<compile_context>
chip_gen: v5e
topology: v5e:2x2
jax: 0.10.0
libtpu: 0.0.40
codegen_flags: <defaults>
</compile_context>

<pallas_src>
import functools

import jax
import jax.numpy as jnp
from jax.experimental import pallas as pl
from jax.experimental.pallas import tpu as pltpu

SCALE = 2        # module default scale=2
K3 = 3           # default_conv kernel size
DK = 6           # DBPN-style (de)conv kernel for scale=2
DPAD = 2         # padding for the k=6, stride=2 (de)convs
DEPTH = 12       # TFM dictionary depth
TM_MAX = 2048    # max lane tile for the conv matmuls
MIN_GRID_STEPS = 2   # v7x: keep both TensorCores busy / give the pipeline depth

_SMEM_SPEC = pl.BlockSpec(memory_space=pltpu.MemorySpace.SMEM)


def _round_up(x, m):
    return (x + m - 1) // m * m


def _tile_cols(M, tm_max=TM_MAX, min_steps=MIN_GRID_STEPS):
    """Lane-tile selection: padding bounded (~<=128+tile slack), grid >= min_steps
    whenever there are enough 128-column groups."""
    M128 = _round_up(M, 128)
    n = max(pl.cdiv(M128, tm_max), min_steps)
    n = max(min(n, M128 // 128), 1)
    tm = _round_up(pl.cdiv(M128, n), 128)
    grid = pl.cdiv(M128, tm)
    return tm, grid, grid * tm


def _alpha_arr(alpha):
    if alpha is None:
        return jnp.zeros((1,), jnp.float32)
    return jnp.reshape(alpha, (1,)).astype(jnp.float32)


# ----------------------------------------------------------------------------
# Pallas kernels
# ----------------------------------------------------------------------------
def _mm_kernel(w_ref, x_ref, b_ref, a_ref, *rest, act, res_mode):
    """out(N, tm) = act(W(N,K) @ X(K,tm) + bias) [optionally +res / res-acc]."""
    if res_mode is None:
        (o_ref,) = rest
        res = None
    else:
        res_ref, o_ref = rest
        res = res_ref[...].astype(jnp.float32)
    acc = jnp.dot(w_ref[...], x_ref[...], preferred_element_type=jnp.float32)
    acc = acc + b_ref[...]                      # bias (N, 1) broadcast over lanes
    if act == "prelu":
        alpha = a_ref[0]                        # scalar from SMEM
        acc = jnp.where(acc >= 0.0, acc, alpha * acc)
    elif act == "relu":
        acc = jnp.maximum(acc, 0.0)
    if res_mode == "add":
        acc = acc + res
    elif res_mode == "rsub":
        acc = res - acc
    o_ref[...] = acc.astype(o_ref.dtype)


def _tfm_kernel(w_ref, x_ref, b_ref, a_ref, d_ref, dT_ref, o_ref):
    """TFM: feat = PReLU(conv); out = (softmax over dict of dict@feat)-match + feat."""
    acc = jnp.dot(w_ref[...], x_ref[...], preferred_element_type=jnp.float32)   # (C, tm)
    acc = acc + b_ref[...]
    alpha = a_ref[0]
    feat = jnp.where(acc >= 0.0, acc, alpha * acc)                               # f32
    logits = jnp.dot(d_ref[...], feat.astype(jnp.bfloat16),
                     preferred_element_type=jnp.float32)                         # (depth, tm)
    logits = logits - jnp.max(logits, axis=0, keepdims=True)
    p = jnp.exp(logits)
    p = p * pl.reciprocal(jnp.sum(p, axis=0, keepdims=True), approx=True)
    matched = jnp.dot(dT_ref[...], p.astype(jnp.bfloat16),
                      preferred_element_type=jnp.float32)                        # (C, tm)
    o_ref[...] = (matched + feat).astype(o_ref.dtype)


def _nl_flash_kernel(th_ref, ph_ref, g_ref, o_ref, m_sc, l_sc, acc_sc,
                     *, tk, hw, padded):
    """Flash-tiled embedded-Gaussian non-local attention.

    Grid = (batch, q_tile, kv_tile); per-column layout (lanes = queries):
      s[j, i]  = sum_c phi[c, j] * theta[c, i]      (kv on sublanes, q on lanes)
      y[c, i]  = sum_j g[c, j] * softmax_j(s)[j, i]
    Online softmax over the kv grid axis; the (HW, HW) matrix is never built."""
    ki = pl.program_id(2)

    @pl.when(ki == 0)
    def _():
        m_sc[...] = jnp.full(m_sc.shape, -jnp.inf, jnp.float32)
        l_sc[...] = jnp.zeros(l_sc.shape, jnp.float32)
        acc_sc[...] = jnp.zeros(acc_sc.shape, jnp.float32)

    s = jax.lax.dot_general(ph_ref[...], th_ref[...], (((0,), (0,)), ((), ())),
                            preferred_element_type=jnp.float32)       # (tk, tq)
    if padded:   # mask zero-padded kv columns (padding is appended per batch)
        kv_idx = ki * tk + jax.lax.broadcasted_iota(jnp.int32, s.shape, 0)
        s = jnp.where(kv_idx < hw, s, -jnp.inf)

    m_prev = m_sc[...]
    m_new = jnp.maximum(m_prev, jnp.max(s, axis=0, keepdims=True))    # (1, tq)
    a = jnp.exp(m_prev - m_new)
    pmat = jnp.exp(s - m_new)                                         # (tk, tq)
    l_sc[...] = a * l_sc[...] + jnp.sum(pmat, axis=0, keepdims=True)
    acc_sc[...] = a * acc_sc[...] + jnp.dot(
        g_ref[...], pmat.astype(jnp.bfloat16), preferred_element_type=jnp.float32)
    m_sc[...] = m_new

    @pl.when(ki == pl.num_programs(2) - 1)
    def _():
        o_ref[...] = (acc_sc[...] *
                      pl.reciprocal(l_sc[...], approx=True)).astype(o_ref.dtype)


def _ca_kernel(x_ref, w1_ref, b1_ref, w2_ref, b2_ref, o_ref, *, inv_hw):
    """Channel attention for one batch: GAP -> 1x1 -> ReLU -> 1x1 -> sigmoid -> scale."""
    x = x_ref[...].astype(jnp.float32)                               # (C, hw)
    pooled = jnp.sum(x, axis=1, keepdims=True) * inv_hw              # (C, 1)
    y1 = jnp.dot(w1_ref[...], pooled, preferred_element_type=jnp.float32) + b1_ref[...]
    y1 = jnp.maximum(y1, 0.0)
    y2 = jnp.dot(w2_ref[...], y1, preferred_element_type=jnp.float32) + b2_ref[...]
    gate = jax.nn.sigmoid(y2)                                        # (C, 1)
    o_ref[...] = (x * gate).astype(o_ref.dtype)


# ----------------------------------------------------------------------------
# Pallas wrappers
# ----------------------------------------------------------------------------
def matmul_bias_act(w, x, b, act="none", alpha=None, res=None, res_mode=None,
                    tm_max=TM_MAX):
    """w:(N,K) x:(K,M) b:(N,) res:(N,M)? -> lane-dense bf16 (N,M), fused epilogue."""
    N, K = w.shape
    M = x.shape[1]
    tm, grid, Mp = _tile_cols(M, tm_max)
    if Mp != M:
        x = jnp.pad(x, ((0, 0), (0, Mp - M)))
        if res is not None:
            res = jnp.pad(res, ((0, 0), (0, Mp - M)))
    in_specs = [
        pl.BlockSpec((N, K), lambda i: (0, 0)),
        pl.BlockSpec((K, tm), lambda i: (0, i)),
        pl.BlockSpec((N, 1), lambda i: (0, 0)),
        _SMEM_SPEC,
    ]
    args = [w.astype(jnp.bfloat16), x.astype(jnp.bfloat16),
            b.reshape(N, 1).astype(jnp.float32), _alpha_arr(alpha)]
    mode = None
    if res is not None:
        in_specs.append(pl.BlockSpec((N, tm), lambda i: (0, i)))
        args.append(res.astype(jnp.bfloat16))
        mode = res_mode
    out = pl.pallas_call(
        functools.partial(_mm_kernel, act=act, res_mode=mode),
        out_shape=jax.ShapeDtypeStruct((N, Mp), jnp.bfloat16),
        grid=(grid,),
        in_specs=in_specs,
        out_specs=pl.BlockSpec((N, tm), lambda i: (0, i)),
        compiler_params=pltpu.CompilerParams(dimension_semantics=("parallel",)),
    )(*args)
    return out if Mp == M else out[:, :M]


def im2col(x, kh, kw, stride, pad):
    """x:(C,B,H,W) bf16 -> patches (C*kh*kw, B*Ho*Wo) bf16. CBHW -> no transposes.
    TODO(synk): move this into the conv kernel (per-tap matmuls on a haloed VMEM
    block) to remove the kh*kw x HBM expansion entirely."""
    C, B, H, W = x.shape
    xp = jnp.pad(x, ((0, 0), (0, 0), (pad, pad), (pad, pad))) if pad else x
    Ho = (H + 2 * pad - kh) // stride + 1
    Wo = (W + 2 * pad - kw) // stride + 1
    taps = []
    for di in range(kh):
        for dj in range(kw):
            taps.append(xp[:, :,
                           di:di + (Ho - 1) * stride + 1:stride,
                           dj:dj + (Wo - 1) * stride + 1:stride])
    pat = jnp.stack(taps, axis=1)                  # (C, kh*kw, B, Ho, Wo)
    return pat.reshape(C * kh * kw, B * Ho * Wo), Ho, Wo


def conv2d(x, w, b, stride=1, pad=0, act="none", alpha=None, res=None, res_mode=None):
    """x:(C,B,H,W) w:(Cout,Cin,kh,kw); optional fused residual (Cout,B,Ho,Wo)."""
    C, B, H, W = x.shape
    Cout, Cin, kh, kw = w.shape
    patches, Ho, Wo = im2col(x.astype(jnp.bfloat16), kh, kw, stride, pad)
    res2 = None if res is None else res.reshape(Cout, B * Ho * Wo)
    out = matmul_bias_act(w.reshape(Cout, Cin * kh * kw), patches, b,
                          act=act, alpha=alpha, res=res2, res_mode=res_mode)
    return out.reshape(Cout, B, Ho, Wo)


def _deconv_phase_weights(w_t):
    """ConvTranspose2d(k=6,s=2,p=2) weight (Cin,Cout,6,6) -> (4*Cout, Cin*9):
    four 3x3 sub-kernels (one per output phase), sub-pixel decomposition."""
    Cin, Cout = w_t.shape[0], w_t.shape[1]
    wf = jnp.transpose(w_t[:, :, ::-1, ::-1], (1, 0, 2, 3))       # (Cout, Cin, 6, 6)
    rows = []
    for qh in (0, 1):
        for qw in (0, 1):
            sub = wf[:, :, (1 - qh)::2, (1 - qw)::2]              # (Cout, Cin, 3, 3)
            rows.append(sub.reshape(Cout, Cin * 9))
    return jnp.concatenate(rows, axis=0)                          # (4*Cout, Cin*9)


def deconv_k6s2(x, w_t, b, act="none", alpha=None):
    """ConvTranspose2d(kernel=6, stride=2, padding=2): one fused matmul computes
    all four output phases on the un-dilated grid, then a bf16 phase interleave."""
    C, B, H, W = x.shape
    Cout = w_t.shape[1]
    patches, _, _ = im2col(x.astype(jnp.bfloat16), 3, 3, 1, 1)    # (C*9, B*H*W)
    wph = _deconv_phase_weights(w_t)                              # (4*Cout, C*9)
    bph = jnp.tile(b, 4)                                          # (4*Cout,)
    out = matmul_bias_act(wph, patches, bph, act=act, alpha=alpha)  # (4*Cout, B*H*W) bf16
    out = out.reshape(2, 2, Cout, B, H, W)
    out = out.transpose(2, 3, 4, 0, 5, 1).reshape(Cout, B, 2 * H, 2 * W)
    return out


def tfm_conv_match(patches, w, b, alpha, dictionary, tm_max=TM_MAX):
    """Fused TFM body: feat = PReLU(W@patches + b); out = match(feat) + feat."""
    Cout, K = w.shape
    depth = dictionary.shape[0]
    M = patches.shape[1]
    tm, grid, Mp = _tile_cols(M, tm_max)
    if Mp != M:
        patches = jnp.pad(patches, ((0, 0), (0, Mp - M)))
    out = pl.pallas_call(
        _tfm_kernel,
        out_shape=jax.ShapeDtypeStruct((Cout, Mp), jnp.bfloat16),
        grid=(grid,),
        in_specs=[
            pl.BlockSpec((Cout, K), lambda i: (0, 0)),
            pl.BlockSpec((K, tm), lambda i: (0, i)),
            pl.BlockSpec((Cout, 1), lambda i: (0, 0)),
            _SMEM_SPEC,
            pl.BlockSpec((depth, Cout), lambda i: (0, 0)),
            pl.BlockSpec((Cout, depth), lambda i: (0, 0)),
        ],
        out_specs=pl.BlockSpec((Cout, tm), lambda i: (0, i)),
        compiler_params=pltpu.CompilerParams(dimension_semantics=("parallel",)),
    )(w.astype(jnp.bfloat16), patches.astype(jnp.bfloat16),
      b.reshape(Cout, 1).astype(jnp.float32), _alpha_arr(alpha),
      dictionary.astype(jnp.bfloat16), dictionary.T.astype(jnp.bfloat16))
    return out if Mp == M else out[:, :M]


def tfm_forward(p, x, i):
    # TODO(synk): exact TFM recursion (index `i`) not in the provided source; i unused.
    C, B, H, W = x.shape
    patches, Ho, Wo = im2col(x.astype(jnp.bfloat16), K3, K3, 1, K3 // 2)
    matched = tfm_conv_match(patches, p["tfm_conv_w"].reshape(C, C * K3 * K3),
                             p["tfm_conv_b"], p["tfm_conv_a"], p["tfm_dict"])
    matched = matched.reshape(C, B, Ho, Wo)
    return deconv_k6s2(matched, p["tfm_up_w"], p["tfm_up_b"],
                       act="prelu", alpha=p["tfm_up_a"])


def _nl_attention(th, ph, g, nb, hw):
    """Flash-tiled non-local attention: th/ph/g (Ci, nb*hw) bf16 -> y (Ci, nb*hw)."""
    ci = th.shape[0]
    hwp = _round_up(hw, 128)

    def prep(a):
        a = a.reshape(ci, nb, hw)
        if hwp != hw:
            a = jnp.pad(a, ((0, 0), (0, 0), (0, hwp - hw)))
        return a.reshape(ci, nb * hwp).astype(jnp.bfloat16)

    thp, php, gp = prep(th), prep(ph), prep(g)
    tq = 128
    for cand in (512, 256, 128):
        if hwp % cand == 0:
            tq = cand
            break
    tk = tq
    n_q = hwp // tq
    n_k = hwp // tk
    kernel = functools.partial(_nl_flash_kernel, tk=tk, hw=hw, padded=(hwp != hw))
    y = pl.pallas_call(
        kernel,
        out_shape=jax.ShapeDtypeStruct((ci, nb * hwp), jnp.bfloat16),
        grid=(nb, n_q, n_k),
        in_specs=[
            pl.BlockSpec((ci, tq), lambda b, qi, ki: (0, b * n_q + qi)),
            pl.BlockSpec((ci, tk), lambda b, qi, ki: (0, b * n_k + ki)),
            pl.BlockSpec((ci, tk), lambda b, qi, ki: (0, b * n_k + ki)),
        ],
        out_specs=pl.BlockSpec((ci, tq), lambda b, qi, ki: (0, b * n_q + qi)),
        scratch_shapes=[pltpu.VMEM((1, tq), jnp.float32),
                        pltpu.VMEM((1, tq), jnp.float32),
                        pltpu.VMEM((ci, tq), jnp.float32)],
        compiler_params=pltpu.CompilerParams(
            dimension_semantics=("parallel", "parallel", "arbitrary")),
    )(thp, php, gp)
    if hwp != hw:
        y = y.reshape(ci, nb, hwp)[:, :, :hw].reshape(ci, nb * hw)
    return y


def srnl_forward(p, x):
    """SRNL = 1x1 theta/phi/g proj -> flash non-local attention -> 1x1 out proj + x."""
    C, B, H, W = x.shape
    HW = H * W
    ci = p["nl_th_w"].shape[0]
    x2 = x.reshape(C, B * HW)
    wp = jnp.concatenate([p["nl_th_w"], p["nl_ph_w"], p["nl_g_w"]], axis=0)   # (3Ci, C)
    bp = jnp.concatenate([p["nl_th_b"], p["nl_ph_b"], p["nl_g_b"]], axis=0)   # (3Ci,)
    tpg = matmul_bias_act(wp, x2, bp, act="none")                             # (3Ci, B*HW) bf16
    th, ph, g = tpg[:ci], tpg[ci:2 * ci], tpg[2 * ci:]
    y = _nl_attention(th, ph, g, B, HW)                                       # (Ci, B*HW) bf16
    out = matmul_bias_act(p["nl_out_w"], y, p["nl_out_b"], act="none",
                          res=x2, res_mode="add")                             # (C, B*HW) bf16
    return out.reshape(C, B, H, W)


def ca_forward(p, x):
    """Squeeze-excite channel attention, one grid step per batch (direct o_ref writes)."""
    C, B, H, W = x.shape
    HW = H * W
    HWp = _round_up(HW, 128)
    Cr = p["ca_w1"].shape[0]
    x2 = x.reshape(C, B, HW)
    if HWp != HW:
        x2 = jnp.pad(x2, ((0, 0), (0, 0), (0, HWp - HW)))   # zeros; mean uses 1/HW
    x2 = x2.reshape(C, B * HWp).astype(jnp.bfloat16)
    out = pl.pallas_call(
        functools.partial(_ca_kernel, inv_hw=1.0 / HW),
        out_shape=jax.ShapeDtypeStruct((C, B * HWp), jnp.bfloat16),
        grid=(B,),
        in_specs=[
            pl.BlockSpec((C, HWp), lambda b: (0, b)),
            pl.BlockSpec((Cr, C), lambda b: (0, 0)),
            pl.BlockSpec((Cr, 1), lambda b: (0, 0)),
            pl.BlockSpec((C, Cr), lambda b: (0, 0)),
            pl.BlockSpec((C, 1), lambda b: (0, 0)),
        ],
        out_specs=pl.BlockSpec((C, HWp), lambda b: (0, b)),
        compiler_params=pltpu.CompilerParams(dimension_semantics=("parallel",)),
    )(x2,
      p["ca_w1"].astype(jnp.float32), p["ca_b1"].reshape(Cr, 1).astype(jnp.float32),
      p["ca_w2"].astype(jnp.float32), p["ca_b2"].reshape(C, 1).astype(jnp.float32))
    if HWp != HW:
        out = out.reshape(C, B, HWp)[:, :, :HW].reshape(C, B * HW)
    return out.reshape(C, B, H, W)


# ----------------------------------------------------------------------------
# Module forward (internal layout: (C, B, H, W), bf16 activations)
# ----------------------------------------------------------------------------
def fusion1_forward(p, x, i):
    b1 = ca_forward(p, tfm_forward(p, x, i))                          # (C,B,2H,2W)
    b2 = deconv_k6s2(srnl_forward(p, x), p["f1_up_w"], p["f1_up_b"],
                     act="prelu", alpha=p["f1_up_a"])                 # (C,B,2H,2W)
    d = b1 - b2          # plain jnp; XLA fuses it with the phase-interleave copy
    # TODO(synk): fuse f1_enc1 + f1_enc2 + residual into one kernel (needs halo).
    e = conv2d(d, p["f1_enc1_w"], p["f1_enc1_b"], stride=1, pad=K3 // 2,
               act="prelu", alpha=p["f1_enc_a"])
    x_fuse = conv2d(e, p["f1_enc2_w"], p["f1_enc2_b"], stride=1, pad=K3 // 2,
                    act="none", res=b1, res_mode="add")               # fused "+ b1"
    return x_fuse


def fmf_forward(p, x_nchw, i=0):
    # NCHW -> CBHW (+ bf16 cast) once at the boundary; inside, the long B*H*W
    # axis is always on lanes and all HBM traffic is bf16.
    x = jnp.transpose(x_nchw, (1, 0, 2, 3)).astype(jnp.bfloat16)      # (C, B, H, W)
    x_fuse = fusion1_forward(p, x, i)                                 # (C, B, 2H, 2W)
    # diff = x - PReLU(downsample(x_fuse))   (rsub fused into the conv epilogue)
    diff = conv2d(x_fuse, p["down_w"], p["down_b"], stride=SCALE, pad=DPAD,
                  act="prelu", alpha=p["down_a"], res=x, res_mode="rsub")
    up = deconv_k6s2(diff, p["enc_up_w"], p["enc_up_b"],
                     act="prelu", alpha=p["enc_up_a"])
    x_up = x_fuse + up      # plain jnp; fused by XLA with the phase interleave
    # TODO(synk): fuse pb_down + pb_conv into one kernel (needs halo).
    pb = conv2d(x_up, p["pb_down_w"], p["pb_down_b"], stride=SCALE, pad=DPAD,
                act="prelu", alpha=p["pb_down_a"])
    x_next = conv2d(pb, p["pb_conv_w"], p["pb_conv_b"], stride=1, pad=K3 // 2,
                    act="prelu", alpha=p["pb_conv_a"])
    return (jnp.transpose(x_next, (1, 0, 2, 3)).astype(jnp.float32),
            jnp.transpose(x_up, (1, 0, 2, 3)).astype(jnp.float32))


# ----------------------------------------------------------------------------
# Deterministic parameter init
# ----------------------------------------------------------------------------
def init_params(key, C=4, depth=DEPTH, reduction=2):
    Ci = max(C // 2, 1)
    Cr = max(C // reduction, 1)
    shapes = {
        "tfm_conv_w": (C, C, K3, K3), "tfm_conv_b": (C,),
        "tfm_dict": (depth, C),
        "tfm_up_w": (C, C, DK, DK), "tfm_up_b": (C,),
        "ca_w1": (Cr, C), "ca_b1": (Cr,),
        "ca_w2": (C, Cr), "ca_b2": (C,),
        "nl_th_w": (Ci, C), "nl_th_b": (Ci,),
        "nl_ph_w": (Ci, C), "nl_ph_b": (Ci,),
        "nl_g_w": (Ci, C), "nl_g_b": (Ci,),
        "nl_out_w": (C, Ci), "nl_out_b": (C,),
        "f1_up_w": (C, C, DK, DK), "f1_up_b": (C,),
        "f1_enc1_w": (C, C, K3, K3), "f1_enc1_b": (C,),
        "f1_enc2_w": (C, C, K3, K3), "f1_enc2_b": (C,),
        "down_w": (C, C, DK, DK), "down_b": (C,),
        "enc_up_w": (C, C, DK, DK), "enc_up_b": (C,),
        "pb_down_w": (C, C, DK, DK), "pb_down_b": (C,),
        "pb_conv_w": (C, C, K3, K3), "pb_conv_b": (C,),
    }
    params = {}
    keys = jax.random.split(key, len(shapes))
    for (name, shp), k in zip(shapes.items(), keys):
        params[name] = 0.1 * jax.random.normal(k, shp, jnp.float32)
    # nn.PReLU() default: a single shared parameter, init 0.25
    for name in ["tfm_conv_a", "tfm_up_a", "f1_up_a", "f1_enc_a",
                 "down_a", "enc_up_a", "pb_down_a", "pb_conv_a"]:
        params[name] = jnp.full((1,), 0.25, jnp.float32)
    return params


# ----------------------------------------------------------------------------
if __name__ == "__main__":
    key = jax.random.PRNGKey(0)
    kx, kp = jax.random.split(key)
    B, C, H, W = 2, 4, 16, 16
    x = jax.random.normal(kx, (B, C, H, W), jnp.float32)
    params = init_params(kp, C=C)

    fwd = jax.jit(lambda p, xx: fmf_forward(p, xx, 0))
    x_next, x_up = fwd(params, x)
    jax.block_until_ready((x_next, x_up))

    assert x_next.shape == (B, C, H, W)
    assert x_up.shape == (B, C, H * SCALE, W * SCALE)
    assert jnp.all(jnp.isfinite(x_next)) and jnp.all(jnp.isfinite(x_up))
    print("KERNEL_OK")
</pallas_src>

<mosaic_0001>
module attributes {stable_mosaic.version = 11 : i64} {
  func.func @_mm_kernel(%arg0: i32, %arg1: memref<6x4xbf16, #tpu.memory_space<vmem>>, %arg2: memref<4x256xbf16, #tpu.memory_space<vmem>>, %arg3: memref<6x1xf32, #tpu.memory_space<vmem>>, %arg4: memref<1xf32, #tpu.memory_space<smem>>, %arg5: memref<6x256xbf16, #tpu.memory_space<vmem>>) attributes {dimension_semantics = [#tpu.dimension_semantics<parallel>], iteration_bounds = array<i64: 2>, scalar_prefetch = 0 : i64, scratch_operands = 0 : i64, tpu.core_type = #tpu.core_type<tc>, window_params = [{pipeline_mode = #tpu.pipeline_mode<synchronous>, transform_indices = @transform_0, window_bounds = array<i64: 6, 4>}, {transform_indices = @transform_1, window_bounds = array<i64: 4, 256>}, {pipeline_mode = #tpu.pipeline_mode<synchronous>, transform_indices = @transform_2, window_bounds = array<i64: 6, 1>}, {transform_indices = @transform_3, window_bounds = array<i64: 1>}, {transform_indices = @transform_4, window_bounds = array<i64: 6, 256>}]} {
    %c0 = arith.constant 0 : index
    %c0_0 = arith.constant 0 : index
    %0 = vector.load %arg1[%c0, %c0_0] : memref<6x4xbf16, #tpu.memory_space<vmem>>, vector<6x4xbf16>
    %c0_1 = arith.constant 0 : index
    %c0_2 = arith.constant 0 : index
    %1 = vector.load %arg2[%c0_1, %c0_2] : memref<4x256xbf16, #tpu.memory_space<vmem>>, vector<4x256xbf16>
    %cst = arith.constant dense<0.000000e+00> : vector<6x256xf32>
    %2 = tpu.matmul %0, %1, %cst {dimension_numbers = #tpu.dot_dimension_numbers<[1], [0], [0], [1], [0, 0, 1, 1], [], []>} : vector<6x4xbf16>, vector<4x256xbf16>, vector<6x256xf32> -> vector<6x256xf32>
    %c0_3 = arith.constant 0 : index
    %c0_4 = arith.constant 0 : index
    %3 = vector.load %arg3[%c0_3, %c0_4] : memref<6x1xf32, #tpu.memory_space<vmem>>, vector<6x1xf32>
    %4 = vector.broadcast %3 : vector<6x1xf32> to vector<6x256xf32>
    %5 = arith.addf %2, %4 : vector<6x256xf32>
    %6 = arith.truncf %5 : vector<6x256xf32> to vector<6x256xbf16>
    %c0_5 = arith.constant 0 : index
    %c0_6 = arith.constant 0 : index
    %7 = vector.load %arg5[%c0_5, %c0_6] : memref<6x256xbf16, #tpu.memory_space<vmem>>, vector<6x256xbf16>
    tpu.vector_store %arg5[%c0_5, %c0_6], %6 {strides = array<i32>} : memref<6x256xbf16, #tpu.memory_space<vmem>>, vector<6x256xbf16>,
    return
  }
  func.func @transform_0(%arg0: i32) -> (i32, i32) {
    %c0_i32 = arith.constant 0 : i32
    %c0_i32_0 = arith.constant 0 : i32
    %c0_i32_1 = arith.constant 0 : i32
    return %c0_i32, %c0_i32_0 : i32, i32
  }
  func.func @transform_1(%arg0: i32) -> (i32, i32) {
    %c0_i32 = arith.constant 0 : i32
    %c0_i32_0 = arith.constant 0 : i32
    return %c0_i32, %arg0 : i32, i32
  }
  func.func @transform_2(%arg0: i32) -> (i32, i32) {
    %c0_i32 = arith.constant 0 : i32
    %c0_i32_0 = arith.constant 0 : i32
    %c0_i32_1 = arith.constant 0 : i32
    return %c0_i32, %c0_i32_0 : i32, i32
  }
  func.func @transform_3(%arg0: i32) -> i32 {
    %c0_i32 = arith.constant 0 : i32
    %c0_i32_0 = arith.constant 0 : i32
    return %c0_i32 : i32
  }
  func.func @transform_4(%arg0: i32) -> (i32, i32) {
    %c0_i32 = arith.constant 0 : i32
    %c0_i32_0 = arith.constant 0 : i32
    return %c0_i32, %arg0 : i32, i32
  }
}

module attributes {stable_mosaic.version = 11 : i64} {
  func.func @_mm_kernel(%arg0: i32, %arg1: memref<4x2xbf16, #tpu.memory_space<vmem>>, %arg2: memref<2x256xbf16, #tpu.memory_space<vmem>>, %arg3: memref<4x1xf32, #tpu.memory_space<vmem>>, %arg4: memref<1xf32, #tpu.memory_space<smem>>, %arg5: memref<4x256xbf16, #tpu.memory_space<vmem>>, %arg6: memref<4x256xbf16, #tpu.memory_space<vmem>>) attributes {dimension_semantics = [#tpu.dimension_semantics<parallel>], iteration_bounds = array<i64: 2>, scalar_prefetch = 0 : i64, scratch_operands = 0 : i64, tpu.core_type = #tpu.core_type<tc>, window_params = [{pipeline_mode = #tpu.pipeline_mode<synchronous>, transform_indices = @transform_0, window_bounds = array<i64: 4, 2>}, {transform_indices = @transform_1, window_bounds = array<i64: 2, 256>}, {pipeline_mode = #tpu.pipeline_mode<synchronous>, transform_indices = @transform_2, window_bounds = array<i64: 4, 1>}, {transform_indices = @transform_3, window_bounds = array<i64: 1>}, {transform_indices = @transform_4, window_bounds = array<i64: 4, 256>}, {transform_indices = @transform_5, window_bounds = array<i64: 4, 256>}]} {
    %c0 = arith.constant 0 : index
    %c0_0 = arith.constant 0 : index
    %0 = vector.load %arg5[%c0, %c0_0] : memref<4x256xbf16, #tpu.memory_space<vmem>>, vector<4x256xbf16>
    %1 = arith.extf %0 : vector<4x256xbf16> to vector<4x256xf32>
    %c0_1 = arith.constant 0 : index
    %c0_2 = arith.constant 0 : index
    %2 = vector.load %arg1[%c0_1, %c0_2] : memref<4x2xbf16, #tpu.memory_space<vmem>>, vector<4x2xbf16>
    %c0_3 = arith.constant 0 : index
    %c0_4 = arith.constant 0 : index
    %3 = vector.load %arg2[%c0_3, %c0_4] : memref<2x256xbf16, #tpu.memory_space<vmem>>, vector<2x256xbf16>
    %cst = arith.constant dense<0.000000e+00> : vector<4x256xf32>
    %4 = tpu.matmul %2, %3, %cst {dimension_numbers = #tpu.dot_dimension_numbers<[1], [0], [0], [1], [0, 0, 1, 1], [], []>} : vector<4x2xbf16>, vector<2x256xbf16>, vector<4x256xf32> -> vector<4x256xf32>
    %c0_5 = arith.constant 0 : index
    %c0_6 = arith.constant 0 : index
    %5 = vector.load %arg3[%c0_5, %c0_6] : memref<4x1xf32, #tpu.memory_space<vmem>>, vector<4x1xf32>
    %6 = vector.broadcast %5 : vector<4x1xf32> to vector<4x256xf32>
    %7 = arith.addf %4, %6 : vector<4x256xf32>
    %8 = arith.addf %7, %1 : vector<4x256xf32>
    %9 = arith.truncf %8 : vector<4x256xf32> to vector<4x256xbf16>
    %c0_7 = arith.constant 0 : index
    %c0_8 = arith.constant 0 : index
    %10 = vector.load %arg6[%c0_7, %c0_8] : memref<4x256xbf16, #tpu.memory_space<vmem>>, vector<4x256xbf16>
    tpu.vector_store %arg6[%c0_7, %c0_8], %9 {strides = array<i32>} : memref<4x256xbf16, #tpu.memory_space<vmem>>, vector<4x256xbf16>,
    return
  }
  func.func @transform_0(%arg0: i32) -> (i32, i32) {
    %c0_i32 = arith.constant 0 : i32
    %c0_i32_0 = arith.constant 0 : i32
    %c0_i32_1 = arith.constant 0 : i32
    return %c0_i32, %c0_i32_0 : i32, i32
  }
  func.func @transform_1(%arg0: i32) -> (i32, i32) {
    %c0_i32 = arith.constant 0 : i32
    %c0_i32_0 = arith.constant 0 : i32
    return %c0_i32, %arg0 : i32, i32
  }
  func.func @transform_2(%arg0: i32) -> (i32, i32) {
    %c0_i32 = arith.constant 0 : i32
    %c0_i32_0 = arith.constant 0 : i32
    %c0_i32_1 = arith.constant 0 : i32
    return %c0_i32, %c0_i32_0 : i32, i32
  }
  func.func @transform_3(%arg0: i32) -> i32 {
    %c0_i32 = arith.constant 0 : i32
    %c0_i32_0 = arith.constant 0 : i32
    return %c0_i32 : i32
  }
  func.func @transform_4(%arg0: i32) -> (i32, i32) {
    %c0_i32 = arith.constant 0 : i32
    %c0_i32_0 = arith.constant 0 : i32
    return %c0_i32, %arg0 : i32, i32
  }
  func.func @transform_5(%arg0: i32) -> (i32, i32) {
    %c0_i32 = arith.constant 0 : i32
    %c0_i32_0 = arith.constant 0 : i32
    return %c0_i32, %arg0 : i32, i32
  }
}

module attributes {stable_mosaic.version = 11 : i64} {
  func.func @_nl_flash_kernel(%arg0: i32, %arg1: i32, %arg2: i32, %arg3: memref<2x256xbf16, #tpu.memory_space<vmem>>, %arg4: memref<2x256xbf16, #tpu.memory_space<vmem>>, %arg5: memref<2x256xbf16, #tpu.memory_space<vmem>>, %arg6: memref<2x256xbf16, #tpu.memory_space<vmem>>, %arg7: memref<1x256xf32, #tpu.memory_space<vmem>>, %arg8: memref<1x256xf32, #tpu.memory_space<vmem>>, %arg9: memref<2x256xf32, #tpu.memory_space<vmem>>) attributes {dimension_semantics = [#tpu.dimension_semantics<parallel>, #tpu.dimension_semantics<parallel>, #tpu.dimension_semantics<arbitrary>], iteration_bounds = array<i64: 2, 1, 1>, scalar_prefetch = 0 : i64, scratch_operands = 3 : i64, tpu.core_type = #tpu.core_type<tc>, window_params = [{transform_indices = @transform_0, window_bounds = array<i64: 2, 256>}, {transform_indices = @transform_1, window_bounds = array<i64: 2, 256>}, {transform_indices = @transform_2, window_bounds = array<i64: 2, 256>}, {transform_indices = @transform_3, window_bounds = array<i64: 2, 256>}]} {
    %c0_i32 = arith.constant 0 : i32
    %0 = arith.cmpi eq, %arg2, %c0_i32 : i32
    %1 = arith.extui %0 : i1 to i32
    %c0_i32_0 = arith.constant 0 : i32
    %2 = arith.cmpi ne, %1, %c0_i32_0 : i32
    scf.if %2 {
      %cst_23 = arith.constant 0xFF800000 : f32
      %33 = vector.broadcast %cst_23 : f32 to vector<1x256xf32>
      %c0_24 = arith.constant 0 : index
      %c0_25 = arith.constant 0 : index
      %34 = vector.load %arg7[%c0_24, %c0_25] : memref<1x256xf32, #tpu.memory_space<vmem>>, vector<1x256xf32>
      tpu.vector_store %arg7[%c0_24, %c0_25], %33 {strides = array<i32>} : memref<1x256xf32, #tpu.memory_space<vmem>>, vector<1x256xf32>,
      %cst_26 = arith.constant 0.000000e+00 : f32
      %35 = vector.broadcast %cst_26 : f32 to vector<1x256xf32>
      %c0_27 = arith.constant 0 : index
      %c0_28 = arith.constant 0 : index
      %36 = vector.load %arg8[%c0_27, %c0_28] : memref<1x256xf32, #tpu.memory_space<vmem>>, vector<1x256xf32>
      tpu.vector_store %arg8[%c0_27, %c0_28], %35 {strides = array<i32>} : memref<1x256xf32, #tpu.memory_space<vmem>>, vector<1x256xf32>,
      %cst_29 = arith.constant 0.000000e+00 : f32
      %37 = vector.broadcast %cst_29 : f32 to vector<2x256xf32>
      %c0_30 = arith.constant 0 : index
      %c0_31 = arith.constant 0 : index
      %38 = vector.load %arg9[%c0_30, %c0_31] : memref<2x256xf32, #tpu.memory_space<vmem>>, vector<2x256xf32>
      tpu.vector_store %arg9[%c0_30, %c0_31], %37 {strides = array<i32>} : memref<2x256xf32, #tpu.memory_space<vmem>>, vector<2x256xf32>,
    } else {
    }
    %c0 = arith.constant 0 : index
    %c0_1 = arith.constant 0 : index
    %3 = vector.load %arg4[%c0, %c0_1] : memref<2x256xbf16, #tpu.memory_space<vmem>>, vector<2x256xbf16>
    %c0_2 = arith.constant 0 : index
    %c0_3 = arith.constant 0 : index
    %4 = vector.load %arg3[%c0_2, %c0_3] : memref<2x256xbf16, #tpu.memory_space<vmem>>, vector<2x256xbf16>
    %cst = arith.constant dense<0.000000e+00> : vector<256x256xf32>
    %5 = tpu.matmul %3, %4, %cst {dimension_numbers = #tpu.dot_dimension_numbers<[0], [0], [1], [1], [0, 1, 1, 1], [], []>} : vector<2x256xbf16>, vector<2x256xbf16>, vector<256x256xf32> -> vector<256x256xf32>
    %c0_4 = arith.constant 0 : index
    %c0_5 = arith.constant 0 : index
    %6 = vector.load %arg7[%c0_4, %c0_5] : memref<1x256xf32, #tpu.memory_space<vmem>>, vector<1x256xf32>
    %cst_6 = arith.constant dense<0xFF800000> : vector<256xf32>
    %7 = vector.multi_reduction <maximumf>, %5, %cst_6 [0] : vector<256x256xf32> to vector<256xf32>
    %8 = vector.shape_cast %7 : vector<256xf32> to vector<1x256xf32>
    %9 = arith.maximumf %6, %8 : vector<1x256xf32>
    %10 = arith.subf %6, %9 : vector<1x256xf32>
    %11 = math.exp %10 : vector<1x256xf32>
    %12 = vector.broadcast %9 : vector<1x256xf32> to vector<256x256xf32>
    %13 = arith.subf %5, %12 : vector<256x256xf32>
    %14 = math.exp %13 : vector<256x256xf32>
    %c0_7 = arith.constant 0 : index
    %c0_8 = arith.constant 0 : index
    %15 = vector.load %arg8[%c0_7, %c0_8] : memref<1x256xf32, #tpu.memory_space<vmem>>, vector<1x256xf32>
    %16 = arith.mulf %11, %15 : vector<1x256xf32>
    %cst_9 = arith.constant dense<0.000000e+00> : vector<256xf32>
    %17 = vector.multi_reduction <add>, %14, %cst_9 [0] : vector<256x256xf32> to vector<256xf32>
    %18 = vector.shape_cast %17 : vector<256xf32> to vector<1x256xf32>
    %19 = arith.addf %16, %18 : vector<1x256xf32>
    %c0_10 = arith.constant 0 : index
    %c0_11 = arith.constant 0 : index
    %20 = vector.load %arg8[%c0_10, %c0_11] : memref<1x256xf32, #tpu.memory_space<vmem>>, vector<1x256xf32>
    tpu.vector_store %arg8[%c0_10, %c0_11], %19 {strides = array<i32>} : memref<1x256xf32, #tpu.memory_space<vmem>>, vector<1x256xf32>,
    %c0_12 = arith.constant 0 : index
    %c0_13 = arith.constant 0 : index
    %21 = vector.load %arg9[%c0_12, %c0_13] : memref<2x256xf32, #tpu.memory_space<vmem>>, vector<2x256xf32>
    %22 = vector.broadcast %11 : vector<1x256xf32> to vector<2x256xf32>
    %23 = arith.mulf %22, %21 : vector<2x256xf32>
    %c0_14 = arith.constant 0 : index
    %c0_15 = arith.constant 0 : index
    %24 = vector.load %arg5[%c0_14, %c0_15] : memref<2x256xbf16, #tpu.memory_space<vmem>>, vector<2x256xbf16>
    %25 = arith.truncf %14 : vector<256x256xf32> to vector<256x256xbf16>
    %cst_16 = arith.constant dense<0.000000e+00> : vector<2x256xf32>
    %26 = tpu.matmul %24, %25, %cst_16 {dimension_numbers = #tpu.dot_dimension_numbers<[1], [0], [0], [1], [0, 0, 1, 1], [], []>} : vector<2x256xbf16>, vector<256x256xbf16>, vector<2x256xf32> -> vector<2x256xf32>
    %27 = arith.addf %23, %26 : vector<2x256xf32>
    %c0_17 = arith.constant 0 : index
    %c0_18 = arith.constant 0 : index
    %28 = vector.load %arg9[%c0_17, %c0_18] : memref<2x256xf32, #tpu.memory_space<vmem>>, vector<2x256xf32>
    tpu.vector_store %arg9[%c0_17, %c0_18], %27 {strides = array<i32>} : memref<2x256xf32, #tpu.memory_space<vmem>>, vector<2x256xf32>,
    %c0_19 = arith.constant 0 : index
    %c0_20 = arith.constant 0 : index
    %29 = vector.load %arg7[%c0_19, %c0_20] : memref<1x256xf32, #tpu.memory_space<vmem>>, vector<1x256xf32>
    tpu.vector_store %arg7[%c0_19, %c0_20], %9 {strides = array<i32>} : memref<1x256xf32, #tpu.memory_space<vmem>>, vector<1x256xf32>,
    %c0_i32_21 = arith.constant 0 : i32
    %30 = arith.cmpi eq, %arg2, %c0_i32_21 : i32
    %31 = arith.extui %30 : i1 to i32
    %c0_i32_22 = arith.constant 0 : i32
    %32 = arith.cmpi ne, %31, %c0_i32_22 : i32
    scf.if %32 {
      %c0_23 = arith.constant 0 : index
      %c0_24 = arith.constant 0 : index
      %33 = vector.load %arg9[%c0_23, %c0_24] : memref<2x256xf32, #tpu.memory_space<vmem>>, vector<2x256xf32>
      %c0_25 = arith.constant 0 : index
      %c0_26 = arith.constant 0 : index
      %34 = vector.load %arg8[%c0_25, %c0_26] : memref<1x256xf32, #tpu.memory_space<vmem>>, vector<1x256xf32>
      %35 = tpu.reciprocal %34 {approx = true} : vector<1x256xf32> -> vector<1x256xf32>
      %36 = vector.broadcast %35 : vector<1x256xf32> to vector<2x256xf32>
      %37 = arith.mulf %33, %36 : vector<2x256xf32>
      %38 = arith.truncf %37 : vector<2x256xf32> to vector<2x256xbf16>
      %c0_27 = arith.constant 0 : index
      %c0_28 = arith.constant 0 : index
      %39 = vector.load %arg6[%c0_27, %c0_28] : memref<2x256xbf16, #tpu.memory_space<vmem>>, vector<2x256xbf16>
      tpu.vector_store %arg6[%c0_27, %c0_28], %38 {strides = array<i32>} : memref<2x256xbf16, #tpu.memory_space<vmem>>, vector<2x256xbf16>,
    } else {
    }
    return
  }
  func.func @transform_0(%arg0: i32, %arg1: i32, %arg2: i32) -> (i32, i32) {
    %c1_i32 = arith.constant 1 : i32
    %0 = arith.muli %arg0, %c1_i32 : i32
    %1 = arith.addi %0, %arg1 : i32
    %c0_i32 = arith.constant 0 : i32
    %c0_i32_0 = arith.constant 0 : i32
    return %c0_i32, %1 : i32, i32
  }
  func.func @transform_1(%arg0: i32, %arg1: i32, %arg2: i32) -> (i32, i32) {
    %c1_i32 = arith.constant 1 : i32
    %0 = arith.muli %arg0, %c1_i32 : i32
    %1 = arith.addi %0, %arg2 : i32
    %c0_i32 = arith.constant 0 : i32
    %c0_i32_0 = arith.constant 0 : i32
    return %c0_i32, %1 : i32, i32
  }
  func.func @transform_2(%arg0: i32, %arg1: i32, %arg2: i32) -> (i32, i32) {
    %c1_i32 = arith.constant 1 : i32
    %0 = arith.muli %arg0, %c1_i32 : i32
    %1 = arith.addi %0, %arg2 : i32
    %c0_i32 = arith.constant 0 : i32
    %c0_i32_0 = arith.constant 0 : i32
    return %c0_i32, %1 : i32, i32
  }
  func.func @transform_3(%arg0: i32, %arg1: i32, %arg2: i32) -> (i32, i32) {
    %c1_i32 = arith.constant 1 : i32
    %0 = arith.muli %arg0, %c1_i32 : i32
    %1 = arith.addi %0, %arg1 : i32
    %c0_i32 = arith.constant 0 : i32
    %c0_i32_0 = arith.constant 0 : i32
    return %c0_i32, %1 : i32, i32
  }
}

module attributes {stable_mosaic.version = 11 : i64} {
  func.func @_mm_kernel(%arg0: i32, %arg1: memref<16x36xbf16, #tpu.memory_space<vmem>>, %arg2: memref<36x256xbf16, #tpu.memory_space<vmem>>, %arg3: memref<16x1xf32, #tpu.memory_space<vmem>>, %arg4: memref<1xf32, #tpu.memory_space<smem>>, %arg5: memref<16x256xbf16, #tpu.memory_space<vmem>>) attributes {dimension_semantics = [#tpu.dimension_semantics<parallel>], iteration_bounds = array<i64: 2>, scalar_prefetch = 0 : i64, scratch_operands = 0 : i64, tpu.core_type = #tpu.core_type<tc>, window_params = [{pipeline_mode = #tpu.pipeline_mode<synchronous>, transform_indices = @transform_0, window_bounds = array<i64: 16, 36>}, {transform_indices = @transform_1, window_bounds = array<i64: 36, 256>}, {pipeline_mode = #tpu.pipeline_mode<synchronous>, transform_indices = @transform_2, window_bounds = array<i64: 16, 1>}, {transform_indices = @transform_3, window_bounds = array<i64: 1>}, {transform_indices = @transform_4, window_bounds = array<i64: 16, 256>}]} {
    %c0 = arith.constant 0 : index
    %c0_0 = arith.constant 0 : index
    %0 = vector.load %arg1[%c0, %c0_0] : memref<16x36xbf16, #tpu.memory_space<vmem>>, vector<16x36xbf16>
    %c0_1 = arith.constant 0 : index
    %c0_2 = arith.constant 0 : index
    %1 = vector.load %arg2[%c0_1, %c0_2] : memref<36x256xbf16, #tpu.memory_space<vmem>>, vector<36x256xbf16>
    %cst = arith.constant dense<0.000000e+00> : vector<16x256xf32>
    %2 = tpu.matmul %0, %1, %cst {dimension_numbers = #tpu.dot_dimension_numbers<[1], [0], [0], [1], [0, 0, 1, 1], [], []>} : vector<16x36xbf16>, vector<36x256xbf16>, vector<16x256xf32> -> vector<16x256xf32>
    %c0_3 = arith.constant 0 : index
    %c0_4 = arith.constant 0 : index
    %3 = vector.load %arg3[%c0_3, %c0_4] : memref<16x1xf32, #tpu.memory_space<vmem>>, vector<16x1xf32>
    %4 = vector.broadcast %3 : vector<16x1xf32> to vector<16x256xf32>
    %5 = arith.addf %2, %4 : vector<16x256xf32>
    %c0_5 = arith.constant 0 : index
    %6 = memref.load %arg4[%c0_5] : memref<1xf32, #tpu.memory_space<smem>>
    %cst_6 = arith.constant 0.000000e+00 : f32
    %7 = vector.broadcast %cst_6 : f32 to vector<16x256xf32>
    %8 = arith.cmpf oge, %5, %7 : vector<16x256xf32>
    %9 = vector.broadcast %6 : f32 to vector<16x256xf32>
    %10 = arith.mulf %9, %5 : vector<16x256xf32>
    %11 = arith.select %8, %5, %10 : vector<16x256xi1>, vector<16x256xf32>
    %12 = arith.truncf %11 : vector<16x256xf32> to vector<16x256xbf16>
    %c0_7 = arith.constant 0 : index
    %c0_8 = arith.constant 0 : index
    %13 = vector.load %arg5[%c0_7, %c0_8] : memref<16x256xbf16, #tpu.memory_space<vmem>>, vector<16x256xbf16>
    tpu.vector_store %arg5[%c0_7, %c0_8], %12 {strides = array<i32>} : memref<16x256xbf16, #tpu.memory_space<vmem>>, vector<16x256xbf16>,
    return
  }
  func.func @transform_0(%arg0: i32) -> (i32, i32) {
    %c0_i32 = arith.constant 0 : i32
    %c0_i32_0 = arith.constant 0 : i32
    %c0_i32_1 = arith.constant 0 : i32
    return %c0_i32, %c0_i32_0 : i32, i32
  }
  func.func @transform_1(%arg0: i32) -> (i32, i32) {
    %c0_i32 = arith.constant 0 : i32
    %c0_i32_0 = arith.constant 0 : i32
    return %c0_i32, %arg0 : i32, i32
  }
  func.func @transform_2(%arg0: i32) -> (i32, i32) {
    %c0_i32 = arith.constant 0 : i32
    %c0_i32_0 = arith.constant 0 : i32
    %c0_i32_1 = arith.constant 0 : i32
    return %c0_i32, %c0_i32_0 : i32, i32
  }
  func.func @transform_3(%arg0: i32) -> i32 {
    %c0_i32 = arith.constant 0 : i32
    %c0_i32_0 = arith.constant 0 : i32
    return %c0_i32 : i32
  }
  func.func @transform_4(%arg0: i32) -> (i32, i32) {
    %c0_i32 = arith.constant 0 : i32
    %c0_i32_0 = arith.constant 0 : i32
    return %c0_i32, %arg0 : i32, i32
  }
}

module attributes {stable_mosaic.version = 11 : i64} {
  func.func @_tfm_kernel(%arg0: i32, %arg1: memref<4x36xbf16, #tpu.memory_space<vmem>>, %arg2: memref<36x256xbf16, #tpu.memory_space<vmem>>, %arg3: memref<4x1xf32, #tpu.memory_space<vmem>>, %arg4: memref<1xf32, #tpu.memory_space<smem>>, %arg5: memref<12x4xbf16, #tpu.memory_space<vmem>>, %arg6: memref<4x12xbf16, #tpu.memory_space<vmem>>, %arg7: memref<4x256xbf16, #tpu.memory_space<vmem>>) attributes {dimension_semantics = [#tpu.dimension_semantics<parallel>], iteration_bounds = array<i64: 2>, scalar_prefetch = 0 : i64, scratch_operands = 0 : i64, tpu.core_type = #tpu.core_type<tc>, window_params = [{pipeline_mode = #tpu.pipeline_mode<synchronous>, transform_indices = @transform_0, window_bounds = array<i64: 4, 36>}, {transform_indices = @transform_1, window_bounds = array<i64: 36, 256>}, {pipeline_mode = #tpu.pipeline_mode<synchronous>, transform_indices = @transform_2, window_bounds = array<i64: 4, 1>}, {transform_indices = @transform_3, window_bounds = array<i64: 1>}, {pipeline_mode = #tpu.pipeline_mode<synchronous>, transform_indices = @transform_4, window_bounds = array<i64: 12, 4>}, {pipeline_mode = #tpu.pipeline_mode<synchronous>, transform_indices = @transform_5, window_bounds = array<i64: 4, 12>}, {transform_indices = @transform_6, window_bounds = array<i64: 4, 256>}]} {
    %c0 = arith.constant 0 : index
    %c0_0 = arith.constant 0 : index
    %0 = vector.load %arg1[%c0, %c0_0] : memref<4x36xbf16, #tpu.memory_space<vmem>>, vector<4x36xbf16>
    %c0_1 = arith.constant 0 : index
    %c0_2 = arith.constant 0 : index
    %1 = vector.load %arg2[%c0_1, %c0_2] : memref<36x256xbf16, #tpu.memory_space<vmem>>, vector<36x256xbf16>
    %cst = arith.constant dense<0.000000e+00> : vector<4x256xf32>
    %2 = tpu.matmul %0, %1, %cst {dimension_numbers = #tpu.dot_dimension_numbers<[1], [0], [0], [1], [0, 0, 1, 1], [], []>} : vector<4x36xbf16>, vector<36x256xbf16>, vector<4x256xf32> -> vector<4x256xf32>
    %c0_3 = arith.constant 0 : index
    %c0_4 = arith.constant 0 : index
    %3 = vector.load %arg3[%c0_3, %c0_4] : memref<4x1xf32, #tpu.memory_space<vmem>>, vector<4x1xf32>
    %4 = vector.broadcast %3 : vector<4x1xf32> to vector<4x256xf32>
    %5 = arith.addf %2, %4 : vector<4x256xf32>
    %c0_5 = arith.constant 0 : index
    %6 = memref.load %arg4[%c0_5] : memref<1xf32, #tpu.memory_space<smem>>
    %cst_6 = arith.constant 0.000000e+00 : f32
    %7 = vector.broadcast %cst_6 : f32 to vector<4x256xf32>
    %8 = arith.cmpf oge, %5, %7 : vector<4x256xf32>
    %9 = vector.broadcast %6 : f32 to vector<4x256xf32>
    %10 = arith.mulf %9, %5 : vector<4x256xf32>
    %11 = arith.select %8, %5, %10 : vector<4x256xi1>, vector<4x256xf32>
    %c0_7 = arith.constant 0 : index
    %c0_8 = arith.constant 0 : index
    %12 = vector.load %arg5[%c0_7, %c0_8] : memref<12x4xbf16, #tpu.memory_space<vmem>>, vector<12x4xbf16>
    %13 = arith.truncf %11 : vector<4x256xf32> to vector<4x256xbf16>
    %cst_9 = arith.constant dense<0.000000e+00> : vector<12x256xf32>
    %14 = tpu.matmul %12, %13, %cst_9 {dimension_numbers = #tpu.dot_dimension_numbers<[1], [0], [0], [1], [0, 0, 1, 1], [], []>} : vector<12x4xbf16>, vector<4x256xbf16>, vector<12x256xf32> -> vector<12x256xf32>
    %cst_10 = arith.constant dense<0xFF800000> : vector<256xf32>
    %15 = vector.multi_reduction <maximumf>, %14, %cst_10 [0] : vector<12x256xf32> to vector<256xf32>
    %16 = vector.shape_cast %15 : vector<256xf32> to vector<1x256xf32>
    %17 = vector.broadcast %16 : vector<1x256xf32> to vector<12x256xf32>
    %18 = arith.subf %14, %17 : vector<12x256xf32>
    %19 = math.exp %18 : vector<12x256xf32>
    %cst_11 = arith.constant dense<0.000000e+00> : vector<256xf32>
    %20 = vector.multi_reduction <add>, %19, %cst_11 [0] : vector<12x256xf32> to vector<256xf32>
    %21 = vector.shape_cast %20 : vector<256xf32> to vector<1x256xf32>
    %22 = tpu.reciprocal %21 {approx = true} : vector<1x256xf32> -> vector<1x256xf32>
    %23 = vector.broadcast %22 : vector<1x256xf32> to vector<12x256xf32>
    %24 = arith.mulf %19, %23 : vector<12x256xf32>
    %c0_12 = arith.constant 0 : index
    %c0_13 = arith.constant 0 : index
    %25 = vector.load %arg6[%c0_12, %c0_13] : memref<4x12xbf16, #tpu.memory_space<vmem>>, vector<4x12xbf16>
    %26 = arith.truncf %24 : vector<12x256xf32> to vector<12x256xbf16>
    %cst_14 = arith.constant dense<0.000000e+00> : vector<4x256xf32>
    %27 = tpu.matmul %25, %26, %cst_14 {dimension_numbers = #tpu.dot_dimension_numbers<[1], [0], [0], [1], [0, 0, 1, 1], [], []>} : vector<4x12xbf16>, vector<12x256xbf16>, vector<4x256xf32> -> vector<4x256xf32>
    %28 = arith.addf %27, %11 : vector<4x256xf32>
    %29 = arith.truncf %28 : vector<4x256xf32> to vector<4x256xbf16>
    %c0_15 = arith.constant 0 : index
    %c0_16 = arith.constant 0 : index
    %30 = vector.load %arg7[%c0_15, %c0_16] : memref<4x256xbf16, #tpu.memory_space<vmem>>, vector<4x256xbf16>
    tpu.vector_store %arg7[%c0_15, %c0_16], %29 {strides = array<i32>} : memref<4x256xbf16, #tpu.memory_space<vmem>>, vector<4x256xbf16>,
    return
  }
  func.func @transform_0(%arg0: i32) -> (i32, i32) {
    %c0_i32 = arith.constant 0 : i32
    %c0_i32_0 = arith.constant 0 : i32
    %c0_i32_1 = arith.constant 0 : i32
    return %c0_i32, %c0_i32_0 : i32, i32
  }
  func.func @transform_1(%arg0: i32) -> (i32, i32) {
    %c0_i32 = arith.constant 0 : i32
    %c0_i32_0 = arith.constant 0 : i32
    return %c0_i32, %arg0 : i32, i32
  }
  func.func @transform_2(%arg0: i32) -> (i32, i32) {
    %c0_i32 = arith.constant 0 : i32
    %c0_i32_0 = arith.constant 0 : i32
    %c0_i32_1 = arith.constant 0 : i32
    return %c0_i32, %c0_i32_0 : i32, i32
  }
  func.func @transform_3(%arg0: i32) -> i32 {
    %c0_i32 = arith.constant 0 : i32
    %c0_i32_0 = arith.constant 0 : i32
    return %c0_i32 : i32
  }
  func.func @transform_4(%arg0: i32) -> (i32, i32) {
    %c0_i32 = arith.constant 0 : i32
    %c0_i32_0 = arith.constant 0 : i32
    %c0_i32_1 = arith.constant 0 : i32
    return %c0_i32, %c0_i32_0 : i32, i32
  }
  func.func @transform_5(%arg0: i32) -> (i32, i32) {
    %c0_i32 = arith.constant 0 : i32
    %c0_i32_0 = arith.constant 0 : i32
    %c0_i32_1 = arith.constant 0 : i32
    return %c0_i32, %c0_i32_0 : i32, i32
  }
  func.func @transform_6(%arg0: i32) -> (i32, i32) {
    %c0_i32 = arith.constant 0 : i32
    %c0_i32_0 = arith.constant 0 : i32
    return %c0_i32, %arg0 : i32, i32
  }
}

module attributes {stable_mosaic.version = 11 : i64} {
  func.func @_ca_kernel(%arg0: i32, %arg1: memref<4x1024xbf16, #tpu.memory_space<vmem>>, %arg2: memref<2x4xf32, #tpu.memory_space<vmem>>, %arg3: memref<2x1xf32, #tpu.memory_space<vmem>>, %arg4: memref<4x2xf32, #tpu.memory_space<vmem>>, %arg5: memref<4x1xf32, #tpu.memory_space<vmem>>, %arg6: memref<4x1024xbf16, #tpu.memory_space<vmem>>) attributes {dimension_semantics = [#tpu.dimension_semantics<parallel>], iteration_bounds = array<i64: 2>, scalar_prefetch = 0 : i64, scratch_operands = 0 : i64, tpu.core_type = #tpu.core_type<tc>, window_params = [{transform_indices = @transform_0, window_bounds = array<i64: 4, 1024>}, {pipeline_mode = #tpu.pipeline_mode<synchronous>, transform_indices = @transform_1, window_bounds = array<i64: 2, 4>}, {pipeline_mode = #tpu.pipeline_mode<synchronous>, transform_indices = @transform_2, window_bounds = array<i64: 2, 1>}, {pipeline_mode = #tpu.pipeline_mode<synchronous>, transform_indices = @transform_3, window_bounds = array<i64: 4, 2>}, {pipeline_mode = #tpu.pipeline_mode<synchronous>, transform_indices = @transform_4, window_bounds = array<i64: 4, 1>}, {transform_indices = @transform_5, window_bounds = array<i64: 4, 1024>}]} {
    %c0 = arith.constant 0 : index
    %c0_0 = arith.constant 0 : index
    %0 = vector.load %arg1[%c0, %c0_0] : memref<4x1024xbf16, #tpu.memory_space<vmem>>, vector<4x1024xbf16>
    %1 = arith.extf %0 : vector<4x1024xbf16> to vector<4x1024xf32>
    %cst = arith.constant dense<0.000000e+00> : vector<4xf32>
    %2 = vector.multi_reduction <add>, %1, %cst [1] : vector<4x1024xf32> to vector<4xf32>
    %3 = vector.shape_cast %2 : vector<4xf32> to vector<4x1xf32>
    %cst_1 = arith.constant 9.765625E-4 : f32
    %4 = vector.broadcast %cst_1 : f32 to vector<4x1xf32>
    %5 = arith.mulf %3, %4 : vector<4x1xf32>
    %c0_2 = arith.constant 0 : index
    %c0_3 = arith.constant 0 : index
    %6 = vector.load %arg2[%c0_2, %c0_3] : memref<2x4xf32, #tpu.memory_space<vmem>>, vector<2x4xf32>
    %cst_4 = arith.constant dense<0.000000e+00> : vector<2x1xf32>
    %7 = tpu.matmul %6, %5, %cst_4 {dimension_numbers = #tpu.dot_dimension_numbers<[1], [0], [0], [1], [0, 0, 1, 1], [], []>} : vector<2x4xf32>, vector<4x1xf32>, vector<2x1xf32> -> vector<2x1xf32>
    %c0_5 = arith.constant 0 : index
    %c0_6 = arith.constant 0 : index
    %8 = vector.load %arg3[%c0_5, %c0_6] : memref<2x1xf32, #tpu.memory_space<vmem>>, vector<2x1xf32>
    %9 = arith.addf %7, %8 : vector<2x1xf32>
    %cst_7 = arith.constant 0.000000e+00 : f32
    %10 = vector.broadcast %cst_7 : f32 to vector<2x1xf32>
    %11 = arith.maximumf %9, %10 : vector<2x1xf32>
    %c0_8 = arith.constant 0 : index
    %c0_9 = arith.constant 0 : index
    %12 = vector.load %arg4[%c0_8, %c0_9] : memref<4x2xf32, #tpu.memory_space<vmem>>, vector<4x2xf32>
    %cst_10 = arith.constant dense<0.000000e+00> : vector<4x1xf32>
    %13 = tpu.matmul %12, %11, %cst_10 {dimension_numbers = #tpu.dot_dimension_numbers<[1], [0], [0], [1], [0, 0, 1, 1], [], []>} : vector<4x2xf32>, vector<2x1xf32>, vector<4x1xf32> -> vector<4x1xf32>
    %c0_11 = arith.constant 0 : index
    %c0_12 = arith.constant 0 : index
    %14 = vector.load %arg5[%c0_11, %c0_12] : memref<4x1xf32, #tpu.memory_space<vmem>>, vector<4x1xf32>
    %15 = arith.addf %13, %14 : vector<4x1xf32>
    %16 = arith.negf %15 : vector<4x1xf32>
    %17 = math.exp %16 : vector<4x1xf32>
    %cst_13 = arith.constant 1.000000e+00 : f32
    %18 = vector.broadcast %cst_13 : f32 to vector<4x1xf32>
    %19 = arith.addf %18, %17 : vector<4x1xf32>
    %20 = arith.divf %18, %19 : vector<4x1xf32>
    %21 = vector.broadcast %20 : vector<4x1xf32> to vector<4x1024xf32>
    %22 = arith.mulf %1, %21 : vector<4x1024xf32>
    %23 = arith.truncf %22 : vector<4x1024xf32> to vector<4x1024xbf16>
    %c0_14 = arith.constant 0 : index
    %c0_15 = arith.constant 0 : index
    %24 = vector.load %arg6[%c0_14, %c0_15] : memref<4x1024xbf16, #tpu.memory_space<vmem>>, vector<4x1024xbf16>
    tpu.vector_store %arg6[%c0_14, %c0_15], %23 {strides = array<i32>} : memref<4x1024xbf16, #tpu.memory_space<vmem>>, vector<4x1024xbf16>,
    return
  }
  func.func @transform_0(%arg0: i32) -> (i32, i32) {
    %c0_i32 = arith.constant 0 : i32
    %c0_i32_0 = arith.constant 0 : i32
    return %c0_i32, %arg0 : i32, i32
  }
  func.func @transform_1(%arg0: i32) -> (i32, i32) {
    %c0_i32 = arith.constant 0 : i32
    %c0_i32_0 = arith.constant 0 : i32
    %c0_i32_1 = arith.constant 0 : i32
    return %c0_i32, %c0_i32_0 : i32, i32
  }
  func.func @transform_2(%arg0: i32) -> (i32, i32) {
    %c0_i32 = arith.constant 0 : i32
    %c0_i32_0 = arith.constant 0 : i32
    %c0_i32_1 = arith.constant 0 : i32
    return %c0_i32, %c0_i32_0 : i32, i32
  }
  func.func @transform_3(%arg0: i32) -> (i32, i32) {
    %c0_i32 = arith.constant 0 : i32
    %c0_i32_0 = arith.constant 0 : i32
    %c0_i32_1 = arith.constant 0 : i32
    return %c0_i32, %c0_i32_0 : i32, i32
  }
  func.func @transform_4(%arg0: i32) -> (i32, i32) {
    %c0_i32 = arith.constant 0 : i32
    %c0_i32_0 = arith.constant 0 : i32
    %c0_i32_1 = arith.constant 0 : i32
    return %c0_i32, %c0_i32_0 : i32, i32
  }
  func.func @transform_5(%arg0: i32) -> (i32, i32) {
    %c0_i32 = arith.constant 0 : i32
    %c0_i32_0 = arith.constant 0 : i32
    return %c0_i32, %arg0 : i32, i32
  }
}

module attributes {stable_mosaic.version = 11 : i64} {
  func.func @_mm_kernel(%arg0: i32, %arg1: memref<4x36xbf16, #tpu.memory_space<vmem>>, %arg2: memref<36x1024xbf16, #tpu.memory_space<vmem>>, %arg3: memref<4x1xf32, #tpu.memory_space<vmem>>, %arg4: memref<1xf32, #tpu.memory_space<smem>>, %arg5: memref<4x1024xbf16, #tpu.memory_space<vmem>>) attributes {dimension_semantics = [#tpu.dimension_semantics<parallel>], iteration_bounds = array<i64: 2>, scalar_prefetch = 0 : i64, scratch_operands = 0 : i64, tpu.core_type = #tpu.core_type<tc>, window_params = [{pipeline_mode = #tpu.pipeline_mode<synchronous>, transform_indices = @transform_0, window_bounds = array<i64: 4, 36>}, {transform_indices = @transform_1, window_bounds = array<i64: 36, 1024>}, {pipeline_mode = #tpu.pipeline_mode<synchronous>, transform_indices = @transform_2, window_bounds = array<i64: 4, 1>}, {transform_indices = @transform_3, window_bounds = array<i64: 1>}, {transform_indices = @transform_4, window_bounds = array<i64: 4, 1024>}]} {
    %c0 = arith.constant 0 : index
    %c0_0 = arith.constant 0 : index
    %0 = vector.load %arg1[%c0, %c0_0] : memref<4x36xbf16, #tpu.memory_space<vmem>>, vector<4x36xbf16>
    %c0_1 = arith.constant 0 : index
    %c0_2 = arith.constant 0 : index
    %1 = vector.load %arg2[%c0_1, %c0_2] : memref<36x1024xbf16, #tpu.memory_space<vmem>>, vector<36x1024xbf16>
    %cst = arith.constant dense<0.000000e+00> : vector<4x1024xf32>
    %2 = tpu.matmul %0, %1, %cst {dimension_numbers = #tpu.dot_dimension_numbers<[1], [0], [0], [1], [0, 0, 1, 1], [], []>} : vector<4x36xbf16>, vector<36x1024xbf16>, vector<4x1024xf32> -> vector<4x1024xf32>
    %c0_3 = arith.constant 0 : index
    %c0_4 = arith.constant 0 : index
    %3 = vector.load %arg3[%c0_3, %c0_4] : memref<4x1xf32, #tpu.memory_space<vmem>>, vector<4x1xf32>
    %4 = vector.broadcast %3 : vector<4x1xf32> to vector<4x1024xf32>
    %5 = arith.addf %2, %4 : vector<4x1024xf32>
    %c0_5 = arith.constant 0 : index
    %6 = memref.load %arg4[%c0_5] : memref<1xf32, #tpu.memory_space<smem>>
    %cst_6 = arith.constant 0.000000e+00 : f32
    %7 = vector.broadcast %cst_6 : f32 to vector<4x1024xf32>
    %8 = arith.cmpf oge, %5, %7 : vector<4x1024xf32>
    %9 = vector.broadcast %6 : f32 to vector<4x1024xf32>
    %10 = arith.mulf %9, %5 : vector<4x1024xf32>
    %11 = arith.select %8, %5, %10 : vector<4x1024xi1>, vector<4x1024xf32>
    %12 = arith.truncf %11 : vector<4x1024xf32> to vector<4x1024xbf16>
    %c0_7 = arith.constant 0 : index
    %c0_8 = arith.constant 0 : index
    %13 = vector.load %arg5[%c0_7, %c0_8] : memref<4x1024xbf16, #tpu.memory_space<vmem>>, vector<4x1024xbf16>
    tpu.vector_store %arg5[%c0_7, %c0_8], %12 {strides = array<i32>} : memref<4x1024xbf16, #tpu.memory_space<vmem>>, vector<4x1024xbf16>,
    return
  }
  func.func @transform_0(%arg0: i32) -> (i32, i32) {
    %c0_i32 = arith.constant 0 : i32
    %c0_i32_0 = arith.constant 0 : i32
    %c0_i32_1 = arith.constant 0 : i32
    return %c0_i32, %c0_i32_0 : i32, i32
  }
  func.func @transform_1(%arg0: i32) -> (i32, i32) {
    %c0_i32 = arith.constant 0 : i32
    %c0_i32_0 = arith.constant 0 : i32
    return %c0_i32, %arg0 : i32, i32
  }
  func.func @transform_2(%arg0: i32) -> (i32, i32) {
    %c0_i32 = arith.constant 0 : i32
    %c0_i32_0 = arith.constant 0 : i32
    %c0_i32_1 = arith.constant 0 : i32
    return %c0_i32, %c0_i32_0 : i32, i32
  }
  func.func @transform_3(%arg0: i32) -> i32 {
    %c0_i32 = arith.constant 0 : i32
    %c0_i32_0 = arith.constant 0 : i32
    return %c0_i32 : i32
  }
  func.func @transform_4(%arg0: i32) -> (i32, i32) {
    %c0_i32 = arith.constant 0 : i32
    %c0_i32_0 = arith.constant 0 : i32
    return %c0_i32, %arg0 : i32, i32
  }
}

module attributes {stable_mosaic.version = 11 : i64} {
  func.func @_mm_kernel(%arg0: i32, %arg1: memref<4x36xbf16, #tpu.memory_space<vmem>>, %arg2: memref<36x1024xbf16, #tpu.memory_space<vmem>>, %arg3: memref<4x1xf32, #tpu.memory_space<vmem>>, %arg4: memref<1xf32, #tpu.memory_space<smem>>, %arg5: memref<4x1024xbf16, #tpu.memory_space<vmem>>, %arg6: memref<4x1024xbf16, #tpu.memory_space<vmem>>) attributes {dimension_semantics = [#tpu.dimension_semantics<parallel>], iteration_bounds = array<i64: 2>, scalar_prefetch = 0 : i64, scratch_operands = 0 : i64, tpu.core_type = #tpu.core_type<tc>, window_params = [{pipeline_mode = #tpu.pipeline_mode<synchronous>, transform_indices = @transform_0, window_bounds = array<i64: 4, 36>}, {transform_indices = @transform_1, window_bounds = array<i64: 36, 1024>}, {pipeline_mode = #tpu.pipeline_mode<synchronous>, transform_indices = @transform_2, window_bounds = array<i64: 4, 1>}, {transform_indices = @transform_3, window_bounds = array<i64: 1>}, {transform_indices = @transform_4, window_bounds = array<i64: 4, 1024>}, {transform_indices = @transform_5, window_bounds = array<i64: 4, 1024>}]} {
    %c0 = arith.constant 0 : index
    %c0_0 = arith.constant 0 : index
    %0 = vector.load %arg5[%c0, %c0_0] : memref<4x1024xbf16, #tpu.memory_space<vmem>>, vector<4x1024xbf16>
    %1 = arith.extf %0 : vector<4x1024xbf16> to vector<4x1024xf32>
    %c0_1 = arith.constant 0 : index
    %c0_2 = arith.constant 0 : index
    %2 = vector.load %arg1[%c0_1, %c0_2] : memref<4x36xbf16, #tpu.memory_space<vmem>>, vector<4x36xbf16>
    %c0_3 = arith.constant 0 : index
    %c0_4 = arith.constant 0 : index
    %3 = vector.load %arg2[%c0_3, %c0_4] : memref<36x1024xbf16, #tpu.memory_space<vmem>>, vector<36x1024xbf16>
    %cst = arith.constant dense<0.000000e+00> : vector<4x1024xf32>
    %4 = tpu.matmul %2, %3, %cst {dimension_numbers = #tpu.dot_dimension_numbers<[1], [0], [0], [1], [0, 0, 1, 1], [], []>} : vector<4x36xbf16>, vector<36x1024xbf16>, vector<4x1024xf32> -> vector<4x1024xf32>
    %c0_5 = arith.constant 0 : index
    %c0_6 = arith.constant 0 : index
    %5 = vector.load %arg3[%c0_5, %c0_6] : memref<4x1xf32, #tpu.memory_space<vmem>>, vector<4x1xf32>
    %6 = vector.broadcast %5 : vector<4x1xf32> to vector<4x1024xf32>
    %7 = arith.addf %4, %6 : vector<4x1024xf32>
    %8 = arith.addf %7, %1 : vector<4x1024xf32>
    %9 = arith.truncf %8 : vector<4x1024xf32> to vector<4x1024xbf16>
    %c0_7 = arith.constant 0 : index
    %c0_8 = arith.constant 0 : index
    %10 = vector.load %arg6[%c0_7, %c0_8] : memref<4x1024xbf16, #tpu.memory_space<vmem>>, vector<4x1024xbf16>
    tpu.vector_store %arg6[%c0_7, %c0_8], %9 {strides = array<i32>} : memref<4x1024xbf16, #tpu.memory_space<vmem>>, vector<4x1024xbf16>,
    return
  }
  func.func @transform_0(%arg0: i32) -> (i32, i32) {
    %c0_i32 = arith.constant 0 : i32
    %c0_i32_0 = arith.constant 0 : i32
    %c0_i32_1 = arith.constant 0 : i32
    return %c0_i32, %c0_i32_0 : i32, i32
  }
  func.func @transform_1(%arg0: i32) -> (i32, i32) {
    %c0_i32 = arith.constant 0 : i32
    %c0_i32_0 = arith.constant 0 : i32
    return %c0_i32, %arg0 : i32, i32
  }
  func.func @transform_2(%arg0: i32) -> (i32, i32) {
    %c0_i32 = arith.constant 0 : i32
    %c0_i32_0 = arith.constant 0 : i32
    %c0_i32_1 = arith.constant 0 : i32
    return %c0_i32, %c0_i32_0 : i32, i32
  }
  func.func @transform_3(%arg0: i32) -> i32 {
    %c0_i32 = arith.constant 0 : i32
    %c0_i32_0 = arith.constant 0 : i32
    return %c0_i32 : i32
  }
  func.func @transform_4(%arg0: i32) -> (i32, i32) {
    %c0_i32 = arith.constant 0 : i32
    %c0_i32_0 = arith.constant 0 : i32
    return %c0_i32, %arg0 : i32, i32
  }
  func.func @transform_5(%arg0: i32) -> (i32, i32) {
    %c0_i32 = arith.constant 0 : i32
    %c0_i32_0 = arith.constant 0 : i32
    return %c0_i32, %arg0 : i32, i32
  }
}

module attributes {stable_mosaic.version = 11 : i64} {
  func.func @_mm_kernel(%arg0: i32, %arg1: memref<4x144xbf16, #tpu.memory_space<vmem>>, %arg2: memref<144x256xbf16, #tpu.memory_space<vmem>>, %arg3: memref<4x1xf32, #tpu.memory_space<vmem>>, %arg4: memref<1xf32, #tpu.memory_space<smem>>, %arg5: memref<4x256xbf16, #tpu.memory_space<vmem>>, %arg6: memref<4x256xbf16, #tpu.memory_space<vmem>>) attributes {dimension_semantics = [#tpu.dimension_semantics<parallel>], iteration_bounds = array<i64: 2>, scalar_prefetch = 0 : i64, scratch_operands = 0 : i64, tpu.core_type = #tpu.core_type<tc>, window_params = [{pipeline_mode = #tpu.pipeline_mode<synchronous>, transform_indices = @transform_0, window_bounds = array<i64: 4, 144>}, {transform_indices = @transform_1, window_bounds = array<i64: 144, 256>}, {pipeline_mode = #tpu.pipeline_mode<synchronous>, transform_indices = @transform_2, window_bounds = array<i64: 4, 1>}, {transform_indices = @transform_3, window_bounds = array<i64: 1>}, {transform_indices = @transform_4, window_bounds = array<i64: 4, 256>}, {transform_indices = @transform_5, window_bounds = array<i64: 4, 256>}]} {
    %c0 = arith.constant 0 : index
    %c0_0 = arith.constant 0 : index
    %0 = vector.load %arg5[%c0, %c0_0] : memref<4x256xbf16, #tpu.memory_space<vmem>>, vector<4x256xbf16>
    %1 = arith.extf %0 : vector<4x256xbf16> to vector<4x256xf32>
    %c0_1 = arith.constant 0 : index
    %c0_2 = arith.constant 0 : index
    %2 = vector.load %arg1[%c0_1, %c0_2] : memref<4x144xbf16, #tpu.memory_space<vmem>>, vector<4x144xbf16>
    %c0_3 = arith.constant 0 : index
    %c0_4 = arith.constant 0 : index
    %3 = vector.load %arg2[%c0_3, %c0_4] : memref<144x256xbf16, #tpu.memory_space<vmem>>, vector<144x256xbf16>
    %cst = arith.constant dense<0.000000e+00> : vector<4x256xf32>
    %4 = tpu.matmul %2, %3, %cst {dimension_numbers = #tpu.dot_dimension_numbers<[1], [0], [0], [1], [0, 0, 1, 1], [], []>} : vector<4x144xbf16>, vector<144x256xbf16>, vector<4x256xf32> -> vector<4x256xf32>
    %c0_5 = arith.constant 0 : index
    %c0_6 = arith.constant 0 : index
    %5 = vector.load %arg3[%c0_5, %c0_6] : memref<4x1xf32, #tpu.memory_space<vmem>>, vector<4x1xf32>
    %6 = vector.broadcast %5 : vector<4x1xf32> to vector<4x256xf32>
    %7 = arith.addf %4, %6 : vector<4x256xf32>
    %c0_7 = arith.constant 0 : index
    %8 = memref.load %arg4[%c0_7] : memref<1xf32, #tpu.memory_space<smem>>
    %cst_8 = arith.constant 0.000000e+00 : f32
    %9 = vector.broadcast %cst_8 : f32 to vector<4x256xf32>
    %10 = arith.cmpf oge, %7, %9 : vector<4x256xf32>
    %11 = vector.broadcast %8 : f32 to vector<4x256xf32>
    %12 = arith.mulf %11, %7 : vector<4x256xf32>
    %13 = arith.select %10, %7, %12 : vector<4x256xi1>, vector<4x256xf32>
    %14 = arith.subf %1, %13 : vector<4x256xf32>
    %15 = arith.truncf %14 : vector<4x256xf32> to vector<4x256xbf16>
    %c0_9 = arith.constant 0 : index
    %c0_10 = arith.constant 0 : index
    %16 = vector.load %arg6[%c0_9, %c0_10] : memref<4x256xbf16, #tpu.memory_space<vmem>>, vector<4x256xbf16>
    tpu.vector_store %arg6[%c0_9, %c0_10], %15 {strides = array<i32>} : memref<4x256xbf16, #tpu.memory_space<vmem>>, vector<4x256xbf16>,
    return
  }
  func.func @transform_0(%arg0: i32) -> (i32, i32) {
    %c0_i32 = arith.constant 0 : i32
    %c0_i32_0 = arith.constant 0 : i32
    %c0_i32_1 = arith.constant 0 : i32
    return %c0_i32, %c0_i32_0 : i32, i32
  }
  func.func @transform_1(%arg0: i32) -> (i32, i32) {
    %c0_i32 = arith.constant 0 : i32
    %c0_i32_0 = arith.constant 0 : i32
    return %c0_i32, %arg0 : i32, i32
  }
  func.func @transform_2(%arg0: i32) -> (i32, i32) {
    %c0_i32 = arith.constant 0 : i32
    %c0_i32_0 = arith.constant 0 : i32
    %c0_i32_1 = arith.constant 0 : i32
    return %c0_i32, %c0_i32_0 : i32, i32
  }
  func.func @transform_3(%arg0: i32) -> i32 {
    %c0_i32 = arith.constant 0 : i32
    %c0_i32_0 = arith.constant 0 : i32
    return %c0_i32 : i32
  }
  func.func @transform_4(%arg0: i32) -> (i32, i32) {
    %c0_i32 = arith.constant 0 : i32
    %c0_i32_0 = arith.constant 0 : i32
    return %c0_i32, %arg0 : i32, i32
  }
  func.func @transform_5(%arg0: i32) -> (i32, i32) {
    %c0_i32 = arith.constant 0 : i32
    %c0_i32_0 = arith.constant 0 : i32
    return %c0_i32, %arg0 : i32, i32
  }
}

module attributes {stable_mosaic.version = 11 : i64} {
  func.func @_mm_kernel(%arg0: i32, %arg1: memref<4x144xbf16, #tpu.memory_space<vmem>>, %arg2: memref<144x256xbf16, #tpu.memory_space<vmem>>, %arg3: memref<4x1xf32, #tpu.memory_space<vmem>>, %arg4: memref<1xf32, #tpu.memory_space<smem>>, %arg5: memref<4x256xbf16, #tpu.memory_space<vmem>>) attributes {dimension_semantics = [#tpu.dimension_semantics<parallel>], iteration_bounds = array<i64: 2>, scalar_prefetch = 0 : i64, scratch_operands = 0 : i64, tpu.core_type = #tpu.core_type<tc>, window_params = [{pipeline_mode = #tpu.pipeline_mode<synchronous>, transform_indices = @transform_0, window_bounds = array<i64: 4, 144>}, {transform_indices = @transform_1, window_bounds = array<i64: 144, 256>}, {pipeline_mode = #tpu.pipeline_mode<synchronous>, transform_indices = @transform_2, window_bounds = array<i64: 4, 1>}, {transform_indices = @transform_3, window_bounds = array<i64: 1>}, {transform_indices = @transform_4, window_bounds = array<i64: 4, 256>}]} {
    %c0 = arith.constant 0 : index
    %c0_0 = arith.constant 0 : index
    %0 = vector.load %arg1[%c0, %c0_0] : memref<4x144xbf16, #tpu.memory_space<vmem>>, vector<4x144xbf16>
    %c0_1 = arith.constant 0 : index
    %c0_2 = arith.constant 0 : index
    %1 = vector.load %arg2[%c0_1, %c0_2] : memref<144x256xbf16, #tpu.memory_space<vmem>>, vector<144x256xbf16>
    %cst = arith.constant dense<0.000000e+00> : vector<4x256xf32>
    %2 = tpu.matmul %0, %1, %cst {dimension_numbers = #tpu.dot_dimension_numbers<[1], [0], [0], [1], [0, 0, 1, 1], [], []>} : vector<4x144xbf16>, vector<144x256xbf16>, vector<4x256xf32> -> vector<4x256xf32>
    %c0_3 = arith.constant 0 : index
    %c0_4 = arith.constant 0 : index
    %3 = vector.load %arg3[%c0_3, %c0_4] : memref<4x1xf32, #tpu.memory_space<vmem>>, vector<4x1xf32>
    %4 = vector.broadcast %3 : vector<4x1xf32> to vector<4x256xf32>
    %5 = arith.addf %2, %4 : vector<4x256xf32>
    %c0_5 = arith.constant 0 : index
    %6 = memref.load %arg4[%c0_5] : memref<1xf32, #tpu.memory_space<smem>>
    %cst_6 = arith.constant 0.000000e+00 : f32
    %7 = vector.broadcast %cst_6 : f32 to vector<4x256xf32>
    %8 = arith.cmpf oge, %5, %7 : vector<4x256xf32>
    %9 = vector.broadcast %6 : f32 to vector<4x256xf32>
    %10 = arith.mulf %9, %5 : vector<4x256xf32>
    %11 = arith.select %8, %5, %10 : vector<4x256xi1>, vector<4x256xf32>
    %12 = arith.truncf %11 : vector<4x256xf32> to vector<4x256xbf16>
    %c0_7 = arith.constant 0 : index
    %c0_8 = arith.constant 0 : index
    %13 = vector.load %arg5[%c0_7, %c0_8] : memref<4x256xbf16, #tpu.memory_space<vmem>>, vector<4x256xbf16>
    tpu.vector_store %arg5[%c0_7, %c0_8], %12 {strides = array<i32>} : memref<4x256xbf16, #tpu.memory_space<vmem>>, vector<4x256xbf16>,
    return
  }
  func.func @transform_0(%arg0: i32) -> (i32, i32) {
    %c0_i32 = arith.constant 0 : i32
    %c0_i32_0 = arith.constant 0 : i32
    %c0_i32_1 = arith.constant 0 : i32
    return %c0_i32, %c0_i32_0 : i32, i32
  }
  func.func @transform_1(%arg0: i32) -> (i32, i32) {
    %c0_i32 = arith.constant 0 : i32
    %c0_i32_0 = arith.constant 0 : i32
    return %c0_i32, %arg0 : i32, i32
  }
  func.func @transform_2(%arg0: i32) -> (i32, i32) {
    %c0_i32 = arith.constant 0 : i32
    %c0_i32_0 = arith.constant 0 : i32
    %c0_i32_1 = arith.constant 0 : i32
    return %c0_i32, %c0_i32_0 : i32, i32
  }
  func.func @transform_3(%arg0: i32) -> i32 {
    %c0_i32 = arith.constant 0 : i32
    %c0_i32_0 = arith.constant 0 : i32
    return %c0_i32 : i32
  }
  func.func @transform_4(%arg0: i32) -> (i32, i32) {
    %c0_i32 = arith.constant 0 : i32
    %c0_i32_0 = arith.constant 0 : i32
    return %c0_i32, %arg0 : i32, i32
  }
}

module attributes {stable_mosaic.version = 11 : i64} {
  func.func @_mm_kernel(%arg0: i32, %arg1: memref<4x36xbf16, #tpu.memory_space<vmem>>, %arg2: memref<36x256xbf16, #tpu.memory_space<vmem>>, %arg3: memref<4x1xf32, #tpu.memory_space<vmem>>, %arg4: memref<1xf32, #tpu.memory_space<smem>>, %arg5: memref<4x256xbf16, #tpu.memory_space<vmem>>) attributes {dimension_semantics = [#tpu.dimension_semantics<parallel>], iteration_bounds = array<i64: 2>, scalar_prefetch = 0 : i64, scratch_operands = 0 : i64, tpu.core_type = #tpu.core_type<tc>, window_params = [{pipeline_mode = #tpu.pipeline_mode<synchronous>, transform_indices = @transform_0, window_bounds = array<i64: 4, 36>}, {transform_indices = @transform_1, window_bounds = array<i64: 36, 256>}, {pipeline_mode = #tpu.pipeline_mode<synchronous>, transform_indices = @transform_2, window_bounds = array<i64: 4, 1>}, {transform_indices = @transform_3, window_bounds = array<i64: 1>}, {transform_indices = @transform_4, window_bounds = array<i64: 4, 256>}]} {
    %c0 = arith.constant 0 : index
    %c0_0 = arith.constant 0 : index
    %0 = vector.load %arg1[%c0, %c0_0] : memref<4x36xbf16, #tpu.memory_space<vmem>>, vector<4x36xbf16>
    %c0_1 = arith.constant 0 : index
    %c0_2 = arith.constant 0 : index
    %1 = vector.load %arg2[%c0_1, %c0_2] : memref<36x256xbf16, #tpu.memory_space<vmem>>, vector<36x256xbf16>
    %cst = arith.constant dense<0.000000e+00> : vector<4x256xf32>
    %2 = tpu.matmul %0, %1, %cst {dimension_numbers = #tpu.dot_dimension_numbers<[1], [0], [0], [1], [0, 0, 1, 1], [], []>} : vector<4x36xbf16>, vector<36x256xbf16>, vector<4x256xf32> -> vector<4x256xf32>
    %c0_3 = arith.constant 0 : index
    %c0_4 = arith.constant 0 : index
    %3 = vector.load %arg3[%c0_3, %c0_4] : memref<4x1xf32, #tpu.memory_space<vmem>>, vector<4x1xf32>
    %4 = vector.broadcast %3 : vector<4x1xf32> to vector<4x256xf32>
    %5 = arith.addf %2, %4 : vector<4x256xf32>
    %c0_5 = arith.constant 0 : index
    %6 = memref.load %arg4[%c0_5] : memref<1xf32, #tpu.memory_space<smem>>
    %cst_6 = arith.constant 0.000000e+00 : f32
    %7 = vector.broadcast %cst_6 : f32 to vector<4x256xf32>
    %8 = arith.cmpf oge, %5, %7 : vector<4x256xf32>
    %9 = vector.broadcast %6 : f32 to vector<4x256xf32>
    %10 = arith.mulf %9, %5 : vector<4x256xf32>
    %11 = arith.select %8, %5, %10 : vector<4x256xi1>, vector<4x256xf32>
    %12 = arith.truncf %11 : vector<4x256xf32> to vector<4x256xbf16>
    %c0_7 = arith.constant 0 : index
    %c0_8 = arith.constant 0 : index
    %13 = vector.load %arg5[%c0_7, %c0_8] : memref<4x256xbf16, #tpu.memory_space<vmem>>, vector<4x256xbf16>
    tpu.vector_store %arg5[%c0_7, %c0_8], %12 {strides = array<i32>} : memref<4x256xbf16, #tpu.memory_space<vmem>>, vector<4x256xbf16>,
    return
  }
  func.func @transform_0(%arg0: i32) -> (i32, i32) {
    %c0_i32 = arith.constant 0 : i32
    %c0_i32_0 = arith.constant 0 : i32
    %c0_i32_1 = arith.constant 0 : i32
    return %c0_i32, %c0_i32_0 : i32, i32
  }
  func.func @transform_1(%arg0: i32) -> (i32, i32) {
    %c0_i32 = arith.constant 0 : i32
    %c0_i32_0 = arith.constant 0 : i32
    return %c0_i32, %arg0 : i32, i32
  }
  func.func @transform_2(%arg0: i32) -> (i32, i32) {
    %c0_i32 = arith.constant 0 : i32
    %c0_i32_0 = arith.constant 0 : i32
    %c0_i32_1 = arith.constant 0 : i32
    return %c0_i32, %c0_i32_0 : i32, i32
  }
  func.func @transform_3(%arg0: i32) -> i32 {
    %c0_i32 = arith.constant 0 : i32
    %c0_i32_0 = arith.constant 0 : i32
    return %c0_i32 : i32
  }
  func.func @transform_4(%arg0: i32) -> (i32, i32) {
    %c0_i32 = arith.constant 0 : i32
    %c0_i32_0 = arith.constant 0 : i32
    return %c0_i32, %arg0 : i32, i32
  }
}

</mosaic_0001>

<llo_original>
// kernel: tile.28
$region0: #{tile.28}
  #allocation2 [shape = 's32[1]{0}', space=sflag, size = 0x4, scoped, tag = 'scoped memory for tile.28']
  %s0 = inlined_call_operand.hbm [shape: f32[4], index: 0, kind: input, shape index: {}]
  %s1 = inlined_call_operand.vmem [shape: f32[4,4], index: 1, kind: output, shape index: {}]
  $region1: #{tile.28} parent=0
    #allocation0 [shape = 'u8[512]{0}', space=vmem, size = 0x400, scoped, tag = 'operand span for operand 0']
    #allocation1 [shape = 's32[1]{0}', space=sflag, size = 0x4, scoped, tag = 'scoped memory for tile.28']
    %2 = vsyncpa [#allocation1], 0
    // Predicated region
    $region2: #{tile.28} parent=1 // pred_check
      _
    $region3: #{tile.28} parent=1 // pred_check_branch
      %4 = sbr.rel (0) target = $region5
    $region4: #{tile.28} parent=1 // pred_region
      %6 = vsyncadd [#allocation1], 0
      %s8 = sshll.u32 %s0, 4
      %s9 = int_to_ptr.hbm [resolvable:$true] %s8
      %s10 = sshll.u32 [#allocation0], 4
      %s11 = int_to_ptr.vmem [resolvable:$true] %s10
      %13 = dma.hbm_to_vmem [thread:$0]  %s9, 16, %s11, [#allocation1]
    $region5: #{tile.28} parent=1 // pred_fallthru
      _
    // Predicated region
    $region6: #{tile.28} parent=1 // pred_check
      _
    $region7: #{tile.28} parent=1 // pred_check_branch
      %15 = sbr.rel (0) target = $region9
    $region8: #{tile.28} parent=1 // pred_region
      %17 = dma.done [#allocation1], 16
    $region9: #{tile.28} parent=1 // pred_fallthru
      _
    %v18 = vld [vmem:[#allocation0] ss:$0 sm:$0xff]
    %19 = vst [vmem:[%s1] sm:$0xf] %v18
    %20 = vsyncpa [#allocation1], 1

// kernel: tile.0
$region0: #{tile.0}
  %s0 = inlined_call_operand.vmem [shape: f32[4,4], index: 0, kind: input, shape index: {}]
  %s1 = inlined_call_operand.vmem [shape: f32[16,1], index: 1, kind: output, shape index: {}]
  $region1: #{tile.0} parent=0
    #allocation0 [shape = 'u8[4096]{0}', space=vmem, size = 0x1000, scoped, tag = 'scoped mem for input reshape']
    %s3 = ssub.s32 16, 1
    %v4 = vld [vmem:[%s0] sm:%s3]
    %5 = vst [vmem:[#allocation0] sm:%s3] %v4
    %v6 = vld [vmem:[#allocation0] sm:$0xf]
    %vm7 = vcmask 7168
    %8 = vst.msk [vmem:[%s1] ss:$4 sm:$0xf] %vm7, %v6
    %v9 = vld [vmem:[#allocation0] sm:$0xf]
    %10 = vrot.lane.b32.xlu0 %v9, 127
    %v11 = vpop.permute.xlu0 %10
    %vm12 = vcmask 7168
    %s13 = scalar_lea.vmem %s1, 1
    %14 = vst.msk [vmem:[%s13] ss:$4 sm:$0xf] %vm12, %v11
    %v15 = vld [vmem:[#allocation0] sm:$0xf]
    %16 = vrot.lane.b32.xlu0 %v15, 126
    %v17 = vpop.permute.xlu0 %16
    %vm18 = vcmask 7168
    %s19 = scalar_lea.vmem %s1, 2
    %20 = vst.msk [vmem:[%s19] ss:$4 sm:$0xf] %vm18, %v17
    %v21 = vld [vmem:[#allocation0] sm:$0xf]
    %22 = vrot.lane.b32.xlu0 %v21, 125
    %v23 = vpop.permute.xlu0 %22
    %vm24 = vcmask 7168
    %s25 = scalar_lea.vmem %s1, 3
    %26 = vst.msk [vmem:[%s25] ss:$4 sm:$0xf] %vm24, %v23

// kernel: _lambda_.18
$region0: #{_lambda_.18}
  #allocation0 [shape = 'u32[]', space=smem, size = 0x4, offset = 0x4, fixed_abs, tag = 'smem constant byte address 0x4 - core index']
  #allocation1 [shape = 'u32[72,128]{1,0:T(1,128)}', space=vmem, size = 0x9000, scoped, tag = 'internal scratch']
  #allocation2 [shape = 'f32[1]{0:T(128)S(6)}', space=smem, size = 0x200, scoped, tag = 'scoped memory for _lambda_.18']
  %s0 = inlined_call_operand.vmem [shape: bf16[4,2], index: 0, kind: input, shape index: {}]
  %s1 = inlined_call_operand.vmem [shape: bf16[2,512], index: 1, kind: input, shape index: {}]
  %s2 = inlined_call_operand.vmem [shape: f32[4,1], index: 2, kind: input, shape index: {}]
  %s3 = inlined_call_operand.<no memory space> [shape: f32[1], index: 3, kind: input, shape index: {}]
  %s4 = inlined_call_operand.vmem [shape: bf16[4,512], index: 4, kind: input, shape index: {}]
  %s5 = inlined_call_operand.vmem [shape: bf16[4,512], index: 5, kind: output, shape index: {}]
  %s6 = sld [smem:[#allocation0]]
  $region53: #{_lambda_.18} parent=0
    _
  %s8 = ssub.s32 1, %s6
  %s9 = scalar_select 0, %s8, %s6
  %10 = sst [smem:[#allocation2]] %s3
  loop: start=0, step=1, limit=4
  $region2: #{_lambda_.18} parent=0 // loop_pre_header
    _
  $region3: #{_lambda_.18} parent=0 // loop_header
    %s12 = sphi 0, %s16
    %p13 = scmp.ge.s32.totalorder %s12, 4
    %s20 = sphi 0, %s20
    %s22 = sphi 0, %s20
    %s23 = sphi 0, %s22
    %s37 = sphi 0, %s23
    %s43 = sphi 0, %s45
    %s46 = sphi 0, %s43
    %s47 = sphi 0, %s46
    %s63 = sphi 0, %s47
    %s67 = sphi 0, %s67
    %s69 = sphi 0, %s67
    %s70 = sphi 0, %s69
    %s84 = sphi 0, %s70
    %s88 = sphi 0, %s88
    %s90 = sphi 0, %s88
    %s91 = sphi 0, %s90
    %s105 = sphi 0, %s91
    %s111 = sphi 0, %s113
    %s114 = sphi 0, %s111
    %s115 = sphi 0, %s114
    %s131 = sphi 0, %s115
    %s137 = sphi 0, %s139
    %s140 = sphi 0, %s137
    %s141 = sphi 0, %s140
    %s157 = sphi 0, %s141
  $region4: #{_lambda_.18} parent=0 // loop_header_branch
    %15 = sbr.rel (%p13) target = $region8
  $region5: #{_lambda_.18} parent=0 // loop_body
    %s17 = ssub.s32 %s12, 1
    %s18 = ssub.s32 %s12, 2
    %s19 = sadd.s32 %s12, 1
    %s21 = sadd.s32 %s20, 1
    %p24 = scmp.eq.s32.totalorder %s12, 1
    %p25 = scmp.ne.s32.totalorder %s20, %s22
    %p26 = scmp.eq.s32.totalorder %s12, 0
    %p27 = por %p25, %p26
    %p28 = scmp.ne.s32.totalorder %s20, %s22
    %p29 = scmp.eq.s32.totalorder %s17, 1
    %p30 = por %p28, %p29
    %p31 = scmp.ne.s32.totalorder %s22, %s23
    %p32 = scmp.eq.s32.totalorder %s17, 0
    %p33 = por %p31, %p32
    %p34 = scmp.ne.s32.totalorder %s22, %s23
    %p35 = scmp.eq.s32.totalorder %s18, 1
    %p36 = por %p34, %p35
    %p38 = scmp.ne.s32.totalorder %s23, %s37
    %p39 = scmp.eq.s32.totalorder %s18, 0
    %p40 = por %p38, %p39
    %s41 = ssub.s32 %s12, %s19
    %p42 = scmp.eq.s32.totalorder %s41, 0
    %s44 = sadd.s32 %s43, 1
    %s45 = scalar_select %p42, %s43, %s44
    %p48 = pneg %p42
    %p49 = scmp.eq.s32.totalorder %s12, 1
    %p50 = por %p48, %p49
    %p51 = scmp.ne.s32.totalorder %s43, %s46
    %p52 = scmp.eq.s32.totalorder %s12, 0
    %p53 = por %p51, %p52
    %p54 = scmp.ne.s32.totalorder %s43, %s46
    %p55 = scmp.eq.s32.totalorder %s17, 1
    %p56 = por %p54, %p55
    %p57 = scmp.ne.s32.totalorder %s46, %s47
    %p58 = scmp.eq.s32.totalorder %s17, 0
    %p59 = por %p57, %p58
    %p60 = scmp.ne.s32.totalorder %s46, %s47
    %p61 = scmp.eq.s32.totalorder %s18, 1
    %p62 = por %p60, %p61
    %p64 = scmp.ne.s32.totalorder %s47, %s63
    %p65 = scmp.eq.s32.totalorder %s18, 0
    %p66 = por %p64, %p65
    %s68 = sadd.s32 %s67, 1
    %p71 = scmp.eq.s32.totalorder %s12, 1
    %p72 = scmp.ne.s32.totalorder %s67, %s69
    %p73 = scmp.eq.s32.totalorder %s12, 0
    %p74 = por %p72, %p73
    %p75 = scmp.ne.s32.totalorder %s67, %s69
    %p76 = scmp.eq.s32.totalorder %s17, 1
    %p77 = por %p75, %p76
    %p78 = scmp.ne.s32.totalorder %s69, %s70
    %p79 = scmp.eq.s32.totalorder %s17, 0
    %p80 = por %p78, %p79
    %p81 = scmp.ne.s32.totalorder %s69, %s70
    %p82 = scmp.eq.s32.totalorder %s18, 1
    %p83 = por %p81, %p82
    %p85 = scmp.ne.s32.totalorder %s70, %s84
    %p86 = scmp.eq.s32.totalorder %s18, 0
    %p87 = por %p85, %p86
    %s89 = sadd.s32 %s88, 1
    %p92 = scmp.eq.s32.totalorder %s12, 1
    %p93 = scmp.ne.s32.totalorder %s88, %s90
    %p94 = scmp.eq.s32.totalorder %s12, 0
    %p95 = por %p93, %p94
    %p96 = scmp.ne.s32.totalorder %s88, %s90
    %p97 = scmp.eq.s32.totalorder %s17, 1
    %p98 = por %p96, %p97
    %p99 = scmp.ne.s32.totalorder %s90, %s91
    %p100 = scmp.eq.s32.totalorder %s17, 0
    %p101 = por %p99, %p100
    %p102 = scmp.ne.s32.totalorder %s90, %s91
    %p103 = scmp.eq.s32.totalorder %s18, 1
    %p104 = por %p102, %p103
    %p106 = scmp.ne.s32.totalorder %s91, %s105
    %p107 = scmp.eq.s32.totalorder %s18, 0
    %p108 = por %p106, %p107
    %s109 = ssub.s32 %s12, %s19
    %p110 = scmp.eq.s32.totalorder %s109, 0
    %s112 = sadd.s32 %s111, 1
    %s113 = scalar_select %p110, %s111, %s112
    %p116 = pneg %p110
    %p117 = scmp.eq.s32.totalorder %s12, 1
    %p118 = por %p116, %p117
    %p119 = scmp.ne.s32.totalorder %s111, %s114
    %p120 = scmp.eq.s32.totalorder %s12, 0
    %p121 = por %p119, %p120
    %p122 = scmp.ne.s32.totalorder %s111, %s114
    %p123 = scmp.eq.s32.totalorder %s17, 1
    %p124 = por %p122, %p123
    %p125 = scmp.ne.s32.totalorder %s114, %s115
    %p126 = scmp.eq.s32.totalorder %s17, 0
    %p127 = por %p125, %p126
    %p128 = scmp.ne.s32.totalorder %s114, %s115
    %p129 = scmp.eq.s32.totalorder %s18, 1
    %p130 = por %p128, %p129
    %p132 = scmp.ne.s32.totalorder %s115, %s131
    %p133 = scmp.eq.s32.totalorder %s18, 0
    %p134 = por %p132, %p133
    %s135 = ssub.s32 %s12, %s19
    %p136 = scmp.eq.s32.totalorder %s135, 0
    %s138 = sadd.s32 %s137, 1
    %s139 = scalar_select %p136, %s137, %s138
    %p142 = pneg %p136
    %p143 = scmp.eq.s32.totalorder %s12, 1
    %p144 = por %p142, %p143
    %p145 = scmp.ne.s32.totalorder %s137, %s140
    %p146 = scmp.eq.s32.totalorder %s12, 0
    %p147 = por %p145, %p146
    %p148 = scmp.ne.s32.totalorder %s137, %s140
    %p149 = scmp.eq.s32.totalorder %s17, 1
    %p150 = por %p148, %p149
    %p151 = scmp.ne.s32.totalorder %s140, %s141
    %p152 = scmp.eq.s32.totalorder %s17, 0
    %p153 = por %p151, %p152
    %p154 = scmp.ne.s32.totalorder %s140, %s141
    %p155 = scmp.eq.s32.totalorder %s18, 1
    %p156 = por %p154, %p155
    %p158 = scmp.ne.s32.totalorder %s141, %s157
    %p159 = scmp.eq.s32.totalorder %s18, 0
    %p160 = por %p158, %p159
    %p161 = scmp.le.s32.totalorder 1, %s12
    %p162 = scmp.lt.s32.totalorder %s12, 3
    %p163 = pnand %p161, %p162
    %p164 = pneg %p163
    // Predicated region
    $region9: #{_lambda_.18} parent=5 // pred_check
      _
    $region10: #{_lambda_.18} parent=5 // pred_check_branch
      %166 = sbr.rel (%p163) target = $region12
    $region11: #{_lambda_.18} parent=5 // pred_region
      %s167 = ssub.s32 %s12, 1
      // Predicated region
      $region13: #{_lambda_.18} parent=11 // pred_check
        %p168 = pneg %p33
      $region14: #{_lambda_.18} parent=11 // pred_check_branch
        %170 = sbr.rel (%p168) target = $region16
      $region15: #{_lambda_.18} parent=11 // pred_region
        _
      $region16: #{_lambda_.18} parent=11 // pred_fallthru
        _
      // Predicated region
      $region17: #{_lambda_.18} parent=11 // pred_check
        %p171 = pneg %p80
      $region18: #{_lambda_.18} parent=11 // pred_check_branch
        %173 = sbr.rel (%p171) target = $region20
      $region19: #{_lambda_.18} parent=11 // pred_region
        _
      $region20: #{_lambda_.18} parent=11 // pred_fallthru
        _
      // Predicated region
      $region21: #{_lambda_.18} parent=11 // pred_check
        %p174 = pneg %p101
      $region22: #{_lambda_.18} parent=11 // pred_check_branch
        %176 = sbr.rel (%p174) target = $region24
      $region23: #{_lambda_.18} parent=11 // pred_region
        _
      $region24: #{_lambda_.18} parent=11 // pred_fallthru
        _
    $region12: #{_lambda_.18} parent=5 // pred_fallthru
      _
    %p177 = scmp.lt.s32.totalorder %s12, 2
    // Predicated region
    $region25: #{_lambda_.18} parent=5 // pred_check
      %p178 = pneg %p177
    $region26: #{_lambda_.18} parent=5 // pred_check_branch
      %180 = sbr.rel (%p178) target = $region28
    $region27: #{_lambda_.18} parent=5 // pred_region
      // Predicated region
      $region29: #{_lambda_.18} parent=27 // pred_check
        %p181 = pneg %p53
      $region30: #{_lambda_.18} parent=27 // pred_check_branch
        %183 = sbr.rel (%p181) target = $region32
      $region31: #{_lambda_.18} parent=27 // pred_region
        %s184 = smul.u32 2, %s12
        %p185 = scmp.lt.s32.totalorder %s184, 3
        %s186 = scalar_select %p185, %s184, 3
        %s187 = scalar_lea.vmem %s1, %s186
        %s188 = smul.u32 2, %s12
      $region32: #{_lambda_.18} parent=27 // pred_fallthru
        _
      // Predicated region
      $region33: #{_lambda_.18} parent=27 // pred_check
        %p189 = pneg %p121
      $region34: #{_lambda_.18} parent=27 // pred_check_branch
        %191 = sbr.rel (%p189) target = $region36
      $region35: #{_lambda_.18} parent=27 // pred_region
        %s192 = smul.u32 2, %s12
        %p193 = scmp.lt.s32.totalorder %s192, 3
        %s194 = scalar_select %p193, %s192, 3
        %s195 = smul.addr %s194, 2
        %s196 = scalar_lea.vmem %s4, %s195
        %s197 = smul.u32 2, %s12
      $region36: #{_lambda_.18} parent=27 // pred_fallthru
        _
    $region28: #{_lambda_.18} parent=5 // pred_fallthru
      _
    %p198 = scmp.le.s32.totalorder 1, %s12
    %p199 = scmp.lt.s32.totalorder %s12, 3
    %p200 = pnand %p198, %p199
    %p201 = pneg %p200
    // Predicated region
    $region37: #{_lambda_.18} parent=5 // pred_check
      _
    $region38: #{_lambda_.18} parent=5 // pred_check_branch
      %203 = sbr.rel (%p200) target = $region40
    $region39: #{_lambda_.18} parent=5 // pred_region
      %s204 = ssub.s32 %s12, 1
      %p205 = pneg %p33
      %p206 = pneg %p30
      %s207 = smul.u32 2, %s17
      %p208 = scmp.lt.s32.totalorder %s207, 3
      %s209 = scalar_select %p208, %s207, 3
      %s210 = scalar_lea.vmem %s1, %s209
      %p211 = pneg %p59
      %p212 = pneg %p56
      %p213 = pneg %p80
      %p214 = pneg %p77
      %p215 = pneg %p101
      %p216 = pneg %p98
      %s217 = smul.u32 2, %s17
      %p218 = scmp.lt.s32.totalorder %s217, 3
      %s219 = scalar_select %p218, %s217, 3
      %s220 = smul.addr %s219, 2
      %s221 = scalar_lea.vmem %s4, %s220
      %p222 = pneg %p127
      %p223 = pneg %p124
      %p224 = pneg %p153
      %p225 = pneg %p150
      %s226 = smul.u32 2, %s17
      %p227 = scmp.lt.s32.totalorder %s226, 3
      %s228 = scalar_select %p227, %s226, 3
      %s229 = smul.addr %s228, 2
      %s230 = scalar_lea.vmem %s5, %s229
      %s231 = smul.u32 2, %s17
      %p232 = scmp.lt.s32.totalorder %s231, 3
      %s233 = scalar_select %p232, %s231, 3
      %s234 = scalar_lea.vmem %s1, %s233
      %s235 = smul.u32 2, %s17
      %s236 = smul.u32 2, %s17
      %p237 = scmp.lt.s32.totalorder %s236, 3
      %s238 = scalar_select %p237, %s236, 3
      %s239 = smul.addr %s238, 2
      %s240 = scalar_lea.vmem %s4, %s239
      %s241 = smul.u32 2, %s17
      %s242 = smul.u32 2, %s17
      %p243 = scmp.lt.s32.totalorder %s242, 3
      %s244 = scalar_select %p243, %s242, 3
      %s245 = smul.addr %s244, 2
      %s246 = scalar_lea.vmem %s5, %s245
      %s247 = smul.u32 2, %s17
      %v249 = vld [vmem:[%s240] sm:$0xf]
      %v250 = vunpack.c.l.bf16 %v249
      %v251 = vld [vmem:[%s0] sm:$0x3]
      %v252 = vld [vmem:[%s234] sm:$0x3]
      %v253 = vld [vmem:[%s2] sm:$0xf]
      %255 = vset.pattern.permute.xlu0 0
      %256 = vperm.xlu0 %255, %v253
      %v257 = vpop.permute.xlu0 %256
      %260 = vst [vmem:[#allocation1] ss:$9 sm:$0xff] %v252
      %v261 = vld [vmem:[#allocation1] sm:$0xff]
      %v262 = vld [vmem:[#allocation1 + $0x9] sm:$0xff]
      %vm263 = vcmask 15360
      %v265 = vsel %vm263, %v251, 0
      %vm267 = vcmask 1040384
      %v268 = vsel %vm267, %v261, 0
      %v270 = vsel %vm267, %v262, 0
      %272 = vmatpush.bf16.msra.mxu0 0
      %273 = vmatpush.bf16.msra.mxu0 0
      %274 = vmatpush.bf16.msra.mxu0 0
      %275 = vmatpush.bf16.msra.mxu0 0
      %276 = vmatpush.bf16.msra.mxu0 0
      %277 = vmatpush.bf16.msra.mxu0 0
      %278 = vmatpush.bf16.msra.mxu0 0
      %279 = vmatpush.bf16.msra.mxu0 %v268
      %280 = vmatmul.bf16.gmra.mxu0 %v265
      %v281 = vpop.f32.mrf.mxu0
      %v282 = vadd.f32 %v257, %v281
      %v283 = vpop.f32.mrf.mxu0
      %284 = vdwg.mxu0
      %285 = vmatpush.bf16.msra.mxu0 0
      %286 = vmatpush.bf16.msra.mxu0 0
      %287 = vmatpush.bf16.msra.mxu0 0
      %288 = vmatpush.bf16.msra.mxu0 0
      %289 = vmatpush.bf16.msra.mxu0 0
      %290 = vmatpush.bf16.msra.mxu0 0
      %291 = vmatpush.bf16.msra.mxu0 0
      %292 = vmatpush.bf16.msra.mxu0 %v270
      %293 = vmatmul.bf16.gmra.mxu0 %v265
      %v294 = vpop.f32.mrf.mxu0
      %v295 = vadd.f32 %v257, %v294
      %v296 = vpop.f32.mrf.mxu0
      %297 = vdwg.mxu0
      %299 = vst [vmem:[#allocation1] ss:$2 sm:$0xff] %v250
      %v300 = vld.sshfl [vmem:[#allocation1] sm:$0xff pattern:$0x75316420]
      %v301 = vld.sshfl [vmem:[#allocation1 + $0x8] sm:$0xff pattern:$0x75316420]
      %v304 = vadd.f32 %v282, %v300
      %v305 = vadd.f32 %v295, %v301
      %v306 = vpack.c.bf16 %v305, %v304
      %v308 = vrot.slane %v306, 2
      %vm309 = vcmask 1041408
      %v312 = vsel %vm309, %v306, %v308
      %314 = vst [vmem:[%s246] sm:$0xf] %v312
      %s315 = smul.u32 2, %s17
      %p316 = scmp.lt.s32.totalorder %s315, 3
      %s317 = scalar_select %p316, %s315, 3
      %s318 = smul.addr %s317, 2
      %s319 = scalar_lea.vmem %s5, %s318
      // Predicated region
      $region41: #{_lambda_.18} parent=39 // pred_check
        %p320 = pneg %p150
      $region42: #{_lambda_.18} parent=39 // pred_check_branch
        %322 = sbr.rel (%p320) target = $region44
      $region43: #{_lambda_.18} parent=39 // pred_region
        %s323 = smul.u32 2, %s17
      $region44: #{_lambda_.18} parent=39 // pred_fallthru
        _
    $region40: #{_lambda_.18} parent=5 // pred_fallthru
      _
    %p324 = scmp.le.s32.totalorder 2, %s12
    // Predicated region
    $region45: #{_lambda_.18} parent=5 // pred_check
      %p325 = pneg %p324
    $region46: #{_lambda_.18} parent=5 // pred_check_branch
      %327 = sbr.rel (%p325) target = $region48
    $region47: #{_lambda_.18} parent=5 // pred_region
      %s328 = ssub.s32 %s12, 2
      // Predicated region
      $region49: #{_lambda_.18} parent=47 // pred_check
        %p329 = pneg %p156
      $region50: #{_lambda_.18} parent=47 // pred_check_branch
        %331 = sbr.rel (%p329) target = $region52
      $region51: #{_lambda_.18} parent=47 // pred_region
        %s332 = smul.u32 2, %s18
        %p333 = scmp.lt.s32.totalorder %s332, 3
        %s334 = scalar_select %p333, %s332, 3
        %s335 = smul.addr %s334, 2
        %s336 = scalar_lea.vmem %s5, %s335
      $region52: #{_lambda_.18} parent=47 // pred_fallthru
        _
    $region48: #{_lambda_.18} parent=5 // pred_fallthru
      _
  $region6: #{_lambda_.18} parent=0 // loop_footer
    %s16 = sadd.s32 1, %s12
  $region7: #{_lambda_.18} parent=0 // loop_footer_branch
    %11 = sbr.rel target = $region3
  $region8: #{_lambda_.18} parent=0 // loop_exit
    _

// kernel: _lambda_.16
$region0: #{_lambda_.16}
  #allocation0 [shape = 'u32[]', space=smem, size = 0x4, offset = 0x4, fixed_abs, tag = 'smem constant byte address 0x4 - core index']
  #allocation1 [shape = 'u32[72,128]{1,0:T(1,128)}', space=vmem, size = 0x9000, scoped, tag = 'internal scratch']
  #allocation2 [shape = 'f32[1]{0:T(128)S(6)}', space=smem, size = 0x200, scoped, tag = 'scoped memory for _lambda_.16']
  %s0 = inlined_call_operand.vmem [shape: bf16[6,4], index: 0, kind: input, shape index: {}]
  %s1 = inlined_call_operand.vmem [shape: bf16[4,512], index: 1, kind: input, shape index: {}]
  %s2 = inlined_call_operand.vmem [shape: f32[6,1], index: 2, kind: input, shape index: {}]
  %s3 = inlined_call_operand.<no memory space> [shape: f32[1], index: 3, kind: input, shape index: {}]
  %s4 = inlined_call_operand.vmem [shape: bf16[6,512], index: 4, kind: output, shape index: {}]
  %s5 = sld [smem:[#allocation0]]
  $region49: #{_lambda_.16} parent=0
    _
  %s7 = ssub.s32 1, %s5
  %s8 = scalar_select 0, %s7, %s5
  %9 = sst [smem:[#allocation2]] %s3
  loop: start=0, step=1, limit=4
  $region2: #{_lambda_.16} parent=0 // loop_pre_header
    _
  $region3: #{_lambda_.16} parent=0 // loop_header
    %s11 = sphi 0, %s15
    %p12 = scmp.ge.s32.totalorder %s11, 4
    %s19 = sphi 0, %s19
    %s21 = sphi 0, %s19
    %s22 = sphi 0, %s21
    %s36 = sphi 0, %s22
    %s42 = sphi 0, %s44
    %s45 = sphi 0, %s42
    %s46 = sphi 0, %s45
    %s62 = sphi 0, %s46
    %s66 = sphi 0, %s66
    %s68 = sphi 0, %s66
    %s69 = sphi 0, %s68
    %s83 = sphi 0, %s69
    %s87 = sphi 0, %s87
    %s89 = sphi 0, %s87
    %s90 = sphi 0, %s89
    %s104 = sphi 0, %s90
    %s110 = sphi 0, %s112
    %s113 = sphi 0, %s110
    %s114 = sphi 0, %s113
    %s130 = sphi 0, %s114
  $region4: #{_lambda_.16} parent=0 // loop_header_branch
    %14 = sbr.rel (%p12) target = $region8
  $region5: #{_lambda_.16} parent=0 // loop_body
    %s16 = ssub.s32 %s11, 1
    %s17 = ssub.s32 %s11, 2
    %s18 = sadd.s32 %s11, 1
    %s20 = sadd.s32 %s19, 1
    %p23 = scmp.eq.s32.totalorder %s11, 1
    %p24 = scmp.ne.s32.totalorder %s19, %s21
    %p25 = scmp.eq.s32.totalorder %s11, 0
    %p26 = por %p24, %p25
    %p27 = scmp.ne.s32.totalorder %s19, %s21
    %p28 = scmp.eq.s32.totalorder %s16, 1
    %p29 = por %p27, %p28
    %p30 = scmp.ne.s32.totalorder %s21, %s22
    %p31 = scmp.eq.s32.totalorder %s16, 0
    %p32 = por %p30, %p31
    %p33 = scmp.ne.s32.totalorder %s21, %s22
    %p34 = scmp.eq.s32.totalorder %s17, 1
    %p35 = por %p33, %p34
    %p37 = scmp.ne.s32.totalorder %s22, %s36
    %p38 = scmp.eq.s32.totalorder %s17, 0
    %p39 = por %p37, %p38
    %s40 = ssub.s32 %s11, %s18
    %p41 = scmp.eq.s32.totalorder %s40, 0
    %s43 = sadd.s32 %s42, 1
    %s44 = scalar_select %p41, %s42, %s43
    %p47 = pneg %p41
    %p48 = scmp.eq.s32.totalorder %s11, 1
    %p49 = por %p47, %p48
    %p50 = scmp.ne.s32.totalorder %s42, %s45
    %p51 = scmp.eq.s32.totalorder %s11, 0
    %p52 = por %p50, %p51
    %p53 = scmp.ne.s32.totalorder %s42, %s45
    %p54 = scmp.eq.s32.totalorder %s16, 1
    %p55 = por %p53, %p54
    %p56 = scmp.ne.s32.totalorder %s45, %s46
    %p57 = scmp.eq.s32.totalorder %s16, 0
    %p58 = por %p56, %p57
    %p59 = scmp.ne.s32.totalorder %s45, %s46
    %p60 = scmp.eq.s32.totalorder %s17, 1
    %p61 = por %p59, %p60
    %p63 = scmp.ne.s32.totalorder %s46, %s62
    %p64 = scmp.eq.s32.totalorder %s17, 0
    %p65 = por %p63, %p64
    %s67 = sadd.s32 %s66, 1
    %p70 = scmp.eq.s32.totalorder %s11, 1
    %p71 = scmp.ne.s32.totalorder %s66, %s68
    %p72 = scmp.eq.s32.totalorder %s11, 0
    %p73 = por %p71, %p72
    %p74 = scmp.ne.s32.totalorder %s66, %s68
    %p75 = scmp.eq.s32.totalorder %s16, 1
    %p76 = por %p74, %p75
    %p77 = scmp.ne.s32.totalorder %s68, %s69
    %p78 = scmp.eq.s32.totalorder %s16, 0
    %p79 = por %p77, %p78
    %p80 = scmp.ne.s32.totalorder %s68, %s69
    %p81 = scmp.eq.s32.totalorder %s17, 1
    %p82 = por %p80, %p81
    %p84 = scmp.ne.s32.totalorder %s69, %s83
    %p85 = scmp.eq.s32.totalorder %s17, 0
    %p86 = por %p84, %p85
    %s88 = sadd.s32 %s87, 1
    %p91 = scmp.eq.s32.totalorder %s11, 1
    %p92 = scmp.ne.s32.totalorder %s87, %s89
    %p93 = scmp.eq.s32.totalorder %s11, 0
    %p94 = por %p92, %p93
    %p95 = scmp.ne.s32.totalorder %s87, %s89
    %p96 = scmp.eq.s32.totalorder %s16, 1
    %p97 = por %p95, %p96
    %p98 = scmp.ne.s32.totalorder %s89, %s90
    %p99 = scmp.eq.s32.totalorder %s16, 0
    %p100 = por %p98, %p99
    %p101 = scmp.ne.s32.totalorder %s89, %s90
    %p102 = scmp.eq.s32.totalorder %s17, 1
    %p103 = por %p101, %p102
    %p105 = scmp.ne.s32.totalorder %s90, %s104
    %p106 = scmp.eq.s32.totalorder %s17, 0
    %p107 = por %p105, %p106
    %s108 = ssub.s32 %s11, %s18
    %p109 = scmp.eq.s32.totalorder %s108, 0
    %s111 = sadd.s32 %s110, 1
    %s112 = scalar_select %p109, %s110, %s111
    %p115 = pneg %p109
    %p116 = scmp.eq.s32.totalorder %s11, 1
    %p117 = por %p115, %p116
    %p118 = scmp.ne.s32.totalorder %s110, %s113
    %p119 = scmp.eq.s32.totalorder %s11, 0
    %p120 = por %p118, %p119
    %p121 = scmp.ne.s32.totalorder %s110, %s113
    %p122 = scmp.eq.s32.totalorder %s16, 1
    %p123 = por %p121, %p122
    %p124 = scmp.ne.s32.totalorder %s113, %s114
    %p125 = scmp.eq.s32.totalorder %s16, 0
    %p126 = por %p124, %p125
    %p127 = scmp.ne.s32.totalorder %s113, %s114
    %p128 = scmp.eq.s32.totalorder %s17, 1
    %p129 = por %p127, %p128
    %p131 = scmp.ne.s32.totalorder %s114, %s130
    %p132 = scmp.eq.s32.totalorder %s17, 0
    %p133 = por %p131, %p132
    %p134 = scmp.le.s32.totalorder 1, %s11
    %p135 = scmp.lt.s32.totalorder %s11, 3
    %p136 = pnand %p134, %p135
    %p137 = pneg %p136
    // Predicated region
    $region9: #{_lambda_.16} parent=5 // pred_check
      _
    $region10: #{_lambda_.16} parent=5 // pred_check_branch
      %139 = sbr.rel (%p136) target = $region12
    $region11: #{_lambda_.16} parent=5 // pred_region
      %s140 = ssub.s32 %s11, 1
      // Predicated region
      $region13: #{_lambda_.16} parent=11 // pred_check
        %p141 = pneg %p32
      $region14: #{_lambda_.16} parent=11 // pred_check_branch
        %143 = sbr.rel (%p141) target = $region16
      $region15: #{_lambda_.16} parent=11 // pred_region
        _
      $region16: #{_lambda_.16} parent=11 // pred_fallthru
        _
      // Predicated region
      $region17: #{_lambda_.16} parent=11 // pred_check
        %p144 = pneg %p79
      $region18: #{_lambda_.16} parent=11 // pred_check_branch
        %146 = sbr.rel (%p144) target = $region20
      $region19: #{_lambda_.16} parent=11 // pred_region
        _
      $region20: #{_lambda_.16} parent=11 // pred_fallthru
        _
      // Predicated region
      $region21: #{_lambda_.16} parent=11 // pred_check
        %p147 = pneg %p100
      $region22: #{_lambda_.16} parent=11 // pred_check_branch
        %149 = sbr.rel (%p147) target = $region24
      $region23: #{_lambda_.16} parent=11 // pred_region
        _
      $region24: #{_lambda_.16} parent=11 // pred_fallthru
        _
    $region12: #{_lambda_.16} parent=5 // pred_fallthru
      _
    %p150 = scmp.lt.s32.totalorder %s11, 2
    // Predicated region
    $region25: #{_lambda_.16} parent=5 // pred_check
      %p151 = pneg %p150
    $region26: #{_lambda_.16} parent=5 // pred_check_branch
      %153 = sbr.rel (%p151) target = $region28
    $region27: #{_lambda_.16} parent=5 // pred_region
      // Predicated region
      $region29: #{_lambda_.16} parent=27 // pred_check
        %p154 = pneg %p52
      $region30: #{_lambda_.16} parent=27 // pred_check_branch
        %156 = sbr.rel (%p154) target = $region32
      $region31: #{_lambda_.16} parent=27 // pred_region
        %s157 = smul.u32 2, %s11
        %p158 = scmp.lt.s32.totalorder %s157, 3
        %s159 = scalar_select %p158, %s157, 3
        %s160 = smul.addr %s159, 2
        %s161 = scalar_lea.vmem %s1, %s160
        %s162 = smul.u32 2, %s11
      $region32: #{_lambda_.16} parent=27 // pred_fallthru
        _
    $region28: #{_lambda_.16} parent=5 // pred_fallthru
      _
    %p163 = scmp.le.s32.totalorder 1, %s11
    %p164 = scmp.lt.s32.totalorder %s11, 3
    %p165 = pnand %p163, %p164
    %p166 = pneg %p165
    // Predicated region
    $region33: #{_lambda_.16} parent=5 // pred_check
      _
    $region34: #{_lambda_.16} parent=5 // pred_check_branch
      %168 = sbr.rel (%p165) target = $region36
    $region35: #{_lambda_.16} parent=5 // pred_region
      %s169 = ssub.s32 %s11, 1
      %p170 = pneg %p32
      %p171 = pneg %p29
      %s172 = smul.u32 2, %s16
      %p173 = scmp.lt.s32.totalorder %s172, 3
      %s174 = scalar_select %p173, %s172, 3
      %s175 = smul.addr %s174, 2
      %s176 = scalar_lea.vmem %s1, %s175
      %p177 = pneg %p58
      %p178 = pneg %p55
      %p179 = pneg %p79
      %p180 = pneg %p76
      %p181 = pneg %p100
      %p182 = pneg %p97
      %p183 = pneg %p126
      %p184 = pneg %p123
      %s185 = smul.u32 2, %s16
      %p186 = scmp.lt.s32.totalorder %s185, 3
      %s187 = scalar_select %p186, %s185, 3
      %s188 = smul.addr %s187, 4
      %s189 = scalar_lea.vmem %s4, %s188
      %s190 = smul.u32 2, %s16
      %p191 = scmp.lt.s32.totalorder %s190, 3
      %s192 = scalar_select %p191, %s190, 3
      %s193 = smul.addr %s192, 2
      %s194 = scalar_lea.vmem %s1, %s193
      %s195 = smul.u32 2, %s16
      %s196 = smul.u32 2, %s16
      %p197 = scmp.lt.s32.totalorder %s196, 3
      %s198 = scalar_select %p197, %s196, 3
      %s199 = smul.addr %s198, 4
      %s200 = scalar_lea.vmem %s4, %s199
      %s201 = smul.u32 2, %s16
      %v203 = vld [vmem:[%s0] sm:$0x7]
      %v204 = vld [vmem:[%s194] sm:$0xf]
      %v205 = vld [vmem:[%s2] sm:$0x3f]
      %207 = vset.pattern.permute.xlu0 0
      %208 = vperm.xlu0 %207, %v205
      %v209 = vpop.permute.xlu0 %208
      %212 = vst [vmem:[#allocation1] ss:$4 sm:$0xff] %v204
      %v213 = vld.sshfl [vmem:[#allocation1] sm:$0xff pattern:$0x73625140]
      %v214 = vld.sshfl [vmem:[#allocation1 + $0x8] sm:$0xff pattern:$0x73625140]
      %vm215 = vcmask 31744
      %v217 = vsel %vm215, %v203, 0
      %vm219 = vcmask 1041408
      %v220 = vsel %vm219, %v213, 0
      %v222 = vsel %vm219, %v214, 0
      %224 = vmatpush.bf16.msra.mxu0 0
      %225 = vmatpush.bf16.msra.mxu0 0
      %226 = vmatpush.bf16.msra.mxu0 0
      %227 = vmatpush.bf16.msra.mxu0 0
      %228 = vmatpush.bf16.msra.mxu0 0
      %229 = vmatpush.bf16.msra.mxu0 0
      %230 = vmatpush.bf16.msra.mxu0 0
      %231 = vmatpush.bf16.msra.mxu0 %v220
      %232 = vmatmul.bf16.gmra.mxu0 %v217
      %v233 = vpop.f32.mrf.mxu0
      %v234 = vadd.f32 %v209, %v233
      %v235 = vpop.f32.mrf.mxu0
      %236 = vdwg.mxu0
      %237 = vmatpush.bf16.msra.mxu0 0
      %238 = vmatpush.bf16.msra.mxu0 0
      %239 = vmatpush.bf16.msra.mxu0 0
      %240 = vmatpush.bf16.msra.mxu0 0
      %241 = vmatpush.bf16.msra.mxu0 0
      %242 = vmatpush.bf16.msra.mxu0 0
      %243 = vmatpush.bf16.msra.mxu0 0
      %244 = vmatpush.bf16.msra.mxu0 %v222
      %245 = vmatmul.bf16.gmra.mxu0 %v217
      %v246 = vpop.f32.mrf.mxu0
      %v247 = vadd.f32 %v209, %v246
      %v248 = vpop.f32.mrf.mxu0
      %249 = vdwg.mxu0
      %v250 = vpack.c.bf16 %v247, %v234
      %251 = vst [vmem:[%s200] sm:$0x77] %v250
      %s252 = smul.u32 2, %s16
      %p253 = scmp.lt.s32.totalorder %s252, 3
      %s254 = scalar_select %p253, %s252, 3
      %s255 = smul.addr %s254, 4
      %s256 = scalar_lea.vmem %s4, %s255
      // Predicated region
      $region37: #{_lambda_.16} parent=35 // pred_check
        %p257 = pneg %p123
      $region38: #{_lambda_.16} parent=35 // pred_check_branch
        %259 = sbr.rel (%p257) target = $region40
      $region39: #{_lambda_.16} parent=35 // pred_region
        %s260 = smul.u32 2, %s16
      $region40: #{_lambda_.16} parent=35 // pred_fallthru
        _
    $region36: #{_lambda_.16} parent=5 // pred_fallthru
      _
    %p261 = scmp.le.s32.totalorder 2, %s11
    // Predicated region
    $region41: #{_lambda_.16} parent=5 // pred_check
      %p262 = pneg %p261
    $region42: #{_lambda_.16} parent=5 // pred_check_branch
      %264 = sbr.rel (%p262) target = $region44
    $region43: #{_lambda_.16} parent=5 // pred_region
      %s265 = ssub.s32 %s11, 2
      // Predicated region
      $region45: #{_lambda_.16} parent=43 // pred_check
        %p266 = pneg %p129
      $region46: #{_lambda_.16} parent=43 // pred_check_branch
        %268 = sbr.rel (%p266) target = $region48
      $region47: #{_lambda_.16} parent=43 // pred_region
        %s269 = smul.u32 2, %s17
        %p270 = scmp.lt.s32.totalorder %s269, 3
        %s271 = scalar_select %p270, %s269, 3
        %s272 = smul.addr %s271, 4
        %s273 = scalar_lea.vmem %s4, %s272
      $region48: #{_lambda_.16} parent=43 // pred_fallthru
        _
    $region44: #{_lambda_.16} parent=5 // pred_fallthru
      _
  $region6: #{_lambda_.16} parent=0 // loop_footer
    %s15 = sadd.s32 1, %s11
  $region7: #{_lambda_.16} parent=0 // loop_footer_branch
    %10 = sbr.rel target = $region3
  $region8: #{_lambda_.16} parent=0 // loop_exit
    _

// kernel: _lambda_.17
$region0: #{_lambda_.17}
  #allocation0 [shape = 'u32[]', space=smem, size = 0x4, offset = 0x4, fixed_abs, tag = 'smem constant byte address 0x4 - core index']
  #allocation1 [shape = 'u32[72,128]{1,0:T(1,128)}', space=vmem, size = 0x9000, scoped, tag = 'internal scratch']
  #allocation2 [shape = 'f32[1,256]{1,0:T(1,128)}', space=vmem, size = 0x400, scoped, tag = 'scratch operand']
  #allocation3 [shape = 'f32[1,256]{1,0:T(1,128)}', space=vmem, size = 0x400, scoped, tag = 'scratch operand']
  #allocation4 [shape = 'f32[2,256]{1,0:T(2,128)}', space=vmem, size = 0x800, scoped, tag = 'scratch operand']
  %s0 = inlined_call_operand.vmem [shape: bf16[2,512], index: 0, kind: input, shape index: {}]
  %s1 = inlined_call_operand.vmem [shape: bf16[2,512], index: 1, kind: input, shape index: {}]
  %s2 = inlined_call_operand.vmem [shape: bf16[2,512], index: 2, kind: input, shape index: {}]
  %s3 = inlined_call_operand.vmem [shape: bf16[2,512], index: 3, kind: output, shape index: {}]
  %s4 = sld [smem:[#allocation0]]
  $region53: #{_lambda_.17} parent=0
    _
  %s6 = ssub.s32 1, %s4
  %s7 = scalar_select 0, %s6, %s4
  loop: start=0, step=1, limit=4
  $region2: #{_lambda_.17} parent=0 // loop_pre_header
    _
  $region3: #{_lambda_.17} parent=0 // loop_header
    %s9 = sphi 0, %s13
    %p10 = scmp.ge.s32.totalorder %s9, 4
    %s16 = sphi 0, %s35
    %s17 = sphi 0, %s31
    %s18 = sphi 0, %s27
    %s19 = sphi 0, %s16
    %s20 = sphi 0, %s17
    %s21 = sphi 0, %s18
    %s22 = sphi 0, %s19
    %s23 = sphi 0, %s20
    %s24 = sphi 0, %s21
    %s40 = sphi 0, %s42
    %s43 = sphi 0, %s40
    %s44 = sphi 0, %s43
    %s60 = sphi 0, %s44
    %s68 = sphi 0, %s70
    %s71 = sphi 0, %s68
    %s72 = sphi 0, %s71
    %s88 = sphi 0, %s72
    %s96 = sphi 0, %s98
    %s99 = sphi 0, %s96
    %s100 = sphi 0, %s99
    %s116 = sphi 0, %s100
    %s124 = sphi 0, %s126
    %s127 = sphi 0, %s124
    %s128 = sphi 0, %s127
    %s144 = sphi 0, %s128
  $region4: #{_lambda_.17} parent=0 // loop_header_branch
    %12 = sbr.rel (%p10) target = $region8
  $region5: #{_lambda_.17} parent=0 // loop_body
    %s14 = ssub.s32 %s9, 1
    %s15 = ssub.s32 %s9, 2
    %s25 = sadd.s32 1, %s18
    %p26 = scmp.ge.s32.totalorder %s25, 1
    %s27 = scalar_select %p26, 0, %s25
    %s28 = sadd.s32 1, %s17
    %s29 = scalar_select %p26, %s28, %s17
    %p30 = scmp.ge.s32.totalorder %s29, 1
    %s31 = scalar_select %p30, 0, %s29
    %s32 = sadd.s32 1, %s16
    %s33 = scalar_select %p30, %s32, %s16
    %p34 = scmp.ge.s32.totalorder %s33, 2
    %s35 = scalar_select %p34, 0, %s33
    %s36 = sadd.s32 %s16, %s17
    %s37 = sadd.s32 %s35, %s31
    %s38 = ssub.s32 %s36, %s37
    %p39 = scmp.eq.s32.totalorder %s38, 0
    %s41 = sadd.s32 %s40, 1
    %s42 = scalar_select %p39, %s40, %s41
    %p45 = pneg %p39
    %p46 = scmp.eq.s32.totalorder %s9, 1
    %p47 = por %p45, %p46
    %p48 = scmp.ne.s32.totalorder %s40, %s43
    %p49 = scmp.eq.s32.totalorder %s9, 0
    %p50 = por %p48, %p49
    %p51 = scmp.ne.s32.totalorder %s40, %s43
    %p52 = scmp.eq.s32.totalorder %s14, 1
    %p53 = por %p51, %p52
    %p54 = scmp.ne.s32.totalorder %s43, %s44
    %p55 = scmp.eq.s32.totalorder %s14, 0
    %p56 = por %p54, %p55
    %p57 = scmp.ne.s32.totalorder %s43, %s44
    %p58 = scmp.eq.s32.totalorder %s15, 1
    %p59 = por %p57, %p58
    %p61 = scmp.ne.s32.totalorder %s44, %s60
    %p62 = scmp.eq.s32.totalorder %s15, 0
    %p63 = por %p61, %p62
    %s64 = sadd.s32 %s16, %s18
    %s65 = sadd.s32 %s35, %s27
    %s66 = ssub.s32 %s64, %s65
    %p67 = scmp.eq.s32.totalorder %s66, 0
    %s69 = sadd.s32 %s68, 1
    %s70 = scalar_select %p67, %s68, %s69
    %p73 = pneg %p67
    %p74 = scmp.eq.s32.totalorder %s9, 1
    %p75 = por %p73, %p74
    %p76 = scmp.ne.s32.totalorder %s68, %s71
    %p77 = scmp.eq.s32.totalorder %s9, 0
    %p78 = por %p76, %p77
    %p79 = scmp.ne.s32.totalorder %s68, %s71
    %p80 = scmp.eq.s32.totalorder %s14, 1
    %p81 = por %p79, %p80
    %p82 = scmp.ne.s32.totalorder %s71, %s72
    %p83 = scmp.eq.s32.totalorder %s14, 0
    %p84 = por %p82, %p83
    %p85 = scmp.ne.s32.totalorder %s71, %s72
    %p86 = scmp.eq.s32.totalorder %s15, 1
    %p87 = por %p85, %p86
    %p89 = scmp.ne.s32.totalorder %s72, %s88
    %p90 = scmp.eq.s32.totalorder %s15, 0
    %p91 = por %p89, %p90
    %s92 = sadd.s32 %s16, %s18
    %s93 = sadd.s32 %s35, %s27
    %s94 = ssub.s32 %s92, %s93
    %p95 = scmp.eq.s32.totalorder %s94, 0
    %s97 = sadd.s32 %s96, 1
    %s98 = scalar_select %p95, %s96, %s97
    %p101 = pneg %p95
    %p102 = scmp.eq.s32.totalorder %s9, 1
    %p103 = por %p101, %p102
    %p104 = scmp.ne.s32.totalorder %s96, %s99
    %p105 = scmp.eq.s32.totalorder %s9, 0
    %p106 = por %p104, %p105
    %p107 = scmp.ne.s32.totalorder %s96, %s99
    %p108 = scmp.eq.s32.totalorder %s14, 1
    %p109 = por %p107, %p108
    %p110 = scmp.ne.s32.totalorder %s99, %s100
    %p111 = scmp.eq.s32.totalorder %s14, 0
    %p112 = por %p110, %p111
    %p113 = scmp.ne.s32.totalorder %s99, %s100
    %p114 = scmp.eq.s32.totalorder %s15, 1
    %p115 = por %p113, %p114
    %p117 = scmp.ne.s32.totalorder %s100, %s116
    %p118 = scmp.eq.s32.totalorder %s15, 0
    %p119 = por %p117, %p118
    %s120 = sadd.s32 %s16, %s17
    %s121 = sadd.s32 %s35, %s31
    %s122 = ssub.s32 %s120, %s121
    %p123 = scmp.eq.s32.totalorder %s122, 0
    %s125 = sadd.s32 %s124, 1
    %s126 = scalar_select %p123, %s124, %s125
    %p129 = pneg %p123
    %p130 = scmp.eq.s32.totalorder %s9, 1
    %p131 = por %p129, %p130
    %p132 = scmp.ne.s32.totalorder %s124, %s127
    %p133 = scmp.eq.s32.totalorder %s9, 0
    %p134 = por %p132, %p133
    %p135 = scmp.ne.s32.totalorder %s124, %s127
    %p136 = scmp.eq.s32.totalorder %s14, 1
    %p137 = por %p135, %p136
    %p138 = scmp.ne.s32.totalorder %s127, %s128
    %p139 = scmp.eq.s32.totalorder %s14, 0
    %p140 = por %p138, %p139
    %p141 = scmp.ne.s32.totalorder %s127, %s128
    %p142 = scmp.eq.s32.totalorder %s15, 1
    %p143 = por %p141, %p142
    %p145 = scmp.ne.s32.totalorder %s128, %s144
    %p146 = scmp.eq.s32.totalorder %s15, 0
    %p147 = por %p145, %p146
    %p148 = scmp.le.s32.totalorder 1, %s9
    %p149 = scmp.lt.s32.totalorder %s9, 3
    %p150 = pnand %p148, %p149
    %p151 = pneg %p150
    // Predicated region
    $region9: #{_lambda_.17} parent=5 // pred_check
      _
    $region10: #{_lambda_.17} parent=5 // pred_check_branch
      %153 = sbr.rel (%p150) target = $region12
    $region11: #{_lambda_.17} parent=5 // pred_region
      %s154 = ssub.s32 %s9, 1
    $region12: #{_lambda_.17} parent=5 // pred_fallthru
      _
    %p155 = scmp.lt.s32.totalorder %s9, 2
    // Predicated region
    $region13: #{_lambda_.17} parent=5 // pred_check
      %p156 = pneg %p155
    $region14: #{_lambda_.17} parent=5 // pred_check_branch
      %158 = sbr.rel (%p156) target = $region16
    $region15: #{_lambda_.17} parent=5 // pred_region
      // Predicated region
      $region17: #{_lambda_.17} parent=15 // pred_check
        %p159 = pneg %p50
      $region18: #{_lambda_.17} parent=15 // pred_check_branch
        %161 = sbr.rel (%p159) target = $region20
      $region19: #{_lambda_.17} parent=15 // pred_region
        %s162 = sadd.s32 %s16, %s17
        %s163 = smul.u32 2, %s162
        %p164 = scmp.lt.s32.totalorder %s163, 3
        %s165 = scalar_select %p164, %s163, 3
        %s166 = scalar_lea.vmem %s0, %s165
        %s167 = sadd.s32 %s16, %s17
        %s168 = smul.u32 2, %s167
      $region20: #{_lambda_.17} parent=15 // pred_fallthru
        _
      // Predicated region
      $region21: #{_lambda_.17} parent=15 // pred_check
        %p169 = pneg %p78
      $region22: #{_lambda_.17} parent=15 // pred_check_branch
        %171 = sbr.rel (%p169) target = $region24
      $region23: #{_lambda_.17} parent=15 // pred_region
        %s172 = sadd.s32 %s16, %s18
        %s173 = smul.u32 2, %s172
        %p174 = scmp.lt.s32.totalorder %s173, 3
        %s175 = scalar_select %p174, %s173, 3
        %s176 = scalar_lea.vmem %s1, %s175
        %s177 = sadd.s32 %s16, %s18
        %s178 = smul.u32 2, %s177
      $region24: #{_lambda_.17} parent=15 // pred_fallthru
        _
      // Predicated region
      $region25: #{_lambda_.17} parent=15 // pred_check
        %p179 = pneg %p106
      $region26: #{_lambda_.17} parent=15 // pred_check_branch
        %181 = sbr.rel (%p179) target = $region28
      $region27: #{_lambda_.17} parent=15 // pred_region
        %s182 = sadd.s32 %s16, %s18
        %s183 = smul.u32 2, %s182
        %p184 = scmp.lt.s32.totalorder %s183, 3
        %s185 = scalar_select %p184, %s183, 3
        %s186 = scalar_lea.vmem %s2, %s185
        %s187 = sadd.s32 %s16, %s18
        %s188 = smul.u32 2, %s187
      $region28: #{_lambda_.17} parent=15 // pred_fallthru
        _
    $region16: #{_lambda_.17} parent=5 // pred_fallthru
      _
    %p189 = scmp.le.s32.totalorder 1, %s9
    %p190 = scmp.lt.s32.totalorder %s9, 3
    %p191 = pnand %p189, %p190
    %p192 = pneg %p191
    // Predicated region
    $region29: #{_lambda_.17} parent=5 // pred_check
      _
    $region30: #{_lambda_.17} parent=5 // pred_check_branch
      %194 = sbr.rel (%p191) target = $region32
    $region31: #{_lambda_.17} parent=5 // pred_region
      %s195 = ssub.s32 %s9, 1
      %s196 = sadd.s32 %s19, %s20
      %s197 = smul.u32 2, %s196
      %p198 = scmp.lt.s32.totalorder %s197, 3
      %s199 = scalar_select %p198, %s197, 3
      %s200 = scalar_lea.vmem %s0, %s199
      %p201 = pneg %p56
      %p202 = pneg %p53
      %s203 = sadd.s32 %s19, %s21
      %s204 = smul.u32 2, %s203
      %p205 = scmp.lt.s32.totalorder %s204, 3
      %s206 = scalar_select %p205, %s204, 3
      %s207 = scalar_lea.vmem %s1, %s206
      %p208 = pneg %p84
      %p209 = pneg %p81
      %s210 = sadd.s32 %s19, %s21
      %s211 = smul.u32 2, %s210
      %p212 = scmp.lt.s32.totalorder %s211, 3
      %s213 = scalar_select %p212, %s211, 3
      %s214 = scalar_lea.vmem %s2, %s213
      %p215 = pneg %p112
      %p216 = pneg %p109
      %p217 = pneg %p140
      %p218 = pneg %p137
      %s219 = sadd.s32 %s19, %s20
      %s220 = smul.u32 2, %s219
      %p221 = scmp.lt.s32.totalorder %s220, 3
      %s222 = scalar_select %p221, %s220, 3
      %s223 = scalar_lea.vmem %s3, %s222
      %s224 = sadd.s32 %s19, %s20
      %s225 = smul.u32 2, %s224
      %p226 = scmp.lt.s32.totalorder %s225, 3
      %s227 = scalar_select %p226, %s225, 3
      %s228 = scalar_lea.vmem %s0, %s227
      %s229 = sadd.s32 %s19, %s20
      %s230 = smul.u32 2, %s229
      %s231 = sadd.s32 %s19, %s21
      %s232 = smul.u32 2, %s231
      %p233 = scmp.lt.s32.totalorder %s232, 3
      %s234 = scalar_select %p233, %s232, 3
      %s235 = scalar_lea.vmem %s1, %s234
      %s236 = sadd.s32 %s19, %s21
      %s237 = smul.u32 2, %s236
      %s238 = sadd.s32 %s19, %s21
      %s239 = smul.u32 2, %s238
      %p240 = scmp.lt.s32.totalorder %s239, 3
      %s241 = scalar_select %p240, %s239, 3
      %s242 = scalar_lea.vmem %s2, %s241
      %s243 = sadd.s32 %s19, %s21
      %s244 = smul.u32 2, %s243
      %s245 = sadd.s32 %s19, %s20
      %s246 = smul.u32 2, %s245
      %p247 = scmp.lt.s32.totalorder %s246, 3
      %s248 = scalar_select %p247, %s246, 3
      %s249 = scalar_lea.vmem %s3, %s248
      %s250 = sadd.s32 %s19, %s20
      %s251 = smul.u32 2, %s250
      %p253 = scmp.eq.s32.totalorder %s21, 0
      // Predicated region
      $region33: #{_lambda_.17} parent=31 // pred_check
        %p254 = pneg %p253
      $region34: #{_lambda_.17} parent=31 // pred_check_branch
        %256 = sbr.rel (%p254) target = $region36
      $region35: #{_lambda_.17} parent=31 // pred_region
        %v257 = vlaneseq
        %vm258 = vcmp.ge.s32.totalorder %v257, 0
        %vm259 = vcmp.lt.s32.totalorder %v257, 256
        %vm260 = vmand %vm258, %vm259
        %261 = vst.msk [vmem:[#allocation2] sm:$0x3] %vm260, -inf
        %262 = vst.msk [vmem:[#allocation3] sm:$0x3] %vm260, 0.0
        %263 = vst [vmem:[#allocation4] sm:$0xf] 0.0
      $region36: #{_lambda_.17} parent=31 // pred_fallthru
        _
      %v264 = vld [vmem:[%s235] sm:$0x3]
      %v265 = vld [vmem:[%s228] sm:$0x3]
      %267 = vst [vmem:[#allocation1] ss:$9 sm:$0xff] %v264
      %v268 = vld [vmem:[#allocation1] sm:$0xff]
      %v269 = vld [vmem:[#allocation1 + $0x9] sm:$0xff]
      %272 = vxpose.binary.xlu0.c.b16.start [1/16] %v269, %v268, 128
      %273 = vxpose.binary.xlu0.c.b16.cont [2/16] 0, 0, 128
      %274 = vxpose.binary.xlu0.c.b16.cont [3/16] 0, 0, 128
      %275 = vxpose.binary.xlu0.c.b16.cont [4/16] 0, 0, 128
      %276 = vxpose.binary.xlu0.c.b16.cont [5/16] 0, 0, 128
      %277 = vxpose.binary.xlu0.c.b16.cont [6/16] 0, 0, 128
      %278 = vxpose.binary.xlu0.c.b16.cont [7/16] 0, 0, 128
      %279 = vxpose.binary.xlu0.c.b16.end [8/16] 0, 0, 128
      %v280 = vpop.trf.xlu0
      %v281 = vpop.trf.xlu0
      %v282 = vpop.trf.xlu0
      %v283 = vpop.trf.xlu0
      %v284 = vpop.trf.xlu0
      %v285 = vpop.trf.xlu0
      %v286 = vpop.trf.xlu0
      %v287 = vpop.trf.xlu0
      %v288 = vpop.trf.xlu0
      %v289 = vpop.trf.xlu0
      %v290 = vpop.trf.xlu0
      %v291 = vpop.trf.xlu0
      %v292 = vpop.trf.xlu0
      %v293 = vpop.trf.xlu0
      %v294 = vpop.trf.xlu0
      %v295 = vpop.trf.xlu0
      %297 = vst [vmem:[#allocation1] ss:$9 sm:$0xff] %v265
      %v298 = vld [vmem:[#allocation1] sm:$0xff]
      %v299 = vld [vmem:[#allocation1 + $0x9] sm:$0xff]
      %vm300 = vcmask 15360
      %v302 = vsel %vm300, %v280, 0
      %v305 = vsel %vm300, %v282, 0
      %v308 = vsel %vm300, %v284, 0
      %v311 = vsel %vm300, %v286, 0
      %v314 = vsel %vm300, %v288, 0
      %v317 = vsel %vm300, %v290, 0
      %v320 = vsel %vm300, %v292, 0
      %v323 = vsel %vm300, %v294, 0
      %v326 = vsel %vm300, %v281, 0
      %v329 = vsel %vm300, %v283, 0
      %v332 = vsel %vm300, %v285, 0
      %v335 = vsel %vm300, %v287, 0
      %v338 = vsel %vm300, %v289, 0
      %v341 = vsel %vm300, %v291, 0
      %v344 = vsel %vm300, %v293, 0
      %v347 = vsel %vm300, %v295, 0
      %vm349 = vcmask 1040384
      %v350 = vsel %vm349, %v298, 0
      %v352 = vsel %vm349, %v299, 0
      %354 = vmatpush.bf16.msra.mxu0 0
      %355 = vmatpush.bf16.msra.mxu0 0
      %356 = vmatpush.bf16.msra.mxu0 0
      %357 = vmatpush.bf16.msra.mxu0 0
      %358 = vmatpush.bf16.msra.mxu0 0
      %359 = vmatpush.bf16.msra.mxu0 0
      %360 = vmatpush.bf16.msra.mxu0 0
      %361 = vmatpush.bf16.msra.mxu0 %v350
      %362 = vmatmul.bf16.gmra.mxu0 %v302
      %v363 = vpop.f32.mrf.mxu0
      %v364 = vadd.f32 0.0, %v363
      %v365 = vpop.f32.mrf.mxu0
      %v366 = vadd.f32 0.0, %v365
      %367 = vmatmul.bf16.gmra.mxu0 %v305
      %v368 = vpop.f32.mrf.mxu0
      %v369 = vadd.f32 0.0, %v368
      %v370 = vpop.f32.mrf.mxu0
      %v371 = vadd.f32 0.0, %v370
      %372 = vmatmul.bf16.gmra.mxu0 %v308
      %v373 = vpop.f32.mrf.mxu0
      %v374 = vadd.f32 0.0, %v373
      %v375 = vpop.f32.mrf.mxu0
      %v376 = vadd.f32 0.0, %v375
      %377 = vmatmul.bf16.gmra.mxu0 %v311
      %v378 = vpop.f32.mrf.mxu0
      %v379 = vadd.f32 0.0, %v378
      %v380 = vpop.f32.mrf.mxu0
      %v381 = vadd.f32 0.0, %v380
      %382 = vmatmul.bf16.gmra.mxu0 %v314
      %v383 = vpop.f32.mrf.mxu0
      %v384 = vadd.f32 0.0, %v383
      %v385 = vpop.f32.mrf.mxu0
      %v386 = vadd.f32 0.0, %v385
      %387 = vmatmul.bf16.gmra.mxu0 %v317
      %v388 = vpop.f32.mrf.mxu0
      %v389 = vadd.f32 0.0, %v388
      %v390 = vpop.f32.mrf.mxu0
      %v391 = vadd.f32 0.0, %v390
      %392 = vmatmul.bf16.gmra.mxu0 %v320
      %v393 = vpop.f32.mrf.mxu0
      %v394 = vadd.f32 0.0, %v393
      %v395 = vpop.f32.mrf.mxu0
      %v396 = vadd.f32 0.0, %v395
      %397 = vmatmul.bf16.gmra.mxu0 %v323
      %v398 = vpop.f32.mrf.mxu0
      %v399 = vadd.f32 0.0, %v398
      %v400 = vpop.f32.mrf.mxu0
      %v401 = vadd.f32 0.0, %v400
      %402 = vmatmul.bf16.gmra.mxu0 %v326
      %v403 = vpop.f32.mrf.mxu0
      %v404 = vadd.f32 0.0, %v403
      %v405 = vpop.f32.mrf.mxu0
      %v406 = vadd.f32 0.0, %v405
      %407 = vmatmul.bf16.gmra.mxu0 %v329
      %v408 = vpop.f32.mrf.mxu0
      %v409 = vadd.f32 0.0, %v408
      %v410 = vpop.f32.mrf.mxu0
      %v411 = vadd.f32 0.0, %v410
      %412 = vmatmul.bf16.gmra.mxu0 %v332
      %v413 = vpop.f32.mrf.mxu0
      %v414 = vadd.f32 0.0, %v413
      %v415 = vpop.f32.mrf.mxu0
      %v416 = vadd.f32 0.0, %v415
      %417 = vmatmul.bf16.gmra.mxu0 %v335
      %v418 = vpop.f32.mrf.mxu0
      %v419 = vadd.f32 0.0, %v418
      %v420 = vpop.f32.mrf.mxu0
      %v421 = vadd.f32 0.0, %v420
      %422 = vmatmul.bf16.gmra.mxu0 %v338
      %v423 = vpop.f32.mrf.mxu0
      %v424 = vadd.f32 0.0, %v423
      %v425 = vpop.f32.mrf.mxu0
      %v426 = vadd.f32 0.0, %v425
      %427 = vmatmul.bf16.gmra.mxu0 %v341
      %v428 = vpop.f32.mrf.mxu0
      %v429 = vadd.f32 0.0, %v428
      %v430 = vpop.f32.mrf.mxu0
      %v431 = vadd.f32 0.0, %v430
      %432 = vmatmul.bf16.gmra.mxu0 %v344
      %v433 = vpop.f32.mrf.mxu0
      %v434 = vadd.f32 0.0, %v433
      %v435 = vpop.f32.mrf.mxu0
      %v436 = vadd.f32 0.0, %v435
      %437 = vmatmul.bf16.gmra.mxu0 %v347
      %v438 = vpop.f32.mrf.mxu0
      %v439 = vadd.f32 0.0, %v438
      %v440 = vpop.f32.mrf.mxu0
      %v441 = vadd.f32 0.0, %v440
      %442 = vdwg.mxu0
      %443 = vmatpush.bf16.msra.mxu0 0
      %444 = vmatpush.bf16.msra.mxu0 0
      %445 = vmatpush.bf16.msra.mxu0 0
      %446 = vmatpush.bf16.msra.mxu0 0
      %447 = vmatpush.bf16.msra.mxu0 0
      %448 = vmatpush.bf16.msra.mxu0 0
      %449 = vmatpush.bf16.msra.mxu0 0
      %450 = vmatpush.bf16.msra.mxu0 %v352
      %451 = vmatmul.bf16.gmra.mxu0 %v302
      %v452 = vpop.f32.mrf.mxu0
      %v453 = vadd.f32 0.0, %v452
      %v454 = vpop.f32.mrf.mxu0
      %v455 = vadd.f32 0.0, %v454
      %456 = vmatmul.bf16.gmra.mxu0 %v305
      %v457 = vpop.f32.mrf.mxu0
      %v458 = vadd.f32 0.0, %v457
      %v459 = vpop.f32.mrf.mxu0
      %v460 = vadd.f32 0.0, %v459
      %461 = vmatmul.bf16.gmra.mxu0 %v308
      %v462 = vpop.f32.mrf.mxu0
      %v463 = vadd.f32 0.0, %v462
      %v464 = vpop.f32.mrf.mxu0
      %v465 = vadd.f32 0.0, %v464
      %466 = vmatmul.bf16.gmra.mxu0 %v311
      %v467 = vpop.f32.mrf.mxu0
      %v468 = vadd.f32 0.0, %v467
      %v469 = vpop.f32.mrf.mxu0
      %v470 = vadd.f32 0.0, %v469
      %471 = vmatmul.bf16.gmra.mxu0 %v314
      %v472 = vpop.f32.mrf.mxu0
      %v473 = vadd.f32 0.0, %v472
      %v474 = vpop.f32.mrf.mxu0
      %v475 = vadd.f32 0.0, %v474
      %476 = vmatmul.bf16.gmra.mxu0 %v317
      %v477 = vpop.f32.mrf.mxu0
      %v478 = vadd.f32 0.0, %v477
      %v479 = vpop.f32.mrf.mxu0
      %v480 = vadd.f32 0.0, %v479
      %481 = vmatmul.bf16.gmra.mxu0 %v320
      %v482 = vpop.f32.mrf.mxu0
      %v483 = vadd.f32 0.0, %v482
      %v484 = vpop.f32.mrf.mxu0
      %v485 = vadd.f32 0.0, %v484
      %486 = vmatmul.bf16.gmra.mxu0 %v323
      %v487 = vpop.f32.mrf.mxu0
      %v488 = vadd.f32 0.0, %v487
      %v489 = vpop.f32.mrf.mxu0
      %v490 = vadd.f32 0.0, %v489
      %491 = vmatmul.bf16.gmra.mxu0 %v326
      %v492 = vpop.f32.mrf.mxu0
      %v493 = vadd.f32 0.0, %v492
      %v494 = vpop.f32.mrf.mxu0
      %v495 = vadd.f32 0.0, %v494
      %496 = vmatmul.bf16.gmra.mxu0 %v329
      %v497 = vpop.f32.mrf.mxu0
      %v498 = vadd.f32 0.0, %v497
      %v499 = vpop.f32.mrf.mxu0
      %v500 = vadd.f32 0.0, %v499
      %501 = vmatmul.bf16.gmra.mxu0 %v332
      %v502 = vpop.f32.mrf.mxu0
      %v503 = vadd.f32 0.0, %v502
      %v504 = vpop.f32.mrf.mxu0
      %v505 = vadd.f32 0.0, %v504
      %506 = vmatmul.bf16.gmra.mxu0 %v335
      %v507 = vpop.f32.mrf.mxu0
      %v508 = vadd.f32 0.0, %v507
      %v509 = vpop.f32.mrf.mxu0
      %v510 = vadd.f32 0.0, %v509
      %511 = vmatmul.bf16.gmra.mxu0 %v338
      %v512 = vpop.f32.mrf.mxu0
      %v513 = vadd.f32 0.0, %v512
      %v514 = vpop.f32.mrf.mxu0
      %v515 = vadd.f32 0.0, %v514
      %516 = vmatmul.bf16.gmra.mxu0 %v341
      %v517 = vpop.f32.mrf.mxu0
      %v518 = vadd.f32 0.0, %v517
      %v519 = vpop.f32.mrf.mxu0
      %v520 = vadd.f32 0.0, %v519
      %521 = vmatmul.bf16.gmra.mxu0 %v344
      %v522 = vpop.f32.mrf.mxu0
      %v523 = vadd.f32 0.0, %v522
      %v524 = vpop.f32.mrf.mxu0
      %v525 = vadd.f32 0.0, %v524
      %526 = vmatmul.bf16.gmra.mxu0 %v347
      %v527 = vpop.f32.mrf.mxu0
      %v528 = vadd.f32 0.0, %v527
      %v529 = vpop.f32.mrf.mxu0
      %v530 = vadd.f32 0.0, %v529
      %531 = vdwg.mxu0
      %v532 = vld [vmem:[#allocation2] sm:$0x3]
      %v533 = vmax.f32 %v364, %v369
      %v534 = vmax.f32 %v366, %v371
      %v535 = vmax.f32 %v533, %v374
      %v536 = vmax.f32 %v534, %v376
      %v537 = vmax.f32 %v535, %v379
      %v538 = vmax.f32 %v536, %v381
      %v539 = vmax.f32 %v537, %v384
      %v540 = vmax.f32 %v538, %v386
      %v541 = vmax.f32 %v539, %v389
      %v542 = vmax.f32 %v540, %v391
      %v543 = vmax.f32 %v541, %v394
      %v544 = vmax.f32 %v542, %v396
      %v545 = vmax.f32 %v543, %v399
      %v546 = vmax.f32 %v544, %v401
      %v547 = vmax.f32 %v545, %v404
      %v548 = vmax.f32 %v546, %v406
      %v549 = vmax.f32 %v547, %v409
      %v550 = vmax.f32 %v548, %v411
      %v551 = vmax.f32 %v549, %v414
      %v552 = vmax.f32 %v550, %v416
      %v553 = vmax.f32 %v551, %v419
      %v554 = vmax.f32 %v552, %v421
      %v555 = vmax.f32 %v553, %v424
      %v556 = vmax.f32 %v554, %v426
      %v557 = vmax.f32 %v555, %v429
      %v558 = vmax.f32 %v556, %v431
      %v559 = vmax.f32 %v557, %v434
      %v560 = vmax.f32 %v558, %v436
      %v561 = vmax.f32 %v559, %v439
      %v562 = vmax.f32 %v560, %v441
      %v563 = vmax.f32 %v561, %v562
      %v564 = vrot.slane %v563, 4
      %v565 = vmax.f32 %v563, %v564
      %v566 = vrot.slane %v565, 2
      %v567 = vmax.f32 %v565, %v566
      %v568 = vrot.slane %v567, 1
      %v569 = vmax.f32 %v567, %v568
      %v570 = vmax.f32 %v453, %v458
      %v571 = vmax.f32 %v455, %v460
      %v572 = vmax.f32 %v570, %v463
      %v573 = vmax.f32 %v571, %v465
      %v574 = vmax.f32 %v572, %v468
      %v575 = vmax.f32 %v573, %v470
      %v576 = vmax.f32 %v574, %v473
      %v577 = vmax.f32 %v575, %v475
      %v578 = vmax.f32 %v576, %v478
      %v579 = vmax.f32 %v577, %v480
      %v580 = vmax.f32 %v578, %v483
      %v581 = vmax.f32 %v579, %v485
      %v582 = vmax.f32 %v580, %v488
      %v583 = vmax.f32 %v581, %v490
      %v584 = vmax.f32 %v582, %v493
      %v585 = vmax.f32 %v583, %v495
      %v586 = vmax.f32 %v584, %v498
      %v587 = vmax.f32 %v585, %v500
      %v588 = vmax.f32 %v586, %v503
      %v589 = vmax.f32 %v587, %v505
      %v590 = vmax.f32 %v588, %v508
      %v591 = vmax.f32 %v589, %v510
      %v592 = vmax.f32 %v590, %v513
      %v593 = vmax.f32 %v591, %v515
      %v594 = vmax.f32 %v592, %v518
      %v595 = vmax.f32 %v593, %v520
      %v596 = vmax.f32 %v594, %v523
      %v597 = vmax.f32 %v595, %v525
      %v598 = vmax.f32 %v596, %v528
      %v599 = vmax.f32 %v597, %v530
      %v600 = vmax.f32 %v598, %v599
      %v601 = vrot.slane %v600, 4
      %v602 = vmax.f32 %v600, %v601
      %v603 = vrot.slane %v602, 2
      %v604 = vmax.f32 %v602, %v603
      %v605 = vrot.slane %v604, 1
      %v606 = vmax.f32 %v604, %v605
      %v609 = vrot.slane %v606, 7
      %v610 = vsel %vm349, %v569, %v609
      %v612 = vmax.f32 %v532, %v610
      %v613 = vsub.f32 %v532, %v612
      %v614 = vmul.f32 %v613, 1.442695
      %v615 = vpow.pop %v614
      %v617 = vperm.slane %v612, 0
      %v618 = vperm.slane %v612, 1
      %v621 = vsub.f32 %v364, %v617
      %v622 = vsub.f32 %v453, %v618
      %v623 = vsub.f32 %v366, %v617
      %v624 = vsub.f32 %v455, %v618
      %v625 = vsub.f32 %v369, %v617
      %v626 = vsub.f32 %v458, %v618
      %v627 = vsub.f32 %v371, %v617
      %v628 = vsub.f32 %v460, %v618
      %v629 = vsub.f32 %v374, %v617
      %v630 = vsub.f32 %v463, %v618
      %v631 = vsub.f32 %v376, %v617
      %v632 = vsub.f32 %v465, %v618
      %v633 = vsub.f32 %v379, %v617
      %v634 = vsub.f32 %v468, %v618
      %v635 = vsub.f32 %v381, %v617
      %v636 = vsub.f32 %v470, %v618
      %v637 = vsub.f32 %v384, %v617
      %v638 = vsub.f32 %v473, %v618
      %v639 = vsub.f32 %v386, %v617
      %v640 = vsub.f32 %v475, %v618
      %v641 = vsub.f32 %v389, %v617
      %v642 = vsub.f32 %v478, %v618
      %v643 = vsub.f32 %v391, %v617
      %v644 = vsub.f32 %v480, %v618
      %v645 = vsub.f32 %v394, %v617
      %v646 = vsub.f32 %v483, %v618
      %v647 = vsub.f32 %v396, %v617
      %v648 = vsub.f32 %v485, %v618
      %v649 = vsub.f32 %v399, %v617
      %v650 = vsub.f32 %v488, %v618
      %v651 = vsub.f32 %v401, %v617
      %v652 = vsub.f32 %v490, %v618
      %v653 = vsub.f32 %v404, %v617
      %v654 = vsub.f32 %v493, %v618
      %v655 = vsub.f32 %v406, %v617
      %v656 = vsub.f32 %v495, %v618
      %v657 = vsub.f32 %v409, %v617
      %v658 = vsub.f32 %v498, %v618
      %v659 = vsub.f32 %v411, %v617
      %v660 = vsub.f32 %v500, %v618
      %v661 = vsub.f32 %v414, %v617
      %v662 = vsub.f32 %v503, %v618
      %v663 = vsub.f32 %v416, %v617
      %v664 = vsub.f32 %v505, %v618
      %v665 = vsub.f32 %v419, %v617
      %v666 = vsub.f32 %v508, %v618
      %v667 = vsub.f32 %v421, %v617
      %v668 = vsub.f32 %v510, %v618
      %v669 = vsub.f32 %v424, %v617
      %v670 = vsub.f32 %v513, %v618
      %v671 = vsub.f32 %v426, %v617
      %v672 = vsub.f32 %v515, %v618
      %v673 = vsub.f32 %v429, %v617
      %v674 = vsub.f32 %v518, %v618
      %v675 = vsub.f32 %v431, %v617
      %v676 = vsub.f32 %v520, %v618
      %v677 = vsub.f32 %v434, %v617
      %v678 = vsub.f32 %v523, %v618
      %v679 = vsub.f32 %v436, %v617
      %v680 = vsub.f32 %v525, %v618
      %v681 = vsub.f32 %v439, %v617
      %v682 = vsub.f32 %v528, %v618
      %v683 = vsub.f32 %v441, %v617
      %v684 = vsub.f32 %v530, %v618
      %v685 = vmul.f32 %v621, 1.442695
      %v686 = vpow.pop %v685
      %v687 = vmul.f32 %v622, 1.442695
      %v688 = vpow.pop %v687
      %v689 = vmul.f32 %v623, 1.442695
      %v690 = vpow.pop %v689
      %v691 = vmul.f32 %v624, 1.442695
      %v692 = vpow.pop %v691
      %v693 = vmul.f32 %v625, 1.442695
      %v694 = vpow.pop %v693
      %v695 = vmul.f32 %v626, 1.442695
      %v696 = vpow.pop %v695
      %v697 = vmul.f32 %v627, 1.442695
      %v698 = vpow.pop %v697
      %v699 = vmul.f32 %v628, 1.442695
      %v700 = vpow.pop %v699
      %v701 = vmul.f32 %v629, 1.442695
      %v702 = vpow.pop %v701
      %v703 = vmul.f32 %v630, 1.442695
      %v704 = vpow.pop %v703
      %v705 = vmul.f32 %v631, 1.442695
      %v706 = vpow.pop %v705
      %v707 = vmul.f32 %v632, 1.442695
      %v708 = vpow.pop %v707
      %v709 = vmul.f32 %v633, 1.442695
      %v710 = vpow.pop %v709
      %v711 = vmul.f32 %v634, 1.442695
      %v712 = vpow.pop %v711
      %v713 = vmul.f32 %v635, 1.442695
      %v714 = vpow.pop %v713
      %v715 = vmul.f32 %v636, 1.442695
      %v716 = vpow.pop %v715
      %v717 = vmul.f32 %v637, 1.442695
      %v718 = vpow.pop %v717
      %v719 = vmul.f32 %v638, 1.442695
      %v720 = vpow.pop %v719
      %v721 = vmul.f32 %v639, 1.442695
      %v722 = vpow.pop %v721
      %v723 = vmul.f32 %v640, 1.442695
      %v724 = vpow.pop %v723
      %v725 = vmul.f32 %v641, 1.442695
      %v726 = vpow.pop %v725
      %v727 = vmul.f32 %v642, 1.442695
      %v728 = vpow.pop %v727
      %v729 = vmul.f32 %v643, 1.442695
      %v730 = vpow.pop %v729
      %v731 = vmul.f32 %v644, 1.442695
      %v732 = vpow.pop %v731
      %v733 = vmul.f32 %v645, 1.442695
      %v734 = vpow.pop %v733
      %v735 = vmul.f32 %v646, 1.442695
      %v736 = vpow.pop %v735
      %v737 = vmul.f32 %v647, 1.442695
      %v738 = vpow.pop %v737
      %v739 = vmul.f32 %v648, 1.442695
      %v740 = vpow.pop %v739
      %v741 = vmul.f32 %v649, 1.442695
      %v742 = vpow.pop %v741
      %v743 = vmul.f32 %v650, 1.442695
      %v744 = vpow.pop %v743
      %v745 = vmul.f32 %v651, 1.442695
      %v746 = vpow.pop %v745
      %v747 = vmul.f32 %v652, 1.442695
      %v748 = vpow.pop %v747
      %v749 = vmul.f32 %v653, 1.442695
      %v750 = vpow.pop %v749
      %v751 = vmul.f32 %v654, 1.442695
      %v752 = vpow.pop %v751
      %v753 = vmul.f32 %v655, 1.442695
      %v754 = vpow.pop %v753
      %v755 = vmul.f32 %v656, 1.442695
      %v756 = vpow.pop %v755
      %v757 = vmul.f32 %v657, 1.442695
      %v758 = vpow.pop %v757
      %v759 = vmul.f32 %v658, 1.442695
      %v760 = vpow.pop %v759
      %v761 = vmul.f32 %v659, 1.442695
      %v762 = vpow.pop %v761
      %v763 = vmul.f32 %v660, 1.442695
      %v764 = vpow.pop %v763
      %v765 = vmul.f32 %v661, 1.442695
      %v766 = vpow.pop %v765
      %v767 = vmul.f32 %v662, 1.442695
      %v768 = vpow.pop %v767
      %v769 = vmul.f32 %v663, 1.442695
      %v770 = vpow.pop %v769
      %v771 = vmul.f32 %v664, 1.442695
      %v772 = vpow.pop %v771
      %v773 = vmul.f32 %v665, 1.442695
      %v774 = vpow.pop %v773
      %v775 = vmul.f32 %v666, 1.442695
      %v776 = vpow.pop %v775
      %v777 = vmul.f32 %v667, 1.442695
      %v778 = vpow.pop %v777
      %v779 = vmul.f32 %v668, 1.442695
      %v780 = vpow.pop %v779
      %v781 = vmul.f32 %v669, 1.442695
      %v782 = vpow.pop %v781
      %v783 = vmul.f32 %v670, 1.442695
      %v784 = vpow.pop %v783
      %v785 = vmul.f32 %v671, 1.442695
      %v786 = vpow.pop %v785
      %v787 = vmul.f32 %v672, 1.442695
      %v788 = vpow.pop %v787
      %v789 = vmul.f32 %v673, 1.442695
      %v790 = vpow.pop %v789
      %v791 = vmul.f32 %v674, 1.442695
      %v792 = vpow.pop %v791
      %v793 = vmul.f32 %v675, 1.442695
      %v794 = vpow.pop %v793
      %v795 = vmul.f32 %v676, 1.442695
      %v796 = vpow.pop %v795
      %v797 = vmul.f32 %v677, 1.442695
      %v798 = vpow.pop %v797
      %v799 = vmul.f32 %v678, 1.442695
      %v800 = vpow.pop %v799
      %v801 = vmul.f32 %v679, 1.442695
      %v802 = vpow.pop %v801
      %v803 = vmul.f32 %v680, 1.442695
      %v804 = vpow.pop %v803
      %v805 = vmul.f32 %v681, 1.442695
      %v806 = vpow.pop %v805
      %v807 = vmul.f32 %v682, 1.442695
      %v808 = vpow.pop %v807
      %v809 = vmul.f32 %v683, 1.442695
      %v810 = vpow.pop %v809
      %v811 = vmul.f32 %v684, 1.442695
      %v812 = vpow.pop %v811
      %v813 = vld [vmem:[#allocation3] sm:$0x3]
      %v814 = vmul.f32 %v615, %v813
      %v815 = vadd.f32 %v686, %v690
      %v816 = vadd.f32 %v815, %v694
      %v817 = vadd.f32 %v816, %v698
      %v818 = vadd.f32 %v817, %v702
      %v819 = vadd.f32 %v818, %v706
      %v820 = vadd.f32 %v819, %v710
      %v821 = vadd.f32 %v820, %v714
      %v822 = vadd.f32 %v821, %v718
      %v823 = vadd.f32 %v822, %v722
      %v824 = vadd.f32 %v823, %v726
      %v825 = vadd.f32 %v824, %v730
      %v826 = vadd.f32 %v825, %v734
      %v827 = vadd.f32 %v826, %v738
      %v828 = vadd.f32 %v827, %v742
      %v829 = vadd.f32 %v828, %v746
      %v830 = vadd.f32 %v829, %v750
      %v831 = vadd.f32 %v830, %v754
      %v832 = vadd.f32 %v831, %v758
      %v833 = vadd.f32 %v832, %v762
      %v834 = vadd.f32 %v833, %v766
      %v835 = vadd.f32 %v834, %v770
      %v836 = vadd.f32 %v835, %v774
      %v837 = vadd.f32 %v836, %v778
      %v838 = vadd.f32 %v837, %v782
      %v839 = vadd.f32 %v838, %v786
      %v840 = vadd.f32 %v839, %v790
      %v841 = vadd.f32 %v840, %v794
      %v842 = vadd.f32 %v841, %v798
      %v843 = vadd.f32 %v842, %v802
      %v844 = vadd.f32 %v843, %v806
      %v845 = vadd.f32 %v844, %v810
      %v846 = vrot.slane %v845, 4
      %v847 = vadd.f32 %v845, %v846
      %v848 = vrot.slane %v847, 2
      %v849 = vadd.f32 %v847, %v848
      %v850 = vrot.slane %v849, 1
      %v851 = vadd.f32 %v849, %v850
      %v852 = vadd.f32 %v688, %v692
      %v853 = vadd.f32 %v852, %v696
      %v854 = vadd.f32 %v853, %v700
      %v855 = vadd.f32 %v854, %v704
      %v856 = vadd.f32 %v855, %v708
      %v857 = vadd.f32 %v856, %v712
      %v858 = vadd.f32 %v857, %v716
      %v859 = vadd.f32 %v858, %v720
      %v860 = vadd.f32 %v859, %v724
      %v861 = vadd.f32 %v860, %v728
      %v862 = vadd.f32 %v861, %v732
      %v863 = vadd.f32 %v862, %v736
      %v864 = vadd.f32 %v863, %v740
      %v865 = vadd.f32 %v864, %v744
      %v866 = vadd.f32 %v865, %v748
      %v867 = vadd.f32 %v866, %v752
      %v868 = vadd.f32 %v867, %v756
      %v869 = vadd.f32 %v868, %v760
      %v870 = vadd.f32 %v869, %v764
      %v871 = vadd.f32 %v870, %v768
      %v872 = vadd.f32 %v871, %v772
      %v873 = vadd.f32 %v872, %v776
      %v874 = vadd.f32 %v873, %v780
      %v875 = vadd.f32 %v874, %v784
      %v876 = vadd.f32 %v875, %v788
      %v877 = vadd.f32 %v876, %v792
      %v878 = vadd.f32 %v877, %v796
      %v879 = vadd.f32 %v878, %v800
      %v880 = vadd.f32 %v879, %v804
      %v881 = vadd.f32 %v880, %v808
      %v882 = vadd.f32 %v881, %v812
      %v883 = vrot.slane %v882, 4
      %v884 = vadd.f32 %v882, %v883
      %v885 = vrot.slane %v884, 2
      %v886 = vadd.f32 %v884, %v885
      %v887 = vrot.slane %v886, 1
      %v888 = vadd.f32 %v886, %v887
      %v891 = vrot.slane %v888, 7
      %v892 = vsel %vm349, %v851, %v891
      %v894 = vadd.f32 %v814, %v892
      %v895 = vlaneseq
      %vm896 = vcmp.ge.s32.totalorder %v895, 0
      %vm897 = vcmp.lt.s32.totalorder %v895, 256
      %vm898 = vmand %vm896, %vm897
      %899 = vst.msk [vmem:[#allocation3] sm:$0x3] %vm898, %v894
      %v900 = vld [vmem:[#allocation4] sm:$0xf]
      %v902 = vperm.slane %v615, 0
      %v903 = vperm.slane %v615, 1
      %907 = vst [vmem:[#allocation1] ss:$4 sm:$0xff] %v900
      %v908 = vld.sshfl [vmem:[#allocation1] sm:$0xff pattern:$0x73625140]
      %v909 = vld.sshfl [vmem:[#allocation1 + $0x8] sm:$0xff pattern:$0x73625140]
      %v912 = vmul.f32 %v902, %v908
      %v913 = vmul.f32 %v903, %v909
      %v914 = vld [vmem:[%s242] sm:$0x3]
      %v915 = vpack.c.bf16 %v690, %v686
      %v916 = vpack.c.bf16 %v692, %v688
      %v917 = vpack.c.bf16 %v698, %v694
      %v918 = vpack.c.bf16 %v700, %v696
      %v919 = vpack.c.bf16 %v706, %v702
      %v920 = vpack.c.bf16 %v708, %v704
      %v921 = vpack.c.bf16 %v714, %v710
      %v922 = vpack.c.bf16 %v716, %v712
      %v923 = vpack.c.bf16 %v722, %v718
      %v924 = vpack.c.bf16 %v724, %v720
      %v925 = vpack.c.bf16 %v730, %v726
      %v926 = vpack.c.bf16 %v732, %v728
      %v927 = vpack.c.bf16 %v738, %v734
      %v928 = vpack.c.bf16 %v740, %v736
      %v929 = vpack.c.bf16 %v746, %v742
      %v930 = vpack.c.bf16 %v748, %v744
      %v931 = vpack.c.bf16 %v754, %v750
      %v932 = vpack.c.bf16 %v756, %v752
      %v933 = vpack.c.bf16 %v762, %v758
      %v934 = vpack.c.bf16 %v764, %v760
      %v935 = vpack.c.bf16 %v770, %v766
      %v936 = vpack.c.bf16 %v772, %v768
      %v937 = vpack.c.bf16 %v778, %v774
      %v938 = vpack.c.bf16 %v780, %v776
      %v939 = vpack.c.bf16 %v786, %v782
      %v940 = vpack.c.bf16 %v788, %v784
      %v941 = vpack.c.bf16 %v794, %v790
      %v942 = vpack.c.bf16 %v796, %v792
      %v943 = vpack.c.bf16 %v802, %v798
      %v944 = vpack.c.bf16 %v804, %v800
      %v945 = vpack.c.bf16 %v810, %v806
      %v946 = vpack.c.bf16 %v812, %v808
      %948 = vst [vmem:[#allocation1] ss:$9 sm:$0xff] %v914
      %v949 = vld [vmem:[#allocation1] sm:$0xff]
      %v950 = vld [vmem:[#allocation1 + $0x9] sm:$0xff]
      %953 = vmatpush.bf16.msra.mxu0 %v929
      %954 = vmatpush.bf16.msra.mxu0 %v927
      %955 = vmatpush.bf16.msra.mxu0 %v925
      %956 = vmatpush.bf16.msra.mxu0 %v923
      %957 = vmatpush.bf16.msra.mxu0 %v921
      %958 = vmatpush.bf16.msra.mxu0 %v919
      %959 = vmatpush.bf16.msra.mxu0 %v917
      %960 = vmatpush.bf16.msra.mxu0 %v915
      %961 = vmatmul.bf16.gmra.mxu0 %v949
      %v962 = vpop.f32.mrf.mxu0
      %v963 = vadd.f32 0.0, %v962
      %v964 = vpop.f32.mrf.mxu0
      %965 = vdwg.mxu0
      %966 = vmatpush.bf16.msra.mxu0 %v945
      %967 = vmatpush.bf16.msra.mxu0 %v943
      %968 = vmatpush.bf16.msra.mxu0 %v941
      %969 = vmatpush.bf16.msra.mxu0 %v939
      %970 = vmatpush.bf16.msra.mxu0 %v937
      %971 = vmatpush.bf16.msra.mxu0 %v935
      %972 = vmatpush.bf16.msra.mxu0 %v933
      %973 = vmatpush.bf16.msra.mxu0 %v931
      %974 = vmatmul.bf16.gmra.mxu0 %v950
      %v975 = vpop.f32.mrf.mxu0
      %v976 = vadd.f32 %v963, %v975
      %v977 = vpop.f32.mrf.mxu0
      %978 = vdwg.mxu0
      %979 = vmatpush.bf16.msra.mxu0 %v930
      %980 = vmatpush.bf16.msra.mxu0 %v928
      %981 = vmatpush.bf16.msra.mxu0 %v926
      %982 = vmatpush.bf16.msra.mxu0 %v924
      %983 = vmatpush.bf16.msra.mxu0 %v922
      %984 = vmatpush.bf16.msra.mxu0 %v920
      %985 = vmatpush.bf16.msra.mxu0 %v918
      %986 = vmatpush.bf16.msra.mxu0 %v916
      %987 = vmatmul.bf16.gmra.mxu0 %v949
      %v988 = vpop.f32.mrf.mxu0
      %v989 = vadd.f32 0.0, %v988
      %v990 = vpop.f32.mrf.mxu0
      %991 = vdwg.mxu0
      %992 = vmatpush.bf16.msra.mxu0 %v946
      %993 = vmatpush.bf16.msra.mxu0 %v944
      %994 = vmatpush.bf16.msra.mxu0 %v942
      %995 = vmatpush.bf16.msra.mxu0 %v940
      %996 = vmatpush.bf16.msra.mxu0 %v938
      %997 = vmatpush.bf16.msra.mxu0 %v936
      %998 = vmatpush.bf16.msra.mxu0 %v934
      %999 = vmatpush.bf16.msra.mxu0 %v932
      %1000 = vmatmul.bf16.gmra.mxu0 %v950
      %v1001 = vpop.f32.mrf.mxu0
      %v1002 = vadd.f32 %v989, %v1001
      %v1003 = vpop.f32.mrf.mxu0
      %1004 = vdwg.mxu0
      %v1005 = vadd.f32 %v912, %v976
      %v1006 = vadd.f32 %v913, %v1002
      %v1009 = vrot.slane %v1006, 6
      %vm1010 = vcmask 1041408
      %v1011 = vsel %vm1010, %v1005, %v1009
      %1013 = vst [vmem:[#allocation4] sm:$0xf] %v1011
      %1014 = vst.msk [vmem:[#allocation2] sm:$0x3] %vm898, %v612
      // Predicated region
      $region37: #{_lambda_.17} parent=31 // pred_check
        %p1015 = pneg %p253
      $region38: #{_lambda_.17} parent=31 // pred_check_branch
        %1017 = sbr.rel (%p1015) target = $region40
      $region39: #{_lambda_.17} parent=31 // pred_region
        %v1018 = vld [vmem:[#allocation4] sm:$0xf]
        %v1019 = vld [vmem:[#allocation3] sm:$0x3]
        %v1020 = vrcp.pop %v1019
        %v1022 = vperm.slane %v1020, 0
        %v1023 = vperm.slane %v1020, 1
        %v1024 = vrot.slane %v1023, 6
        %v1025 = vsel %vm1010, %v1022, %v1024
        %v1027 = vmul.f32 %v1018, %v1025
        %1029 = vst [vmem:[#allocation1] ss:$4 sm:$0xff] %v1027
        %v1030 = vld.sshfl [vmem:[#allocation1] sm:$0xff pattern:$0x73625140]
        %v1031 = vld.sshfl [vmem:[#allocation1 + $0x8] sm:$0xff pattern:$0x73625140]
        %v1034 = vpack.c.bf16 %v1031, %v1030
        %v1036 = vrot.slane %v1034, 3
        %v1039 = vsel %vm349, %v1034, %v1036
        %1041 = vst [vmem:[%s249] sm:$0x3] %v1039
      $region40: #{_lambda_.17} parent=31 // pred_fallthru
        _
      %s1042 = sadd.s32 %s19, %s20
      %s1043 = smul.u32 2, %s1042
      %p1044 = scmp.lt.s32.totalorder %s1043, 3
      %s1045 = scalar_select %p1044, %s1043, 3
      %s1046 = scalar_lea.vmem %s3, %s1045
      // Predicated region
      $region41: #{_lambda_.17} parent=31 // pred_check
        %p1047 = pneg %p137
      $region42: #{_lambda_.17} parent=31 // pred_check_branch
        %1049 = sbr.rel (%p1047) target = $region44
      $region43: #{_lambda_.17} parent=31 // pred_region
        %s1050 = sadd.s32 %s19, %s20
        %s1051 = smul.u32 2, %s1050
      $region44: #{_lambda_.17} parent=31 // pred_fallthru
        _
    $region32: #{_lambda_.17} parent=5 // pred_fallthru
      _
    %p1052 = scmp.le.s32.totalorder 2, %s9
    // Predicated region
    $region45: #{_lambda_.17} parent=5 // pred_check
      %p1053 = pneg %p1052
    $region46: #{_lambda_.17} parent=5 // pred_check_branch
      %1055 = sbr.rel (%p1053) target = $region48
    $region47: #{_lambda_.17} parent=5 // pred_region
      %s1056 = ssub.s32 %s9, 2
      // Predicated region
      $region49: #{_lambda_.17} parent=47 // pred_check
        %p1057 = pneg %p143
      $region50: #{_lambda_.17} parent=47 // pred_check_branch
        %1059 = sbr.rel (%p1057) target = $region52
      $region51: #{_lambda_.17} parent=47 // pred_region
        %s1060 = sadd.s32 %s22, %s23
        %s1061 = smul.u32 2, %s1060
        %p1062 = scmp.lt.s32.totalorder %s1061, 3
        %s1063 = scalar_select %p1062, %s1061, 3
        %s1064 = scalar_lea.vmem %s3, %s1063
      $region52: #{_lambda_.17} parent=47 // pred_fallthru
        _
    $region48: #{_lambda_.17} parent=5 // pred_fallthru
      _
  $region6: #{_lambda_.17} parent=0 // loop_footer
    %s13 = sadd.s32 1, %s9
  $region7: #{_lambda_.17} parent=0 // loop_footer_branch
    %8 = sbr.rel target = $region3
  $region8: #{_lambda_.17} parent=0 // loop_exit
    _

// kernel: _lambda_.19
$region0: #{_lambda_.19}
  #allocation0 [shape = 'u32[]', space=smem, size = 0x4, offset = 0x4, fixed_abs, tag = 'smem constant byte address 0x4 - core index']
  #allocation1 [shape = 'u32[72,128]{1,0:T(1,128)}', space=vmem, size = 0x9000, scoped, tag = 'internal scratch']
  #allocation2 [shape = 'f32[1]{0:T(128)S(6)}', space=smem, size = 0x200, scoped, tag = 'scoped memory for _lambda_.19']
  %s0 = inlined_call_operand.vmem [shape: bf16[16,36], index: 0, kind: input, shape index: {}]
  %s1 = inlined_call_operand.vmem [shape: bf16[36,512], index: 1, kind: input, shape index: {}]
  %s2 = inlined_call_operand.vmem [shape: f32[16,1], index: 2, kind: input, shape index: {}]
  %s3 = inlined_call_operand.<no memory space> [shape: f32[1], index: 3, kind: input, shape index: {}]
  %s4 = inlined_call_operand.vmem [shape: bf16[16,512], index: 4, kind: output, shape index: {}]
  %s5 = sld [smem:[#allocation0]]
  $region121: #{_lambda_.19} parent=0
    _
  %s7 = ssub.s32 1, %s5
  %s8 = scalar_select 0, %s7, %s5
  %9 = sst [smem:[#allocation2]] %s3
  $region1: #{_lambda_.19} parent=0
    #allocation3 [shape = 'u8[40960]{0}', space=vmem, size = 0xa000, scoped, tag = 'input window, operand 1']
    #allocation4 [shape = 'u8[16384]{0}', space=vmem, size = 0x4000, scoped, tag = 'output window, operand 0']
    loop: start=0, step=1, limit=4
    $region2: #{_lambda_.19} parent=1 // loop_pre_header
      _
    $region3: #{_lambda_.19} parent=1 // loop_header
      %s11 = sphi 0, %s15
      %p12 = scmp.ge.s32.totalorder %s11, 4
      %s19 = sphi 0, %s19
      %s21 = sphi 0, %s19
      %s22 = sphi 0, %s21
      %s36 = sphi 0, %s22
      %s42 = sphi 0, %s44
      %s45 = sphi 0, %s42
      %s46 = sphi 0, %s45
      %s62 = sphi 0, %s46
      %s66 = sphi 0, %s66
      %s68 = sphi 0, %s66
      %s69 = sphi 0, %s68
      %s83 = sphi 0, %s69
      %s87 = sphi 0, %s87
      %s89 = sphi 0, %s87
      %s90 = sphi 0, %s89
      %s104 = sphi 0, %s90
      %s110 = sphi 0, %s112
      %s113 = sphi 0, %s110
      %s114 = sphi 0, %s113
      %s130 = sphi 0, %s114
    $region4: #{_lambda_.19} parent=1 // loop_header_branch
      %14 = sbr.rel (%p12) target = $region8
    $region5: #{_lambda_.19} parent=1 // loop_body
      %s16 = ssub.s32 %s11, 1
      %s17 = ssub.s32 %s11, 2
      %s18 = sadd.s32 %s11, 1
      %s20 = sadd.s32 %s19, 1
      %p23 = scmp.eq.s32.totalorder %s11, 1
      %p24 = scmp.ne.s32.totalorder %s19, %s21
      %p25 = scmp.eq.s32.totalorder %s11, 0
      %p26 = por %p24, %p25
      %p27 = scmp.ne.s32.totalorder %s19, %s21
      %p28 = scmp.eq.s32.totalorder %s16, 1
      %p29 = por %p27, %p28
      %p30 = scmp.ne.s32.totalorder %s21, %s22
      %p31 = scmp.eq.s32.totalorder %s16, 0
      %p32 = por %p30, %p31
      %p33 = scmp.ne.s32.totalorder %s21, %s22
      %p34 = scmp.eq.s32.totalorder %s17, 1
      %p35 = por %p33, %p34
      %p37 = scmp.ne.s32.totalorder %s22, %s36
      %p38 = scmp.eq.s32.totalorder %s17, 0
      %p39 = por %p37, %p38
      %s40 = ssub.s32 %s11, %s18
      %p41 = scmp.eq.s32.totalorder %s40, 0
      %s43 = sadd.s32 %s42, 1
      %s44 = scalar_select %p41, %s42, %s43
      %p47 = pneg %p41
      %p48 = scmp.eq.s32.totalorder %s11, 1
      %p49 = por %p47, %p48
      %p50 = scmp.ne.s32.totalorder %s42, %s45
      %p51 = scmp.eq.s32.totalorder %s11, 0
      %p52 = por %p50, %p51
      %p53 = scmp.ne.s32.totalorder %s42, %s45
      %p54 = scmp.eq.s32.totalorder %s16, 1
      %p55 = por %p53, %p54
      %p56 = scmp.ne.s32.totalorder %s45, %s46
      %p57 = scmp.eq.s32.totalorder %s16, 0
      %p58 = por %p56, %p57
      %p59 = scmp.ne.s32.totalorder %s45, %s46
      %p60 = scmp.eq.s32.totalorder %s17, 1
      %p61 = por %p59, %p60
      %p63 = scmp.ne.s32.totalorder %s46, %s62
      %p64 = scmp.eq.s32.totalorder %s17, 0
      %p65 = por %p63, %p64
      %s67 = sadd.s32 %s66, 1
      %p70 = scmp.eq.s32.totalorder %s11, 1
      %p71 = scmp.ne.s32.totalorder %s66, %s68
      %p72 = scmp.eq.s32.totalorder %s11, 0
      %p73 = por %p71, %p72
      %p74 = scmp.ne.s32.totalorder %s66, %s68
      %p75 = scmp.eq.s32.totalorder %s16, 1
      %p76 = por %p74, %p75
      %p77 = scmp.ne.s32.totalorder %s68, %s69
      %p78 = scmp.eq.s32.totalorder %s16, 0
      %p79 = por %p77, %p78
      %p80 = scmp.ne.s32.totalorder %s68, %s69
      %p81 = scmp.eq.s32.totalorder %s17, 1
      %p82 = por %p80, %p81
      %p84 = scmp.ne.s32.totalorder %s69, %s83
      %p85 = scmp.eq.s32.totalorder %s17, 0
      %p86 = por %p84, %p85
      %s88 = sadd.s32 %s87, 1
      %p91 = scmp.eq.s32.totalorder %s11, 1
      %p92 = scmp.ne.s32.totalorder %s87, %s89
      %p93 = scmp.eq.s32.totalorder %s11, 0
      %p94 = por %p92, %p93
      %p95 = scmp.ne.s32.totalorder %s87, %s89
      %p96 = scmp.eq.s32.totalorder %s16, 1
      %p97 = por %p95, %p96
      %p98 = scmp.ne.s32.totalorder %s89, %s90
      %p99 = scmp.eq.s32.totalorder %s16, 0
      %p100 = por %p98, %p99
      %p101 = scmp.ne.s32.totalorder %s89, %s90
      %p102 = scmp.eq.s32.totalorder %s17, 1
      %p103 = por %p101, %p102
      %p105 = scmp.ne.s32.totalorder %s90, %s104
      %p106 = scmp.eq.s32.totalorder %s17, 0
      %p107 = por %p105, %p106
      %s108 = ssub.s32 %s11, %s18
      %p109 = scmp.eq.s32.totalorder %s108, 0
      %s111 = sadd.s32 %s110, 1
      %s112 = scalar_select %p109, %s110, %s111
      %p115 = pneg %p109
      %p116 = scmp.eq.s32.totalorder %s11, 1
      %p117 = por %p115, %p116
      %p118 = scmp.ne.s32.totalorder %s110, %s113
      %p119 = scmp.eq.s32.totalorder %s11, 0
      %p120 = por %p118, %p119
      %p121 = scmp.ne.s32.totalorder %s110, %s113
      %p122 = scmp.eq.s32.totalorder %s16, 1
      %p123 = por %p121, %p122
      %p124 = scmp.ne.s32.totalorder %s113, %s114
      %p125 = scmp.eq.s32.totalorder %s16, 0
      %p126 = por %p124, %p125
      %p127 = scmp.ne.s32.totalorder %s113, %s114
      %p128 = scmp.eq.s32.totalorder %s17, 1
      %p129 = por %p127, %p128
      %p131 = scmp.ne.s32.totalorder %s114, %s130
      %p132 = scmp.eq.s32.totalorder %s17, 0
      %p133 = por %p131, %p132
      %p134 = scmp.le.s32.totalorder 1, %s11
      %p135 = scmp.lt.s32.totalorder %s11, 3
      %p136 = pnand %p134, %p135
      %p137 = pneg %p136
      // Predicated region
      $region9: #{_lambda_.19} parent=5 // pred_check
        _
      $region10: #{_lambda_.19} parent=5 // pred_check_branch
        %139 = sbr.rel (%p136) target = $region12
      $region11: #{_lambda_.19} parent=5 // pred_region
        %s140 = ssub.s32 %s11, 1
        // Predicated region
        $region13: #{_lambda_.19} parent=11 // pred_check
          %p141 = pneg %p32
        $region14: #{_lambda_.19} parent=11 // pred_check_branch
          %143 = sbr.rel (%p141) target = $region16
        $region15: #{_lambda_.19} parent=11 // pred_region
          _
        $region16: #{_lambda_.19} parent=11 // pred_fallthru
          _
        // Predicated region
        $region17: #{_lambda_.19} parent=11 // pred_check
          %p144 = pneg %p79
        $region18: #{_lambda_.19} parent=11 // pred_check_branch
          %146 = sbr.rel (%p144) target = $region20
        $region19: #{_lambda_.19} parent=11 // pred_region
          _
        $region20: #{_lambda_.19} parent=11 // pred_fallthru
          _
        // Predicated region
        $region21: #{_lambda_.19} parent=11 // pred_check
          %p147 = pneg %p100
        $region22: #{_lambda_.19} parent=11 // pred_check_branch
          %149 = sbr.rel (%p147) target = $region24
        $region23: #{_lambda_.19} parent=11 // pred_region
          _
        $region24: #{_lambda_.19} parent=11 // pred_fallthru
          _
      $region12: #{_lambda_.19} parent=5 // pred_fallthru
        _
      %p150 = scmp.lt.s32.totalorder %s11, 2
      // Predicated region
      $region25: #{_lambda_.19} parent=5 // pred_check
        %p151 = pneg %p150
      $region26: #{_lambda_.19} parent=5 // pred_check_branch
        %153 = sbr.rel (%p151) target = $region28
      $region27: #{_lambda_.19} parent=5 // pred_region
        // Predicated region
        $region29: #{_lambda_.19} parent=27 // pred_check
          %p154 = pneg %p52
        $region30: #{_lambda_.19} parent=27 // pred_check_branch
          %156 = sbr.rel (%p154) target = $region32
        $region31: #{_lambda_.19} parent=27 // pred_region
          %s157 = sand.u32 %s42, 1
          %s158 = sand.u32 %s42, 1
          %s159 = smul.addr %s158, 40
          %s160 = scalar_lea.vmem [#allocation3], %s159
          %s161 = smul.u32 2, %s11
          %s162 = smul.addr %s161, 4
          %s163 = scalar_lea.vmem %s1, %s162
          // Predicated region
          $region33: #{_lambda_.19} parent=31 // pred_check
            _
          $region34: #{_lambda_.19} parent=31 // pred_check_branch
            %165 = sbr.rel (0) target = $region36
          $region35: #{_lambda_.19} parent=31 // pred_region
            // Predicated region
            $region37: #{_lambda_.19} parent=35 // pred_check
              _
            $region38: #{_lambda_.19} parent=35 // pred_check_branch
              %167 = sbr.rel (0) target = $region40
            $region39: #{_lambda_.19} parent=35 // pred_region
              // Predicated region
              $region52: #{_lambda_.19} parent=39 // pred_check
                _
              $region53: #{_lambda_.19} parent=39 // pred_check_branch
                %191 = sbr.rel (0) target = $region55
              $region54: #{_lambda_.19} parent=39 // pred_region
                loop: start=0, step=1, limit=1
                $region56: #{_lambda_.19} parent=54 // loop_pre_header
                  _
                $region57: #{_lambda_.19} parent=54 // loop_header
                  %s193 = sphi 0, %s197
                  %p194 = scmp.ge.s32.totalorder %s193, 1
                  %s198 = sphi %s163, %s163
                  %s199 = sphi %s160, %s160
                $region58: #{_lambda_.19} parent=54 // loop_header_branch
                  %196 = sbr.rel (%p194) target = $region62
                $region59: #{_lambda_.19} parent=54 // loop_body
                  %v200 = vld [vmem:[%s198] sm:$0xff]
                  %201 = vst [vmem:[%s199] sm:$0xff] %v200
                  %v202 = vld [vmem:[%s198 + $0x10] sm:$0xff]
                  %203 = vst [vmem:[%s199 + $0x8] sm:$0xff] %v202
                  %v204 = vld [vmem:[%s198 + $0x20] sm:$0xff]
                  %205 = vst [vmem:[%s199 + $0x10] sm:$0xff] %v204
                  %v206 = vld [vmem:[%s198 + $0x30] sm:$0xff]
                  %207 = vst [vmem:[%s199 + $0x18] sm:$0xff] %v206
                  %v208 = vld [vmem:[%s198 + $0x40] sm:$0xff]
                  %209 = vst [vmem:[%s199 + $0x20] sm:$0xff] %v208
                $region60: #{_lambda_.19} parent=54 // loop_footer
                  %s197 = sadd.s32 1, %s193
                $region61: #{_lambda_.19} parent=54 // loop_footer_branch
                  %192 = sbr.rel target = $region57
                $region62: #{_lambda_.19} parent=54 // loop_exit
                  _
              $region55: #{_lambda_.19} parent=39 // pred_fallthru
                _
              // Predicated region
              $region63: #{_lambda_.19} parent=39 // pred_check
                _
              $region64: #{_lambda_.19} parent=39 // pred_check_branch
                %211 = sbr.rel target = $region66
              $region65: #{_lambda_.19} parent=39 // pred_region
                _
              $region66: #{_lambda_.19} parent=39 // pred_fallthru
                _
            $region40: #{_lambda_.19} parent=35 // pred_fallthru
              _
            // Predicated region
            $region41: #{_lambda_.19} parent=35 // pred_check
              _
            $region42: #{_lambda_.19} parent=35 // pred_check_branch
              %169 = sbr.rel target = $region44
            $region43: #{_lambda_.19} parent=35 // pred_region
              %s171 = ssub.s32 256, 1
              loop: start=0, step=1, limit=1
              $region45: #{_lambda_.19} parent=43 // loop_pre_header
                _
              $region46: #{_lambda_.19} parent=43 // loop_header
                %s173 = sphi 0, %s177
                %p174 = scmp.ge.s32.totalorder %s173, 1
                %s178 = sphi %s163, %s163
                %s179 = sphi %s160, %s160
              $region47: #{_lambda_.19} parent=43 // loop_header_branch
                %176 = sbr.rel (%p174) target = $region51
              $region48: #{_lambda_.19} parent=43 // loop_body
                %v180 = vld [vmem:[%s178] sm:%s171]
                %181 = vst [vmem:[%s179] sm:%s171] %v180
                %v182 = vld [vmem:[%s178 + $0x10] sm:%s171]
                %183 = vst [vmem:[%s179 + $0x8] sm:%s171] %v182
                %v184 = vld [vmem:[%s178 + $0x20] sm:%s171]
                %185 = vst [vmem:[%s179 + $0x10] sm:%s171] %v184
                %v186 = vld [vmem:[%s178 + $0x30] sm:%s171]
                %187 = vst [vmem:[%s179 + $0x18] sm:%s171] %v186
                %v188 = vld [vmem:[%s178 + $0x40] sm:%s171]
                %189 = vst [vmem:[%s179 + $0x20] sm:%s171] %v188
              $region49: #{_lambda_.19} parent=43 // loop_footer
                %s177 = sadd.s32 1, %s173
              $region50: #{_lambda_.19} parent=43 // loop_footer_branch
                %172 = sbr.rel target = $region46
              $region51: #{_lambda_.19} parent=43 // loop_exit
                _
            $region44: #{_lambda_.19} parent=35 // pred_fallthru
              _
          $region36: #{_lambda_.19} parent=31 // pred_fallthru
            _
          %212 = vnop
        $region32: #{_lambda_.19} parent=27 // pred_fallthru
          _
      $region28: #{_lambda_.19} parent=5 // pred_fallthru
        _
      %p213 = scmp.le.s32.totalorder 1, %s11
      %p214 = scmp.lt.s32.totalorder %s11, 3
      %p215 = pnand %p213, %p214
      %p216 = pneg %p215
      // Predicated region
      $region67: #{_lambda_.19} parent=5 // pred_check
        _
      $region68: #{_lambda_.19} parent=5 // pred_check_branch
        %218 = sbr.rel (%p215) target = $region70
      $region69: #{_lambda_.19} parent=5 // pred_region
        %s219 = ssub.s32 %s11, 1
        %s220 = sand.u32 %s45, 1
        %s221 = sand.u32 %s45, 1
        %s222 = smul.addr %s221, 40
        %s223 = scalar_lea.vmem [#allocation3], %s222
        // Predicated region
        $region71: #{_lambda_.19} parent=69 // pred_check
          %p224 = pneg %p58
        $region72: #{_lambda_.19} parent=69 // pred_check_branch
          %226 = sbr.rel (%p224) target = $region74
        $region73: #{_lambda_.19} parent=69 // pred_region
          _
        $region74: #{_lambda_.19} parent=69 // pred_fallthru
          _
        %p227 = pneg %p32
        %p228 = pneg %p29
        %s229 = sand.u32 %s45, 1
        %s230 = sand.u32 %s45, 1
        %s231 = smul.addr %s230, 40
        %s232 = scalar_lea.vmem [#allocation3], %s231
        %p233 = pneg %p58
        %p234 = pneg %p55
        %p235 = pneg %p79
        %p236 = pneg %p76
        %p237 = pneg %p100
        %p238 = pneg %p97
        %p239 = pneg %p126
        %p240 = pneg %p123
        %s241 = sand.u32 %s113, 1
        %s242 = sand.u32 %s113, 1
        %s243 = smul.addr %s242, 16
        %s244 = scalar_lea.vmem [#allocation4], %s243
        %s245 = smul.u32 2, %s16
        %s246 = smul.u32 2, %s16
        %v248 = vld [vmem:[%s0] sm:$0xf]
        %v249 = vld [vmem:[%s0 + $0x4] sm:$0xf]
        %v250 = vld [vmem:[%s223] sm:$0xff]
        %v251 = vld [vmem:[%s223 + $0x8] sm:$0xff]
        %v252 = vld [vmem:[%s223 + $0x10] sm:$0xff]
        %v253 = vld [vmem:[%s223 + $0x18] sm:$0xff]
        %v254 = vld [vmem:[%s223 + $0x20] sm:$0x33]
        %v255 = vld [vmem:[%s2] sm:$0xff]
        %v256 = vld [vmem:[%s2 + $0x8] sm:$0xff]
        %258 = vset.pattern.permute.xlu0 0
        %259 = vperm.xlu0 %258, %v255
        %v260 = vpop.permute.xlu0 %259
        %263 = vset.pattern.permute.xlu0 0
        %264 = vperm.xlu0 %263, %v256
        %v265 = vpop.permute.xlu0 %264
        %v269 = vunpack.c.l.b16 %v248
        %v270 = vunpack.c.l.b16 %v249
        %v271 = vpack.c.b16 %v270, %v269
        %v277 = vunpack.c.l.b16 %v250
        %v278 = vunpack.c.h.b16 %v250
        %v279 = vunpack.c.l.b16 %v251
        %v280 = vunpack.c.h.b16 %v251
        %v281 = vunpack.c.l.b16 %v252
        %v282 = vunpack.c.h.b16 %v252
        %v283 = vunpack.c.l.b16 %v253
        %v284 = vunpack.c.h.b16 %v253
        %v285 = vunpack.c.l.b16 %v254
        %v286 = vunpack.c.h.b16 %v254
        %v287 = vpack.c.b16 %v279, %v277
        %v288 = vpack.c.b16 %v280, %v278
        %v289 = vpack.c.b16 %v283, %v281
        %v290 = vpack.c.b16 %v284, %v282
        %v291 = vpack.c.b16 %v285, %v285
        %v292 = vpack.c.b16 %v286, %v286
        %vm297 = vcmask 293888
        %v299 = vsel %vm297, %v271, 0
        %vm301 = vcmask 1041408
        %v303 = vsel %vm301, %v291, 0
        %v306 = vsel %vm301, %v292, 0
        %308 = vmatpush.bf16.msra.mxu0 0
        %309 = vmatpush.bf16.msra.mxu0 0
        %310 = vmatpush.bf16.msra.mxu0 0
        %311 = vmatpush.bf16.msra.mxu0 0
        %312 = vmatpush.bf16.msra.mxu0 0
        %313 = vmatpush.bf16.msra.mxu0 %v303
        %314 = vmatpush.bf16.msra.mxu0 %v289
        %315 = vmatpush.bf16.msra.mxu0 %v287
        %316 = vmatmul.bf16.gmra.mxu0 %v299
        %v317 = vpop.f32.mrf.mxu0
        %v318 = vadd.f32 %v260, %v317
        %v319 = vpop.f32.mrf.mxu0
        %v320 = vadd.f32 %v265, %v319
        %321 = vdwg.mxu0
        %322 = vmatpush.bf16.msra.mxu0 0
        %323 = vmatpush.bf16.msra.mxu0 0
        %324 = vmatpush.bf16.msra.mxu0 0
        %325 = vmatpush.bf16.msra.mxu0 0
        %326 = vmatpush.bf16.msra.mxu0 0
        %327 = vmatpush.bf16.msra.mxu0 %v306
        %328 = vmatpush.bf16.msra.mxu0 %v290
        %329 = vmatpush.bf16.msra.mxu0 %v288
        %330 = vmatmul.bf16.gmra.mxu0 %v299
        %v331 = vpop.f32.mrf.mxu0
        %v332 = vadd.f32 %v260, %v331
        %v333 = vpop.f32.mrf.mxu0
        %v334 = vadd.f32 %v265, %v333
        %335 = vdwg.mxu0
        %s336 = sld [smem:[#allocation2]]
        %vm337 = vcmp.ge.f32.partialorder %v318, 0.0
        %vm338 = vcmp.ge.f32.partialorder %v332, 0.0
        %vm339 = vcmp.ge.f32.partialorder %v320, 0.0
        %vm340 = vcmp.ge.f32.partialorder %v334, 0.0
        %v341 = vstv %s336
        %v342 = vmul.f32 %v341, %v318
        %v343 = vmul.f32 %v341, %v332
        %v344 = vmul.f32 %v341, %v320
        %v345 = vmul.f32 %v341, %v334
        %v346 = vsel %vm337, %v318, %v342
        %v347 = vsel %vm338, %v332, %v343
        %v348 = vsel %vm339, %v320, %v344
        %v349 = vsel %vm340, %v334, %v345
        %v350 = vpack.c.bf16 %v347, %v346
        %v351 = vpack.c.bf16 %v349, %v348
        %352 = vst [vmem:[%s244] sm:$0xff] %v350
        %353 = vst [vmem:[%s244 + $0x8] sm:$0xff] %v351
        %s354 = sand.u32 %s113, 1
        %s355 = sand.u32 %s113, 1
        %s356 = smul.addr %s355, 16
        %s357 = scalar_lea.vmem [#allocation4], %s356
        // Predicated region
        $region75: #{_lambda_.19} parent=69 // pred_check
          %p358 = pneg %p123
        $region76: #{_lambda_.19} parent=69 // pred_check_branch
          %360 = sbr.rel (%p358) target = $region78
        $region77: #{_lambda_.19} parent=69 // pred_region
          %s361 = smul.u32 2, %s16
          %s362 = smul.addr %s361, 4
          %s363 = scalar_lea.vmem %s4, %s362
          // Predicated region
          $region79: #{_lambda_.19} parent=77 // pred_check
            _
          $region80: #{_lambda_.19} parent=77 // pred_check_branch
            %365 = sbr.rel (0) target = $region82
          $region81: #{_lambda_.19} parent=77 // pred_region
            // Predicated region
            $region83: #{_lambda_.19} parent=81 // pred_check
              _
            $region84: #{_lambda_.19} parent=81 // pred_check_branch
              %367 = sbr.rel (0) target = $region86
            $region85: #{_lambda_.19} parent=81 // pred_region
              // Predicated region
              $region98: #{_lambda_.19} parent=85 // pred_check
                _
              $region99: #{_lambda_.19} parent=85 // pred_check_branch
                %385 = sbr.rel (0) target = $region101
              $region100: #{_lambda_.19} parent=85 // pred_region
                loop: start=0, step=1, limit=1
                $region102: #{_lambda_.19} parent=100 // loop_pre_header
                  _
                $region103: #{_lambda_.19} parent=100 // loop_header
                  %s387 = sphi 0, %s391
                  %p388 = scmp.ge.s32.totalorder %s387, 1
                  %s392 = sphi %s357, %s357
                  %s393 = sphi %s363, %s363
                $region104: #{_lambda_.19} parent=100 // loop_header_branch
                  %390 = sbr.rel (%p388) target = $region108
                $region105: #{_lambda_.19} parent=100 // loop_body
                  %v394 = vld [vmem:[%s392] sm:$0xff]
                  %395 = vst [vmem:[%s393] sm:$0xff] %v394
                  %v396 = vld [vmem:[%s392 + $0x8] sm:$0xff]
                  %397 = vst [vmem:[%s393 + $0x10] sm:$0xff] %v396
                $region106: #{_lambda_.19} parent=100 // loop_footer
                  %s391 = sadd.s32 1, %s387
                $region107: #{_lambda_.19} parent=100 // loop_footer_branch
                  %386 = sbr.rel target = $region103
                $region108: #{_lambda_.19} parent=100 // loop_exit
                  _
              $region101: #{_lambda_.19} parent=85 // pred_fallthru
                _
              // Predicated region
              $region109: #{_lambda_.19} parent=85 // pred_check
                _
              $region110: #{_lambda_.19} parent=85 // pred_check_branch
                %399 = sbr.rel target = $region112
              $region111: #{_lambda_.19} parent=85 // pred_region
                _
              $region112: #{_lambda_.19} parent=85 // pred_fallthru
                _
            $region86: #{_lambda_.19} parent=81 // pred_fallthru
              _
            // Predicated region
            $region87: #{_lambda_.19} parent=81 // pred_check
              _
            $region88: #{_lambda_.19} parent=81 // pred_check_branch
              %369 = sbr.rel target = $region90
            $region89: #{_lambda_.19} parent=81 // pred_region
              %s371 = ssub.s32 256, 1
              loop: start=0, step=1, limit=1
              $region91: #{_lambda_.19} parent=89 // loop_pre_header
                _
              $region92: #{_lambda_.19} parent=89 // loop_header
                %s373 = sphi 0, %s377
                %p374 = scmp.ge.s32.totalorder %s373, 1
                %s378 = sphi %s357, %s357
                %s379 = sphi %s363, %s363
              $region93: #{_lambda_.19} parent=89 // loop_header_branch
                %376 = sbr.rel (%p374) target = $region97
              $region94: #{_lambda_.19} parent=89 // loop_body
                %v380 = vld [vmem:[%s378] sm:%s371]
                %381 = vst [vmem:[%s379] sm:%s371] %v380
                %v382 = vld [vmem:[%s378 + $0x8] sm:%s371]
                %383 = vst [vmem:[%s379 + $0x10] sm:%s371] %v382
              $region95: #{_lambda_.19} parent=89 // loop_footer
                %s377 = sadd.s32 1, %s373
              $region96: #{_lambda_.19} parent=89 // loop_footer_branch
                %372 = sbr.rel target = $region92
              $region97: #{_lambda_.19} parent=89 // loop_exit
                _
            $region90: #{_lambda_.19} parent=81 // pred_fallthru
              _
          $region82: #{_lambda_.19} parent=77 // pred_fallthru
            _
          %400 = vnop
        $region78: #{_lambda_.19} parent=69 // pred_fallthru
          _
      $region70: #{_lambda_.19} parent=5 // pred_fallthru
        _
      %p401 = scmp.le.s32.totalorder 2, %s11
      // Predicated region
      $region113: #{_lambda_.19} parent=5 // pred_check
        %p402 = pneg %p401
      $region114: #{_lambda_.19} parent=5 // pred_check_branch
        %404 = sbr.rel (%p402) target = $region116
      $region115: #{_lambda_.19} parent=5 // pred_region
        %s405 = ssub.s32 %s11, 2
        // Predicated region
        $region117: #{_lambda_.19} parent=115 // pred_check
          %p406 = pneg %p129
        $region118: #{_lambda_.19} parent=115 // pred_check_branch
          %408 = sbr.rel (%p406) target = $region120
        $region119: #{_lambda_.19} parent=115 // pred_region
          %s409 = sand.u32 %s114, 1
          %s410 = sand.u32 %s114, 1
          %s411 = smul.addr %s410, 16
          %s412 = scalar_lea.vmem [#allocation4], %s411
        $region120: #{_lambda_.19} parent=115 // pred_fallthru
          _
      $region116: #{_lambda_.19} parent=5 // pred_fallthru
        _
    $region6: #{_lambda_.19} parent=1 // loop_footer
      %s15 = sadd.s32 1, %s11
    $region7: #{_lambda_.19} parent=1 // loop_footer_branch
      %10 = sbr.rel target = $region3
    $region8: #{_lambda_.19} parent=1 // loop_exit
      _

// kernel: _lambda_.13
$region0: #{_lambda_.13}
  #allocation0 [shape = 'u32[]', space=smem, size = 0x4, offset = 0x4, fixed_abs, tag = 'smem constant byte address 0x4 - core index']
  #allocation1 [shape = 'u32[72,128]{1,0:T(1,128)}', space=vmem, size = 0x9000, scoped, tag = 'internal scratch']
  #allocation2 [shape = 'f32[1]{0:T(128)S(6)}', space=smem, size = 0x200, scoped, tag = 'scoped memory for _lambda_.13']
  %s0 = inlined_call_operand.vmem [shape: bf16[4,36], index: 0, kind: input, shape index: {}]
  %s1 = inlined_call_operand.vmem [shape: bf16[36,512], index: 1, kind: input, shape index: {}]
  %s2 = inlined_call_operand.vmem [shape: f32[4,1], index: 2, kind: input, shape index: {}]
  %s3 = inlined_call_operand.<no memory space> [shape: f32[1], index: 3, kind: input, shape index: {}]
  %s4 = inlined_call_operand.vmem [shape: bf16[12,4], index: 4, kind: input, shape index: {}]
  %s5 = inlined_call_operand.vmem [shape: bf16[4,12], index: 5, kind: input, shape index: {}]
  %s6 = inlined_call_operand.vmem [shape: bf16[4,512], index: 6, kind: output, shape index: {}]
  %s7 = sld [smem:[#allocation0]]
  $region95: #{_lambda_.13} parent=0
    _
  %s9 = ssub.s32 1, %s7
  %s10 = scalar_select 0, %s9, %s7
  %11 = sst [smem:[#allocation2]] %s3
  $region1: #{_lambda_.13} parent=0
    #allocation3 [shape = 'u8[40960]{0}', space=vmem, size = 0xa000, scoped, tag = 'input window, operand 1']
    loop: start=0, step=1, limit=4
    $region2: #{_lambda_.13} parent=1 // loop_pre_header
      _
    $region3: #{_lambda_.13} parent=1 // loop_header
      %s13 = sphi 0, %s17
      %p14 = scmp.ge.s32.totalorder %s13, 4
      %s21 = sphi 0, %s21
      %s23 = sphi 0, %s21
      %s24 = sphi 0, %s23
      %s38 = sphi 0, %s24
      %s44 = sphi 0, %s46
      %s47 = sphi 0, %s44
      %s48 = sphi 0, %s47
      %s64 = sphi 0, %s48
      %s68 = sphi 0, %s68
      %s70 = sphi 0, %s68
      %s71 = sphi 0, %s70
      %s85 = sphi 0, %s71
      %s89 = sphi 0, %s89
      %s91 = sphi 0, %s89
      %s92 = sphi 0, %s91
      %s106 = sphi 0, %s92
      %s110 = sphi 0, %s110
      %s112 = sphi 0, %s110
      %s113 = sphi 0, %s112
      %s127 = sphi 0, %s113
      %s131 = sphi 0, %s131
      %s133 = sphi 0, %s131
      %s134 = sphi 0, %s133
      %s148 = sphi 0, %s134
      %s154 = sphi 0, %s156
      %s157 = sphi 0, %s154
      %s158 = sphi 0, %s157
      %s174 = sphi 0, %s158
    $region4: #{_lambda_.13} parent=1 // loop_header_branch
      %16 = sbr.rel (%p14) target = $region8
    $region5: #{_lambda_.13} parent=1 // loop_body
      %s18 = ssub.s32 %s13, 1
      %s19 = ssub.s32 %s13, 2
      %s20 = sadd.s32 %s13, 1
      %s22 = sadd.s32 %s21, 1
      %p25 = scmp.eq.s32.totalorder %s13, 1
      %p26 = scmp.ne.s32.totalorder %s21, %s23
      %p27 = scmp.eq.s32.totalorder %s13, 0
      %p28 = por %p26, %p27
      %p29 = scmp.ne.s32.totalorder %s21, %s23
      %p30 = scmp.eq.s32.totalorder %s18, 1
      %p31 = por %p29, %p30
      %p32 = scmp.ne.s32.totalorder %s23, %s24
      %p33 = scmp.eq.s32.totalorder %s18, 0
      %p34 = por %p32, %p33
      %p35 = scmp.ne.s32.totalorder %s23, %s24
      %p36 = scmp.eq.s32.totalorder %s19, 1
      %p37 = por %p35, %p36
      %p39 = scmp.ne.s32.totalorder %s24, %s38
      %p40 = scmp.eq.s32.totalorder %s19, 0
      %p41 = por %p39, %p40
      %s42 = ssub.s32 %s13, %s20
      %p43 = scmp.eq.s32.totalorder %s42, 0
      %s45 = sadd.s32 %s44, 1
      %s46 = scalar_select %p43, %s44, %s45
      %p49 = pneg %p43
      %p50 = scmp.eq.s32.totalorder %s13, 1
      %p51 = por %p49, %p50
      %p52 = scmp.ne.s32.totalorder %s44, %s47
      %p53 = scmp.eq.s32.totalorder %s13, 0
      %p54 = por %p52, %p53
      %p55 = scmp.ne.s32.totalorder %s44, %s47
      %p56 = scmp.eq.s32.totalorder %s18, 1
      %p57 = por %p55, %p56
      %p58 = scmp.ne.s32.totalorder %s47, %s48
      %p59 = scmp.eq.s32.totalorder %s18, 0
      %p60 = por %p58, %p59
      %p61 = scmp.ne.s32.totalorder %s47, %s48
      %p62 = scmp.eq.s32.totalorder %s19, 1
      %p63 = por %p61, %p62
      %p65 = scmp.ne.s32.totalorder %s48, %s64
      %p66 = scmp.eq.s32.totalorder %s19, 0
      %p67 = por %p65, %p66
      %s69 = sadd.s32 %s68, 1
      %p72 = scmp.eq.s32.totalorder %s13, 1
      %p73 = scmp.ne.s32.totalorder %s68, %s70
      %p74 = scmp.eq.s32.totalorder %s13, 0
      %p75 = por %p73, %p74
      %p76 = scmp.ne.s32.totalorder %s68, %s70
      %p77 = scmp.eq.s32.totalorder %s18, 1
      %p78 = por %p76, %p77
      %p79 = scmp.ne.s32.totalorder %s70, %s71
      %p80 = scmp.eq.s32.totalorder %s18, 0
      %p81 = por %p79, %p80
      %p82 = scmp.ne.s32.totalorder %s70, %s71
      %p83 = scmp.eq.s32.totalorder %s19, 1
      %p84 = por %p82, %p83
      %p86 = scmp.ne.s32.totalorder %s71, %s85
      %p87 = scmp.eq.s32.totalorder %s19, 0
      %p88 = por %p86, %p87
      %s90 = sadd.s32 %s89, 1
      %p93 = scmp.eq.s32.totalorder %s13, 1
      %p94 = scmp.ne.s32.totalorder %s89, %s91
      %p95 = scmp.eq.s32.totalorder %s13, 0
      %p96 = por %p94, %p95
      %p97 = scmp.ne.s32.totalorder %s89, %s91
      %p98 = scmp.eq.s32.totalorder %s18, 1
      %p99 = por %p97, %p98
      %p100 = scmp.ne.s32.totalorder %s91, %s92
      %p101 = scmp.eq.s32.totalorder %s18, 0
      %p102 = por %p100, %p101
      %p103 = scmp.ne.s32.totalorder %s91, %s92
      %p104 = scmp.eq.s32.totalorder %s19, 1
      %p105 = por %p103, %p104
      %p107 = scmp.ne.s32.totalorder %s92, %s106
      %p108 = scmp.eq.s32.totalorder %s19, 0
      %p109 = por %p107, %p108
      %s111 = sadd.s32 %s110, 1
      %p114 = scmp.eq.s32.totalorder %s13, 1
      %p115 = scmp.ne.s32.totalorder %s110, %s112
      %p116 = scmp.eq.s32.totalorder %s13, 0
      %p117 = por %p115, %p116
      %p118 = scmp.ne.s32.totalorder %s110, %s112
      %p119 = scmp.eq.s32.totalorder %s18, 1
      %p120 = por %p118, %p119
      %p121 = scmp.ne.s32.totalorder %s112, %s113
      %p122 = scmp.eq.s32.totalorder %s18, 0
      %p123 = por %p121, %p122
      %p124 = scmp.ne.s32.totalorder %s112, %s113
      %p125 = scmp.eq.s32.totalorder %s19, 1
      %p126 = por %p124, %p125
      %p128 = scmp.ne.s32.totalorder %s113, %s127
      %p129 = scmp.eq.s32.totalorder %s19, 0
      %p130 = por %p128, %p129
      %s132 = sadd.s32 %s131, 1
      %p135 = scmp.eq.s32.totalorder %s13, 1
      %p136 = scmp.ne.s32.totalorder %s131, %s133
      %p137 = scmp.eq.s32.totalorder %s13, 0
      %p138 = por %p136, %p137
      %p139 = scmp.ne.s32.totalorder %s131, %s133
      %p140 = scmp.eq.s32.totalorder %s18, 1
      %p141 = por %p139, %p140
      %p142 = scmp.ne.s32.totalorder %s133, %s134
      %p143 = scmp.eq.s32.totalorder %s18, 0
      %p144 = por %p142, %p143
      %p145 = scmp.ne.s32.totalorder %s133, %s134
      %p146 = scmp.eq.s32.totalorder %s19, 1
      %p147 = por %p145, %p146
      %p149 = scmp.ne.s32.totalorder %s134, %s148
      %p150 = scmp.eq.s32.totalorder %s19, 0
      %p151 = por %p149, %p150
      %s152 = ssub.s32 %s13, %s20
      %p153 = scmp.eq.s32.totalorder %s152, 0
      %s155 = sadd.s32 %s154, 1
      %s156 = scalar_select %p153, %s154, %s155
      %p159 = pneg %p153
      %p160 = scmp.eq.s32.totalorder %s13, 1
      %p161 = por %p159, %p160
      %p162 = scmp.ne.s32.totalorder %s154, %s157
      %p163 = scmp.eq.s32.totalorder %s13, 0
      %p164 = por %p162, %p163
      %p165 = scmp.ne.s32.totalorder %s154, %s157
      %p166 = scmp.eq.s32.totalorder %s18, 1
      %p167 = por %p165, %p166
      %p168 = scmp.ne.s32.totalorder %s157, %s158
      %p169 = scmp.eq.s32.totalorder %s18, 0
      %p170 = por %p168, %p169
      %p171 = scmp.ne.s32.totalorder %s157, %s158
      %p172 = scmp.eq.s32.totalorder %s19, 1
      %p173 = por %p171, %p172
      %p175 = scmp.ne.s32.totalorder %s158, %s174
      %p176 = scmp.eq.s32.totalorder %s19, 0
      %p177 = por %p175, %p176
      %p178 = scmp.le.s32.totalorder 1, %s13
      %p179 = scmp.lt.s32.totalorder %s13, 3
      %p180 = pnand %p178, %p179
      %p181 = pneg %p180
      // Predicated region
      $region9: #{_lambda_.13} parent=5 // pred_check
        _
      $region10: #{_lambda_.13} parent=5 // pred_check_branch
        %183 = sbr.rel (%p180) target = $region12
      $region11: #{_lambda_.13} parent=5 // pred_region
        %s184 = ssub.s32 %s13, 1
        // Predicated region
        $region13: #{_lambda_.13} parent=11 // pred_check
          %p185 = pneg %p34
        $region14: #{_lambda_.13} parent=11 // pred_check_branch
          %187 = sbr.rel (%p185) target = $region16
        $region15: #{_lambda_.13} parent=11 // pred_region
          _
        $region16: #{_lambda_.13} parent=11 // pred_fallthru
          _
        // Predicated region
        $region17: #{_lambda_.13} parent=11 // pred_check
          %p188 = pneg %p81
        $region18: #{_lambda_.13} parent=11 // pred_check_branch
          %190 = sbr.rel (%p188) target = $region20
        $region19: #{_lambda_.13} parent=11 // pred_region
          _
        $region20: #{_lambda_.13} parent=11 // pred_fallthru
          _
        // Predicated region
        $region21: #{_lambda_.13} parent=11 // pred_check
          %p191 = pneg %p102
        $region22: #{_lambda_.13} parent=11 // pred_check_branch
          %193 = sbr.rel (%p191) target = $region24
        $region23: #{_lambda_.13} parent=11 // pred_region
          _
        $region24: #{_lambda_.13} parent=11 // pred_fallthru
          _
        // Predicated region
        $region25: #{_lambda_.13} parent=11 // pred_check
          %p194 = pneg %p123
        $region26: #{_lambda_.13} parent=11 // pred_check_branch
          %196 = sbr.rel (%p194) target = $region28
        $region27: #{_lambda_.13} parent=11 // pred_region
          _
        $region28: #{_lambda_.13} parent=11 // pred_fallthru
          _
        // Predicated region
        $region29: #{_lambda_.13} parent=11 // pred_check
          %p197 = pneg %p144
        $region30: #{_lambda_.13} parent=11 // pred_check_branch
          %199 = sbr.rel (%p197) target = $region32
        $region31: #{_lambda_.13} parent=11 // pred_region
          _
        $region32: #{_lambda_.13} parent=11 // pred_fallthru
          _
      $region12: #{_lambda_.13} parent=5 // pred_fallthru
        _
      %p200 = scmp.lt.s32.totalorder %s13, 2
      // Predicated region
      $region33: #{_lambda_.13} parent=5 // pred_check
        %p201 = pneg %p200
      $region34: #{_lambda_.13} parent=5 // pred_check_branch
        %203 = sbr.rel (%p201) target = $region36
      $region35: #{_lambda_.13} parent=5 // pred_region
        // Predicated region
        $region37: #{_lambda_.13} parent=35 // pred_check
          %p204 = pneg %p54
        $region38: #{_lambda_.13} parent=35 // pred_check_branch
          %206 = sbr.rel (%p204) target = $region40
        $region39: #{_lambda_.13} parent=35 // pred_region
          %s207 = sand.u32 %s44, 1
          %s208 = sand.u32 %s44, 1
          %s209 = smul.addr %s208, 40
          %s210 = scalar_lea.vmem [#allocation3], %s209
          %s211 = smul.u32 2, %s13
          %s212 = smul.addr %s211, 4
          %s213 = scalar_lea.vmem %s1, %s212
          // Predicated region
          $region41: #{_lambda_.13} parent=39 // pred_check
            _
          $region42: #{_lambda_.13} parent=39 // pred_check_branch
            %215 = sbr.rel (0) target = $region44
          $region43: #{_lambda_.13} parent=39 // pred_region
            // Predicated region
            $region45: #{_lambda_.13} parent=43 // pred_check
              _
            $region46: #{_lambda_.13} parent=43 // pred_check_branch
              %217 = sbr.rel (0) target = $region48
            $region47: #{_lambda_.13} parent=43 // pred_region
              // Predicated region
              $region60: #{_lambda_.13} parent=47 // pred_check
                _
              $region61: #{_lambda_.13} parent=47 // pred_check_branch
                %241 = sbr.rel (0) target = $region63
              $region62: #{_lambda_.13} parent=47 // pred_region
                loop: start=0, step=1, limit=1
                $region64: #{_lambda_.13} parent=62 // loop_pre_header
                  _
                $region65: #{_lambda_.13} parent=62 // loop_header
                  %s243 = sphi 0, %s247
                  %p244 = scmp.ge.s32.totalorder %s243, 1
                  %s248 = sphi %s213, %s213
                  %s249 = sphi %s210, %s210
                $region66: #{_lambda_.13} parent=62 // loop_header_branch
                  %246 = sbr.rel (%p244) target = $region70
                $region67: #{_lambda_.13} parent=62 // loop_body
                  %v250 = vld [vmem:[%s248] sm:$0xff]
                  %251 = vst [vmem:[%s249] sm:$0xff] %v250
                  %v252 = vld [vmem:[%s248 + $0x10] sm:$0xff]
                  %253 = vst [vmem:[%s249 + $0x8] sm:$0xff] %v252
                  %v254 = vld [vmem:[%s248 + $0x20] sm:$0xff]
                  %255 = vst [vmem:[%s249 + $0x10] sm:$0xff] %v254
                  %v256 = vld [vmem:[%s248 + $0x30] sm:$0xff]
                  %257 = vst [vmem:[%s249 + $0x18] sm:$0xff] %v256
                  %v258 = vld [vmem:[%s248 + $0x40] sm:$0xff]
                  %259 = vst [vmem:[%s249 + $0x20] sm:$0xff] %v258
                $region68: #{_lambda_.13} parent=62 // loop_footer
                  %s247 = sadd.s32 1, %s243
                $region69: #{_lambda_.13} parent=62 // loop_footer_branch
                  %242 = sbr.rel target = $region65
                $region70: #{_lambda_.13} parent=62 // loop_exit
                  _
              $region63: #{_lambda_.13} parent=47 // pred_fallthru
                _
              // Predicated region
              $region71: #{_lambda_.13} parent=47 // pred_check
                _
              $region72: #{_lambda_.13} parent=47 // pred_check_branch
                %261 = sbr.rel target = $region74
              $region73: #{_lambda_.13} parent=47 // pred_region
                _
              $region74: #{_lambda_.13} parent=47 // pred_fallthru
                _
            $region48: #{_lambda_.13} parent=43 // pred_fallthru
              _
            // Predicated region
            $region49: #{_lambda_.13} parent=43 // pred_check
              _
            $region50: #{_lambda_.13} parent=43 // pred_check_branch
              %219 = sbr.rel target = $region52
            $region51: #{_lambda_.13} parent=43 // pred_region
              %s221 = ssub.s32 256, 1
              loop: start=0, step=1, limit=1
              $region53: #{_lambda_.13} parent=51 // loop_pre_header
                _
              $region54: #{_lambda_.13} parent=51 // loop_header
                %s223 = sphi 0, %s227
                %p224 = scmp.ge.s32.totalorder %s223, 1
                %s228 = sphi %s213, %s213
                %s229 = sphi %s210, %s210
              $region55: #{_lambda_.13} parent=51 // loop_header_branch
                %226 = sbr.rel (%p224) target = $region59
              $region56: #{_lambda_.13} parent=51 // loop_body
                %v230 = vld [vmem:[%s228] sm:%s221]
                %231 = vst [vmem:[%s229] sm:%s221] %v230
                %v232 = vld [vmem:[%s228 + $0x10] sm:%s221]
                %233 = vst [vmem:[%s229 + $0x8] sm:%s221] %v232
                %v234 = vld [vmem:[%s228 + $0x20] sm:%s221]
                %235 = vst [vmem:[%s229 + $0x10] sm:%s221] %v234
                %v236 = vld [vmem:[%s228 + $0x30] sm:%s221]
                %237 = vst [vmem:[%s229 + $0x18] sm:%s221] %v236
                %v238 = vld [vmem:[%s228 + $0x40] sm:%s221]
                %239 = vst [vmem:[%s229 + $0x20] sm:%s221] %v238
              $region57: #{_lambda_.13} parent=51 // loop_footer
                %s227 = sadd.s32 1, %s223
              $region58: #{_lambda_.13} parent=51 // loop_footer_branch
                %222 = sbr.rel target = $region54
              $region59: #{_lambda_.13} parent=51 // loop_exit
                _
            $region52: #{_lambda_.13} parent=43 // pred_fallthru
              _
          $region44: #{_lambda_.13} parent=39 // pred_fallthru
            _
          %262 = vnop
        $region40: #{_lambda_.13} parent=35 // pred_fallthru
          _
      $region36: #{_lambda_.13} parent=5 // pred_fallthru
        _
      %p263 = scmp.le.s32.totalorder 1, %s13
      %p264 = scmp.lt.s32.totalorder %s13, 3
      %p265 = pnand %p263, %p264
      %p266 = pneg %p265
      // Predicated region
      $region75: #{_lambda_.13} parent=5 // pred_check
        _
      $region76: #{_lambda_.13} parent=5 // pred_check_branch
        %268 = sbr.rel (%p265) target = $region78
      $region77: #{_lambda_.13} parent=5 // pred_region
        %s269 = ssub.s32 %s13, 1
        %s270 = sand.u32 %s47, 1
        %s271 = sand.u32 %s47, 1
        %s272 = smul.addr %s271, 40
        %s273 = scalar_lea.vmem [#allocation3], %s272
        // Predicated region
        $region79: #{_lambda_.13} parent=77 // pred_check
          %p274 = pneg %p60
        $region80: #{_lambda_.13} parent=77 // pred_check_branch
          %276 = sbr.rel (%p274) target = $region82
        $region81: #{_lambda_.13} parent=77 // pred_region
          _
        $region82: #{_lambda_.13} parent=77 // pred_fallthru
          _
        %p277 = pneg %p34
        %p278 = pneg %p31
        %s279 = sand.u32 %s47, 1
        %s280 = sand.u32 %s47, 1
        %s281 = smul.addr %s280, 40
        %s282 = scalar_lea.vmem [#allocation3], %s281
        %p283 = pneg %p60
        %p284 = pneg %p57
        %p285 = pneg %p81
        %p286 = pneg %p78
        %p287 = pneg %p102
        %p288 = pneg %p99
        %p289 = pneg %p123
        %p290 = pneg %p120
        %p291 = pneg %p144
        %p292 = pneg %p141
        %p293 = pneg %p170
        %p294 = pneg %p167
        %s295 = smul.u32 2, %s18
        %p296 = scmp.lt.s32.totalorder %s295, 3
        %s297 = scalar_select %p296, %s295, 3
        %s298 = smul.addr %s297, 2
        %s299 = scalar_lea.vmem %s6, %s298
        %s300 = smul.u32 2, %s18
        %s301 = smul.u32 2, %s18
        %p302 = scmp.lt.s32.totalorder %s301, 3
        %s303 = scalar_select %p302, %s301, 3
        %s304 = smul.addr %s303, 2
        %s305 = scalar_lea.vmem %s6, %s304
        %s306 = smul.u32 2, %s18
        %v308 = vld [vmem:[%s0] sm:$0x3]
        %v309 = vld [vmem:[%s273] sm:$0xff]
        %v310 = vld [vmem:[%s273 + $0x8] sm:$0xff]
        %v311 = vld [vmem:[%s273 + $0x10] sm:$0xff]
        %v312 = vld [vmem:[%s273 + $0x18] sm:$0xff]
        %v313 = vld [vmem:[%s273 + $0x20] sm:$0x33]
        %v314 = vld [vmem:[%s2] sm:$0xf]
        %316 = vset.pattern.permute.xlu0 0
        %317 = vperm.xlu0 %316, %v314
        %v318 = vpop.permute.xlu0 %317
        %v325 = vunpack.c.l.b16 %v309
        %v326 = vunpack.c.h.b16 %v309
        %v327 = vunpack.c.l.b16 %v310
        %v328 = vunpack.c.h.b16 %v310
        %v329 = vunpack.c.l.b16 %v311
        %v330 = vunpack.c.h.b16 %v311
        %v331 = vunpack.c.l.b16 %v312
        %v332 = vunpack.c.h.b16 %v312
        %v333 = vunpack.c.l.b16 %v313
        %v334 = vunpack.c.h.b16 %v313
        %v335 = vpack.c.b16 %v327, %v325
        %v336 = vpack.c.b16 %v328, %v326
        %v337 = vpack.c.b16 %v331, %v329
        %v338 = vpack.c.b16 %v332, %v330
        %v339 = vpack.c.b16 %v333, %v333
        %v340 = vpack.c.b16 %v334, %v334
        %vm345 = vcmask 293888
        %v347 = vsel %vm345, %v308, 0
        %vm349 = vcmask 1041408
        %v351 = vsel %vm349, %v339, 0
        %v354 = vsel %vm349, %v340, 0
        %356 = vmatpush.bf16.msra.mxu0 0
        %357 = vmatpush.bf16.msra.mxu0 0
        %358 = vmatpush.bf16.msra.mxu0 0
        %359 = vmatpush.bf16.msra.mxu0 0
        %360 = vmatpush.bf16.msra.mxu0 0
        %361 = vmatpush.bf16.msra.mxu0 %v351
        %362 = vmatpush.bf16.msra.mxu0 %v337
        %363 = vmatpush.bf16.msra.mxu0 %v335
        %364 = vmatmul.bf16.gmra.mxu0 %v347
        %v365 = vpop.f32.mrf.mxu0
        %v366 = vadd.f32 %v318, %v365
        %v367 = vpop.f32.mrf.mxu0
        %368 = vdwg.mxu0
        %369 = vmatpush.bf16.msra.mxu0 0
        %370 = vmatpush.bf16.msra.mxu0 0
        %371 = vmatpush.bf16.msra.mxu0 0
        %372 = vmatpush.bf16.msra.mxu0 0
        %373 = vmatpush.bf16.msra.mxu0 0
        %374 = vmatpush.bf16.msra.mxu0 %v354
        %375 = vmatpush.bf16.msra.mxu0 %v338
        %376 = vmatpush.bf16.msra.mxu0 %v336
        %377 = vmatmul.bf16.gmra.mxu0 %v347
        %v378 = vpop.f32.mrf.mxu0
        %v379 = vadd.f32 %v318, %v378
        %v380 = vpop.f32.mrf.mxu0
        %381 = vdwg.mxu0
        %s382 = sld [smem:[#allocation2]]
        %vm383 = vcmp.ge.f32.partialorder %v366, 0.0
        %vm384 = vcmp.ge.f32.partialorder %v379, 0.0
        %v385 = vstv %s382
        %v386 = vmul.f32 %v385, %v366
        %v387 = vmul.f32 %v385, %v379
        %v388 = vsel %vm383, %v366, %v386
        %v389 = vsel %vm384, %v379, %v387
        %v390 = vld [vmem:[%s4] sm:$0xf]
        %v391 = vld [vmem:[%s4 + $0x4] sm:$0x3]
        %v392 = vpack.c.bf16 %v388, %v388
        %v393 = vpack.c.bf16 %v389, %v389
        %v396 = vunpack.c.l.b16 %v390
        %v397 = vunpack.c.l.b16 %v391
        %v398 = vpack.c.b16 %v397, %v396
        %vm399 = vcmask 31744
        %v401 = vsel %vm399, %v398, 0
        %v404 = vsel %vm349, %v392, 0
        %v407 = vsel %vm349, %v393, 0
        %409 = vmatpush.bf16.msra.mxu0 0
        %410 = vmatpush.bf16.msra.mxu0 0
        %411 = vmatpush.bf16.msra.mxu0 0
        %412 = vmatpush.bf16.msra.mxu0 0
        %413 = vmatpush.bf16.msra.mxu0 0
        %414 = vmatpush.bf16.msra.mxu0 0
        %415 = vmatpush.bf16.msra.mxu0 0
        %416 = vmatpush.bf16.msra.mxu0 %v404
        %417 = vmatmul.bf16.gmra.mxu0 %v401
        %v418 = vpop.f32.mrf.mxu0
        %v419 = vadd.f32 0.0, %v418
        %v420 = vpop.f32.mrf.mxu0
        %v421 = vadd.f32 0.0, %v420
        %422 = vdwg.mxu0
        %423 = vmatpush.bf16.msra.mxu0 0
        %424 = vmatpush.bf16.msra.mxu0 0
        %425 = vmatpush.bf16.msra.mxu0 0
        %426 = vmatpush.bf16.msra.mxu0 0
        %427 = vmatpush.bf16.msra.mxu0 0
        %428 = vmatpush.bf16.msra.mxu0 0
        %429 = vmatpush.bf16.msra.mxu0 0
        %430 = vmatpush.bf16.msra.mxu0 %v407
        %431 = vmatmul.bf16.gmra.mxu0 %v401
        %v432 = vpop.f32.mrf.mxu0
        %v433 = vadd.f32 0.0, %v432
        %v434 = vpop.f32.mrf.mxu0
        %v435 = vadd.f32 0.0, %v434
        %436 = vdwg.mxu0
        %vm437 = vcmask 1043456
        %v438 = vsel %vm437, %v421, -inf
        %v439 = vmax.f32 %v419, %v438
        %v440 = vrot.slane %v439, 4
        %v441 = vmax.f32 %v439, %v440
        %v442 = vrot.slane %v441, 2
        %v443 = vmax.f32 %v441, %v442
        %v444 = vrot.slane %v443, 1
        %v445 = vmax.f32 %v443, %v444
        %v446 = vsel %vm437, %v435, -inf
        %v447 = vmax.f32 %v433, %v446
        %v448 = vrot.slane %v447, 4
        %v449 = vmax.f32 %v447, %v448
        %v450 = vrot.slane %v449, 2
        %v451 = vmax.f32 %v449, %v450
        %v452 = vrot.slane %v451, 1
        %v453 = vmax.f32 %v451, %v452
        %v454 = vsub.f32 %v419, %v445
        %v455 = vsub.f32 %v433, %v453
        %v456 = vsub.f32 %v421, %v445
        %v457 = vsub.f32 %v435, %v453
        %v458 = vmul.f32 %v454, 1.442695
        %v459 = vpow.pop %v458
        %v460 = vmul.f32 %v455, 1.442695
        %v461 = vpow.pop %v460
        %v462 = vmul.f32 %v456, 1.442695
        %v463 = vpow.pop %v462
        %v464 = vmul.f32 %v457, 1.442695
        %v465 = vpow.pop %v464
        %v466 = vsel %vm437, %v463, 0.0
        %v467 = vadd.f32 %v459, %v466
        %v468 = vrot.slane %v467, 4
        %v469 = vadd.f32 %v467, %v468
        %v470 = vrot.slane %v469, 2
        %v471 = vadd.f32 %v469, %v470
        %v472 = vrot.slane %v471, 1
        %v473 = vadd.f32 %v471, %v472
        %v474 = vsel %vm437, %v465, 0.0
        %v475 = vadd.f32 %v461, %v474
        %v476 = vrot.slane %v475, 4
        %v477 = vadd.f32 %v475, %v476
        %v478 = vrot.slane %v477, 2
        %v479 = vadd.f32 %v477, %v478
        %v480 = vrot.slane %v479, 1
        %v481 = vadd.f32 %v479, %v480
        %v482 = vrcp.pop %v473
        %v483 = vrcp.pop %v481
        %v484 = vmul.f32 %v459, %v482
        %v485 = vmul.f32 %v461, %v483
        %v486 = vmul.f32 %v463, %v482
        %v487 = vmul.f32 %v465, %v483
        %v488 = vld [vmem:[%s5] sm:$0x3]
        %v489 = vpack.c.bf16 %v486, %v484
        %v490 = vpack.c.bf16 %v487, %v485
        %vm491 = vcmask 97280
        %v493 = vsel %vm491, %v488, 0
        %vm495 = vcmask 1045504
        %v497 = vsel %vm495, %v489, 0
        %v500 = vsel %vm495, %v490, 0
        %502 = vmatpush.bf16.msra.mxu0 0
        %503 = vmatpush.bf16.msra.mxu0 0
        %504 = vmatpush.bf16.msra.mxu0 0
        %505 = vmatpush.bf16.msra.mxu0 0
        %506 = vmatpush.bf16.msra.mxu0 0
        %507 = vmatpush.bf16.msra.mxu0 0
        %508 = vmatpush.bf16.msra.mxu0 0
        %509 = vmatpush.bf16.msra.mxu0 %v497
        %510 = vmatmul.bf16.gmra.mxu0 %v493
        %v511 = vpop.f32.mrf.mxu0
        %v512 = vadd.f32 %v388, %v511
        %v513 = vpop.f32.mrf.mxu0
        %514 = vdwg.mxu0
        %515 = vmatpush.bf16.msra.mxu0 0
        %516 = vmatpush.bf16.msra.mxu0 0
        %517 = vmatpush.bf16.msra.mxu0 0
        %518 = vmatpush.bf16.msra.mxu0 0
        %519 = vmatpush.bf16.msra.mxu0 0
        %520 = vmatpush.bf16.msra.mxu0 0
        %521 = vmatpush.bf16.msra.mxu0 0
        %522 = vmatpush.bf16.msra.mxu0 %v500
        %523 = vmatmul.bf16.gmra.mxu0 %v493
        %v524 = vpop.f32.mrf.mxu0
        %v525 = vadd.f32 %v389, %v524
        %v526 = vpop.f32.mrf.mxu0
        %527 = vdwg.mxu0
        %v528 = vpack.c.bf16 %v525, %v512
        %v530 = vrot.slane %v528, 2
        %v533 = vsel %vm349, %v528, %v530
        %535 = vst [vmem:[%s305] sm:$0xf] %v533
        %s536 = smul.u32 2, %s18
        %p537 = scmp.lt.s32.totalorder %s536, 3
        %s538 = scalar_select %p537, %s536, 3
        %s539 = smul.addr %s538, 2
        %s540 = scalar_lea.vmem %s6, %s539
        // Predicated region
        $region83: #{_lambda_.13} parent=77 // pred_check
          %p541 = pneg %p167
        $region84: #{_lambda_.13} parent=77 // pred_check_branch
          %543 = sbr.rel (%p541) target = $region86
        $region85: #{_lambda_.13} parent=77 // pred_region
          %s544 = smul.u32 2, %s18
        $region86: #{_lambda_.13} parent=77 // pred_fallthru
          _
      $region78: #{_lambda_.13} parent=5 // pred_fallthru
        _
      %p545 = scmp.le.s32.totalorder 2, %s13
      // Predicated region
      $region87: #{_lambda_.13} parent=5 // pred_check
        %p546 = pneg %p545
      $region88: #{_lambda_.13} parent=5 // pred_check_branch
        %548 = sbr.rel (%p546) target = $region90
      $region89: #{_lambda_.13} parent=5 // pred_region
        %s549 = ssub.s32 %s13, 2
        // Predicated region
        $region91: #{_lambda_.13} parent=89 // pred_check
          %p550 = pneg %p173
        $region92: #{_lambda_.13} parent=89 // pred_check_branch
          %552 = sbr.rel (%p550) target = $region94
        $region93: #{_lambda_.13} parent=89 // pred_region
          %s553 = smul.u32 2, %s19
          %p554 = scmp.lt.s32.totalorder %s553, 3
          %s555 = scalar_select %p554, %s553, 3
          %s556 = smul.addr %s555, 2
          %s557 = scalar_lea.vmem %s6, %s556
        $region94: #{_lambda_.13} parent=89 // pred_fallthru
          _
      $region90: #{_lambda_.13} parent=5 // pred_fallthru
        _
    $region6: #{_lambda_.13} parent=1 // loop_footer
      %s17 = sadd.s32 1, %s13
    $region7: #{_lambda_.13} parent=1 // loop_footer_branch
      %12 = sbr.rel target = $region3
    $region8: #{_lambda_.13} parent=1 // loop_exit
      _

// kernel: sub.1
$region0: #{sub.1}
  #allocation0 [shape = 's32[1]{0}', space=sflag, size = 0x4, scoped, tag = 'scoped memory for sub.1']
  %s0 = inlined_call_operand.vmem [shape: bf16[4,2,32,32], index: 0, kind: input, shape index: {}]
  %s1 = inlined_call_operand.vmem [shape: bf16[4,2,32,32], index: 1, kind: input, shape index: {}]
  %s2 = inlined_call_operand.vmem [shape: bf16[4,2,32,32], index: 2, kind: output, shape index: {}]
  %v3 = vld [vmem:[%s0] sm:$0xf]
  %v4 = vunpack.c.l.bf16 %v3
  %v5 = vunpack.c.h.bf16 %v3
  %v6 = vld [vmem:[%s1] sm:$0xf]
  %v7 = vunpack.c.l.bf16 %v6
  %v8 = vunpack.c.h.bf16 %v6
  %9 = xla_tuple %v4, %v7
  %10 = xla_tuple %9
  %v11 = vsub.f32 %v4, %v7
  %12 = xla_tuple %v11
  %v13 = vpack.c.bf16 0.0, %v11
  %14 = vst [vmem:[%s2] sm:$0xf] %v13
  %s15 = scalar_lea.vmem %s0, 512
  %v16 = vld [vmem:[%s15] sm:$0xf]
  %v17 = vunpack.c.l.bf16 %v16
  %v18 = vunpack.c.h.bf16 %v16
  %s19 = scalar_lea.vmem %s1, 512
  %v20 = vld [vmem:[%s19] sm:$0xf]
  %v21 = vunpack.c.l.bf16 %v20
  %v22 = vunpack.c.h.bf16 %v20
  %23 = xla_tuple %v17, %v21
  %24 = xla_tuple %23
  %v25 = vsub.f32 %v17, %v21
  %26 = xla_tuple %v25
  %s27 = scalar_lea.vmem %s2, 512
  %v28 = vpack.c.bf16 0.0, %v25
  %29 = vst [vmem:[%s27] sm:$0xf] %v28
  %s30 = scalar_lea.vmem %s0, 16
  %v31 = vld [vmem:[%s30] sm:$0xf]
  %v32 = vunpack.c.l.bf16 %v31
  %v33 = vunpack.c.h.bf16 %v31
  %s34 = scalar_lea.vmem %s1, 16
  %v35 = vld [vmem:[%s34] sm:$0xf]
  %v36 = vunpack.c.l.bf16 %v35
  %v37 = vunpack.c.h.bf16 %v35
  %38 = xla_tuple %v32, %v36
  %39 = xla_tuple %38
  %v40 = vsub.f32 %v32, %v36
  %41 = xla_tuple %v40
  %s42 = scalar_lea.vmem %s2, 16
  %v43 = vpack.c.bf16 0.0, %v40
  %44 = vst [vmem:[%s42] sm:$0xf] %v43
  %s45 = scalar_lea.vmem %s0, 528
  %v46 = vld [vmem:[%s45] sm:$0xf]
  %v47 = vunpack.c.l.bf16 %v46
  %v48 = vunpack.c.h.bf16 %v46
  %s49 = scalar_lea.vmem %s1, 528
  %v50 = vld [vmem:[%s49] sm:$0xf]
  %v51 = vunpack.c.l.bf16 %v50
  %v52 = vunpack.c.h.bf16 %v50
  %53 = xla_tuple %v47, %v51
  %54 = xla_tuple %53
  %v55 = vsub.f32 %v47, %v51
  %56 = xla_tuple %v55
  %s57 = scalar_lea.vmem %s2, 528
  %v58 = vpack.c.bf16 0.0, %v55
  %59 = vst [vmem:[%s57] sm:$0xf] %v58
  %s60 = scalar_lea.vmem %s0, 32
  %v61 = vld [vmem:[%s60] sm:$0xf]
  %v62 = vunpack.c.l.bf16 %v61
  %v63 = vunpack.c.h.bf16 %v61
  %s64 = scalar_lea.vmem %s1, 32
  %v65 = vld [vmem:[%s64] sm:$0xf]
  %v66 = vunpack.c.l.bf16 %v65
  %v67 = vunpack.c.h.bf16 %v65
  %68 = xla_tuple %v62, %v66
  %69 = xla_tuple %68
  %v70 = vsub.f32 %v62, %v66
  %71 = xla_tuple %v70
  %s72 = scalar_lea.vmem %s2, 32
  %v73 = vpack.c.bf16 0.0, %v70
  %74 = vst [vmem:[%s72] sm:$0xf] %v73
  %s75 = scalar_lea.vmem %s0, 544
  %v76 = vld [vmem:[%s75] sm:$0xf]
  %v77 = vunpack.c.l.bf16 %v76
  %v78 = vunpack.c.h.bf16 %v76
  %s79 = scalar_lea.vmem %s1, 544
  %v80 = vld [vmem:[%s79] sm:$0xf]
  %v81 = vunpack.c.l.bf16 %v80
  %v82 = vunpack.c.h.bf16 %v80
  %83 = xla_tuple %v77, %v81
  %84 = xla_tuple %83
  %v85 = vsub.f32 %v77, %v81
  %86 = xla_tuple %v85
  %s87 = scalar_lea.vmem %s2, 544
  %v88 = vpack.c.bf16 0.0, %v85
  %89 = vst [vmem:[%s87] sm:$0xf] %v88
  %s90 = scalar_lea.vmem %s0, 48
  %v91 = vld [vmem:[%s90] sm:$0xf]
  %v92 = vunpack.c.l.bf16 %v91
  %v93 = vunpack.c.h.bf16 %v91
  %s94 = scalar_lea.vmem %s1, 48
  %v95 = vld [vmem:[%s94] sm:$0xf]
  %v96 = vunpack.c.l.bf16 %v95
  %v97 = vunpack.c.h.bf16 %v95
  %98 = xla_tuple %v92, %v96
  %99 = xla_tuple %98
  %v100 = vsub.f32 %v92, %v96
  %101 = xla_tuple %v100
  %s102 = scalar_lea.vmem %s2, 48
  %v103 = vpack.c.bf16 0.0, %v100
  %104 = vst [vmem:[%s102] sm:$0xf] %v103
  %s105 = scalar_lea.vmem %s0, 560
  %v106 = vld [vmem:[%s105] sm:$0xf]
  %v107 = vunpack.c.l.bf16 %v106
  %v108 = vunpack.c.h.bf16 %v106
  %s109 = scalar_lea.vmem %s1, 560
  %v110 = vld [vmem:[%s109] sm:$0xf]
  %v111 = vunpack.c.l.bf16 %v110
  %v112 = vunpack.c.h.bf16 %v110
  %113 = xla_tuple %v107, %v111
  %114 = xla_tuple %113
  %v115 = vsub.f32 %v107, %v111
  %116 = xla_tuple %v115
  %s117 = scalar_lea.vmem %s2, 560
  %v118 = vpack.c.bf16 0.0, %v115
  %119 = vst [vmem:[%s117] sm:$0xf] %v118
  %s120 = scalar_lea.vmem %s0, 64
  %v121 = vld [vmem:[%s120] sm:$0xf]
  %v122 = vunpack.c.l.bf16 %v121
  %v123 = vunpack.c.h.bf16 %v121
  %s124 = scalar_lea.vmem %s1, 64
  %v125 = vld [vmem:[%s124] sm:$0xf]
  %v126 = vunpack.c.l.bf16 %v125
  %v127 = vunpack.c.h.bf16 %v125
  %128 = xla_tuple %v122, %v126
  %129 = xla_tuple %128
  %v130 = vsub.f32 %v122, %v126
  %131 = xla_tuple %v130
  %s132 = scalar_lea.vmem %s2, 64
  %v133 = vpack.c.bf16 0.0, %v130
  %134 = vst [vmem:[%s132] sm:$0xf] %v133
  %s135 = scalar_lea.vmem %s0, 576
  %v136 = vld [vmem:[%s135] sm:$0xf]
  %v137 = vunpack.c.l.bf16 %v136
  %v138 = vunpack.c.h.bf16 %v136
  %s139 = scalar_lea.vmem %s1, 576
  %v140 = vld [vmem:[%s139] sm:$0xf]
  %v141 = vunpack.c.l.bf16 %v140
  %v142 = vunpack.c.h.bf16 %v140
  %143 = xla_tuple %v137, %v141
  %144 = xla_tuple %143
  %v145 = vsub.f32 %v137, %v141
  %146 = xla_tuple %v145
  %s147 = scalar_lea.vmem %s2, 576
  %v148 = vpack.c.bf16 0.0, %v145
  %149 = vst [vmem:[%s147] sm:$0xf] %v148
  %s150 = scalar_lea.vmem %s0, 80
  %v151 = vld [vmem:[%s150] sm:$0xf]
  %v152 = vunpack.c.l.bf16 %v151
  %v153 = vunpack.c.h.bf16 %v151
  %s154 = scalar_lea.vmem %s1, 80
  %v155 = vld [vmem:[%s154] sm:$0xf]
  %v156 = vunpack.c.l.bf16 %v155
  %v157 = vunpack.c.h.bf16 %v155
  %158 = xla_tuple %v152, %v156
  %159 = xla_tuple %158
  %v160 = vsub.f32 %v152, %v156
  %161 = xla_tuple %v160
  %s162 = scalar_lea.vmem %s2, 80
  %v163 = vpack.c.bf16 0.0, %v160
  %164 = vst [vmem:[%s162] sm:$0xf] %v163
  %s165 = scalar_lea.vmem %s0, 592
  %v166 = vld [vmem:[%s165] sm:$0xf]
  %v167 = vunpack.c.l.bf16 %v166
  %v168 = vunpack.c.h.bf16 %v166
  %s169 = scalar_lea.vmem %s1, 592
  %v170 = vld [vmem:[%s169] sm:$0xf]
  %v171 = vunpack.c.l.bf16 %v170
  %v172 = vunpack.c.h.bf16 %v170
  %173 = xla_tuple %v167, %v171
  %174 = xla_tuple %173
  %v175 = vsub.f32 %v167, %v171
  %176 = xla_tuple %v175
  %s177 = scalar_lea.vmem %s2, 592
  %v178 = vpack.c.bf16 0.0, %v175
  %179 = vst [vmem:[%s177] sm:$0xf] %v178
  %s180 = scalar_lea.vmem %s0, 96
  %v181 = vld [vmem:[%s180] sm:$0xf]
  %v182 = vunpack.c.l.bf16 %v181
  %v183 = vunpack.c.h.bf16 %v181
  %s184 = scalar_lea.vmem %s1, 96
  %v185 = vld [vmem:[%s184] sm:$0xf]
  %v186 = vunpack.c.l.bf16 %v185
  %v187 = vunpack.c.h.bf16 %v185
  %188 = xla_tuple %v182, %v186
  %189 = xla_tuple %188
  %v190 = vsub.f32 %v182, %v186
  %191 = xla_tuple %v190
  %s192 = scalar_lea.vmem %s2, 96
  %v193 = vpack.c.bf16 0.0, %v190
  %194 = vst [vmem:[%s192] sm:$0xf] %v193
  %s195 = scalar_lea.vmem %s0, 608
  %v196 = vld [vmem:[%s195] sm:$0xf]
  %v197 = vunpack.c.l.bf16 %v196
  %v198 = vunpack.c.h.bf16 %v196
  %s199 = scalar_lea.vmem %s1, 608
  %v200 = vld [vmem:[%s199] sm:$0xf]
  %v201 = vunpack.c.l.bf16 %v200
  %v202 = vunpack.c.h.bf16 %v200
  %203 = xla_tuple %v197, %v201
  %204 = xla_tuple %203
  %v205 = vsub.f32 %v197, %v201
  %206 = xla_tuple %v205
  %s207 = scalar_lea.vmem %s2, 608
  %v208 = vpack.c.bf16 0.0, %v205
  %209 = vst [vmem:[%s207] sm:$0xf] %v208
  %s210 = scalar_lea.vmem %s0, 112
  %v211 = vld [vmem:[%s210] sm:$0xf]
  %v212 = vunpack.c.l.bf16 %v211
  %v213 = vunpack.c.h.bf16 %v211
  %s214 = scalar_lea.vmem %s1, 112
  %v215 = vld [vmem:[%s214] sm:$0xf]
  %v216 = vunpack.c.l.bf16 %v215
  %v217 = vunpack.c.h.bf16 %v215
  %218 = xla_tuple %v212, %v216
  %219 = xla_tuple %218
  %v220 = vsub.f32 %v212, %v216
  %221 = xla_tuple %v220
  %s222 = scalar_lea.vmem %s2, 112
  %v223 = vpack.c.bf16 0.0, %v220
  %224 = vst [vmem:[%s222] sm:$0xf] %v223
  %s225 = scalar_lea.vmem %s0, 624
  %v226 = vld [vmem:[%s225] sm:$0xf]
  %v227 = vunpack.c.l.bf16 %v226
  %v228 = vunpack.c.h.bf16 %v226
  %s229 = scalar_lea.vmem %s1, 624
  %v230 = vld [vmem:[%s229] sm:$0xf]
  %v231 = vunpack.c.l.bf16 %v230
  %v232 = vunpack.c.h.bf16 %v230
  %233 = xla_tuple %v227, %v231
  %234 = xla_tuple %233
  %v235 = vsub.f32 %v227, %v231
  %236 = xla_tuple %v235
  %s237 = scalar_lea.vmem %s2, 624
  %v238 = vpack.c.bf16 0.0, %v235
  %239 = vst [vmem:[%s237] sm:$0xf] %v238
  %s240 = scalar_lea.vmem %s0, 128
  %v241 = vld [vmem:[%s240] sm:$0xf]
  %v242 = vunpack.c.l.bf16 %v241
  %v243 = vunpack.c.h.bf16 %v241
  %s244 = scalar_lea.vmem %s1, 128
  %v245 = vld [vmem:[%s244] sm:$0xf]
  %v246 = vunpack.c.l.bf16 %v245
  %v247 = vunpack.c.h.bf16 %v245
  %248 = xla_tuple %v242, %v246
  %249 = xla_tuple %248
  %v250 = vsub.f32 %v242, %v246
  %251 = xla_tuple %v250
  %s252 = scalar_lea.vmem %s2, 128
  %v253 = vpack.c.bf16 0.0, %v250
  %254 = vst [vmem:[%s252] sm:$0xf] %v253
  %s255 = scalar_lea.vmem %s0, 640
  %v256 = vld [vmem:[%s255] sm:$0xf]
  %v257 = vunpack.c.l.bf16 %v256
  %v258 = vunpack.c.h.bf16 %v256
  %s259 = scalar_lea.vmem %s1, 640
  %v260 = vld [vmem:[%s259] sm:$0xf]
  %v261 = vunpack.c.l.bf16 %v260
  %v262 = vunpack.c.h.bf16 %v260
  %263 = xla_tuple %v257, %v261
  %264 = xla_tuple %263
  %v265 = vsub.f32 %v257, %v261
  %266 = xla_tuple %v265
  %s267 = scalar_lea.vmem %s2, 640
  %v268 = vpack.c.bf16 0.0, %v265
  %269 = vst [vmem:[%s267] sm:$0xf] %v268
  %s270 = scalar_lea.vmem %s0, 144
  %v271 = vld [vmem:[%s270] sm:$0xf]
  %v272 = vunpack.c.l.bf16 %v271
  %v273 = vunpack.c.h.bf16 %v271
  %s274 = scalar_lea.vmem %s1, 144
  %v275 = vld [vmem:[%s274] sm:$0xf]
  %v276 = vunpack.c.l.bf16 %v275
  %v277 = vunpack.c.h.bf16 %v275
  %278 = xla_tuple %v272, %v276
  %279 = xla_tuple %278
  %v280 = vsub.f32 %v272, %v276
  %281 = xla_tuple %v280
  %s282 = scalar_lea.vmem %s2, 144
  %v283 = vpack.c.bf16 0.0, %v280
  %284 = vst [vmem:[%s282] sm:$0xf] %v283
  %s285 = scalar_lea.vmem %s0, 656
  %v286 = vld [vmem:[%s285] sm:$0xf]
  %v287 = vunpack.c.l.bf16 %v286
  %v288 = vunpack.c.h.bf16 %v286
  %s289 = scalar_lea.vmem %s1, 656
  %v290 = vld [vmem:[%s289] sm:$0xf]
  %v291 = vunpack.c.l.bf16 %v290
  %v292 = vunpack.c.h.bf16 %v290
  %293 = xla_tuple %v287, %v291
  %294 = xla_tuple %293
  %v295 = vsub.f32 %v287, %v291
  %296 = xla_tuple %v295
  %s297 = scalar_lea.vmem %s2, 656
  %v298 = vpack.c.bf16 0.0, %v295
  %299 = vst [vmem:[%s297] sm:$0xf] %v298
  %s300 = scalar_lea.vmem %s0, 160
  %v301 = vld [vmem:[%s300] sm:$0xf]
  %v302 = vunpack.c.l.bf16 %v301
  %v303 = vunpack.c.h.bf16 %v301
  %s304 = scalar_lea.vmem %s1, 160
  %v305 = vld [vmem:[%s304] sm:$0xf]
  %v306 = vunpack.c.l.bf16 %v305
  %v307 = vunpack.c.h.bf16 %v305
  %308 = xla_tuple %v302, %v306
  %309 = xla_tuple %308
  %v310 = vsub.f32 %v302, %v306
  %311 = xla_tuple %v310
  %s312 = scalar_lea.vmem %s2, 160
  %v313 = vpack.c.bf16 0.0, %v310
  %314 = vst [vmem:[%s312] sm:$0xf] %v313
  %s315 = scalar_lea.vmem %s0, 672
  %v316 = vld [vmem:[%s315] sm:$0xf]
  %v317 = vunpack.c.l.bf16 %v316
  %v318 = vunpack.c.h.bf16 %v316
  %s319 = scalar_lea.vmem %s1, 672
  %v320 = vld [vmem:[%s319] sm:$0xf]
  %v321 = vunpack.c.l.bf16 %v320
  %v322 = vunpack.c.h.bf16 %v320
  %323 = xla_tuple %v317, %v321
  %324 = xla_tuple %323
  %v325 = vsub.f32 %v317, %v321
  %326 = xla_tuple %v325
  %s327 = scalar_lea.vmem %s2, 672
  %v328 = vpack.c.bf16 0.0, %v325
  %329 = vst [vmem:[%s327] sm:$0xf] %v328
  %s330 = scalar_lea.vmem %s0, 176
  %v331 = vld [vmem:[%s330] sm:$0xf]
  %v332 = vunpack.c.l.bf16 %v331
  %v333 = vunpack.c.h.bf16 %v331
  %s334 = scalar_lea.vmem %s1, 176
  %v335 = vld [vmem:[%s334] sm:$0xf]
  %v336 = vunpack.c.l.bf16 %v335
  %v337 = vunpack.c.h.bf16 %v335
  %338 = xla_tuple %v332, %v336
  %339 = xla_tuple %338
  %v340 = vsub.f32 %v332, %v336
  %341 = xla_tuple %v340
  %s342 = scalar_lea.vmem %s2, 176
  %v343 = vpack.c.bf16 0.0, %v340
  %344 = vst [vmem:[%s342] sm:$0xf] %v343
  %s345 = scalar_lea.vmem %s0, 688
  %v346 = vld [vmem:[%s345] sm:$0xf]
  %v347 = vunpack.c.l.bf16 %v346
  %v348 = vunpack.c.h.bf16 %v346
  %s349 = scalar_lea.vmem %s1, 688
  %v350 = vld [vmem:[%s349] sm:$0xf]
  %v351 = vunpack.c.l.bf16 %v350
  %v352 = vunpack.c.h.bf16 %v350
  %353 = xla_tuple %v347, %v351
  %354 = xla_tuple %353
  %v355 = vsub.f32 %v347, %v351
  %356 = xla_tuple %v355
  %s357 = scalar_lea.vmem %s2, 688
  %v358 = vpack.c.bf16 0.0, %v355
  %359 = vst [vmem:[%s357] sm:$0xf] %v358
  %s360 = scalar_lea.vmem %s0, 192
  %v361 = vld [vmem:[%s360] sm:$0xf]
  %v362 = vunpack.c.l.bf16 %v361
  %v363 = vunpack.c.h.bf16 %v361
  %s364 = scalar_lea.vmem %s1, 192
  %v365 = vld [vmem:[%s364] sm:$0xf]
  %v366 = vunpack.c.l.bf16 %v365
  %v367 = vunpack.c.h.bf16 %v365
  %368 = xla_tuple %v362, %v366
  %369 = xla_tuple %368
  %v370 = vsub.f32 %v362, %v366
  %371 = xla_tuple %v370
  %s372 = scalar_lea.vmem %s2, 192
  %v373 = vpack.c.bf16 0.0, %v370
  %374 = vst [vmem:[%s372] sm:$0xf] %v373
  %s375 = scalar_lea.vmem %s0, 704
  %v376 = vld [vmem:[%s375] sm:$0xf]
  %v377 = vunpack.c.l.bf16 %v376
  %v378 = vunpack.c.h.bf16 %v376
  %s379 = scalar_lea.vmem %s1, 704
  %v380 = vld [vmem:[%s379] sm:$0xf]
  %v381 = vunpack.c.l.bf16 %v380
  %v382 = vunpack.c.h.bf16 %v380
  %383 = xla_tuple %v377, %v381
  %384 = xla_tuple %383
  %v385 = vsub.f32 %v377, %v381
  %386 = xla_tuple %v385
  %s387 = scalar_lea.vmem %s2, 704
  %v388 = vpack.c.bf16 0.0, %v385
  %389 = vst [vmem:[%s387] sm:$0xf] %v388
  %s390 = scalar_lea.vmem %s0, 208
  %v391 = vld [vmem:[%s390] sm:$0xf]
  %v392 = vunpack.c.l.bf16 %v391
  %v393 = vunpack.c.h.bf16 %v391
  %s394 = scalar_lea.vmem %s1, 208
  %v395 = vld [vmem:[%s394] sm:$0xf]
  %v396 = vunpack.c.l.bf16 %v395
  %v397 = vunpack.c.h.bf16 %v395
  %398 = xla_tuple %v392, %v396
  %399 = xla_tuple %398
  %v400 = vsub.f32 %v392, %v396
  %401 = xla_tuple %v400
  %s402 = scalar_lea.vmem %s2, 208
  %v403 = vpack.c.bf16 0.0, %v400
  %404 = vst [vmem:[%s402] sm:$0xf] %v403
  %s405 = scalar_lea.vmem %s0, 720
  %v406 = vld [vmem:[%s405] sm:$0xf]
  %v407 = vunpack.c.l.bf16 %v406
  %v408 = vunpack.c.h.bf16 %v406
  %s409 = scalar_lea.vmem %s1, 720
  %v410 = vld [vmem:[%s409] sm:$0xf]
  %v411 = vunpack.c.l.bf16 %v410
  %v412 = vunpack.c.h.bf16 %v410
  %413 = xla_tuple %v407, %v411
  %414 = xla_tuple %413
  %v415 = vsub.f32 %v407, %v411
  %416 = xla_tuple %v415
  %s417 = scalar_lea.vmem %s2, 720
  %v418 = vpack.c.bf16 0.0, %v415
  %419 = vst [vmem:[%s417] sm:$0xf] %v418
  %s420 = scalar_lea.vmem %s0, 224
  %v421 = vld [vmem:[%s420] sm:$0xf]
  %v422 = vunpack.c.l.bf16 %v421
  %v423 = vunpack.c.h.bf16 %v421
  %s424 = scalar_lea.vmem %s1, 224
  %v425 = vld [vmem:[%s424] sm:$0xf]
  %v426 = vunpack.c.l.bf16 %v425
  %v427 = vunpack.c.h.bf16 %v425
  %428 = xla_tuple %v422, %v426
  %429 = xla_tuple %428
  %v430 = vsub.f32 %v422, %v426
  %431 = xla_tuple %v430
  %s432 = scalar_lea.vmem %s2, 224
  %v433 = vpack.c.bf16 0.0, %v430
  %434 = vst [vmem:[%s432] sm:$0xf] %v433
  %s435 = scalar_lea.vmem %s0, 736
  %v436 = vld [vmem:[%s435] sm:$0xf]
  %v437 = vunpack.c.l.bf16 %v436
  %v438 = vunpack.c.h.bf16 %v436
  %s439 = scalar_lea.vmem %s1, 736
  %v440 = vld [vmem:[%s439] sm:$0xf]
  %v441 = vunpack.c.l.bf16 %v440
  %v442 = vunpack.c.h.bf16 %v440
  %443 = xla_tuple %v437, %v441
  %444 = xla_tuple %443
  %v445 = vsub.f32 %v437, %v441
  %446 = xla_tuple %v445
  %s447 = scalar_lea.vmem %s2, 736
  %v448 = vpack.c.bf16 0.0, %v445
  %449 = vst [vmem:[%s447] sm:$0xf] %v448
  %s450 = scalar_lea.vmem %s0, 240
  %v451 = vld [vmem:[%s450] sm:$0xf]
  %v452 = vunpack.c.l.bf16 %v451
  %v453 = vunpack.c.h.bf16 %v451
  %s454 = scalar_lea.vmem %s1, 240
  %v455 = vld [vmem:[%s454] sm:$0xf]
  %v456 = vunpack.c.l.bf16 %v455
  %v457 = vunpack.c.h.bf16 %v455
  %458 = xla_tuple %v452, %v456
  %459 = xla_tuple %458
  %v460 = vsub.f32 %v452, %v456
  %461 = xla_tuple %v460
  %s462 = scalar_lea.vmem %s2, 240
  %v463 = vpack.c.bf16 0.0, %v460
  %464 = vst [vmem:[%s462] sm:$0xf] %v463
  %s465 = scalar_lea.vmem %s0, 752
  %v466 = vld [vmem:[%s465] sm:$0xf]
  %v467 = vunpack.c.l.bf16 %v466
  %v468 = vunpack.c.h.bf16 %v466
  %s469 = scalar_lea.vmem %s1, 752
  %v470 = vld [vmem:[%s469] sm:$0xf]
  %v471 = vunpack.c.l.bf16 %v470
  %v472 = vunpack.c.h.bf16 %v470
  %473 = xla_tuple %v467, %v471
  %474 = xla_tuple %473
  %v475 = vsub.f32 %v467, %v471
  %476 = xla_tuple %v475
  %s477 = scalar_lea.vmem %s2, 752
  %v478 = vpack.c.bf16 0.0, %v475
  %479 = vst [vmem:[%s477] sm:$0xf] %v478
  %s480 = scalar_lea.vmem %s0, 256
  %v481 = vld [vmem:[%s480] sm:$0xf]
  %v482 = vunpack.c.l.bf16 %v481
  %v483 = vunpack.c.h.bf16 %v481
  %s484 = scalar_lea.vmem %s1, 256
  %v485 = vld [vmem:[%s484] sm:$0xf]
  %v486 = vunpack.c.l.bf16 %v485
  %v487 = vunpack.c.h.bf16 %v485
  %488 = xla_tuple %v482, %v486
  %489 = xla_tuple %488
  %v490 = vsub.f32 %v482, %v486
  %491 = xla_tuple %v490
  %s492 = scalar_lea.vmem %s2, 256
  %v493 = vpack.c.bf16 0.0, %v490
  %494 = vst [vmem:[%s492] sm:$0xf] %v493
  %s495 = scalar_lea.vmem %s0, 768
  %v496 = vld [vmem:[%s495] sm:$0xf]
  %v497 = vunpack.c.l.bf16 %v496
  %v498 = vunpack.c.h.bf16 %v496
  %s499 = scalar_lea.vmem %s1, 768
  %v500 = vld [vmem:[%s499] sm:$0xf]
  %v501 = vunpack.c.l.bf16 %v500
  %v502 = vunpack.c.h.bf16 %v500
  %503 = xla_tuple %v497, %v501
  %504 = xla_tuple %503
  %v505 = vsub.f32 %v497, %v501
  %506 = xla_tuple %v505
  %s507 = scalar_lea.vmem %s2, 768
  %v508 = vpack.c.bf16 0.0, %v505
  %509 = vst [vmem:[%s507] sm:$0xf] %v508
  %s510 = scalar_lea.vmem %s0, 272
  %v511 = vld [vmem:[%s510] sm:$0xf]
  %v512 = vunpack.c.l.bf16 %v511
  %v513 = vunpack.c.h.bf16 %v511
  %s514 = scalar_lea.vmem %s1, 272
  %v515 = vld [vmem:[%s514] sm:$0xf]
  %v516 = vunpack.c.l.bf16 %v515
  %v517 = vunpack.c.h.bf16 %v515
  %518 = xla_tuple %v512, %v516
  %519 = xla_tuple %518
  %v520 = vsub.f32 %v512, %v516
  %521 = xla_tuple %v520
  %s522 = scalar_lea.vmem %s2, 272
  %v523 = vpack.c.bf16 0.0, %v520
  %524 = vst [vmem:[%s522] sm:$0xf] %v523
  %s525 = scalar_lea.vmem %s0, 784
  %v526 = vld [vmem:[%s525] sm:$0xf]
  %v527 = vunpack.c.l.bf16 %v526
  %v528 = vunpack.c.h.bf16 %v526
  %s529 = scalar_lea.vmem %s1, 784
  %v530 = vld [vmem:[%s529] sm:$0xf]
  %v531 = vunpack.c.l.bf16 %v530
  %v532 = vunpack.c.h.bf16 %v530
  %533 = xla_tuple %v527, %v531
  %534 = xla_tuple %533
  %v535 = vsub.f32 %v527, %v531
  %536 = xla_tuple %v535
  %s537 = scalar_lea.vmem %s2, 784
  %v538 = vpack.c.bf16 0.0, %v535
  %539 = vst [vmem:[%s537] sm:$0xf] %v538
  %s540 = scalar_lea.vmem %s0, 288
  %v541 = vld [vmem:[%s540] sm:$0xf]
  %v542 = vunpack.c.l.bf16 %v541
  %v543 = vunpack.c.h.bf16 %v541
  %s544 = scalar_lea.vmem %s1, 288
  %v545 = vld [vmem:[%s544] sm:$0xf]
  %v546 = vunpack.c.l.bf16 %v545
  %v547 = vunpack.c.h.bf16 %v545
  %548 = xla_tuple %v542, %v546
  %549 = xla_tuple %548
  %v550 = vsub.f32 %v542, %v546
  %551 = xla_tuple %v550
  %s552 = scalar_lea.vmem %s2, 288
  %v553 = vpack.c.bf16 0.0, %v550
  %554 = vst [vmem:[%s552] sm:$0xf] %v553
  %s555 = scalar_lea.vmem %s0, 800
  %v556 = vld [vmem:[%s555] sm:$0xf]
  %v557 = vunpack.c.l.bf16 %v556
  %v558 = vunpack.c.h.bf16 %v556
  %s559 = scalar_lea.vmem %s1, 800
  %v560 = vld [vmem:[%s559] sm:$0xf]
  %v561 = vunpack.c.l.bf16 %v560
  %v562 = vunpack.c.h.bf16 %v560
  %563 = xla_tuple %v557, %v561
  %564 = xla_tuple %563
  %v565 = vsub.f32 %v557, %v561
  %566 = xla_tuple %v565
  %s567 = scalar_lea.vmem %s2, 800
  %v568 = vpack.c.bf16 0.0, %v565
  %569 = vst [vmem:[%s567] sm:$0xf] %v568
  %s570 = scalar_lea.vmem %s0, 304
  %v571 = vld [vmem:[%s570] sm:$0xf]
  %v572 = vunpack.c.l.bf16 %v571
  %v573 = vunpack.c.h.bf16 %v571
  %s574 = scalar_lea.vmem %s1, 304
  %v575 = vld [vmem:[%s574] sm:$0xf]
  %v576 = vunpack.c.l.bf16 %v575
  %v577 = vunpack.c.h.bf16 %v575
  %578 = xla_tuple %v572, %v576
  %579 = xla_tuple %578
  %v580 = vsub.f32 %v572, %v576
  %581 = xla_tuple %v580
  %s582 = scalar_lea.vmem %s2, 304
  %v583 = vpack.c.bf16 0.0, %v580
  %584 = vst [vmem:[%s582] sm:$0xf] %v583
  %s585 = scalar_lea.vmem %s0, 816
  %v586 = vld [vmem:[%s585] sm:$0xf]
  %v587 = vunpack.c.l.bf16 %v586
  %v588 = vunpack.c.h.bf16 %v586
  %s589 = scalar_lea.vmem %s1, 816
  %v590 = vld [vmem:[%s589] sm:$0xf]
  %v591 = vunpack.c.l.bf16 %v590
  %v592 = vunpack.c.h.bf16 %v590
  %593 = xla_tuple %v587, %v591
  %594 = xla_tuple %593
  %v595 = vsub.f32 %v587, %v591
  %596 = xla_tuple %v595
  %s597 = scalar_lea.vmem %s2, 816
  %v598 = vpack.c.bf16 0.0, %v595
  %599 = vst [vmem:[%s597] sm:$0xf] %v598
  %s600 = scalar_lea.vmem %s0, 320
  %v601 = vld [vmem:[%s600] sm:$0xf]
  %v602 = vunpack.c.l.bf16 %v601
  %v603 = vunpack.c.h.bf16 %v601
  %s604 = scalar_lea.vmem %s1, 320
  %v605 = vld [vmem:[%s604] sm:$0xf]
  %v606 = vunpack.c.l.bf16 %v605
  %v607 = vunpack.c.h.bf16 %v605
  %608 = xla_tuple %v602, %v606
  %609 = xla_tuple %608
  %v610 = vsub.f32 %v602, %v606
  %611 = xla_tuple %v610
  %s612 = scalar_lea.vmem %s2, 320
  %v613 = vpack.c.bf16 0.0, %v610
  %614 = vst [vmem:[%s612] sm:$0xf] %v613
  %s615 = scalar_lea.vmem %s0, 832
  %v616 = vld [vmem:[%s615] sm:$0xf]
  %v617 = vunpack.c.l.bf16 %v616
  %v618 = vunpack.c.h.bf16 %v616
  %s619 = scalar_lea.vmem %s1, 832
  %v620 = vld [vmem:[%s619] sm:$0xf]
  %v621 = vunpack.c.l.bf16 %v620
  %v622 = vunpack.c.h.bf16 %v620
  %623 = xla_tuple %v617, %v621
  %624 = xla_tuple %623
  %v625 = vsub.f32 %v617, %v621
  %626 = xla_tuple %v625
  %s627 = scalar_lea.vmem %s2, 832
  %v628 = vpack.c.bf16 0.0, %v625
  %629 = vst [vmem:[%s627] sm:$0xf] %v628
  %s630 = scalar_lea.vmem %s0, 336
  %v631 = vld [vmem:[%s630] sm:$0xf]
  %v632 = vunpack.c.l.bf16 %v631
  %v633 = vunpack.c.h.bf16 %v631
  %s634 = scalar_lea.vmem %s1, 336
  %v635 = vld [vmem:[%s634] sm:$0xf]
  %v636 = vunpack.c.l.bf16 %v635
  %v637 = vunpack.c.h.bf16 %v635
  %638 = xla_tuple %v632, %v636
  %639 = xla_tuple %638
  %v640 = vsub.f32 %v632, %v636
  %641 = xla_tuple %v640
  %s642 = scalar_lea.vmem %s2, 336
  %v643 = vpack.c.bf16 0.0, %v640
  %644 = vst [vmem:[%s642] sm:$0xf] %v643
  %s645 = scalar_lea.vmem %s0, 848
  %v646 = vld [vmem:[%s645] sm:$0xf]
  %v647 = vunpack.c.l.bf16 %v646
  %v648 = vunpack.c.h.bf16 %v646
  %s649 = scalar_lea.vmem %s1, 848
  %v650 = vld [vmem:[%s649] sm:$0xf]
  %v651 = vunpack.c.l.bf16 %v650
  %v652 = vunpack.c.h.bf16 %v650
  %653 = xla_tuple %v647, %v651
  %654 = xla_tuple %653
  %v655 = vsub.f32 %v647, %v651
  %656 = xla_tuple %v655
  %s657 = scalar_lea.vmem %s2, 848
  %v658 = vpack.c.bf16 0.0, %v655
  %659 = vst [vmem:[%s657] sm:$0xf] %v658
  %s660 = scalar_lea.vmem %s0, 352
  %v661 = vld [vmem:[%s660] sm:$0xf]
  %v662 = vunpack.c.l.bf16 %v661
  %v663 = vunpack.c.h.bf16 %v661
  %s664 = scalar_lea.vmem %s1, 352
  %v665 = vld [vmem:[%s664] sm:$0xf]
  %v666 = vunpack.c.l.bf16 %v665
  %v667 = vunpack.c.h.bf16 %v665
  %668 = xla_tuple %v662, %v666
  %669 = xla_tuple %668
  %v670 = vsub.f32 %v662, %v666
  %671 = xla_tuple %v670
  %s672 = scalar_lea.vmem %s2, 352
  %v673 = vpack.c.bf16 0.0, %v670
  %674 = vst [vmem:[%s672] sm:$0xf] %v673
  %s675 = scalar_lea.vmem %s0, 864
  %v676 = vld [vmem:[%s675] sm:$0xf]
  %v677 = vunpack.c.l.bf16 %v676
  %v678 = vunpack.c.h.bf16 %v676
  %s679 = scalar_lea.vmem %s1, 864
  %v680 = vld [vmem:[%s679] sm:$0xf]
  %v681 = vunpack.c.l.bf16 %v680
  %v682 = vunpack.c.h.bf16 %v680
  %683 = xla_tuple %v677, %v681
  %684 = xla_tuple %683
  %v685 = vsub.f32 %v677, %v681
  %686 = xla_tuple %v685
  %s687 = scalar_lea.vmem %s2, 864
  %v688 = vpack.c.bf16 0.0, %v685
  %689 = vst [vmem:[%s687] sm:$0xf] %v688
  %s690 = scalar_lea.vmem %s0, 368
  %v691 = vld [vmem:[%s690] sm:$0xf]
  %v692 = vunpack.c.l.bf16 %v691
  %v693 = vunpack.c.h.bf16 %v691
  %s694 = scalar_lea.vmem %s1, 368
  %v695 = vld [vmem:[%s694] sm:$0xf]
  %v696 = vunpack.c.l.bf16 %v695
  %v697 = vunpack.c.h.bf16 %v695
  %698 = xla_tuple %v692, %v696
  %699 = xla_tuple %698
  %v700 = vsub.f32 %v692, %v696
  %701 = xla_tuple %v700
  %s702 = scalar_lea.vmem %s2, 368
  %v703 = vpack.c.bf16 0.0, %v700
  %704 = vst [vmem:[%s702] sm:$0xf] %v703
  %s705 = scalar_lea.vmem %s0, 880
  %v706 = vld [vmem:[%s705] sm:$0xf]
  %v707 = vunpack.c.l.bf16 %v706
  %v708 = vunpack.c.h.bf16 %v706
  %s709 = scalar_lea.vmem %s1, 880
  %v710 = vld [vmem:[%s709] sm:$0xf]
  %v711 = vunpack.c.l.bf16 %v710
  %v712 = vunpack.c.h.bf16 %v710
  %713 = xla_tuple %v707, %v711
  %714 = xla_tuple %713
  %v715 = vsub.f32 %v707, %v711
  %716 = xla_tuple %v715
  %s717 = scalar_lea.vmem %s2, 880
  %v718 = vpack.c.bf16 0.0, %v715
  %719 = vst [vmem:[%s717] sm:$0xf] %v718
  %s720 = scalar_lea.vmem %s0, 384
  %v721 = vld [vmem:[%s720] sm:$0xf]
  %v722 = vunpack.c.l.bf16 %v721
  %v723 = vunpack.c.h.bf16 %v721
  %s724 = scalar_lea.vmem %s1, 384
  %v725 = vld [vmem:[%s724] sm:$0xf]
  %v726 = vunpack.c.l.bf16 %v725
  %v727 = vunpack.c.h.bf16 %v725
  %728 = xla_tuple %v722, %v726
  %729 = xla_tuple %728
  %v730 = vsub.f32 %v722, %v726
  %731 = xla_tuple %v730
  %s732 = scalar_lea.vmem %s2, 384
  %v733 = vpack.c.bf16 0.0, %v730
  %734 = vst [vmem:[%s732] sm:$0xf] %v733
  %s735 = scalar_lea.vmem %s0, 896
  %v736 = vld [vmem:[%s735] sm:$0xf]
  %v737 = vunpack.c.l.bf16 %v736
  %v738 = vunpack.c.h.bf16 %v736
  %s739 = scalar_lea.vmem %s1, 896
  %v740 = vld [vmem:[%s739] sm:$0xf]
  %v741 = vunpack.c.l.bf16 %v740
  %v742 = vunpack.c.h.bf16 %v740
  %743 = xla_tuple %v737, %v741
  %744 = xla_tuple %743
  %v745 = vsub.f32 %v737, %v741
  %746 = xla_tuple %v745
  %s747 = scalar_lea.vmem %s2, 896
  %v748 = vpack.c.bf16 0.0, %v745
  %749 = vst [vmem:[%s747] sm:$0xf] %v748
  %s750 = scalar_lea.vmem %s0, 400
  %v751 = vld [vmem:[%s750] sm:$0xf]
  %v752 = vunpack.c.l.bf16 %v751
  %v753 = vunpack.c.h.bf16 %v751
  %s754 = scalar_lea.vmem %s1, 400
  %v755 = vld [vmem:[%s754] sm:$0xf]
  %v756 = vunpack.c.l.bf16 %v755
  %v757 = vunpack.c.h.bf16 %v755
  %758 = xla_tuple %v752, %v756
  %759 = xla_tuple %758
  %v760 = vsub.f32 %v752, %v756
  %761 = xla_tuple %v760
  %s762 = scalar_lea.vmem %s2, 400
  %v763 = vpack.c.bf16 0.0, %v760
  %764 = vst [vmem:[%s762] sm:$0xf] %v763
  %s765 = scalar_lea.vmem %s0, 912
  %v766 = vld [vmem:[%s765] sm:$0xf]
  %v767 = vunpack.c.l.bf16 %v766
  %v768 = vunpack.c.h.bf16 %v766
  %s769 = scalar_lea.vmem %s1, 912
  %v770 = vld [vmem:[%s769] sm:$0xf]
  %v771 = vunpack.c.l.bf16 %v770
  %v772 = vunpack.c.h.bf16 %v770
  %773 = xla_tuple %v767, %v771
  %774 = xla_tuple %773
  %v775 = vsub.f32 %v767, %v771
  %776 = xla_tuple %v775
  %s777 = scalar_lea.vmem %s2, 912
  %v778 = vpack.c.bf16 0.0, %v775
  %779 = vst [vmem:[%s777] sm:$0xf] %v778
  %s780 = scalar_lea.vmem %s0, 416
  %v781 = vld [vmem:[%s780] sm:$0xf]
  %v782 = vunpack.c.l.bf16 %v781
  %v783 = vunpack.c.h.bf16 %v781
  %s784 = scalar_lea.vmem %s1, 416
  %v785 = vld [vmem:[%s784] sm:$0xf]
  %v786 = vunpack.c.l.bf16 %v785
  %v787 = vunpack.c.h.bf16 %v785
  %788 = xla_tuple %v782, %v786
  %789 = xla_tuple %788
  %v790 = vsub.f32 %v782, %v786
  %791 = xla_tuple %v790
  %s792 = scalar_lea.vmem %s2, 416
  %v793 = vpack.c.bf16 0.0, %v790
  %794 = vst [vmem:[%s792] sm:$0xf] %v793
  %s795 = scalar_lea.vmem %s0, 928
  %v796 = vld [vmem:[%s795] sm:$0xf]
  %v797 = vunpack.c.l.bf16 %v796
  %v798 = vunpack.c.h.bf16 %v796
  %s799 = scalar_lea.vmem %s1, 928
  %v800 = vld [vmem:[%s799] sm:$0xf]
  %v801 = vunpack.c.l.bf16 %v800
  %v802 = vunpack.c.h.bf16 %v800
  %803 = xla_tuple %v797, %v801
  %804 = xla_tuple %803
  %v805 = vsub.f32 %v797, %v801
  %806 = xla_tuple %v805
  %s807 = scalar_lea.vmem %s2, 928
  %v808 = vpack.c.bf16 0.0, %v805
  %809 = vst [vmem:[%s807] sm:$0xf] %v808
  %s810 = scalar_lea.vmem %s0, 432
  %v811 = vld [vmem:[%s810] sm:$0xf]
  %v812 = vunpack.c.l.bf16 %v811
  %v813 = vunpack.c.h.bf16 %v811
  %s814 = scalar_lea.vmem %s1, 432
  %v815 = vld [vmem:[%s814] sm:$0xf]
  %v816 = vunpack.c.l.bf16 %v815
  %v817 = vunpack.c.h.bf16 %v815
  %818 = xla_tuple %v812, %v816
  %819 = xla_tuple %818
  %v820 = vsub.f32 %v812, %v816
  %821 = xla_tuple %v820
  %s822 = scalar_lea.vmem %s2, 432
  %v823 = vpack.c.bf16 0.0, %v820
  %824 = vst [vmem:[%s822] sm:$0xf] %v823
  %s825 = scalar_lea.vmem %s0, 944
  %v826 = vld [vmem:[%s825] sm:$0xf]
  %v827 = vunpack.c.l.bf16 %v826
  %v828 = vunpack.c.h.bf16 %v826
  %s829 = scalar_lea.vmem %s1, 944
  %v830 = vld [vmem:[%s829] sm:$0xf]
  %v831 = vunpack.c.l.bf16 %v830
  %v832 = vunpack.c.h.bf16 %v830
  %833 = xla_tuple %v827, %v831
  %834 = xla_tuple %833
  %v835 = vsub.f32 %v827, %v831
  %836 = xla_tuple %v835
  %s837 = scalar_lea.vmem %s2, 944
  %v838 = vpack.c.bf16 0.0, %v835
  %839 = vst [vmem:[%s837] sm:$0xf] %v838
  %s840 = scalar_lea.vmem %s0, 448
  %v841 = vld [vmem:[%s840] sm:$0xf]
  %v842 = vunpack.c.l.bf16 %v841
  %v843 = vunpack.c.h.bf16 %v841
  %s844 = scalar_lea.vmem %s1, 448
  %v845 = vld [vmem:[%s844] sm:$0xf]
  %v846 = vunpack.c.l.bf16 %v845
  %v847 = vunpack.c.h.bf16 %v845
  %848 = xla_tuple %v842, %v846
  %849 = xla_tuple %848
  %v850 = vsub.f32 %v842, %v846
  %851 = xla_tuple %v850
  %s852 = scalar_lea.vmem %s2, 448
  %v853 = vpack.c.bf16 0.0, %v850
  %854 = vst [vmem:[%s852] sm:$0xf] %v853
  %s855 = scalar_lea.vmem %s0, 960
  %v856 = vld [vmem:[%s855] sm:$0xf]
  %v857 = vunpack.c.l.bf16 %v856
  %v858 = vunpack.c.h.bf16 %v856
  %s859 = scalar_lea.vmem %s1, 960
  %v860 = vld [vmem:[%s859] sm:$0xf]
  %v861 = vunpack.c.l.bf16 %v860
  %v862 = vunpack.c.h.bf16 %v860
  %863 = xla_tuple %v857, %v861
  %864 = xla_tuple %863
  %v865 = vsub.f32 %v857, %v861
  %866 = xla_tuple %v865
  %s867 = scalar_lea.vmem %s2, 960
  %v868 = vpack.c.bf16 0.0, %v865
  %869 = vst [vmem:[%s867] sm:$0xf] %v868
  %s870 = scalar_lea.vmem %s0, 464
  %v871 = vld [vmem:[%s870] sm:$0xf]
  %v872 = vunpack.c.l.bf16 %v871
  %v873 = vunpack.c.h.bf16 %v871
  %s874 = scalar_lea.vmem %s1, 464
  %v875 = vld [vmem:[%s874] sm:$0xf]
  %v876 = vunpack.c.l.bf16 %v875
  %v877 = vunpack.c.h.bf16 %v875
  %878 = xla_tuple %v872, %v876
  %879 = xla_tuple %878
  %v880 = vsub.f32 %v872, %v876
  %881 = xla_tuple %v880
  %s882 = scalar_lea.vmem %s2, 464
  %v883 = vpack.c.bf16 0.0, %v880
  %884 = vst [vmem:[%s882] sm:$0xf] %v883
  %s885 = scalar_lea.vmem %s0, 976
  %v886 = vld [vmem:[%s885] sm:$0xf]
  %v887 = vunpack.c.l.bf16 %v886
  %v888 = vunpack.c.h.bf16 %v886
  %s889 = scalar_lea.vmem %s1, 976
  %v890 = vld [vmem:[%s889] sm:$0xf]
  %v891 = vunpack.c.l.bf16 %v890
  %v892 = vunpack.c.h.bf16 %v890
  %893 = xla_tuple %v887, %v891
  %894 = xla_tuple %893
  %v895 = vsub.f32 %v887, %v891
  %896 = xla_tuple %v895
  %s897 = scalar_lea.vmem %s2, 976
  %v898 = vpack.c.bf16 0.0, %v895
  %899 = vst [vmem:[%s897] sm:$0xf] %v898
  %s900 = scalar_lea.vmem %s0, 480
  %v901 = vld [vmem:[%s900] sm:$0xf]
  %v902 = vunpack.c.l.bf16 %v901
  %v903 = vunpack.c.h.bf16 %v901
  %s904 = scalar_lea.vmem %s1, 480
  %v905 = vld [vmem:[%s904] sm:$0xf]
  %v906 = vunpack.c.l.bf16 %v905
  %v907 = vunpack.c.h.bf16 %v905
  %908 = xla_tuple %v902, %v906
  %909 = xla_tuple %908
  %v910 = vsub.f32 %v902, %v906
  %911 = xla_tuple %v910
  %s912 = scalar_lea.vmem %s2, 480
  %v913 = vpack.c.bf16 0.0, %v910
  %914 = vst [vmem:[%s912] sm:$0xf] %v913
  %s915 = scalar_lea.vmem %s0, 992
  %v916 = vld [vmem:[%s915] sm:$0xf]
  %v917 = vunpack.c.l.bf16 %v916
  %v918 = vunpack.c.h.bf16 %v916
  %s919 = scalar_lea.vmem %s1, 992
  %v920 = vld [vmem:[%s919] sm:$0xf]
  %v921 = vunpack.c.l.bf16 %v920
  %v922 = vunpack.c.h.bf16 %v920
  %923 = xla_tuple %v917, %v921
  %924 = xla_tuple %923
  %v925 = vsub.f32 %v917, %v921
  %926 = xla_tuple %v925
  %s927 = scalar_lea.vmem %s2, 992
  %v928 = vpack.c.bf16 0.0, %v925
  %929 = vst [vmem:[%s927] sm:$0xf] %v928
  %s930 = scalar_lea.vmem %s0, 496
  %v931 = vld [vmem:[%s930] sm:$0xf]
  %v932 = vunpack.c.l.bf16 %v931
  %v933 = vunpack.c.h.bf16 %v931
  %s934 = scalar_lea.vmem %s1, 496
  %v935 = vld [vmem:[%s934] sm:$0xf]
  %v936 = vunpack.c.l.bf16 %v935
  %v937 = vunpack.c.h.bf16 %v935
  %938 = xla_tuple %v932, %v936
  %939 = xla_tuple %938
  %v940 = vsub.f32 %v932, %v936
  %941 = xla_tuple %v940
  %s942 = scalar_lea.vmem %s2, 496
  %v943 = vpack.c.bf16 0.0, %v940
  %944 = vst [vmem:[%s942] sm:$0xf] %v943
  %s945 = scalar_lea.vmem %s0, 1008
  %v946 = vld [vmem:[%s945] sm:$0xf]
  %v947 = vunpack.c.l.bf16 %v946
  %v948 = vunpack.c.h.bf16 %v946
  %s949 = scalar_lea.vmem %s1, 1008
  %v950 = vld [vmem:[%s949] sm:$0xf]
  %v951 = vunpack.c.l.bf16 %v950
  %v952 = vunpack.c.h.bf16 %v950
  %953 = xla_tuple %v947, %v951
  %954 = xla_tuple %953
  %v955 = vsub.f32 %v947, %v951
  %956 = xla_tuple %v955
  %s957 = scalar_lea.vmem %s2, 1008
  %v958 = vpack.c.bf16 0.0, %v955
  %959 = vst [vmem:[%s957] sm:$0xf] %v958
  %s960 = scalar_lea.vmem %s0, 4
  %v961 = vld [vmem:[%s960] sm:$0xf]
  %v962 = vunpack.c.l.bf16 %v961
  %v963 = vunpack.c.h.bf16 %v961
  %s964 = scalar_lea.vmem %s1, 4
  %v965 = vld [vmem:[%s964] sm:$0xf]
  %v966 = vunpack.c.l.bf16 %v965
  %v967 = vunpack.c.h.bf16 %v965
  %968 = xla_tuple %v962, %v966
  %969 = xla_tuple %968
  %v970 = vsub.f32 %v962, %v966
  %971 = xla_tuple %v970
  %s972 = scalar_lea.vmem %s2, 4
  %v973 = vpack.c.bf16 0.0, %v970
  %974 = vst [vmem:[%s972] sm:$0xf] %v973
  %s975 = scalar_lea.vmem %s0, 516
  %v976 = vld [vmem:[%s975] sm:$0xf]
  %v977 = vunpack.c.l.bf16 %v976
  %v978 = vunpack.c.h.bf16 %v976
  %s979 = scalar_lea.vmem %s1, 516
  %v980 = vld [vmem:[%s979] sm:$0xf]
  %v981 = vunpack.c.l.bf16 %v980
  %v982 = vunpack.c.h.bf16 %v980
  %983 = xla_tuple %v977, %v981
  %984 = xla_tuple %983
  %v985 = vsub.f32 %v977, %v981
  %986 = xla_tuple %v985
  %s987 = scalar_lea.vmem %s2, 516
  %v988 = vpack.c.bf16 0.0, %v985
  %989 = vst [vmem:[%s987] sm:$0xf] %v988
  %s990 = scalar_lea.vmem %s0, 20
  %v991 = vld [vmem:[%s990] sm:$0xf]
  %v992 = vunpack.c.l.bf16 %v991
  %v993 = vunpack.c.h.bf16 %v991
  %s994 = scalar_lea.vmem %s1, 20
  %v995 = vld [vmem:[%s994] sm:$0xf]
  %v996 = vunpack.c.l.bf16 %v995
  %v997 = vunpack.c.h.bf16 %v995
  %998 = xla_tuple %v992, %v996
  %999 = xla_tuple %998
  %v1000 = vsub.f32 %v992, %v996
  %1001 = xla_tuple %v1000
  %s1002 = scalar_lea.vmem %s2, 20
  %v1003 = vpack.c.bf16 0.0, %v1000
  %1004 = vst [vmem:[%s1002] sm:$0xf] %v1003
  %s1005 = scalar_lea.vmem %s0, 532
  %v1006 = vld [vmem:[%s1005] sm:$0xf]
  %v1007 = vunpack.c.l.bf16 %v1006
  %v1008 = vunpack.c.h.bf16 %v1006
  %s1009 = scalar_lea.vmem %s1, 532
  %v1010 = vld [vmem:[%s1009] sm:$0xf]
  %v1011 = vunpack.c.l.bf16 %v1010
  %v1012 = vunpack.c.h.bf16 %v1010
  %1013 = xla_tuple %v1007, %v1011
  %1014 = xla_tuple %1013
  %v1015 = vsub.f32 %v1007, %v1011
  %1016 = xla_tuple %v1015
  %s1017 = scalar_lea.vmem %s2, 532
  %v1018 = vpack.c.bf16 0.0, %v1015
  %1019 = vst [vmem:[%s1017] sm:$0xf] %v1018
  %s1020 = scalar_lea.vmem %s0, 36
  %v1021 = vld [vmem:[%s1020] sm:$0xf]
  %v1022 = vunpack.c.l.bf16 %v1021
  %v1023 = vunpack.c.h.bf16 %v1021
  %s1024 = scalar_lea.vmem %s1, 36
  %v1025 = vld [vmem:[%s1024] sm:$0xf]
  %v1026 = vunpack.c.l.bf16 %v1025
  %v1027 = vunpack.c.h.bf16 %v1025
  %1028 = xla_tuple %v1022, %v1026
  %1029 = xla_tuple %1028
  %v1030 = vsub.f32 %v1022, %v1026
  %1031 = xla_tuple %v1030
  %s1032 = scalar_lea.vmem %s2, 36
  %v1033 = vpack.c.bf16 0.0, %v1030
  %1034 = vst [vmem:[%s1032] sm:$0xf] %v1033
  %s1035 = scalar_lea.vmem %s0, 548
  %v1036 = vld [vmem:[%s1035] sm:$0xf]
  %v1037 = vunpack.c.l.bf16 %v1036
  %v1038 = vunpack.c.h.bf16 %v1036
  %s1039 = scalar_lea.vmem %s1, 548
  %v1040 = vld [vmem:[%s1039] sm:$0xf]
  %v1041 = vunpack.c.l.bf16 %v1040
  %v1042 = vunpack.c.h.bf16 %v1040
  %1043 = xla_tuple %v1037, %v1041
  %1044 = xla_tuple %1043
  %v1045 = vsub.f32 %v1037, %v1041
  %1046 = xla_tuple %v1045
  %s1047 = scalar_lea.vmem %s2, 548
  %v1048 = vpack.c.bf16 0.0, %v1045
  %1049 = vst [vmem:[%s1047] sm:$0xf] %v1048
  %s1050 = scalar_lea.vmem %s0, 52
  %v1051 = vld [vmem:[%s1050] sm:$0xf]
  %v1052 = vunpack.c.l.bf16 %v1051
  %v1053 = vunpack.c.h.bf16 %v1051
  %s1054 = scalar_lea.vmem %s1, 52
  %v1055 = vld [vmem:[%s1054] sm:$0xf]
  %v1056 = vunpack.c.l.bf16 %v1055
  %v1057 = vunpack.c.h.bf16 %v1055
  %1058 = xla_tuple %v1052, %v1056
  %1059 = xla_tuple %1058
  %v1060 = vsub.f32 %v1052, %v1056
  %1061 = xla_tuple %v1060
  %s1062 = scalar_lea.vmem %s2, 52
  %v1063 = vpack.c.bf16 0.0, %v1060
  %1064 = vst [vmem:[%s1062] sm:$0xf] %v1063
  %s1065 = scalar_lea.vmem %s0, 564
  %v1066 = vld [vmem:[%s1065] sm:$0xf]
  %v1067 = vunpack.c.l.bf16 %v1066
  %v1068 = vunpack.c.h.bf16 %v1066
  %s1069 = scalar_lea.vmem %s1, 564
  %v1070 = vld [vmem:[%s1069] sm:$0xf]
  %v1071 = vunpack.c.l.bf16 %v1070
  %v1072 = vunpack.c.h.bf16 %v1070
  %1073 = xla_tuple %v1067, %v1071
  %1074 = xla_tuple %1073
  %v1075 = vsub.f32 %v1067, %v1071
  %1076 = xla_tuple %v1075
  %s1077 = scalar_lea.vmem %s2, 564
  %v1078 = vpack.c.bf16 0.0, %v1075
  %1079 = vst [vmem:[%s1077] sm:$0xf] %v1078
  %s1080 = scalar_lea.vmem %s0, 68
  %v1081 = vld [vmem:[%s1080] sm:$0xf]
  %v1082 = vunpack.c.l.bf16 %v1081
  %v1083 = vunpack.c.h.bf16 %v1081
  %s1084 = scalar_lea.vmem %s1, 68
  %v1085 = vld [vmem:[%s1084] sm:$0xf]
  %v1086 = vunpack.c.l.bf16 %v1085
  %v1087 = vunpack.c.h.bf16 %v1085
  %1088 = xla_tuple %v1082, %v1086
  %1089 = xla_tuple %1088
  %v1090 = vsub.f32 %v1082, %v1086
  %1091 = xla_tuple %v1090
  %s1092 = scalar_lea.vmem %s2, 68
  %v1093 = vpack.c.bf16 0.0, %v1090
  %1094 = vst [vmem:[%s1092] sm:$0xf] %v1093
  %s1095 = scalar_lea.vmem %s0, 580
  %v1096 = vld [vmem:[%s1095] sm:$0xf]
  %v1097 = vunpack.c.l.bf16 %v1096
  %v1098 = vunpack.c.h.bf16 %v1096
  %s1099 = scalar_lea.vmem %s1, 580
  %v1100 = vld [vmem:[%s1099] sm:$0xf]
  %v1101 = vunpack.c.l.bf16 %v1100
  %v1102 = vunpack.c.h.bf16 %v1100
  %1103 = xla_tuple %v1097, %v1101
  %1104 = xla_tuple %1103
  %v1105 = vsub.f32 %v1097, %v1101
  %1106 = xla_tuple %v1105
  %s1107 = scalar_lea.vmem %s2, 580
  %v1108 = vpack.c.bf16 0.0, %v1105
  %1109 = vst [vmem:[%s1107] sm:$0xf] %v1108
  %s1110 = scalar_lea.vmem %s0, 84
  %v1111 = vld [vmem:[%s1110] sm:$0xf]
  %v1112 = vunpack.c.l.bf16 %v1111
  %v1113 = vunpack.c.h.bf16 %v1111
  %s1114 = scalar_lea.vmem %s1, 84
  %v1115 = vld [vmem:[%s1114] sm:$0xf]
  %v1116 = vunpack.c.l.bf16 %v1115
  %v1117 = vunpack.c.h.bf16 %v1115
  %1118 = xla_tuple %v1112, %v1116
  %1119 = xla_tuple %1118
  %v1120 = vsub.f32 %v1112, %v1116
  %1121 = xla_tuple %v1120
  %s1122 = scalar_lea.vmem %s2, 84
  %v1123 = vpack.c.bf16 0.0, %v1120
  %1124 = vst [vmem:[%s1122] sm:$0xf] %v1123
  %s1125 = scalar_lea.vmem %s0, 596
  %v1126 = vld [vmem:[%s1125] sm:$0xf]
  %v1127 = vunpack.c.l.bf16 %v1126
  %v1128 = vunpack.c.h.bf16 %v1126
  %s1129 = scalar_lea.vmem %s1, 596
  %v1130 = vld [vmem:[%s1129] sm:$0xf]
  %v1131 = vunpack.c.l.bf16 %v1130
  %v1132 = vunpack.c.h.bf16 %v1130
  %1133 = xla_tuple %v1127, %v1131
  %1134 = xla_tuple %1133
  %v1135 = vsub.f32 %v1127, %v1131
  %1136 = xla_tuple %v1135
  %s1137 = scalar_lea.vmem %s2, 596
  %v1138 = vpack.c.bf16 0.0, %v1135
  %1139 = vst [vmem:[%s1137] sm:$0xf] %v1138
  %s1140 = scalar_lea.vmem %s0, 100
  %v1141 = vld [vmem:[%s1140] sm:$0xf]
  %v1142 = vunpack.c.l.bf16 %v1141
  %v1143 = vunpack.c.h.bf16 %v1141
  %s1144 = scalar_lea.vmem %s1, 100
  %v1145 = vld [vmem:[%s1144] sm:$0xf]
  %v1146 = vunpack.c.l.bf16 %v1145
  %v1147 = vunpack.c.h.bf16 %v1145
  %1148 = xla_tuple %v1142, %v1146
  %1149 = xla_tuple %1148
  %v1150 = vsub.f32 %v1142, %v1146
  %1151 = xla_tuple %v1150
  %s1152 = scalar_lea.vmem %s2, 100
  %v1153 = vpack.c.bf16 0.0, %v1150
  %1154 = vst [vmem:[%s1152] sm:$0xf] %v1153
  %s1155 = scalar_lea.vmem %s0, 612
  %v1156 = vld [vmem:[%s1155] sm:$0xf]
  %v1157 = vunpack.c.l.bf16 %v1156
  %v1158 = vunpack.c.h.bf16 %v1156
  %s1159 = scalar_lea.vmem %s1, 612
  %v1160 = vld [vmem:[%s1159] sm:$0xf]
  %v1161 = vunpack.c.l.bf16 %v1160
  %v1162 = vunpack.c.h.bf16 %v1160
  %1163 = xla_tuple %v1157, %v1161
  %1164 = xla_tuple %1163
  %v1165 = vsub.f32 %v1157, %v1161
  %1166 = xla_tuple %v1165
  %s1167 = scalar_lea.vmem %s2, 612
  %v1168 = vpack.c.bf16 0.0, %v1165
  %1169 = vst [vmem:[%s1167] sm:$0xf] %v1168
  %s1170 = scalar_lea.vmem %s0, 116
  %v1171 = vld [vmem:[%s1170] sm:$0xf]
  %v1172 = vunpack.c.l.bf16 %v1171
  %v1173 = vunpack.c.h.bf16 %v1171
  %s1174 = scalar_lea.vmem %s1, 116
  %v1175 = vld [vmem:[%s1174] sm:$0xf]
  %v1176 = vunpack.c.l.bf16 %v1175
  %v1177 = vunpack.c.h.bf16 %v1175
  %1178 = xla_tuple %v1172, %v1176
  %1179 = xla_tuple %1178
  %v1180 = vsub.f32 %v1172, %v1176
  %1181 = xla_tuple %v1180
  %s1182 = scalar_lea.vmem %s2, 116
  %v1183 = vpack.c.bf16 0.0, %v1180
  %1184 = vst [vmem:[%s1182] sm:$0xf] %v1183
  %s1185 = scalar_lea.vmem %s0, 628
  %v1186 = vld [vmem:[%s1185] sm:$0xf]
  %v1187 = vunpack.c.l.bf16 %v1186
  %v1188 = vunpack.c.h.bf16 %v1186
  %s1189 = scalar_lea.vmem %s1, 628
  %v1190 = vld [vmem:[%s1189] sm:$0xf]
  %v1191 = vunpack.c.l.bf16 %v1190
  %v1192 = vunpack.c.h.bf16 %v1190
  %1193 = xla_tuple %v1187, %v1191
  %1194 = xla_tuple %1193
  %v1195 = vsub.f32 %v1187, %v1191
  %1196 = xla_tuple %v1195
  %s1197 = scalar_lea.vmem %s2, 628
  %v1198 = vpack.c.bf16 0.0, %v1195
  %1199 = vst [vmem:[%s1197] sm:$0xf] %v1198
  %s1200 = scalar_lea.vmem %s0, 132
  %v1201 = vld [vmem:[%s1200] sm:$0xf]
  %v1202 = vunpack.c.l.bf16 %v1201
  %v1203 = vunpack.c.h.bf16 %v1201
  %s1204 = scalar_lea.vmem %s1, 132
  %v1205 = vld [vmem:[%s1204] sm:$0xf]
  %v1206 = vunpack.c.l.bf16 %v1205
  %v1207 = vunpack.c.h.bf16 %v1205
  %1208 = xla_tuple %v1202, %v1206
  %1209 = xla_tuple %1208
  %v1210 = vsub.f32 %v1202, %v1206
  %1211 = xla_tuple %v1210
  %s1212 = scalar_lea.vmem %s2, 132
  %v1213 = vpack.c.bf16 0.0, %v1210
  %1214 = vst [vmem:[%s1212] sm:$0xf] %v1213
  %s1215 = scalar_lea.vmem %s0, 644
  %v1216 = vld [vmem:[%s1215] sm:$0xf]
  %v1217 = vunpack.c.l.bf16 %v1216
  %v1218 = vunpack.c.h.bf16 %v1216
  %s1219 = scalar_lea.vmem %s1, 644
  %v1220 = vld [vmem:[%s1219] sm:$0xf]
  %v1221 = vunpack.c.l.bf16 %v1220
  %v1222 = vunpack.c.h.bf16 %v1220
  %1223 = xla_tuple %v1217, %v1221
  %1224 = xla_tuple %1223
  %v1225 = vsub.f32 %v1217, %v1221
  %1226 = xla_tuple %v1225
  %s1227 = scalar_lea.vmem %s2, 644
  %v1228 = vpack.c.bf16 0.0, %v1225
  %1229 = vst [vmem:[%s1227] sm:$0xf] %v1228
  %s1230 = scalar_lea.vmem %s0, 148
  %v1231 = vld [vmem:[%s1230] sm:$0xf]
  %v1232 = vunpack.c.l.bf16 %v1231
  %v1233 = vunpack.c.h.bf16 %v1231
  %s1234 = scalar_lea.vmem %s1, 148
  %v1235 = vld [vmem:[%s1234] sm:$0xf]
  %v1236 = vunpack.c.l.bf16 %v1235
  %v1237 = vunpack.c.h.bf16 %v1235
  %1238 = xla_tuple %v1232, %v1236
  %1239 = xla_tuple %1238
  %v1240 = vsub.f32 %v1232, %v1236
  %1241 = xla_tuple %v1240
  %s1242 = scalar_lea.vmem %s2, 148
  %v1243 = vpack.c.bf16 0.0, %v1240
  %1244 = vst [vmem:[%s1242] sm:$0xf] %v1243
  %s1245 = scalar_lea.vmem %s0, 660
  %v1246 = vld [vmem:[%s1245] sm:$0xf]
  %v1247 = vunpack.c.l.bf16 %v1246
  %v1248 = vunpack.c.h.bf16 %v1246
  %s1249 = scalar_lea.vmem %s1, 660
  %v1250 = vld [vmem:[%s1249] sm:$0xf]
  %v1251 = vunpack.c.l.bf16 %v1250
  %v1252 = vunpack.c.h.bf16 %v1250
  %1253 = xla_tuple %v1247, %v1251
  %1254 = xla_tuple %1253
  %v1255 = vsub.f32 %v1247, %v1251
  %1256 = xla_tuple %v1255
  %s1257 = scalar_lea.vmem %s2, 660
  %v1258 = vpack.c.bf16 0.0, %v1255
  %1259 = vst [vmem:[%s1257] sm:$0xf] %v1258
  %s1260 = scalar_lea.vmem %s0, 164
  %v1261 = vld [vmem:[%s1260] sm:$0xf]
  %v1262 = vunpack.c.l.bf16 %v1261
  %v1263 = vunpack.c.h.bf16 %v1261
  %s1264 = scalar_lea.vmem %s1, 164
  %v1265 = vld [vmem:[%s1264] sm:$0xf]
  %v1266 = vunpack.c.l.bf16 %v1265
  %v1267 = vunpack.c.h.bf16 %v1265
  %1268 = xla_tuple %v1262, %v1266
  %1269 = xla_tuple %1268
  %v1270 = vsub.f32 %v1262, %v1266
  %1271 = xla_tuple %v1270
  %s1272 = scalar_lea.vmem %s2, 164
  %v1273 = vpack.c.bf16 0.0, %v1270
  %1274 = vst [vmem:[%s1272] sm:$0xf] %v1273
  %s1275 = scalar_lea.vmem %s0, 676
  %v1276 = vld [vmem:[%s1275] sm:$0xf]
  %v1277 = vunpack.c.l.bf16 %v1276
  %v1278 = vunpack.c.h.bf16 %v1276
  %s1279 = scalar_lea.vmem %s1, 676
  %v1280 = vld [vmem:[%s1279] sm:$0xf]
  %v1281 = vunpack.c.l.bf16 %v1280
  %v1282 = vunpack.c.h.bf16 %v1280
  %1283 = xla_tuple %v1277, %v1281
  %1284 = xla_tuple %1283
  %v1285 = vsub.f32 %v1277, %v1281
  %1286 = xla_tuple %v1285
  %s1287 = scalar_lea.vmem %s2, 676
  %v1288 = vpack.c.bf16 0.0, %v1285
  %1289 = vst [vmem:[%s1287] sm:$0xf] %v1288
  %s1290 = scalar_lea.vmem %s0, 180
  %v1291 = vld [vmem:[%s1290] sm:$0xf]
  %v1292 = vunpack.c.l.bf16 %v1291
  %v1293 = vunpack.c.h.bf16 %v1291
  %s1294 = scalar_lea.vmem %s1, 180
  %v1295 = vld [vmem:[%s1294] sm:$0xf]
  %v1296 = vunpack.c.l.bf16 %v1295
  %v1297 = vunpack.c.h.bf16 %v1295
  %1298 = xla_tuple %v1292, %v1296
  %1299 = xla_tuple %1298
  %v1300 = vsub.f32 %v1292, %v1296
  %1301 = xla_tuple %v1300
  %s1302 = scalar_lea.vmem %s2, 180
  %v1303 = vpack.c.bf16 0.0, %v1300
  %1304 = vst [vmem:[%s1302] sm:$0xf] %v1303
  %s1305 = scalar_lea.vmem %s0, 692
  %v1306 = vld [vmem:[%s1305] sm:$0xf]
  %v1307 = vunpack.c.l.bf16 %v1306
  %v1308 = vunpack.c.h.bf16 %v1306
  %s1309 = scalar_lea.vmem %s1, 692
  %v1310 = vld [vmem:[%s1309] sm:$0xf]
  %v1311 = vunpack.c.l.bf16 %v1310
  %v1312 = vunpack.c.h.bf16 %v1310
  %1313 = xla_tuple %v1307, %v1311
  %1314 = xla_tuple %1313
  %v1315 = vsub.f32 %v1307, %v1311
  %1316 = xla_tuple %v1315
  %s1317 = scalar_lea.vmem %s2, 692
  %v1318 = vpack.c.bf16 0.0, %v1315
  %1319 = vst [vmem:[%s1317] sm:$0xf] %v1318
  %s1320 = scalar_lea.vmem %s0, 196
  %v1321 = vld [vmem:[%s1320] sm:$0xf]
  %v1322 = vunpack.c.l.bf16 %v1321
  %v1323 = vunpack.c.h.bf16 %v1321
  %s1324 = scalar_lea.vmem %s1, 196
  %v1325 = vld [vmem:[%s1324] sm:$0xf]
  %v1326 = vunpack.c.l.bf16 %v1325
  %v1327 = vunpack.c.h.bf16 %v1325
  %1328 = xla_tuple %v1322, %v1326
  %1329 = xla_tuple %1328
  %v1330 = vsub.f32 %v1322, %v1326
  %1331 = xla_tuple %v1330
  %s1332 = scalar_lea.vmem %s2, 196
  %v1333 = vpack.c.bf16 0.0, %v1330
  %1334 = vst [vmem:[%s1332] sm:$0xf] %v1333
  %s1335 = scalar_lea.vmem %s0, 708
  %v1336 = vld [vmem:[%s1335] sm:$0xf]
  %v1337 = vunpack.c.l.bf16 %v1336
  %v1338 = vunpack.c.h.bf16 %v1336
  %s1339 = scalar_lea.vmem %s1, 708
  %v1340 = vld [vmem:[%s1339] sm:$0xf]
  %v1341 = vunpack.c.l.bf16 %v1340
  %v1342 = vunpack.c.h.bf16 %v1340
  %1343 = xla_tuple %v1337, %v1341
  %1344 = xla_tuple %1343
  %v1345 = vsub.f32 %v1337, %v1341
  %1346 = xla_tuple %v1345
  %s1347 = scalar_lea.vmem %s2, 708
  %v1348 = vpack.c.bf16 0.0, %v1345
  %1349 = vst [vmem:[%s1347] sm:$0xf] %v1348
  %s1350 = scalar_lea.vmem %s0, 212
  %v1351 = vld [vmem:[%s1350] sm:$0xf]
  %v1352 = vunpack.c.l.bf16 %v1351
  %v1353 = vunpack.c.h.bf16 %v1351
  %s1354 = scalar_lea.vmem %s1, 212
  %v1355 = vld [vmem:[%s1354] sm:$0xf]
  %v1356 = vunpack.c.l.bf16 %v1355
  %v1357 = vunpack.c.h.bf16 %v1355
  %1358 = xla_tuple %v1352, %v1356
  %1359 = xla_tuple %1358
  %v1360 = vsub.f32 %v1352, %v1356
  %1361 = xla_tuple %v1360
  %s1362 = scalar_lea.vmem %s2, 212
  %v1363 = vpack.c.bf16 0.0, %v1360
  %1364 = vst [vmem:[%s1362] sm:$0xf] %v1363
  %s1365 = scalar_lea.vmem %s0, 724
  %v1366 = vld [vmem:[%s1365] sm:$0xf]
  %v1367 = vunpack.c.l.bf16 %v1366
  %v1368 = vunpack.c.h.bf16 %v1366
  %s1369 = scalar_lea.vmem %s1, 724
  %v1370 = vld [vmem:[%s1369] sm:$0xf]
  %v1371 = vunpack.c.l.bf16 %v1370
  %v1372 = vunpack.c.h.bf16 %v1370
  %1373 = xla_tuple %v1367, %v1371
  %1374 = xla_tuple %1373
  %v1375 = vsub.f32 %v1367, %v1371
  %1376 = xla_tuple %v1375
  %s1377 = scalar_lea.vmem %s2, 724
  %v1378 = vpack.c.bf16 0.0, %v1375
  %1379 = vst [vmem:[%s1377] sm:$0xf] %v1378
  %s1380 = scalar_lea.vmem %s0, 228
  %v1381 = vld [vmem:[%s1380] sm:$0xf]
  %v1382 = vunpack.c.l.bf16 %v1381
  %v1383 = vunpack.c.h.bf16 %v1381
  %s1384 = scalar_lea.vmem %s1, 228
  %v1385 = vld [vmem:[%s1384] sm:$0xf]
  %v1386 = vunpack.c.l.bf16 %v1385
  %v1387 = vunpack.c.h.bf16 %v1385
  %1388 = xla_tuple %v1382, %v1386
  %1389 = xla_tuple %1388
  %v1390 = vsub.f32 %v1382, %v1386
  %1391 = xla_tuple %v1390
  %s1392 = scalar_lea.vmem %s2, 228
  %v1393 = vpack.c.bf16 0.0, %v1390
  %1394 = vst [vmem:[%s1392] sm:$0xf] %v1393
  %s1395 = scalar_lea.vmem %s0, 740
  %v1396 = vld [vmem:[%s1395] sm:$0xf]
  %v1397 = vunpack.c.l.bf16 %v1396
  %v1398 = vunpack.c.h.bf16 %v1396
  %s1399 = scalar_lea.vmem %s1, 740
  %v1400 = vld [vmem:[%s1399] sm:$0xf]
  %v1401 = vunpack.c.l.bf16 %v1400
  %v1402 = vunpack.c.h.bf16 %v1400
  %1403 = xla_tuple %v1397, %v1401
  %1404 = xla_tuple %1403
  %v1405 = vsub.f32 %v1397, %v1401
  %1406 = xla_tuple %v1405
  %s1407 = scalar_lea.vmem %s2, 740
  %v1408 = vpack.c.bf16 0.0, %v1405
  %1409 = vst [vmem:[%s1407] sm:$0xf] %v1408
  %s1410 = scalar_lea.vmem %s0, 244
  %v1411 = vld [vmem:[%s1410] sm:$0xf]
  %v1412 = vunpack.c.l.bf16 %v1411
  %v1413 = vunpack.c.h.bf16 %v1411
  %s1414 = scalar_lea.vmem %s1, 244
  %v1415 = vld [vmem:[%s1414] sm:$0xf]
  %v1416 = vunpack.c.l.bf16 %v1415
  %v1417 = vunpack.c.h.bf16 %v1415
  %1418 = xla_tuple %v1412, %v1416
  %1419 = xla_tuple %1418
  %v1420 = vsub.f32 %v1412, %v1416
  %1421 = xla_tuple %v1420
  %s1422 = scalar_lea.vmem %s2, 244
  %v1423 = vpack.c.bf16 0.0, %v1420
  %1424 = vst [vmem:[%s1422] sm:$0xf] %v1423
  %s1425 = scalar_lea.vmem %s0, 756
  %v1426 = vld [vmem:[%s1425] sm:$0xf]
  %v1427 = vunpack.c.l.bf16 %v1426
  %v1428 = vunpack.c.h.bf16 %v1426
  %s1429 = scalar_lea.vmem %s1, 756
  %v1430 = vld [vmem:[%s1429] sm:$0xf]
  %v1431 = vunpack.c.l.bf16 %v1430
  %v1432 = vunpack.c.h.bf16 %v1430
  %1433 = xla_tuple %v1427, %v1431
  %1434 = xla_tuple %1433
  %v1435 = vsub.f32 %v1427, %v1431
  %1436 = xla_tuple %v1435
  %s1437 = scalar_lea.vmem %s2, 756
  %v1438 = vpack.c.bf16 0.0, %v1435
  %1439 = vst [vmem:[%s1437] sm:$0xf] %v1438
  %s1440 = scalar_lea.vmem %s0, 260
  %v1441 = vld [vmem:[%s1440] sm:$0xf]
  %v1442 = vunpack.c.l.bf16 %v1441
  %v1443 = vunpack.c.h.bf16 %v1441
  %s1444 = scalar_lea.vmem %s1, 260
  %v1445 = vld [vmem:[%s1444] sm:$0xf]
  %v1446 = vunpack.c.l.bf16 %v1445
  %v1447 = vunpack.c.h.bf16 %v1445
  %1448 = xla_tuple %v1442, %v1446
  %1449 = xla_tuple %1448
  %v1450 = vsub.f32 %v1442, %v1446
  %1451 = xla_tuple %v1450
  %s1452 = scalar_lea.vmem %s2, 260
  %v1453 = vpack.c.bf16 0.0, %v1450
  %1454 = vst [vmem:[%s1452] sm:$0xf] %v1453
  %s1455 = scalar_lea.vmem %s0, 772
  %v1456 = vld [vmem:[%s1455] sm:$0xf]
  %v1457 = vunpack.c.l.bf16 %v1456
  %v1458 = vunpack.c.h.bf16 %v1456
  %s1459 = scalar_lea.vmem %s1, 772
  %v1460 = vld [vmem:[%s1459] sm:$0xf]
  %v1461 = vunpack.c.l.bf16 %v1460
  %v1462 = vunpack.c.h.bf16 %v1460
  %1463 = xla_tuple %v1457, %v1461
  %1464 = xla_tuple %1463
  %v1465 = vsub.f32 %v1457, %v1461
  %1466 = xla_tuple %v1465
  %s1467 = scalar_lea.vmem %s2, 772
  %v1468 = vpack.c.bf16 0.0, %v1465
  %1469 = vst [vmem:[%s1467] sm:$0xf] %v1468
  %s1470 = scalar_lea.vmem %s0, 276
  %v1471 = vld [vmem:[%s1470] sm:$0xf]
  %v1472 = vunpack.c.l.bf16 %v1471
  %v1473 = vunpack.c.h.bf16 %v1471
  %s1474 = scalar_lea.vmem %s1, 276
  %v1475 = vld [vmem:[%s1474] sm:$0xf]
  %v1476 = vunpack.c.l.bf16 %v1475
  %v1477 = vunpack.c.h.bf16 %v1475
  %1478 = xla_tuple %v1472, %v1476
  %1479 = xla_tuple %1478
  %v1480 = vsub.f32 %v1472, %v1476
  %1481 = xla_tuple %v1480
  %s1482 = scalar_lea.vmem %s2, 276
  %v1483 = vpack.c.bf16 0.0, %v1480
  %1484 = vst [vmem:[%s1482] sm:$0xf] %v1483
  %s1485 = scalar_lea.vmem %s0, 788
  %v1486 = vld [vmem:[%s1485] sm:$0xf]
  %v1487 = vunpack.c.l.bf16 %v1486
  %v1488 = vunpack.c.h.bf16 %v1486
  %s1489 = scalar_lea.vmem %s1, 788
  %v1490 = vld [vmem:[%s1489] sm:$0xf]
  %v1491 = vunpack.c.l.bf16 %v1490
  %v1492 = vunpack.c.h.bf16 %v1490
  %1493 = xla_tuple %v1487, %v1491
  %1494 = xla_tuple %1493
  %v1495 = vsub.f32 %v1487, %v1491
  %1496 = xla_tuple %v1495
  %s1497 = scalar_lea.vmem %s2, 788
  %v1498 = vpack.c.bf16 0.0, %v1495
  %1499 = vst [vmem:[%s1497] sm:$0xf] %v1498
  %s1500 = scalar_lea.vmem %s0, 292
  %v1501 = vld [vmem:[%s1500] sm:$0xf]
  %v1502 = vunpack.c.l.bf16 %v1501
  %v1503 = vunpack.c.h.bf16 %v1501
  %s1504 = scalar_lea.vmem %s1, 292
  %v1505 = vld [vmem:[%s1504] sm:$0xf]
  %v1506 = vunpack.c.l.bf16 %v1505
  %v1507 = vunpack.c.h.bf16 %v1505
  %1508 = xla_tuple %v1502, %v1506
  %1509 = xla_tuple %1508
  %v1510 = vsub.f32 %v1502, %v1506
  %1511 = xla_tuple %v1510
  %s1512 = scalar_lea.vmem %s2, 292
  %v1513 = vpack.c.bf16 0.0, %v1510
  %1514 = vst [vmem:[%s1512] sm:$0xf] %v1513
  %s1515 = scalar_lea.vmem %s0, 804
  %v1516 = vld [vmem:[%s1515] sm:$0xf]
  %v1517 = vunpack.c.l.bf16 %v1516
  %v1518 = vunpack.c.h.bf16 %v1516
  %s1519 = scalar_lea.vmem %s1, 804
  %v1520 = vld [vmem:[%s1519] sm:$0xf]
  %v1521 = vunpack.c.l.bf16 %v1520
  %v1522 = vunpack.c.h.bf16 %v1520
  %1523 = xla_tuple %v1517, %v1521
  %1524 = xla_tuple %1523
  %v1525 = vsub.f32 %v1517, %v1521
  %1526 = xla_tuple %v1525
  %s1527 = scalar_lea.vmem %s2, 804
  %v1528 = vpack.c.bf16 0.0, %v1525
  %1529 = vst [vmem:[%s1527] sm:$0xf] %v1528
  %s1530 = scalar_lea.vmem %s0, 308
  %v1531 = vld [vmem:[%s1530] sm:$0xf]
  %v1532 = vunpack.c.l.bf16 %v1531
  %v1533 = vunpack.c.h.bf16 %v1531
  %s1534 = scalar_lea.vmem %s1, 308
  %v1535 = vld [vmem:[%s1534] sm:$0xf]
  %v1536 = vunpack.c.l.bf16 %v1535
  %v1537 = vunpack.c.h.bf16 %v1535
  %1538 = xla_tuple %v1532, %v1536
  %1539 = xla_tuple %1538
  %v1540 = vsub.f32 %v1532, %v1536
  %1541 = xla_tuple %v1540
  %s1542 = scalar_lea.vmem %s2, 308
  %v1543 = vpack.c.bf16 0.0, %v1540
  %1544 = vst [vmem:[%s1542] sm:$0xf] %v1543
  %s1545 = scalar_lea.vmem %s0, 820
  %v1546 = vld [vmem:[%s1545] sm:$0xf]
  %v1547 = vunpack.c.l.bf16 %v1546
  %v1548 = vunpack.c.h.bf16 %v1546
  %s1549 = scalar_lea.vmem %s1, 820
  %v1550 = vld [vmem:[%s1549] sm:$0xf]
  %v1551 = vunpack.c.l.bf16 %v1550
  %v1552 = vunpack.c.h.bf16 %v1550
  %1553 = xla_tuple %v1547, %v1551
  %1554 = xla_tuple %1553
  %v1555 = vsub.f32 %v1547, %v1551
  %1556 = xla_tuple %v1555
  %s1557 = scalar_lea.vmem %s2, 820
  %v1558 = vpack.c.bf16 0.0, %v1555
  %1559 = vst [vmem:[%s1557] sm:$0xf] %v1558
  %s1560 = scalar_lea.vmem %s0, 324
  %v1561 = vld [vmem:[%s1560] sm:$0xf]
  %v1562 = vunpack.c.l.bf16 %v1561
  %v1563 = vunpack.c.h.bf16 %v1561
  %s1564 = scalar_lea.vmem %s1, 324
  %v1565 = vld [vmem:[%s1564] sm:$0xf]
  %v1566 = vunpack.c.l.bf16 %v1565
  %v1567 = vunpack.c.h.bf16 %v1565
  %1568 = xla_tuple %v1562, %v1566
  %1569 = xla_tuple %1568
  %v1570 = vsub.f32 %v1562, %v1566
  %1571 = xla_tuple %v1570
  %s1572 = scalar_lea.vmem %s2, 324
  %v1573 = vpack.c.bf16 0.0, %v1570
  %1574 = vst [vmem:[%s1572] sm:$0xf] %v1573
  %s1575 = scalar_lea.vmem %s0, 836
  %v1576 = vld [vmem:[%s1575] sm:$0xf]
  %v1577 = vunpack.c.l.bf16 %v1576
  %v1578 = vunpack.c.h.bf16 %v1576
  %s1579 = scalar_lea.vmem %s1, 836
  %v1580 = vld [vmem:[%s1579] sm:$0xf]
  %v1581 = vunpack.c.l.bf16 %v1580
  %v1582 = vunpack.c.h.bf16 %v1580
  %1583 = xla_tuple %v1577, %v1581
  %1584 = xla_tuple %1583
  %v1585 = vsub.f32 %v1577, %v1581
  %1586 = xla_tuple %v1585
  %s1587 = scalar_lea.vmem %s2, 836
  %v1588 = vpack.c.bf16 0.0, %v1585
  %1589 = vst [vmem:[%s1587] sm:$0xf] %v1588
  %s1590 = scalar_lea.vmem %s0, 340
  %v1591 = vld [vmem:[%s1590] sm:$0xf]
  %v1592 = vunpack.c.l.bf16 %v1591
  %v1593 = vunpack.c.h.bf16 %v1591
  %s1594 = scalar_lea.vmem %s1, 340
  %v1595 = vld [vmem:[%s1594] sm:$0xf]
  %v1596 = vunpack.c.l.bf16 %v1595
  %v1597 = vunpack.c.h.bf16 %v1595
  %1598 = xla_tuple %v1592, %v1596
  %1599 = xla_tuple %1598
  %v1600 = vsub.f32 %v1592, %v1596
  %1601 = xla_tuple %v1600
  %s1602 = scalar_lea.vmem %s2, 340
  %v1603 = vpack.c.bf16 0.0, %v1600
  %1604 = vst [vmem:[%s1602] sm:$0xf] %v1603
  %s1605 = scalar_lea.vmem %s0, 852
  %v1606 = vld [vmem:[%s1605] sm:$0xf]
  %v1607 = vunpack.c.l.bf16 %v1606
  %v1608 = vunpack.c.h.bf16 %v1606
  %s1609 = scalar_lea.vmem %s1, 852
  %v1610 = vld [vmem:[%s1609] sm:$0xf]
  %v1611 = vunpack.c.l.bf16 %v1610
  %v1612 = vunpack.c.h.bf16 %v1610
  %1613 = xla_tuple %v1607, %v1611
  %1614 = xla_tuple %1613
  %v1615 = vsub.f32 %v1607, %v1611
  %1616 = xla_tuple %v1615
  %s1617 = scalar_lea.vmem %s2, 852
  %v1618 = vpack.c.bf16 0.0, %v1615
  %1619 = vst [vmem:[%s1617] sm:$0xf] %v1618
  %s1620 = scalar_lea.vmem %s0, 356
  %v1621 = vld [vmem:[%s1620] sm:$0xf]
  %v1622 = vunpack.c.l.bf16 %v1621
  %v1623 = vunpack.c.h.bf16 %v1621
  %s1624 = scalar_lea.vmem %s1, 356
  %v1625 = vld [vmem:[%s1624] sm:$0xf]
  %v1626 = vunpack.c.l.bf16 %v1625
  %v1627 = vunpack.c.h.bf16 %v1625
  %1628 = xla_tuple %v1622, %v1626
  %1629 = xla_tuple %1628
  %v1630 = vsub.f32 %v1622, %v1626
  %1631 = xla_tuple %v1630
  %s1632 = scalar_lea.vmem %s2, 356
  %v1633 = vpack.c.bf16 0.0, %v1630
  %1634 = vst [vmem:[%s1632] sm:$0xf] %v1633
  %s1635 = scalar_lea.vmem %s0, 868
  %v1636 = vld [vmem:[%s1635] sm:$0xf]
  %v1637 = vunpack.c.l.bf16 %v1636
  %v1638 = vunpack.c.h.bf16 %v1636
  %s1639 = scalar_lea.vmem %s1, 868
  %v1640 = vld [vmem:[%s1639] sm:$0xf]
  %v1641 = vunpack.c.l.bf16 %v1640
  %v1642 = vunpack.c.h.bf16 %v1640
  %1643 = xla_tuple %v1637, %v1641
  %1644 = xla_tuple %1643
  %v1645 = vsub.f32 %v1637, %v1641
  %1646 = xla_tuple %v1645
  %s1647 = scalar_lea.vmem %s2, 868
  %v1648 = vpack.c.bf16 0.0, %v1645
  %1649 = vst [vmem:[%s1647] sm:$0xf] %v1648
  %s1650 = scalar_lea.vmem %s0, 372
  %v1651 = vld [vmem:[%s1650] sm:$0xf]
  %v1652 = vunpack.c.l.bf16 %v1651
  %v1653 = vunpack.c.h.bf16 %v1651
  %s1654 = scalar_lea.vmem %s1, 372
  %v1655 = vld [vmem:[%s1654] sm:$0xf]
  %v1656 = vunpack.c.l.bf16 %v1655
  %v1657 = vunpack.c.h.bf16 %v1655
  %1658 = xla_tuple %v1652, %v1656
  %1659 = xla_tuple %1658
  %v1660 = vsub.f32 %v1652, %v1656
  %1661 = xla_tuple %v1660
  %s1662 = scalar_lea.vmem %s2, 372
  %v1663 = vpack.c.bf16 0.0, %v1660
  %1664 = vst [vmem:[%s1662] sm:$0xf] %v1663
  %s1665 = scalar_lea.vmem %s0, 884
  %v1666 = vld [vmem:[%s1665] sm:$0xf]
  %v1667 = vunpack.c.l.bf16 %v1666
  %v1668 = vunpack.c.h.bf16 %v1666
  %s1669 = scalar_lea.vmem %s1, 884
  %v1670 = vld [vmem:[%s1669] sm:$0xf]
  %v1671 = vunpack.c.l.bf16 %v1670
  %v1672 = vunpack.c.h.bf16 %v1670
  %1673 = xla_tuple %v1667, %v1671
  %1674 = xla_tuple %1673
  %v1675 = vsub.f32 %v1667, %v1671
  %1676 = xla_tuple %v1675
  %s1677 = scalar_lea.vmem %s2, 884
  %v1678 = vpack.c.bf16 0.0, %v1675
  %1679 = vst [vmem:[%s1677] sm:$0xf] %v1678
  %s1680 = scalar_lea.vmem %s0, 388
  %v1681 = vld [vmem:[%s1680] sm:$0xf]
  %v1682 = vunpack.c.l.bf16 %v1681
  %v1683 = vunpack.c.h.bf16 %v1681
  %s1684 = scalar_lea.vmem %s1, 388
  %v1685 = vld [vmem:[%s1684] sm:$0xf]
  %v1686 = vunpack.c.l.bf16 %v1685
  %v1687 = vunpack.c.h.bf16 %v1685
  %1688 = xla_tuple %v1682, %v1686
  %1689 = xla_tuple %1688
  %v1690 = vsub.f32 %v1682, %v1686
  %1691 = xla_tuple %v1690
  %s1692 = scalar_lea.vmem %s2, 388
  %v1693 = vpack.c.bf16 0.0, %v1690
  %1694 = vst [vmem:[%s1692] sm:$0xf] %v1693
  %s1695 = scalar_lea.vmem %s0, 900
  %v1696 = vld [vmem:[%s1695] sm:$0xf]
  %v1697 = vunpack.c.l.bf16 %v1696
  %v1698 = vunpack.c.h.bf16 %v1696
  %s1699 = scalar_lea.vmem %s1, 900
  %v1700 = vld [vmem:[%s1699] sm:$0xf]
  %v1701 = vunpack.c.l.bf16 %v1700
  %v1702 = vunpack.c.h.bf16 %v1700
  %1703 = xla_tuple %v1697, %v1701
  %1704 = xla_tuple %1703
  %v1705 = vsub.f32 %v1697, %v1701
  %1706 = xla_tuple %v1705
  %s1707 = scalar_lea.vmem %s2, 900
  %v1708 = vpack.c.bf16 0.0, %v1705
  %1709 = vst [vmem:[%s1707] sm:$0xf] %v1708
  %s1710 = scalar_lea.vmem %s0, 404
  %v1711 = vld [vmem:[%s1710] sm:$0xf]
  %v1712 = vunpack.c.l.bf16 %v1711
  %v1713 = vunpack.c.h.bf16 %v1711
  %s1714 = scalar_lea.vmem %s1, 404
  %v1715 = vld [vmem:[%s1714] sm:$0xf]
  %v1716 = vunpack.c.l.bf16 %v1715
  %v1717 = vunpack.c.h.bf16 %v1715
  %1718 = xla_tuple %v1712, %v1716
  %1719 = xla_tuple %1718
  %v1720 = vsub.f32 %v1712, %v1716
  %1721 = xla_tuple %v1720
  %s1722 = scalar_lea.vmem %s2, 404
  %v1723 = vpack.c.bf16 0.0, %v1720
  %1724 = vst [vmem:[%s1722] sm:$0xf] %v1723
  %s1725 = scalar_lea.vmem %s0, 916
  %v1726 = vld [vmem:[%s1725] sm:$0xf]
  %v1727 = vunpack.c.l.bf16 %v1726
  %v1728 = vunpack.c.h.bf16 %v1726
  %s1729 = scalar_lea.vmem %s1, 916
  %v1730 = vld [vmem:[%s1729] sm:$0xf]
  %v1731 = vunpack.c.l.bf16 %v1730
  %v1732 = vunpack.c.h.bf16 %v1730
  %1733 = xla_tuple %v1727, %v1731
  %1734 = xla_tuple %1733
  %v1735 = vsub.f32 %v1727, %v1731
  %1736 = xla_tuple %v1735
  %s1737 = scalar_lea.vmem %s2, 916
  %v1738 = vpack.c.bf16 0.0, %v1735
  %1739 = vst [vmem:[%s1737] sm:$0xf] %v1738
  %s1740 = scalar_lea.vmem %s0, 420
  %v1741 = vld [vmem:[%s1740] sm:$0xf]
  %v1742 = vunpack.c.l.bf16 %v1741
  %v1743 = vunpack.c.h.bf16 %v1741
  %s1744 = scalar_lea.vmem %s1, 420
  %v1745 = vld [vmem:[%s1744] sm:$0xf]
  %v1746 = vunpack.c.l.bf16 %v1745
  %v1747 = vunpack.c.h.bf16 %v1745
  %1748 = xla_tuple %v1742, %v1746
  %1749 = xla_tuple %1748
  %v1750 = vsub.f32 %v1742, %v1746
  %1751 = xla_tuple %v1750
  %s1752 = scalar_lea.vmem %s2, 420
  %v1753 = vpack.c.bf16 0.0, %v1750
  %1754 = vst [vmem:[%s1752] sm:$0xf] %v1753
  %s1755 = scalar_lea.vmem %s0, 932
  %v1756 = vld [vmem:[%s1755] sm:$0xf]
  %v1757 = vunpack.c.l.bf16 %v1756
  %v1758 = vunpack.c.h.bf16 %v1756
  %s1759 = scalar_lea.vmem %s1, 932
  %v1760 = vld [vmem:[%s1759] sm:$0xf]
  %v1761 = vunpack.c.l.bf16 %v1760
  %v1762 = vunpack.c.h.bf16 %v1760
  %1763 = xla_tuple %v1757, %v1761
  %1764 = xla_tuple %1763
  %v1765 = vsub.f32 %v1757, %v1761
  %1766 = xla_tuple %v1765
  %s1767 = scalar_lea.vmem %s2, 932
  %v1768 = vpack.c.bf16 0.0, %v1765
  %1769 = vst [vmem:[%s1767] sm:$0xf] %v1768
  %s1770 = scalar_lea.vmem %s0, 436
  %v1771 = vld [vmem:[%s1770] sm:$0xf]
  %v1772 = vunpack.c.l.bf16 %v1771
  %v1773 = vunpack.c.h.bf16 %v1771
  %s1774 = scalar_lea.vmem %s1, 436
  %v1775 = vld [vmem:[%s1774] sm:$0xf]
  %v1776 = vunpack.c.l.bf16 %v1775
  %v1777 = vunpack.c.h.bf16 %v1775
  %1778 = xla_tuple %v1772, %v1776
  %1779 = xla_tuple %1778
  %v1780 = vsub.f32 %v1772, %v1776
  %1781 = xla_tuple %v1780
  %s1782 = scalar_lea.vmem %s2, 436
  %v1783 = vpack.c.bf16 0.0, %v1780
  %1784 = vst [vmem:[%s1782] sm:$0xf] %v1783
  %s1785 = scalar_lea.vmem %s0, 948
  %v1786 = vld [vmem:[%s1785] sm:$0xf]
  %v1787 = vunpack.c.l.bf16 %v1786
  %v1788 = vunpack.c.h.bf16 %v1786
  %s1789 = scalar_lea.vmem %s1, 948
  %v1790 = vld [vmem:[%s1789] sm:$0xf]
  %v1791 = vunpack.c.l.bf16 %v1790
  %v1792 = vunpack.c.h.bf16 %v1790
  %1793 = xla_tuple %v1787, %v1791
  %1794 = xla_tuple %1793
  %v1795 = vsub.f32 %v1787, %v1791
  %1796 = xla_tuple %v1795
  %s1797 = scalar_lea.vmem %s2, 948
  %v1798 = vpack.c.bf16 0.0, %v1795
  %1799 = vst [vmem:[%s1797] sm:$0xf] %v1798
  %s1800 = scalar_lea.vmem %s0, 452
  %v1801 = vld [vmem:[%s1800] sm:$0xf]
  %v1802 = vunpack.c.l.bf16 %v1801
  %v1803 = vunpack.c.h.bf16 %v1801
  %s1804 = scalar_lea.vmem %s1, 452
  %v1805 = vld [vmem:[%s1804] sm:$0xf]
  %v1806 = vunpack.c.l.bf16 %v1805
  %v1807 = vunpack.c.h.bf16 %v1805
  %1808 = xla_tuple %v1802, %v1806
  %1809 = xla_tuple %1808
  %v1810 = vsub.f32 %v1802, %v1806
  %1811 = xla_tuple %v1810
  %s1812 = scalar_lea.vmem %s2, 452
  %v1813 = vpack.c.bf16 0.0, %v1810
  %1814 = vst [vmem:[%s1812] sm:$0xf] %v1813
  %s1815 = scalar_lea.vmem %s0, 964
  %v1816 = vld [vmem:[%s1815] sm:$0xf]
  %v1817 = vunpack.c.l.bf16 %v1816
  %v1818 = vunpack.c.h.bf16 %v1816
  %s1819 = scalar_lea.vmem %s1, 964
  %v1820 = vld [vmem:[%s1819] sm:$0xf]
  %v1821 = vunpack.c.l.bf16 %v1820
  %v1822 = vunpack.c.h.bf16 %v1820
  %1823 = xla_tuple %v1817, %v1821
  %1824 = xla_tuple %1823
  %v1825 = vsub.f32 %v1817, %v1821
  %1826 = xla_tuple %v1825
  %s1827 = scalar_lea.vmem %s2, 964
  %v1828 = vpack.c.bf16 0.0, %v1825
  %1829 = vst [vmem:[%s1827] sm:$0xf] %v1828
  %s1830 = scalar_lea.vmem %s0, 468
  %v1831 = vld [vmem:[%s1830] sm:$0xf]
  %v1832 = vunpack.c.l.bf16 %v1831
  %v1833 = vunpack.c.h.bf16 %v1831
  %s1834 = scalar_lea.vmem %s1, 468
  %v1835 = vld [vmem:[%s1834] sm:$0xf]
  %v1836 = vunpack.c.l.bf16 %v1835
  %v1837 = vunpack.c.h.bf16 %v1835
  %1838 = xla_tuple %v1832, %v1836
  %1839 = xla_tuple %1838
  %v1840 = vsub.f32 %v1832, %v1836
  %1841 = xla_tuple %v1840
  %s1842 = scalar_lea.vmem %s2, 468
  %v1843 = vpack.c.bf16 0.0, %v1840
  %1844 = vst [vmem:[%s1842] sm:$0xf] %v1843
  %s1845 = scalar_lea.vmem %s0, 980
  %v1846 = vld [vmem:[%s1845] sm:$0xf]
  %v1847 = vunpack.c.l.bf16 %v1846
  %v1848 = vunpack.c.h.bf16 %v1846
  %s1849 = scalar_lea.vmem %s1, 980
  %v1850 = vld [vmem:[%s1849] sm:$0xf]
  %v1851 = vunpack.c.l.bf16 %v1850
  %v1852 = vunpack.c.h.bf16 %v1850
  %1853 = xla_tuple %v1847, %v1851
  %1854 = xla_tuple %1853
  %v1855 = vsub.f32 %v1847, %v1851
  %1856 = xla_tuple %v1855
  %s1857 = scalar_lea.vmem %s2, 980
  %v1858 = vpack.c.bf16 0.0, %v1855
  %1859 = vst [vmem:[%s1857] sm:$0xf] %v1858
  %s1860 = scalar_lea.vmem %s0, 484
  %v1861 = vld [vmem:[%s1860] sm:$0xf]
  %v1862 = vunpack.c.l.bf16 %v1861
  %v1863 = vunpack.c.h.bf16 %v1861
  %s1864 = scalar_lea.vmem %s1, 484
  %v1865 = vld [vmem:[%s1864] sm:$0xf]
  %v1866 = vunpack.c.l.bf16 %v1865
  %v1867 = vunpack.c.h.bf16 %v1865
  %1868 = xla_tuple %v1862, %v1866
  %1869 = xla_tuple %1868
  %v1870 = vsub.f32 %v1862, %v1866
  %1871 = xla_tuple %v1870
  %s1872 = scalar_lea.vmem %s2, 484
  %v1873 = vpack.c.bf16 0.0, %v1870
  %1874 = vst [vmem:[%s1872] sm:$0xf] %v1873
  %s1875 = scalar_lea.vmem %s0, 996
  %v1876 = vld [vmem:[%s1875] sm:$0xf]
  %v1877 = vunpack.c.l.bf16 %v1876
  %v1878 = vunpack.c.h.bf16 %v1876
  %s1879 = scalar_lea.vmem %s1, 996
  %v1880 = vld [vmem:[%s1879] sm:$0xf]
  %v1881 = vunpack.c.l.bf16 %v1880
  %v1882 = vunpack.c.h.bf16 %v1880
  %1883 = xla_tuple %v1877, %v1881
  %1884 = xla_tuple %1883
  %v1885 = vsub.f32 %v1877, %v1881
  %1886 = xla_tuple %v1885
  %s1887 = scalar_lea.vmem %s2, 996
  %v1888 = vpack.c.bf16 0.0, %v1885
  %1889 = vst [vmem:[%s1887] sm:$0xf] %v1888
  %s1890 = scalar_lea.vmem %s0, 500
  %v1891 = vld [vmem:[%s1890] sm:$0xf]
  %v1892 = vunpack.c.l.bf16 %v1891
  %v1893 = vunpack.c.h.bf16 %v1891
  %s1894 = scalar_lea.vmem %s1, 500
  %v1895 = vld [vmem:[%s1894] sm:$0xf]
  %v1896 = vunpack.c.l.bf16 %v1895
  %v1897 = vunpack.c.h.bf16 %v1895
  %1898 = xla_tuple %v1892, %v1896
  %1899 = xla_tuple %1898
  %v1900 = vsub.f32 %v1892, %v1896
  %1901 = xla_tuple %v1900
  %s1902 = scalar_lea.vmem %s2, 500
  %v1903 = vpack.c.bf16 0.0, %v1900
  %1904 = vst [vmem:[%s1902] sm:$0xf] %v1903
  %s1905 = scalar_lea.vmem %s0, 1012
  %v1906 = vld [vmem:[%s1905] sm:$0xf]
  %v1907 = vunpack.c.l.bf16 %v1906
  %v1908 = vunpack.c.h.bf16 %v1906
  %s1909 = scalar_lea.vmem %s1, 1012
  %v1910 = vld [vmem:[%s1909] sm:$0xf]
  %v1911 = vunpack.c.l.bf16 %v1910
  %v1912 = vunpack.c.h.bf16 %v1910
  %1913 = xla_tuple %v1907, %v1911
  %1914 = xla_tuple %1913
  %v1915 = vsub.f32 %v1907, %v1911
  %1916 = xla_tuple %v1915
  %s1917 = scalar_lea.vmem %s2, 1012
  %v1918 = vpack.c.bf16 0.0, %v1915
  %1919 = vst [vmem:[%s1917] sm:$0xf] %v1918
  %s1920 = scalar_lea.vmem %s0, 8
  %v1921 = vld [vmem:[%s1920] sm:$0xf]
  %v1922 = vunpack.c.l.bf16 %v1921
  %v1923 = vunpack.c.h.bf16 %v1921
  %s1924 = scalar_lea.vmem %s1, 8
  %v1925 = vld [vmem:[%s1924] sm:$0xf]
  %v1926 = vunpack.c.l.bf16 %v1925
  %v1927 = vunpack.c.h.bf16 %v1925
  %1928 = xla_tuple %v1922, %v1926
  %1929 = xla_tuple %1928
  %v1930 = vsub.f32 %v1922, %v1926
  %1931 = xla_tuple %v1930
  %s1932 = scalar_lea.vmem %s2, 8
  %v1933 = vpack.c.bf16 0.0, %v1930
  %1934 = vst [vmem:[%s1932] sm:$0xf] %v1933
  %s1935 = scalar_lea.vmem %s0, 520
  %v1936 = vld [vmem:[%s1935] sm:$0xf]
  %v1937 = vunpack.c.l.bf16 %v1936
  %v1938 = vunpack.c.h.bf16 %v1936
  %s1939 = scalar_lea.vmem %s1, 520
  %v1940 = vld [vmem:[%s1939] sm:$0xf]
  %v1941 = vunpack.c.l.bf16 %v1940
  %v1942 = vunpack.c.h.bf16 %v1940
  %1943 = xla_tuple %v1937, %v1941
  %1944 = xla_tuple %1943
  %v1945 = vsub.f32 %v1937, %v1941
  %1946 = xla_tuple %v1945
  %s1947 = scalar_lea.vmem %s2, 520
  %v1948 = vpack.c.bf16 0.0, %v1945
  %1949 = vst [vmem:[%s1947] sm:$0xf] %v1948
  %s1950 = scalar_lea.vmem %s0, 24
  %v1951 = vld [vmem:[%s1950] sm:$0xf]
  %v1952 = vunpack.c.l.bf16 %v1951
  %v1953 = vunpack.c.h.bf16 %v1951
  %s1954 = scalar_lea.vmem %s1, 24
  %v1955 = vld [vmem:[%s1954] sm:$0xf]
  %v1956 = vunpack.c.l.bf16 %v1955
  %v1957 = vunpack.c.h.bf16 %v1955
  %1958 = xla_tuple %v1952, %v1956
  %1959 = xla_tuple %1958
  %v1960 = vsub.f32 %v1952, %v1956
  %1961 = xla_tuple %v1960
  %s1962 = scalar_lea.vmem %s2, 24
  %v1963 = vpack.c.bf16 0.0, %v1960
  %1964 = vst [vmem:[%s1962] sm:$0xf] %v1963
  %s1965 = scalar_lea.vmem %s0, 536
  %v1966 = vld [vmem:[%s1965] sm:$0xf]
  %v1967 = vunpack.c.l.bf16 %v1966
  %v1968 = vunpack.c.h.bf16 %v1966
  %s1969 = scalar_lea.vmem %s1, 536
  %v1970 = vld [vmem:[%s1969] sm:$0xf]
  %v1971 = vunpack.c.l.bf16 %v1970
  %v1972 = vunpack.c.h.bf16 %v1970
  %1973 = xla_tuple %v1967, %v1971
  %1974 = xla_tuple %1973
  %v1975 = vsub.f32 %v1967, %v1971
  %1976 = xla_tuple %v1975
  %s1977 = scalar_lea.vmem %s2, 536
  %v1978 = vpack.c.bf16 0.0, %v1975
  %1979 = vst [vmem:[%s1977] sm:$0xf] %v1978
  %s1980 = scalar_lea.vmem %s0, 40
  %v1981 = vld [vmem:[%s1980] sm:$0xf]
  %v1982 = vunpack.c.l.bf16 %v1981
  %v1983 = vunpack.c.h.bf16 %v1981
  %s1984 = scalar_lea.vmem %s1, 40
  %v1985 = vld [vmem:[%s1984] sm:$0xf]
  %v1986 = vunpack.c.l.bf16 %v1985
  %v1987 = vunpack.c.h.bf16 %v1985
  %1988 = xla_tuple %v1982, %v1986
  %1989 = xla_tuple %1988
  %v1990 = vsub.f32 %v1982, %v1986
  %1991 = xla_tuple %v1990
  %s1992 = scalar_lea.vmem %s2, 40
  %v1993 = vpack.c.bf16 0.0, %v1990
  %1994 = vst [vmem:[%s1992] sm:$0xf] %v1993
  %s1995 = scalar_lea.vmem %s0, 552
  %v1996 = vld [vmem:[%s1995] sm:$0xf]
  %v1997 = vunpack.c.l.bf16 %v1996
  %v1998 = vunpack.c.h.bf16 %v1996
  %s1999 = scalar_lea.vmem %s1, 552
  %v2000 = vld [vmem:[%s1999] sm:$0xf]
  %v2001 = vunpack.c.l.bf16 %v2000
  %v2002 = vunpack.c.h.bf16 %v2000
  %2003 = xla_tuple %v1997, %v2001
  %2004 = xla_tuple %2003
  %v2005 = vsub.f32 %v1997, %v2001
  %2006 = xla_tuple %v2005
  %s2007 = scalar_lea.vmem %s2, 552
  %v2008 = vpack.c.bf16 0.0, %v2005
  %2009 = vst [vmem:[%s2007] sm:$0xf] %v2008
  %s2010 = scalar_lea.vmem %s0, 56
  %v2011 = vld [vmem:[%s2010] sm:$0xf]
  %v2012 = vunpack.c.l.bf16 %v2011
  %v2013 = vunpack.c.h.bf16 %v2011
  %s2014 = scalar_lea.vmem %s1, 56
  %v2015 = vld [vmem:[%s2014] sm:$0xf]
  %v2016 = vunpack.c.l.bf16 %v2015
  %v2017 = vunpack.c.h.bf16 %v2015
  %2018 = xla_tuple %v2012, %v2016
  %2019 = xla_tuple %2018
  %v2020 = vsub.f32 %v2012, %v2016
  %2021 = xla_tuple %v2020
  %s2022 = scalar_lea.vmem %s2, 56
  %v2023 = vpack.c.bf16 0.0, %v2020
  %2024 = vst [vmem:[%s2022] sm:$0xf] %v2023
  %s2025 = scalar_lea.vmem %s0, 568
  %v2026 = vld [vmem:[%s2025] sm:$0xf]
  %v2027 = vunpack.c.l.bf16 %v2026
  %v2028 = vunpack.c.h.bf16 %v2026
  %s2029 = scalar_lea.vmem %s1, 568
  %v2030 = vld [vmem:[%s2029] sm:$0xf]
  %v2031 = vunpack.c.l.bf16 %v2030
  %v2032 = vunpack.c.h.bf16 %v2030
  %2033 = xla_tuple %v2027, %v2031
  %2034 = xla_tuple %2033
  %v2035 = vsub.f32 %v2027, %v2031
  %2036 = xla_tuple %v2035
  %s2037 = scalar_lea.vmem %s2, 568
  %v2038 = vpack.c.bf16 0.0, %v2035
  %2039 = vst [vmem:[%s2037] sm:$0xf] %v2038
  %s2040 = scalar_lea.vmem %s0, 72
  %v2041 = vld [vmem:[%s2040] sm:$0xf]
  %v2042 = vunpack.c.l.bf16 %v2041
  %v2043 = vunpack.c.h.bf16 %v2041
  %s2044 = scalar_lea.vmem %s1, 72
  %v2045 = vld [vmem:[%s2044] sm:$0xf]
  %v2046 = vunpack.c.l.bf16 %v2045
  %v2047 = vunpack.c.h.bf16 %v2045
  %2048 = xla_tuple %v2042, %v2046
  %2049 = xla_tuple %2048
  %v2050 = vsub.f32 %v2042, %v2046
  %2051 = xla_tuple %v2050
  %s2052 = scalar_lea.vmem %s2, 72
  %v2053 = vpack.c.bf16 0.0, %v2050
  %2054 = vst [vmem:[%s2052] sm:$0xf] %v2053
  %s2055 = scalar_lea.vmem %s0, 584
  %v2056 = vld [vmem:[%s2055] sm:$0xf]
  %v2057 = vunpack.c.l.bf16 %v2056
  %v2058 = vunpack.c.h.bf16 %v2056
  %s2059 = scalar_lea.vmem %s1, 584
  %v2060 = vld [vmem:[%s2059] sm:$0xf]
  %v2061 = vunpack.c.l.bf16 %v2060
  %v2062 = vunpack.c.h.bf16 %v2060
  %2063 = xla_tuple %v2057, %v2061
  %2064 = xla_tuple %2063
  %v2065 = vsub.f32 %v2057, %v2061
  %2066 = xla_tuple %v2065
  %s2067 = scalar_lea.vmem %s2, 584
  %v2068 = vpack.c.bf16 0.0, %v2065
  %2069 = vst [vmem:[%s2067] sm:$0xf] %v2068
  %s2070 = scalar_lea.vmem %s0, 88
  %v2071 = vld [vmem:[%s2070] sm:$0xf]
  %v2072 = vunpack.c.l.bf16 %v2071
  %v2073 = vunpack.c.h.bf16 %v2071
  %s2074 = scalar_lea.vmem %s1, 88
  %v2075 = vld [vmem:[%s2074] sm:$0xf]
  %v2076 = vunpack.c.l.bf16 %v2075
  %v2077 = vunpack.c.h.bf16 %v2075
  %2078 = xla_tuple %v2072, %v2076
  %2079 = xla_tuple %2078
  %v2080 = vsub.f32 %v2072, %v2076
  %2081 = xla_tuple %v2080
  %s2082 = scalar_lea.vmem %s2, 88
  %v2083 = vpack.c.bf16 0.0, %v2080
  %2084 = vst [vmem:[%s2082] sm:$0xf] %v2083
  %s2085 = scalar_lea.vmem %s0, 600
  %v2086 = vld [vmem:[%s2085] sm:$0xf]
  %v2087 = vunpack.c.l.bf16 %v2086
  %v2088 = vunpack.c.h.bf16 %v2086
  %s2089 = scalar_lea.vmem %s1, 600
  %v2090 = vld [vmem:[%s2089] sm:$0xf]
  %v2091 = vunpack.c.l.bf16 %v2090
  %v2092 = vunpack.c.h.bf16 %v2090
  %2093 = xla_tuple %v2087, %v2091
  %2094 = xla_tuple %2093
  %v2095 = vsub.f32 %v2087, %v2091
  %2096 = xla_tuple %v2095
  %s2097 = scalar_lea.vmem %s2, 600
  %v2098 = vpack.c.bf16 0.0, %v2095
  %2099 = vst [vmem:[%s2097] sm:$0xf] %v2098
  %s2100 = scalar_lea.vmem %s0, 104
  %v2101 = vld [vmem:[%s2100] sm:$0xf]
  %v2102 = vunpack.c.l.bf16 %v2101
  %v2103 = vunpack.c.h.bf16 %v2101
  %s2104 = scalar_lea.vmem %s1, 104
  %v2105 = vld [vmem:[%s2104] sm:$0xf]
  %v2106 = vunpack.c.l.bf16 %v2105
  %v2107 = vunpack.c.h.bf16 %v2105
  %2108 = xla_tuple %v2102, %v2106
  %2109 = xla_tuple %2108
  %v2110 = vsub.f32 %v2102, %v2106
  %2111 = xla_tuple %v2110
  %s2112 = scalar_lea.vmem %s2, 104
  %v2113 = vpack.c.bf16 0.0, %v2110
  %2114 = vst [vmem:[%s2112] sm:$0xf] %v2113
  %s2115 = scalar_lea.vmem %s0, 616
  %v2116 = vld [vmem:[%s2115] sm:$0xf]
  %v2117 = vunpack.c.l.bf16 %v2116
  %v2118 = vunpack.c.h.bf16 %v2116
  %s2119 = scalar_lea.vmem %s1, 616
  %v2120 = vld [vmem:[%s2119] sm:$0xf]
  %v2121 = vunpack.c.l.bf16 %v2120
  %v2122 = vunpack.c.h.bf16 %v2120
  %2123 = xla_tuple %v2117, %v2121
  %2124 = xla_tuple %2123
  %v2125 = vsub.f32 %v2117, %v2121
  %2126 = xla_tuple %v2125
  %s2127 = scalar_lea.vmem %s2, 616
  %v2128 = vpack.c.bf16 0.0, %v2125
  %2129 = vst [vmem:[%s2127] sm:$0xf] %v2128
  %s2130 = scalar_lea.vmem %s0, 120
  %v2131 = vld [vmem:[%s2130] sm:$0xf]
  %v2132 = vunpack.c.l.bf16 %v2131
  %v2133 = vunpack.c.h.bf16 %v2131
  %s2134 = scalar_lea.vmem %s1, 120
  %v2135 = vld [vmem:[%s2134] sm:$0xf]
  %v2136 = vunpack.c.l.bf16 %v2135
  %v2137 = vunpack.c.h.bf16 %v2135
  %2138 = xla_tuple %v2132, %v2136
  %2139 = xla_tuple %2138
  %v2140 = vsub.f32 %v2132, %v2136
  %2141 = xla_tuple %v2140
  %s2142 = scalar_lea.vmem %s2, 120
  %v2143 = vpack.c.bf16 0.0, %v2140
  %2144 = vst [vmem:[%s2142] sm:$0xf] %v2143
  %s2145 = scalar_lea.vmem %s0, 632
  %v2146 = vld [vmem:[%s2145] sm:$0xf]
  %v2147 = vunpack.c.l.bf16 %v2146
  %v2148 = vunpack.c.h.bf16 %v2146
  %s2149 = scalar_lea.vmem %s1, 632
  %v2150 = vld [vmem:[%s2149] sm:$0xf]
  %v2151 = vunpack.c.l.bf16 %v2150
  %v2152 = vunpack.c.h.bf16 %v2150
  %2153 = xla_tuple %v2147, %v2151
  %2154 = xla_tuple %2153
  %v2155 = vsub.f32 %v2147, %v2151
  %2156 = xla_tuple %v2155
  %s2157 = scalar_lea.vmem %s2, 632
  %v2158 = vpack.c.bf16 0.0, %v2155
  %2159 = vst [vmem:[%s2157] sm:$0xf] %v2158
  %s2160 = scalar_lea.vmem %s0, 136
  %v2161 = vld [vmem:[%s2160] sm:$0xf]
  %v2162 = vunpack.c.l.bf16 %v2161
  %v2163 = vunpack.c.h.bf16 %v2161
  %s2164 = scalar_lea.vmem %s1, 136
  %v2165 = vld [vmem:[%s2164] sm:$0xf]
  %v2166 = vunpack.c.l.bf16 %v2165
  %v2167 = vunpack.c.h.bf16 %v2165
  %2168 = xla_tuple %v2162, %v2166
  %2169 = xla_tuple %2168
  %v2170 = vsub.f32 %v2162, %v2166
  %2171 = xla_tuple %v2170
  %s2172 = scalar_lea.vmem %s2, 136
  %v2173 = vpack.c.bf16 0.0, %v2170
  %2174 = vst [vmem:[%s2172] sm:$0xf] %v2173
  %s2175 = scalar_lea.vmem %s0, 648
  %v2176 = vld [vmem:[%s2175] sm:$0xf]
  %v2177 = vunpack.c.l.bf16 %v2176
  %v2178 = vunpack.c.h.bf16 %v2176
  %s2179 = scalar_lea.vmem %s1, 648
  %v2180 = vld [vmem:[%s2179] sm:$0xf]
  %v2181 = vunpack.c.l.bf16 %v2180
  %v2182 = vunpack.c.h.bf16 %v2180
  %2183 = xla_tuple %v2177, %v2181
  %2184 = xla_tuple %2183
  %v2185 = vsub.f32 %v2177, %v2181
  %2186 = xla_tuple %v2185
  %s2187 = scalar_lea.vmem %s2, 648
  %v2188 = vpack.c.bf16 0.0, %v2185
  %2189 = vst [vmem:[%s2187] sm:$0xf] %v2188
  %s2190 = scalar_lea.vmem %s0, 152
  %v2191 = vld [vmem:[%s2190] sm:$0xf]
  %v2192 = vunpack.c.l.bf16 %v2191
  %v2193 = vunpack.c.h.bf16 %v2191
  %s2194 = scalar_lea.vmem %s1, 152
  %v2195 = vld [vmem:[%s2194] sm:$0xf]
  %v2196 = vunpack.c.l.bf16 %v2195
  %v2197 = vunpack.c.h.bf16 %v2195
  %2198 = xla_tuple %v2192, %v2196
  %2199 = xla_tuple %2198
  %v2200 = vsub.f32 %v2192, %v2196
  %2201 = xla_tuple %v2200
  %s2202 = scalar_lea.vmem %s2, 152
  %v2203 = vpack.c.bf16 0.0, %v2200
  %2204 = vst [vmem:[%s2202] sm:$0xf] %v2203
  %s2205 = scalar_lea.vmem %s0, 664
  %v2206 = vld [vmem:[%s2205] sm:$0xf]
  %v2207 = vunpack.c.l.bf16 %v2206
  %v2208 = vunpack.c.h.bf16 %v2206
  %s2209 = scalar_lea.vmem %s1, 664
  %v2210 = vld [vmem:[%s2209] sm:$0xf]
  %v2211 = vunpack.c.l.bf16 %v2210
  %v2212 = vunpack.c.h.bf16 %v2210
  %2213 = xla_tuple %v2207, %v2211
  %2214 = xla_tuple %2213
  %v2215 = vsub.f32 %v2207, %v2211
  %2216 = xla_tuple %v2215
  %s2217 = scalar_lea.vmem %s2, 664
  %v2218 = vpack.c.bf16 0.0, %v2215
  %2219 = vst [vmem:[%s2217] sm:$0xf] %v2218
  %s2220 = scalar_lea.vmem %s0, 168
  %v2221 = vld [vmem:[%s2220] sm:$0xf]
  %v2222 = vunpack.c.l.bf16 %v2221
  %v2223 = vunpack.c.h.bf16 %v2221
  %s2224 = scalar_lea.vmem %s1, 168
  %v2225 = vld [vmem:[%s2224] sm:$0xf]
  %v2226 = vunpack.c.l.bf16 %v2225
  %v2227 = vunpack.c.h.bf16 %v2225
  %2228 = xla_tuple %v2222, %v2226
  %2229 = xla_tuple %2228
  %v2230 = vsub.f32 %v2222, %v2226
  %2231 = xla_tuple %v2230
  %s2232 = scalar_lea.vmem %s2, 168
  %v2233 = vpack.c.bf16 0.0, %v2230
  %2234 = vst [vmem:[%s2232] sm:$0xf] %v2233
  %s2235 = scalar_lea.vmem %s0, 680
  %v2236 = vld [vmem:[%s2235] sm:$0xf]
  %v2237 = vunpack.c.l.bf16 %v2236
  %v2238 = vunpack.c.h.bf16 %v2236
  %s2239 = scalar_lea.vmem %s1, 680
  %v2240 = vld [vmem:[%s2239] sm:$0xf]
  %v2241 = vunpack.c.l.bf16 %v2240
  %v2242 = vunpack.c.h.bf16 %v2240
  %2243 = xla_tuple %v2237, %v2241
  %2244 = xla_tuple %2243
  %v2245 = vsub.f32 %v2237, %v2241
  %2246 = xla_tuple %v2245
  %s2247 = scalar_lea.vmem %s2, 680
  %v2248 = vpack.c.bf16 0.0, %v2245
  %2249 = vst [vmem:[%s2247] sm:$0xf] %v2248
  %s2250 = scalar_lea.vmem %s0, 184
  %v2251 = vld [vmem:[%s2250] sm:$0xf]
  %v2252 = vunpack.c.l.bf16 %v2251
  %v2253 = vunpack.c.h.bf16 %v2251
  %s2254 = scalar_lea.vmem %s1, 184
  %v2255 = vld [vmem:[%s2254] sm:$0xf]
  %v2256 = vunpack.c.l.bf16 %v2255
  %v2257 = vunpack.c.h.bf16 %v2255
  %2258 = xla_tuple %v2252, %v2256
  %2259 = xla_tuple %2258
  %v2260 = vsub.f32 %v2252, %v2256
  %2261 = xla_tuple %v2260
  %s2262 = scalar_lea.vmem %s2, 184
  %v2263 = vpack.c.bf16 0.0, %v2260
  %2264 = vst [vmem:[%s2262] sm:$0xf] %v2263
  %s2265 = scalar_lea.vmem %s0, 696
  %v2266 = vld [vmem:[%s2265] sm:$0xf]
  %v2267 = vunpack.c.l.bf16 %v2266
  %v2268 = vunpack.c.h.bf16 %v2266
  %s2269 = scalar_lea.vmem %s1, 696
  %v2270 = vld [vmem:[%s2269] sm:$0xf]
  %v2271 = vunpack.c.l.bf16 %v2270
  %v2272 = vunpack.c.h.bf16 %v2270
  %2273 = xla_tuple %v2267, %v2271
  %2274 = xla_tuple %2273
  %v2275 = vsub.f32 %v2267, %v2271
  %2276 = xla_tuple %v2275
  %s2277 = scalar_lea.vmem %s2, 696
  %v2278 = vpack.c.bf16 0.0, %v2275
  %2279 = vst [vmem:[%s2277] sm:$0xf] %v2278
  %s2280 = scalar_lea.vmem %s0, 200
  %v2281 = vld [vmem:[%s2280] sm:$0xf]
  %v2282 = vunpack.c.l.bf16 %v2281
  %v2283 = vunpack.c.h.bf16 %v2281
  %s2284 = scalar_lea.vmem %s1, 200
  %v2285 = vld [vmem:[%s2284] sm:$0xf]
  %v2286 = vunpack.c.l.bf16 %v2285
  %v2287 = vunpack.c.h.bf16 %v2285
  %2288 = xla_tuple %v2282, %v2286
  %2289 = xla_tuple %2288
  %v2290 = vsub.f32 %v2282, %v2286
  %2291 = xla_tuple %v2290
  %s2292 = scalar_lea.vmem %s2, 200
  %v2293 = vpack.c.bf16 0.0, %v2290
  %2294 = vst [vmem:[%s2292] sm:$0xf] %v2293
  %s2295 = scalar_lea.vmem %s0, 712
  %v2296 = vld [vmem:[%s2295] sm:$0xf]
  %v2297 = vunpack.c.l.bf16 %v2296
  %v2298 = vunpack.c.h.bf16 %v2296
  %s2299 = scalar_lea.vmem %s1, 712
  %v2300 = vld [vmem:[%s2299] sm:$0xf]
  %v2301 = vunpack.c.l.bf16 %v2300
  %v2302 = vunpack.c.h.bf16 %v2300
  %2303 = xla_tuple %v2297, %v2301
  %2304 = xla_tuple %2303
  %v2305 = vsub.f32 %v2297, %v2301
  %2306 = xla_tuple %v2305
  %s2307 = scalar_lea.vmem %s2, 712
  %v2308 = vpack.c.bf16 0.0, %v2305
  %2309 = vst [vmem:[%s2307] sm:$0xf] %v2308
  %s2310 = scalar_lea.vmem %s0, 216
  %v2311 = vld [vmem:[%s2310] sm:$0xf]
  %v2312 = vunpack.c.l.bf16 %v2311
  %v2313 = vunpack.c.h.bf16 %v2311
  %s2314 = scalar_lea.vmem %s1, 216
  %v2315 = vld [vmem:[%s2314] sm:$0xf]
  %v2316 = vunpack.c.l.bf16 %v2315
  %v2317 = vunpack.c.h.bf16 %v2315
  %2318 = xla_tuple %v2312, %v2316
  %2319 = xla_tuple %2318
  %v2320 = vsub.f32 %v2312, %v2316
  %2321 = xla_tuple %v2320
  %s2322 = scalar_lea.vmem %s2, 216
  %v2323 = vpack.c.bf16 0.0, %v2320
  %2324 = vst [vmem:[%s2322] sm:$0xf] %v2323
  %s2325 = scalar_lea.vmem %s0, 728
  %v2326 = vld [vmem:[%s2325] sm:$0xf]
  %v2327 = vunpack.c.l.bf16 %v2326
  %v2328 = vunpack.c.h.bf16 %v2326
  %s2329 = scalar_lea.vmem %s1, 728
  %v2330 = vld [vmem:[%s2329] sm:$0xf]
  %v2331 = vunpack.c.l.bf16 %v2330
  %v2332 = vunpack.c.h.bf16 %v2330
  %2333 = xla_tuple %v2327, %v2331
  %2334 = xla_tuple %2333
  %v2335 = vsub.f32 %v2327, %v2331
  %2336 = xla_tuple %v2335
  %s2337 = scalar_lea.vmem %s2, 728
  %v2338 = vpack.c.bf16 0.0, %v2335
  %2339 = vst [vmem:[%s2337] sm:$0xf] %v2338
  %s2340 = scalar_lea.vmem %s0, 232
  %v2341 = vld [vmem:[%s2340] sm:$0xf]
  %v2342 = vunpack.c.l.bf16 %v2341
  %v2343 = vunpack.c.h.bf16 %v2341
  %s2344 = scalar_lea.vmem %s1, 232
  %v2345 = vld [vmem:[%s2344] sm:$0xf]
  %v2346 = vunpack.c.l.bf16 %v2345
  %v2347 = vunpack.c.h.bf16 %v2345
  %2348 = xla_tuple %v2342, %v2346
  %2349 = xla_tuple %2348
  %v2350 = vsub.f32 %v2342, %v2346
  %2351 = xla_tuple %v2350
  %s2352 = scalar_lea.vmem %s2, 232
  %v2353 = vpack.c.bf16 0.0, %v2350
  %2354 = vst [vmem:[%s2352] sm:$0xf] %v2353
  %s2355 = scalar_lea.vmem %s0, 744
  %v2356 = vld [vmem:[%s2355] sm:$0xf]
  %v2357 = vunpack.c.l.bf16 %v2356
  %v2358 = vunpack.c.h.bf16 %v2356
  %s2359 = scalar_lea.vmem %s1, 744
  %v2360 = vld [vmem:[%s2359] sm:$0xf]
  %v2361 = vunpack.c.l.bf16 %v2360
  %v2362 = vunpack.c.h.bf16 %v2360
  %2363 = xla_tuple %v2357, %v2361
  %2364 = xla_tuple %2363
  %v2365 = vsub.f32 %v2357, %v2361
  %2366 = xla_tuple %v2365
  %s2367 = scalar_lea.vmem %s2, 744
  %v2368 = vpack.c.bf16 0.0, %v2365
  %2369 = vst [vmem:[%s2367] sm:$0xf] %v2368
  %s2370 = scalar_lea.vmem %s0, 248
  %v2371 = vld [vmem:[%s2370] sm:$0xf]
  %v2372 = vunpack.c.l.bf16 %v2371
  %v2373 = vunpack.c.h.bf16 %v2371
  %s2374 = scalar_lea.vmem %s1, 248
  %v2375 = vld [vmem:[%s2374] sm:$0xf]
  %v2376 = vunpack.c.l.bf16 %v2375
  %v2377 = vunpack.c.h.bf16 %v2375
  %2378 = xla_tuple %v2372, %v2376
  %2379 = xla_tuple %2378
  %v2380 = vsub.f32 %v2372, %v2376
  %2381 = xla_tuple %v2380
  %s2382 = scalar_lea.vmem %s2, 248
  %v2383 = vpack.c.bf16 0.0, %v2380
  %2384 = vst [vmem:[%s2382] sm:$0xf] %v2383
  %s2385 = scalar_lea.vmem %s0, 760
  %v2386 = vld [vmem:[%s2385] sm:$0xf]
  %v2387 = vunpack.c.l.bf16 %v2386
  %v2388 = vunpack.c.h.bf16 %v2386
  %s2389 = scalar_lea.vmem %s1, 760
  %v2390 = vld [vmem:[%s2389] sm:$0xf]
  %v2391 = vunpack.c.l.bf16 %v2390
  %v2392 = vunpack.c.h.bf16 %v2390
  %2393 = xla_tuple %v2387, %v2391
  %2394 = xla_tuple %2393
  %v2395 = vsub.f32 %v2387, %v2391
  %2396 = xla_tuple %v2395
  %s2397 = scalar_lea.vmem %s2, 760
  %v2398 = vpack.c.bf16 0.0, %v2395
  %2399 = vst [vmem:[%s2397] sm:$0xf] %v2398
  %s2400 = scalar_lea.vmem %s0, 264
  %v2401 = vld [vmem:[%s2400] sm:$0xf]
  %v2402 = vunpack.c.l.bf16 %v2401
  %v2403 = vunpack.c.h.bf16 %v2401
  %s2404 = scalar_lea.vmem %s1, 264
  %v2405 = vld [vmem:[%s2404] sm:$0xf]
  %v2406 = vunpack.c.l.bf16 %v2405
  %v2407 = vunpack.c.h.bf16 %v2405
  %2408 = xla_tuple %v2402, %v2406
  %2409 = xla_tuple %2408
  %v2410 = vsub.f32 %v2402, %v2406
  %2411 = xla_tuple %v2410
  %s2412 = scalar_lea.vmem %s2, 264
  %v2413 = vpack.c.bf16 0.0, %v2410
  %2414 = vst [vmem:[%s2412] sm:$0xf] %v2413
  %s2415 = scalar_lea.vmem %s0, 776
  %v2416 = vld [vmem:[%s2415] sm:$0xf]
  %v2417 = vunpack.c.l.bf16 %v2416
  %v2418 = vunpack.c.h.bf16 %v2416
  %s2419 = scalar_lea.vmem %s1, 776
  %v2420 = vld [vmem:[%s2419] sm:$0xf]
  %v2421 = vunpack.c.l.bf16 %v2420
  %v2422 = vunpack.c.h.bf16 %v2420
  %2423 = xla_tuple %v2417, %v2421
  %2424 = xla_tuple %2423
  %v2425 = vsub.f32 %v2417, %v2421
  %2426 = xla_tuple %v2425
  %s2427 = scalar_lea.vmem %s2, 776
  %v2428 = vpack.c.bf16 0.0, %v2425
  %2429 = vst [vmem:[%s2427] sm:$0xf] %v2428
  %s2430 = scalar_lea.vmem %s0, 280
  %v2431 = vld [vmem:[%s2430] sm:$0xf]
  %v2432 = vunpack.c.l.bf16 %v2431
  %v2433 = vunpack.c.h.bf16 %v2431
  %s2434 = scalar_lea.vmem %s1, 280
  %v2435 = vld [vmem:[%s2434] sm:$0xf]
  %v2436 = vunpack.c.l.bf16 %v2435
  %v2437 = vunpack.c.h.bf16 %v2435
  %2438 = xla_tuple %v2432, %v2436
  %2439 = xla_tuple %2438
  %v2440 = vsub.f32 %v2432, %v2436
  %2441 = xla_tuple %v2440
  %s2442 = scalar_lea.vmem %s2, 280
  %v2443 = vpack.c.bf16 0.0, %v2440
  %2444 = vst [vmem:[%s2442] sm:$0xf] %v2443
  %s2445 = scalar_lea.vmem %s0, 792
  %v2446 = vld [vmem:[%s2445] sm:$0xf]
  %v2447 = vunpack.c.l.bf16 %v2446
  %v2448 = vunpack.c.h.bf16 %v2446
  %s2449 = scalar_lea.vmem %s1, 792
  %v2450 = vld [vmem:[%s2449] sm:$0xf]
  %v2451 = vunpack.c.l.bf16 %v2450
  %v2452 = vunpack.c.h.bf16 %v2450
  %2453 = xla_tuple %v2447, %v2451
  %2454 = xla_tuple %2453
  %v2455 = vsub.f32 %v2447, %v2451
  %2456 = xla_tuple %v2455
  %s2457 = scalar_lea.vmem %s2, 792
  %v2458 = vpack.c.bf16 0.0, %v2455
  %2459 = vst [vmem:[%s2457] sm:$0xf] %v2458
  %s2460 = scalar_lea.vmem %s0, 296
  %v2461 = vld [vmem:[%s2460] sm:$0xf]
  %v2462 = vunpack.c.l.bf16 %v2461
  %v2463 = vunpack.c.h.bf16 %v2461
  %s2464 = scalar_lea.vmem %s1, 296
  %v2465 = vld [vmem:[%s2464] sm:$0xf]
  %v2466 = vunpack.c.l.bf16 %v2465
  %v2467 = vunpack.c.h.bf16 %v2465
  %2468 = xla_tuple %v2462, %v2466
  %2469 = xla_tuple %2468
  %v2470 = vsub.f32 %v2462, %v2466
  %2471 = xla_tuple %v2470
  %s2472 = scalar_lea.vmem %s2, 296
  %v2473 = vpack.c.bf16 0.0, %v2470
  %2474 = vst [vmem:[%s2472] sm:$0xf] %v2473
  %s2475 = scalar_lea.vmem %s0, 808
  %v2476 = vld [vmem:[%s2475] sm:$0xf]
  %v2477 = vunpack.c.l.bf16 %v2476
  %v2478 = vunpack.c.h.bf16 %v2476
  %s2479 = scalar_lea.vmem %s1, 808
  %v2480 = vld [vmem:[%s2479] sm:$0xf]
  %v2481 = vunpack.c.l.bf16 %v2480
  %v2482 = vunpack.c.h.bf16 %v2480
  %2483 = xla_tuple %v2477, %v2481
  %2484 = xla_tuple %2483
  %v2485 = vsub.f32 %v2477, %v2481
  %2486 = xla_tuple %v2485
  %s2487 = scalar_lea.vmem %s2, 808
  %v2488 = vpack.c.bf16 0.0, %v2485
  %2489 = vst [vmem:[%s2487] sm:$0xf] %v2488
  %s2490 = scalar_lea.vmem %s0, 312
  %v2491 = vld [vmem:[%s2490] sm:$0xf]
  %v2492 = vunpack.c.l.bf16 %v2491
  %v2493 = vunpack.c.h.bf16 %v2491
  %s2494 = scalar_lea.vmem %s1, 312
  %v2495 = vld [vmem:[%s2494] sm:$0xf]
  %v2496 = vunpack.c.l.bf16 %v2495
  %v2497 = vunpack.c.h.bf16 %v2495
  %2498 = xla_tuple %v2492, %v2496
  %2499 = xla_tuple %2498
  %v2500 = vsub.f32 %v2492, %v2496
  %2501 = xla_tuple %v2500
  %s2502 = scalar_lea.vmem %s2, 312
  %v2503 = vpack.c.bf16 0.0, %v2500
  %2504 = vst [vmem:[%s2502] sm:$0xf] %v2503
  %s2505 = scalar_lea.vmem %s0, 824
  %v2506 = vld [vmem:[%s2505] sm:$0xf]
  %v2507 = vunpack.c.l.bf16 %v2506
  %v2508 = vunpack.c.h.bf16 %v2506
  %s2509 = scalar_lea.vmem %s1, 824
  %v2510 = vld [vmem:[%s2509] sm:$0xf]
  %v2511 = vunpack.c.l.bf16 %v2510
  %v2512 = vunpack.c.h.bf16 %v2510
  %2513 = xla_tuple %v2507, %v2511
  %2514 = xla_tuple %2513
  %v2515 = vsub.f32 %v2507, %v2511
  %2516 = xla_tuple %v2515
  %s2517 = scalar_lea.vmem %s2, 824
  %v2518 = vpack.c.bf16 0.0, %v2515
  %2519 = vst [vmem:[%s2517] sm:$0xf] %v2518
  %s2520 = scalar_lea.vmem %s0, 328
  %v2521 = vld [vmem:[%s2520] sm:$0xf]
  %v2522 = vunpack.c.l.bf16 %v2521
  %v2523 = vunpack.c.h.bf16 %v2521
  %s2524 = scalar_lea.vmem %s1, 328
  %v2525 = vld [vmem:[%s2524] sm:$0xf]
  %v2526 = vunpack.c.l.bf16 %v2525
  %v2527 = vunpack.c.h.bf16 %v2525
  %2528 = xla_tuple %v2522, %v2526
  %2529 = xla_tuple %2528
  %v2530 = vsub.f32 %v2522, %v2526
  %2531 = xla_tuple %v2530
  %s2532 = scalar_lea.vmem %s2, 328
  %v2533 = vpack.c.bf16 0.0, %v2530
  %2534 = vst [vmem:[%s2532] sm:$0xf] %v2533
  %s2535 = scalar_lea.vmem %s0, 840
  %v2536 = vld [vmem:[%s2535] sm:$0xf]
  %v2537 = vunpack.c.l.bf16 %v2536
  %v2538 = vunpack.c.h.bf16 %v2536
  %s2539 = scalar_lea.vmem %s1, 840
  %v2540 = vld [vmem:[%s2539] sm:$0xf]
  %v2541 = vunpack.c.l.bf16 %v2540
  %v2542 = vunpack.c.h.bf16 %v2540
  %2543 = xla_tuple %v2537, %v2541
  %2544 = xla_tuple %2543
  %v2545 = vsub.f32 %v2537, %v2541
  %2546 = xla_tuple %v2545
  %s2547 = scalar_lea.vmem %s2, 840
  %v2548 = vpack.c.bf16 0.0, %v2545
  %2549 = vst [vmem:[%s2547] sm:$0xf] %v2548
  %s2550 = scalar_lea.vmem %s0, 344
  %v2551 = vld [vmem:[%s2550] sm:$0xf]
  %v2552 = vunpack.c.l.bf16 %v2551
  %v2553 = vunpack.c.h.bf16 %v2551
  %s2554 = scalar_lea.vmem %s1, 344
  %v2555 = vld [vmem:[%s2554] sm:$0xf]
  %v2556 = vunpack.c.l.bf16 %v2555
  %v2557 = vunpack.c.h.bf16 %v2555
  %2558 = xla_tuple %v2552, %v2556
  %2559 = xla_tuple %2558
  %v2560 = vsub.f32 %v2552, %v2556
  %2561 = xla_tuple %v2560
  %s2562 = scalar_lea.vmem %s2, 344
  %v2563 = vpack.c.bf16 0.0, %v2560
  %2564 = vst [vmem:[%s2562] sm:$0xf] %v2563
  %s2565 = scalar_lea.vmem %s0, 856
  %v2566 = vld [vmem:[%s2565] sm:$0xf]
  %v2567 = vunpack.c.l.bf16 %v2566
  %v2568 = vunpack.c.h.bf16 %v2566
  %s2569 = scalar_lea.vmem %s1, 856
  %v2570 = vld [vmem:[%s2569] sm:$0xf]
  %v2571 = vunpack.c.l.bf16 %v2570
  %v2572 = vunpack.c.h.bf16 %v2570
  %2573 = xla_tuple %v2567, %v2571
  %2574 = xla_tuple %2573
  %v2575 = vsub.f32 %v2567, %v2571
  %2576 = xla_tuple %v2575
  %s2577 = scalar_lea.vmem %s2, 856
  %v2578 = vpack.c.bf16 0.0, %v2575
  %2579 = vst [vmem:[%s2577] sm:$0xf] %v2578
  %s2580 = scalar_lea.vmem %s0, 360
  %v2581 = vld [vmem:[%s2580] sm:$0xf]
  %v2582 = vunpack.c.l.bf16 %v2581
  %v2583 = vunpack.c.h.bf16 %v2581
  %s2584 = scalar_lea.vmem %s1, 360
  %v2585 = vld [vmem:[%s2584] sm:$0xf]
  %v2586 = vunpack.c.l.bf16 %v2585
  %v2587 = vunpack.c.h.bf16 %v2585
  %2588 = xla_tuple %v2582, %v2586
  %2589 = xla_tuple %2588
  %v2590 = vsub.f32 %v2582, %v2586
  %2591 = xla_tuple %v2590
  %s2592 = scalar_lea.vmem %s2, 360
  %v2593 = vpack.c.bf16 0.0, %v2590
  %2594 = vst [vmem:[%s2592] sm:$0xf] %v2593
  %s2595 = scalar_lea.vmem %s0, 872
  %v2596 = vld [vmem:[%s2595] sm:$0xf]
  %v2597 = vunpack.c.l.bf16 %v2596
  %v2598 = vunpack.c.h.bf16 %v2596
  %s2599 = scalar_lea.vmem %s1, 872
  %v2600 = vld [vmem:[%s2599] sm:$0xf]
  %v2601 = vunpack.c.l.bf16 %v2600
  %v2602 = vunpack.c.h.bf16 %v2600
  %2603 = xla_tuple %v2597, %v2601
  %2604 = xla_tuple %2603
  %v2605 = vsub.f32 %v2597, %v2601
  %2606 = xla_tuple %v2605
  %s2607 = scalar_lea.vmem %s2, 872
  %v2608 = vpack.c.bf16 0.0, %v2605
  %2609 = vst [vmem:[%s2607] sm:$0xf] %v2608
  %s2610 = scalar_lea.vmem %s0, 376
  %v2611 = vld [vmem:[%s2610] sm:$0xf]
  %v2612 = vunpack.c.l.bf16 %v2611
  %v2613 = vunpack.c.h.bf16 %v2611
  %s2614 = scalar_lea.vmem %s1, 376
  %v2615 = vld [vmem:[%s2614] sm:$0xf]
  %v2616 = vunpack.c.l.bf16 %v2615
  %v2617 = vunpack.c.h.bf16 %v2615
  %2618 = xla_tuple %v2612, %v2616
  %2619 = xla_tuple %2618
  %v2620 = vsub.f32 %v2612, %v2616
  %2621 = xla_tuple %v2620
  %s2622 = scalar_lea.vmem %s2, 376
  %v2623 = vpack.c.bf16 0.0, %v2620
  %2624 = vst [vmem:[%s2622] sm:$0xf] %v2623
  %s2625 = scalar_lea.vmem %s0, 888
  %v2626 = vld [vmem:[%s2625] sm:$0xf]
  %v2627 = vunpack.c.l.bf16 %v2626
  %v2628 = vunpack.c.h.bf16 %v2626
  %s2629 = scalar_lea.vmem %s1, 888
  %v2630 = vld [vmem:[%s2629] sm:$0xf]
  %v2631 = vunpack.c.l.bf16 %v2630
  %v2632 = vunpack.c.h.bf16 %v2630
  %2633 = xla_tuple %v2627, %v2631
  %2634 = xla_tuple %2633
  %v2635 = vsub.f32 %v2627, %v2631
  %2636 = xla_tuple %v2635
  %s2637 = scalar_lea.vmem %s2, 888
  %v2638 = vpack.c.bf16 0.0, %v2635
  %2639 = vst [vmem:[%s2637] sm:$0xf] %v2638
  %s2640 = scalar_lea.vmem %s0, 392
  %v2641 = vld [vmem:[%s2640] sm:$0xf]
  %v2642 = vunpack.c.l.bf16 %v2641
  %v2643 = vunpack.c.h.bf16 %v2641
  %s2644 = scalar_lea.vmem %s1, 392
  %v2645 = vld [vmem:[%s2644] sm:$0xf]
  %v2646 = vunpack.c.l.bf16 %v2645
  %v2647 = vunpack.c.h.bf16 %v2645
  %2648 = xla_tuple %v2642, %v2646
  %2649 = xla_tuple %2648
  %v2650 = vsub.f32 %v2642, %v2646
  %2651 = xla_tuple %v2650
  %s2652 = scalar_lea.vmem %s2, 392
  %v2653 = vpack.c.bf16 0.0, %v2650
  %2654 = vst [vmem:[%s2652] sm:$0xf] %v2653
  %s2655 = scalar_lea.vmem %s0, 904
  %v2656 = vld [vmem:[%s2655] sm:$0xf]
  %v2657 = vunpack.c.l.bf16 %v2656
  %v2658 = vunpack.c.h.bf16 %v2656
  %s2659 = scalar_lea.vmem %s1, 904
  %v2660 = vld [vmem:[%s2659] sm:$0xf]
  %v2661 = vunpack.c.l.bf16 %v2660
  %v2662 = vunpack.c.h.bf16 %v2660
  %2663 = xla_tuple %v2657, %v2661
  %2664 = xla_tuple %2663
  %v2665 = vsub.f32 %v2657, %v2661
  %2666 = xla_tuple %v2665
  %s2667 = scalar_lea.vmem %s2, 904
  %v2668 = vpack.c.bf16 0.0, %v2665
  %2669 = vst [vmem:[%s2667] sm:$0xf] %v2668
  %s2670 = scalar_lea.vmem %s0, 408
  %v2671 = vld [vmem:[%s2670] sm:$0xf]
  %v2672 = vunpack.c.l.bf16 %v2671
  %v2673 = vunpack.c.h.bf16 %v2671
  %s2674 = scalar_lea.vmem %s1, 408
  %v2675 = vld [vmem:[%s2674] sm:$0xf]
  %v2676 = vunpack.c.l.bf16 %v2675
  %v2677 = vunpack.c.h.bf16 %v2675
  %2678 = xla_tuple %v2672, %v2676
  %2679 = xla_tuple %2678
  %v2680 = vsub.f32 %v2672, %v2676
  %2681 = xla_tuple %v2680
  %s2682 = scalar_lea.vmem %s2, 408
  %v2683 = vpack.c.bf16 0.0, %v2680
  %2684 = vst [vmem:[%s2682] sm:$0xf] %v2683
  %s2685 = scalar_lea.vmem %s0, 920
  %v2686 = vld [vmem:[%s2685] sm:$0xf]
  %v2687 = vunpack.c.l.bf16 %v2686
  %v2688 = vunpack.c.h.bf16 %v2686
  %s2689 = scalar_lea.vmem %s1, 920
  %v2690 = vld [vmem:[%s2689] sm:$0xf]
  %v2691 = vunpack.c.l.bf16 %v2690
  %v2692 = vunpack.c.h.bf16 %v2690
  %2693 = xla_tuple %v2687, %v2691
  %2694 = xla_tuple %2693
  %v2695 = vsub.f32 %v2687, %v2691
  %2696 = xla_tuple %v2695
  %s2697 = scalar_lea.vmem %s2, 920
  %v2698 = vpack.c.bf16 0.0, %v2695
  %2699 = vst [vmem:[%s2697] sm:$0xf] %v2698
  %s2700 = scalar_lea.vmem %s0, 424
  %v2701 = vld [vmem:[%s2700] sm:$0xf]
  %v2702 = vunpack.c.l.bf16 %v2701
  %v2703 = vunpack.c.h.bf16 %v2701
  %s2704 = scalar_lea.vmem %s1, 424
  %v2705 = vld [vmem:[%s2704] sm:$0xf]
  %v2706 = vunpack.c.l.bf16 %v2705
  %v2707 = vunpack.c.h.bf16 %v2705
  %2708 = xla_tuple %v2702, %v2706
  %2709 = xla_tuple %2708
  %v2710 = vsub.f32 %v2702, %v2706
  %2711 = xla_tuple %v2710
  %s2712 = scalar_lea.vmem %s2, 424
  %v2713 = vpack.c.bf16 0.0, %v2710
  %2714 = vst [vmem:[%s2712] sm:$0xf] %v2713
  %s2715 = scalar_lea.vmem %s0, 936
  %v2716 = vld [vmem:[%s2715] sm:$0xf]
  %v2717 = vunpack.c.l.bf16 %v2716
  %v2718 = vunpack.c.h.bf16 %v2716
  %s2719 = scalar_lea.vmem %s1, 936
  %v2720 = vld [vmem:[%s2719] sm:$0xf]
  %v2721 = vunpack.c.l.bf16 %v2720
  %v2722 = vunpack.c.h.bf16 %v2720
  %2723 = xla_tuple %v2717, %v2721
  %2724 = xla_tuple %2723
  %v2725 = vsub.f32 %v2717, %v2721
  %2726 = xla_tuple %v2725
  %s2727 = scalar_lea.vmem %s2, 936
  %v2728 = vpack.c.bf16 0.0, %v2725
  %2729 = vst [vmem:[%s2727] sm:$0xf] %v2728
  %s2730 = scalar_lea.vmem %s0, 440
  %v2731 = vld [vmem:[%s2730] sm:$0xf]
  %v2732 = vunpack.c.l.bf16 %v2731
  %v2733 = vunpack.c.h.bf16 %v2731
  %s2734 = scalar_lea.vmem %s1, 440
  %v2735 = vld [vmem:[%s2734] sm:$0xf]
  %v2736 = vunpack.c.l.bf16 %v2735
  %v2737 = vunpack.c.h.bf16 %v2735
  %2738 = xla_tuple %v2732, %v2736
  %2739 = xla_tuple %2738
  %v2740 = vsub.f32 %v2732, %v2736
  %2741 = xla_tuple %v2740
  %s2742 = scalar_lea.vmem %s2, 440
  %v2743 = vpack.c.bf16 0.0, %v2740
  %2744 = vst [vmem:[%s2742] sm:$0xf] %v2743
  %s2745 = scalar_lea.vmem %s0, 952
  %v2746 = vld [vmem:[%s2745] sm:$0xf]
  %v2747 = vunpack.c.l.bf16 %v2746
  %v2748 = vunpack.c.h.bf16 %v2746
  %s2749 = scalar_lea.vmem %s1, 952
  %v2750 = vld [vmem:[%s2749] sm:$0xf]
  %v2751 = vunpack.c.l.bf16 %v2750
  %v2752 = vunpack.c.h.bf16 %v2750
  %2753 = xla_tuple %v2747, %v2751
  %2754 = xla_tuple %2753
  %v2755 = vsub.f32 %v2747, %v2751
  %2756 = xla_tuple %v2755
  %s2757 = scalar_lea.vmem %s2, 952
  %v2758 = vpack.c.bf16 0.0, %v2755
  %2759 = vst [vmem:[%s2757] sm:$0xf] %v2758
  %s2760 = scalar_lea.vmem %s0, 456
  %v2761 = vld [vmem:[%s2760] sm:$0xf]
  %v2762 = vunpack.c.l.bf16 %v2761
  %v2763 = vunpack.c.h.bf16 %v2761
  %s2764 = scalar_lea.vmem %s1, 456
  %v2765 = vld [vmem:[%s2764] sm:$0xf]
  %v2766 = vunpack.c.l.bf16 %v2765
  %v2767 = vunpack.c.h.bf16 %v2765
  %2768 = xla_tuple %v2762, %v2766
  %2769 = xla_tuple %2768
  %v2770 = vsub.f32 %v2762, %v2766
  %2771 = xla_tuple %v2770
  %s2772 = scalar_lea.vmem %s2, 456
  %v2773 = vpack.c.bf16 0.0, %v2770
  %2774 = vst [vmem:[%s2772] sm:$0xf] %v2773
  %s2775 = scalar_lea.vmem %s0, 968
  %v2776 = vld [vmem:[%s2775] sm:$0xf]
  %v2777 = vunpack.c.l.bf16 %v2776
  %v2778 = vunpack.c.h.bf16 %v2776
  %s2779 = scalar_lea.vmem %s1, 968
  %v2780 = vld [vmem:[%s2779] sm:$0xf]
  %v2781 = vunpack.c.l.bf16 %v2780
  %v2782 = vunpack.c.h.bf16 %v2780
  %2783 = xla_tuple %v2777, %v2781
  %2784 = xla_tuple %2783
  %v2785 = vsub.f32 %v2777, %v2781
  %2786 = xla_tuple %v2785
  %s2787 = scalar_lea.vmem %s2, 968
  %v2788 = vpack.c.bf16 0.0, %v2785
  %2789 = vst [vmem:[%s2787] sm:$0xf] %v2788
  %s2790 = scalar_lea.vmem %s0, 472
  %v2791 = vld [vmem:[%s2790] sm:$0xf]
  %v2792 = vunpack.c.l.bf16 %v2791
  %v2793 = vunpack.c.h.bf16 %v2791
  %s2794 = scalar_lea.vmem %s1, 472
  %v2795 = vld [vmem:[%s2794] sm:$0xf]
  %v2796 = vunpack.c.l.bf16 %v2795
  %v2797 = vunpack.c.h.bf16 %v2795
  %2798 = xla_tuple %v2792, %v2796
  %2799 = xla_tuple %2798
  %v2800 = vsub.f32 %v2792, %v2796
  %2801 = xla_tuple %v2800
  %s2802 = scalar_lea.vmem %s2, 472
  %v2803 = vpack.c.bf16 0.0, %v2800
  %2804 = vst [vmem:[%s2802] sm:$0xf] %v2803
  %s2805 = scalar_lea.vmem %s0, 984
  %v2806 = vld [vmem:[%s2805] sm:$0xf]
  %v2807 = vunpack.c.l.bf16 %v2806
  %v2808 = vunpack.c.h.bf16 %v2806
  %s2809 = scalar_lea.vmem %s1, 984
  %v2810 = vld [vmem:[%s2809] sm:$0xf]
  %v2811 = vunpack.c.l.bf16 %v2810
  %v2812 = vunpack.c.h.bf16 %v2810
  %2813 = xla_tuple %v2807, %v2811
  %2814 = xla_tuple %2813
  %v2815 = vsub.f32 %v2807, %v2811
  %2816 = xla_tuple %v2815
  %s2817 = scalar_lea.vmem %s2, 984
  %v2818 = vpack.c.bf16 0.0, %v2815
  %2819 = vst [vmem:[%s2817] sm:$0xf] %v2818
  %s2820 = scalar_lea.vmem %s0, 488
  %v2821 = vld [vmem:[%s2820] sm:$0xf]
  %v2822 = vunpack.c.l.bf16 %v2821
  %v2823 = vunpack.c.h.bf16 %v2821
  %s2824 = scalar_lea.vmem %s1, 488
  %v2825 = vld [vmem:[%s2824] sm:$0xf]
  %v2826 = vunpack.c.l.bf16 %v2825
  %v2827 = vunpack.c.h.bf16 %v2825
  %2828 = xla_tuple %v2822, %v2826
  %2829 = xla_tuple %2828
  %v2830 = vsub.f32 %v2822, %v2826
  %2831 = xla_tuple %v2830
  %s2832 = scalar_lea.vmem %s2, 488
  %v2833 = vpack.c.bf16 0.0, %v2830
  %2834 = vst [vmem:[%s2832] sm:$0xf] %v2833
  %s2835 = scalar_lea.vmem %s0, 1000
  %v2836 = vld [vmem:[%s2835] sm:$0xf]
  %v2837 = vunpack.c.l.bf16 %v2836
  %v2838 = vunpack.c.h.bf16 %v2836
  %s2839 = scalar_lea.vmem %s1, 1000
  %v2840 = vld [vmem:[%s2839] sm:$0xf]
  %v2841 = vunpack.c.l.bf16 %v2840
  %v2842 = vunpack.c.h.bf16 %v2840
  %2843 = xla_tuple %v2837, %v2841
  %2844 = xla_tuple %2843
  %v2845 = vsub.f32 %v2837, %v2841
  %2846 = xla_tuple %v2845
  %s2847 = scalar_lea.vmem %s2, 1000
  %v2848 = vpack.c.bf16 0.0, %v2845
  %2849 = vst [vmem:[%s2847] sm:$0xf] %v2848
  %s2850 = scalar_lea.vmem %s0, 504
  %v2851 = vld [vmem:[%s2850] sm:$0xf]
  %v2852 = vunpack.c.l.bf16 %v2851
  %v2853 = vunpack.c.h.bf16 %v2851
  %s2854 = scalar_lea.vmem %s1, 504
  %v2855 = vld [vmem:[%s2854] sm:$0xf]
  %v2856 = vunpack.c.l.bf16 %v2855
  %v2857 = vunpack.c.h.bf16 %v2855
  %2858 = xla_tuple %v2852, %v2856
  %2859 = xla_tuple %2858
  %v2860 = vsub.f32 %v2852, %v2856
  %2861 = xla_tuple %v2860
  %s2862 = scalar_lea.vmem %s2, 504
  %v2863 = vpack.c.bf16 0.0, %v2860
  %2864 = vst [vmem:[%s2862] sm:$0xf] %v2863
  %s2865 = scalar_lea.vmem %s0, 1016
  %v2866 = vld [vmem:[%s2865] sm:$0xf]
  %v2867 = vunpack.c.l.bf16 %v2866
  %v2868 = vunpack.c.h.bf16 %v2866
  %s2869 = scalar_lea.vmem %s1, 1016
  %v2870 = vld [vmem:[%s2869] sm:$0xf]
  %v2871 = vunpack.c.l.bf16 %v2870
  %v2872 = vunpack.c.h.bf16 %v2870
  %2873 = xla_tuple %v2867, %v2871
  %2874 = xla_tuple %2873
  %v2875 = vsub.f32 %v2867, %v2871
  %2876 = xla_tuple %v2875
  %s2877 = scalar_lea.vmem %s2, 1016
  %v2878 = vpack.c.bf16 0.0, %v2875
  %2879 = vst [vmem:[%s2877] sm:$0xf] %v2878
  %s2880 = scalar_lea.vmem %s0, 12
  %v2881 = vld [vmem:[%s2880] sm:$0xf]
  %v2882 = vunpack.c.l.bf16 %v2881
  %v2883 = vunpack.c.h.bf16 %v2881
  %s2884 = scalar_lea.vmem %s1, 12
  %v2885 = vld [vmem:[%s2884] sm:$0xf]
  %v2886 = vunpack.c.l.bf16 %v2885
  %v2887 = vunpack.c.h.bf16 %v2885
  %2888 = xla_tuple %v2882, %v2886
  %2889 = xla_tuple %2888
  %v2890 = vsub.f32 %v2882, %v2886
  %2891 = xla_tuple %v2890
  %s2892 = scalar_lea.vmem %s2, 12
  %v2893 = vpack.c.bf16 0.0, %v2890
  %2894 = vst [vmem:[%s2892] sm:$0xf] %v2893
  %s2895 = scalar_lea.vmem %s0, 524
  %v2896 = vld [vmem:[%s2895] sm:$0xf]
  %v2897 = vunpack.c.l.bf16 %v2896
  %v2898 = vunpack.c.h.bf16 %v2896
  %s2899 = scalar_lea.vmem %s1, 524
  %v2900 = vld [vmem:[%s2899] sm:$0xf]
  %v2901 = vunpack.c.l.bf16 %v2900
  %v2902 = vunpack.c.h.bf16 %v2900
  %2903 = xla_tuple %v2897, %v2901
  %2904 = xla_tuple %2903
  %v2905 = vsub.f32 %v2897, %v2901
  %2906 = xla_tuple %v2905
  %s2907 = scalar_lea.vmem %s2, 524
  %v2908 = vpack.c.bf16 0.0, %v2905
  %2909 = vst [vmem:[%s2907] sm:$0xf] %v2908
  %s2910 = scalar_lea.vmem %s0, 28
  %v2911 = vld [vmem:[%s2910] sm:$0xf]
  %v2912 = vunpack.c.l.bf16 %v2911
  %v2913 = vunpack.c.h.bf16 %v2911
  %s2914 = scalar_lea.vmem %s1, 28
  %v2915 = vld [vmem:[%s2914] sm:$0xf]
  %v2916 = vunpack.c.l.bf16 %v2915
  %v2917 = vunpack.c.h.bf16 %v2915
  %2918 = xla_tuple %v2912, %v2916
  %2919 = xla_tuple %2918
  %v2920 = vsub.f32 %v2912, %v2916
  %2921 = xla_tuple %v2920
  %s2922 = scalar_lea.vmem %s2, 28
  %v2923 = vpack.c.bf16 0.0, %v2920
  %2924 = vst [vmem:[%s2922] sm:$0xf] %v2923
  %s2925 = scalar_lea.vmem %s0, 540
  %v2926 = vld [vmem:[%s2925] sm:$0xf]
  %v2927 = vunpack.c.l.bf16 %v2926
  %v2928 = vunpack.c.h.bf16 %v2926
  %s2929 = scalar_lea.vmem %s1, 540
  %v2930 = vld [vmem:[%s2929] sm:$0xf]
  %v2931 = vunpack.c.l.bf16 %v2930
  %v2932 = vunpack.c.h.bf16 %v2930
  %2933 = xla_tuple %v2927, %v2931
  %2934 = xla_tuple %2933
  %v2935 = vsub.f32 %v2927, %v2931
  %2936 = xla_tuple %v2935
  %s2937 = scalar_lea.vmem %s2, 540
  %v2938 = vpack.c.bf16 0.0, %v2935
  %2939 = vst [vmem:[%s2937] sm:$0xf] %v2938
  %s2940 = scalar_lea.vmem %s0, 44
  %v2941 = vld [vmem:[%s2940] sm:$0xf]
  %v2942 = vunpack.c.l.bf16 %v2941
  %v2943 = vunpack.c.h.bf16 %v2941
  %s2944 = scalar_lea.vmem %s1, 44
  %v2945 = vld [vmem:[%s2944] sm:$0xf]
  %v2946 = vunpack.c.l.bf16 %v2945
  %v2947 = vunpack.c.h.bf16 %v2945
  %2948 = xla_tuple %v2942, %v2946
  %2949 = xla_tuple %2948
  %v2950 = vsub.f32 %v2942, %v2946
  %2951 = xla_tuple %v2950
  %s2952 = scalar_lea.vmem %s2, 44
  %v2953 = vpack.c.bf16 0.0, %v2950
  %2954 = vst [vmem:[%s2952] sm:$0xf] %v2953
  %s2955 = scalar_lea.vmem %s0, 556
  %v2956 = vld [vmem:[%s2955] sm:$0xf]
  %v2957 = vunpack.c.l.bf16 %v2956
  %v2958 = vunpack.c.h.bf16 %v2956
  %s2959 = scalar_lea.vmem %s1, 556
  %v2960 = vld [vmem:[%s2959] sm:$0xf]
  %v2961 = vunpack.c.l.bf16 %v2960
  %v2962 = vunpack.c.h.bf16 %v2960
  %2963 = xla_tuple %v2957, %v2961
  %2964 = xla_tuple %2963
  %v2965 = vsub.f32 %v2957, %v2961
  %2966 = xla_tuple %v2965
  %s2967 = scalar_lea.vmem %s2, 556
  %v2968 = vpack.c.bf16 0.0, %v2965
  %2969 = vst [vmem:[%s2967] sm:$0xf] %v2968
  %s2970 = scalar_lea.vmem %s0, 60
  %v2971 = vld [vmem:[%s2970] sm:$0xf]
  %v2972 = vunpack.c.l.bf16 %v2971
  %v2973 = vunpack.c.h.bf16 %v2971
  %s2974 = scalar_lea.vmem %s1, 60
  %v2975 = vld [vmem:[%s2974] sm:$0xf]
  %v2976 = vunpack.c.l.bf16 %v2975
  %v2977 = vunpack.c.h.bf16 %v2975
  %2978 = xla_tuple %v2972, %v2976
  %2979 = xla_tuple %2978
  %v2980 = vsub.f32 %v2972, %v2976
  %2981 = xla_tuple %v2980
  %s2982 = scalar_lea.vmem %s2, 60
  %v2983 = vpack.c.bf16 0.0, %v2980
  %2984 = vst [vmem:[%s2982] sm:$0xf] %v2983
  %s2985 = scalar_lea.vmem %s0, 572
  %v2986 = vld [vmem:[%s2985] sm:$0xf]
  %v2987 = vunpack.c.l.bf16 %v2986
  %v2988 = vunpack.c.h.bf16 %v2986
  %s2989 = scalar_lea.vmem %s1, 572
  %v2990 = vld [vmem:[%s2989] sm:$0xf]
  %v2991 = vunpack.c.l.bf16 %v2990
  %v2992 = vunpack.c.h.bf16 %v2990
  %2993 = xla_tuple %v2987, %v2991
  %2994 = xla_tuple %2993
  %v2995 = vsub.f32 %v2987, %v2991
  %2996 = xla_tuple %v2995
  %s2997 = scalar_lea.vmem %s2, 572
  %v2998 = vpack.c.bf16 0.0, %v2995
  %2999 = vst [vmem:[%s2997] sm:$0xf] %v2998
  %s3000 = scalar_lea.vmem %s0, 76
  %v3001 = vld [vmem:[%s3000] sm:$0xf]
  %v3002 = vunpack.c.l.bf16 %v3001
  %v3003 = vunpack.c.h.bf16 %v3001
  %s3004 = scalar_lea.vmem %s1, 76
  %v3005 = vld [vmem:[%s3004] sm:$0xf]
  %v3006 = vunpack.c.l.bf16 %v3005
  %v3007 = vunpack.c.h.bf16 %v3005
  %3008 = xla_tuple %v3002, %v3006
  %3009 = xla_tuple %3008
  %v3010 = vsub.f32 %v3002, %v3006
  %3011 = xla_tuple %v3010
  %s3012 = scalar_lea.vmem %s2, 76
  %v3013 = vpack.c.bf16 0.0, %v3010
  %3014 = vst [vmem:[%s3012] sm:$0xf] %v3013
  %s3015 = scalar_lea.vmem %s0, 588
  %v3016 = vld [vmem:[%s3015] sm:$0xf]
  %v3017 = vunpack.c.l.bf16 %v3016
  %v3018 = vunpack.c.h.bf16 %v3016
  %s3019 = scalar_lea.vmem %s1, 588
  %v3020 = vld [vmem:[%s3019] sm:$0xf]
  %v3021 = vunpack.c.l.bf16 %v3020
  %v3022 = vunpack.c.h.bf16 %v3020
  %3023 = xla_tuple %v3017, %v3021
  %3024 = xla_tuple %3023
  %v3025 = vsub.f32 %v3017, %v3021
  %3026 = xla_tuple %v3025
  %s3027 = scalar_lea.vmem %s2, 588
  %v3028 = vpack.c.bf16 0.0, %v3025
  %3029 = vst [vmem:[%s3027] sm:$0xf] %v3028
  %s3030 = scalar_lea.vmem %s0, 92
  %v3031 = vld [vmem:[%s3030] sm:$0xf]
  %v3032 = vunpack.c.l.bf16 %v3031
  %v3033 = vunpack.c.h.bf16 %v3031
  %s3034 = scalar_lea.vmem %s1, 92
  %v3035 = vld [vmem:[%s3034] sm:$0xf]
  %v3036 = vunpack.c.l.bf16 %v3035
  %v3037 = vunpack.c.h.bf16 %v3035
  %3038 = xla_tuple %v3032, %v3036
  %3039 = xla_tuple %3038
  %v3040 = vsub.f32 %v3032, %v3036
  %3041 = xla_tuple %v3040
  %s3042 = scalar_lea.vmem %s2, 92
  %v3043 = vpack.c.bf16 0.0, %v3040
  %3044 = vst [vmem:[%s3042] sm:$0xf] %v3043
  %s3045 = scalar_lea.vmem %s0, 604
  %v3046 = vld [vmem:[%s3045] sm:$0xf]
  %v3047 = vunpack.c.l.bf16 %v3046
  %v3048 = vunpack.c.h.bf16 %v3046
  %s3049 = scalar_lea.vmem %s1, 604
  %v3050 = vld [vmem:[%s3049] sm:$0xf]
  %v3051 = vunpack.c.l.bf16 %v3050
  %v3052 = vunpack.c.h.bf16 %v3050
  %3053 = xla_tuple %v3047, %v3051
  %3054 = xla_tuple %3053
  %v3055 = vsub.f32 %v3047, %v3051
  %3056 = xla_tuple %v3055
  %s3057 = scalar_lea.vmem %s2, 604
  %v3058 = vpack.c.bf16 0.0, %v3055
  %3059 = vst [vmem:[%s3057] sm:$0xf] %v3058
  %s3060 = scalar_lea.vmem %s0, 108
  %v3061 = vld [vmem:[%s3060] sm:$0xf]
  %v3062 = vunpack.c.l.bf16 %v3061
  %v3063 = vunpack.c.h.bf16 %v3061
  %s3064 = scalar_lea.vmem %s1, 108
  %v3065 = vld [vmem:[%s3064] sm:$0xf]
  %v3066 = vunpack.c.l.bf16 %v3065
  %v3067 = vunpack.c.h.bf16 %v3065
  %3068 = xla_tuple %v3062, %v3066
  %3069 = xla_tuple %3068
  %v3070 = vsub.f32 %v3062, %v3066
  %3071 = xla_tuple %v3070
  %s3072 = scalar_lea.vmem %s2, 108
  %v3073 = vpack.c.bf16 0.0, %v3070
  %3074 = vst [vmem:[%s3072] sm:$0xf] %v3073
  %s3075 = scalar_lea.vmem %s0, 620
  %v3076 = vld [vmem:[%s3075] sm:$0xf]
  %v3077 = vunpack.c.l.bf16 %v3076
  %v3078 = vunpack.c.h.bf16 %v3076
  %s3079 = scalar_lea.vmem %s1, 620
  %v3080 = vld [vmem:[%s3079] sm:$0xf]
  %v3081 = vunpack.c.l.bf16 %v3080
  %v3082 = vunpack.c.h.bf16 %v3080
  %3083 = xla_tuple %v3077, %v3081
  %3084 = xla_tuple %3083
  %v3085 = vsub.f32 %v3077, %v3081
  %3086 = xla_tuple %v3085
  %s3087 = scalar_lea.vmem %s2, 620
  %v3088 = vpack.c.bf16 0.0, %v3085
  %3089 = vst [vmem:[%s3087] sm:$0xf] %v3088
  %s3090 = scalar_lea.vmem %s0, 124
  %v3091 = vld [vmem:[%s3090] sm:$0xf]
  %v3092 = vunpack.c.l.bf16 %v3091
  %v3093 = vunpack.c.h.bf16 %v3091
  %s3094 = scalar_lea.vmem %s1, 124
  %v3095 = vld [vmem:[%s3094] sm:$0xf]
  %v3096 = vunpack.c.l.bf16 %v3095
  %v3097 = vunpack.c.h.bf16 %v3095
  %3098 = xla_tuple %v3092, %v3096
  %3099 = xla_tuple %3098
  %v3100 = vsub.f32 %v3092, %v3096
  %3101 = xla_tuple %v3100
  %s3102 = scalar_lea.vmem %s2, 124
  %v3103 = vpack.c.bf16 0.0, %v3100
  %3104 = vst [vmem:[%s3102] sm:$0xf] %v3103
  %s3105 = scalar_lea.vmem %s0, 636
  %v3106 = vld [vmem:[%s3105] sm:$0xf]
  %v3107 = vunpack.c.l.bf16 %v3106
  %v3108 = vunpack.c.h.bf16 %v3106
  %s3109 = scalar_lea.vmem %s1, 636
  %v3110 = vld [vmem:[%s3109] sm:$0xf]
  %v3111 = vunpack.c.l.bf16 %v3110
  %v3112 = vunpack.c.h.bf16 %v3110
  %3113 = xla_tuple %v3107, %v3111
  %3114 = xla_tuple %3113
  %v3115 = vsub.f32 %v3107, %v3111
  %3116 = xla_tuple %v3115
  %s3117 = scalar_lea.vmem %s2, 636
  %v3118 = vpack.c.bf16 0.0, %v3115
  %3119 = vst [vmem:[%s3117] sm:$0xf] %v3118
  %s3120 = scalar_lea.vmem %s0, 140
  %v3121 = vld [vmem:[%s3120] sm:$0xf]
  %v3122 = vunpack.c.l.bf16 %v3121
  %v3123 = vunpack.c.h.bf16 %v3121
  %s3124 = scalar_lea.vmem %s1, 140
  %v3125 = vld [vmem:[%s3124] sm:$0xf]
  %v3126 = vunpack.c.l.bf16 %v3125
  %v3127 = vunpack.c.h.bf16 %v3125
  %3128 = xla_tuple %v3122, %v3126
  %3129 = xla_tuple %3128
  %v3130 = vsub.f32 %v3122, %v3126
  %3131 = xla_tuple %v3130
  %s3132 = scalar_lea.vmem %s2, 140
  %v3133 = vpack.c.bf16 0.0, %v3130
  %3134 = vst [vmem:[%s3132] sm:$0xf] %v3133
  %s3135 = scalar_lea.vmem %s0, 652
  %v3136 = vld [vmem:[%s3135] sm:$0xf]
  %v3137 = vunpack.c.l.bf16 %v3136
  %v3138 = vunpack.c.h.bf16 %v3136
  %s3139 = scalar_lea.vmem %s1, 652
  %v3140 = vld [vmem:[%s3139] sm:$0xf]
  %v3141 = vunpack.c.l.bf16 %v3140
  %v3142 = vunpack.c.h.bf16 %v3140
  %3143 = xla_tuple %v3137, %v3141
  %3144 = xla_tuple %3143
  %v3145 = vsub.f32 %v3137, %v3141
  %3146 = xla_tuple %v3145
  %s3147 = scalar_lea.vmem %s2, 652
  %v3148 = vpack.c.bf16 0.0, %v3145
  %3149 = vst [vmem:[%s3147] sm:$0xf] %v3148
  %s3150 = scalar_lea.vmem %s0, 156
  %v3151 = vld [vmem:[%s3150] sm:$0xf]
  %v3152 = vunpack.c.l.bf16 %v3151
  %v3153 = vunpack.c.h.bf16 %v3151
  %s3154 = scalar_lea.vmem %s1, 156
  %v3155 = vld [vmem:[%s3154] sm:$0xf]
  %v3156 = vunpack.c.l.bf16 %v3155
  %v3157 = vunpack.c.h.bf16 %v3155
  %3158 = xla_tuple %v3152, %v3156
  %3159 = xla_tuple %3158
  %v3160 = vsub.f32 %v3152, %v3156
  %3161 = xla_tuple %v3160
  %s3162 = scalar_lea.vmem %s2, 156
  %v3163 = vpack.c.bf16 0.0, %v3160
  %3164 = vst [vmem:[%s3162] sm:$0xf] %v3163
  %s3165 = scalar_lea.vmem %s0, 668
  %v3166 = vld [vmem:[%s3165] sm:$0xf]
  %v3167 = vunpack.c.l.bf16 %v3166
  %v3168 = vunpack.c.h.bf16 %v3166
  %s3169 = scalar_lea.vmem %s1, 668
  %v3170 = vld [vmem:[%s3169] sm:$0xf]
  %v3171 = vunpack.c.l.bf16 %v3170
  %v3172 = vunpack.c.h.bf16 %v3170
  %3173 = xla_tuple %v3167, %v3171
  %3174 = xla_tuple %3173
  %v3175 = vsub.f32 %v3167, %v3171
  %3176 = xla_tuple %v3175
  %s3177 = scalar_lea.vmem %s2, 668
  %v3178 = vpack.c.bf16 0.0, %v3175
  %3179 = vst [vmem:[%s3177] sm:$0xf] %v3178
  %s3180 = scalar_lea.vmem %s0, 172
  %v3181 = vld [vmem:[%s3180] sm:$0xf]
  %v3182 = vunpack.c.l.bf16 %v3181
  %v3183 = vunpack.c.h.bf16 %v3181
  %s3184 = scalar_lea.vmem %s1, 172
  %v3185 = vld [vmem:[%s3184] sm:$0xf]
  %v3186 = vunpack.c.l.bf16 %v3185
  %v3187 = vunpack.c.h.bf16 %v3185
  %3188 = xla_tuple %v3182, %v3186
  %3189 = xla_tuple %3188
  %v3190 = vsub.f32 %v3182, %v3186
  %3191 = xla_tuple %v3190
  %s3192 = scalar_lea.vmem %s2, 172
  %v3193 = vpack.c.bf16 0.0, %v3190
  %3194 = vst [vmem:[%s3192] sm:$0xf] %v3193
  %s3195 = scalar_lea.vmem %s0, 684
  %v3196 = vld [vmem:[%s3195] sm:$0xf]
  %v3197 = vunpack.c.l.bf16 %v3196
  %v3198 = vunpack.c.h.bf16 %v3196
  %s3199 = scalar_lea.vmem %s1, 684
  %v3200 = vld [vmem:[%s3199] sm:$0xf]
  %v3201 = vunpack.c.l.bf16 %v3200
  %v3202 = vunpack.c.h.bf16 %v3200
  %3203 = xla_tuple %v3197, %v3201
  %3204 = xla_tuple %3203
  %v3205 = vsub.f32 %v3197, %v3201
  %3206 = xla_tuple %v3205
  %s3207 = scalar_lea.vmem %s2, 684
  %v3208 = vpack.c.bf16 0.0, %v3205
  %3209 = vst [vmem:[%s3207] sm:$0xf] %v3208
  %s3210 = scalar_lea.vmem %s0, 188
  %v3211 = vld [vmem:[%s3210] sm:$0xf]
  %v3212 = vunpack.c.l.bf16 %v3211
  %v3213 = vunpack.c.h.bf16 %v3211
  %s3214 = scalar_lea.vmem %s1, 188
  %v3215 = vld [vmem:[%s3214] sm:$0xf]
  %v3216 = vunpack.c.l.bf16 %v3215
  %v3217 = vunpack.c.h.bf16 %v3215
  %3218 = xla_tuple %v3212, %v3216
  %3219 = xla_tuple %3218
  %v3220 = vsub.f32 %v3212, %v3216
  %3221 = xla_tuple %v3220
  %s3222 = scalar_lea.vmem %s2, 188
  %v3223 = vpack.c.bf16 0.0, %v3220
  %3224 = vst [vmem:[%s3222] sm:$0xf] %v3223
  %s3225 = scalar_lea.vmem %s0, 700
  %v3226 = vld [vmem:[%s3225] sm:$0xf]
  %v3227 = vunpack.c.l.bf16 %v3226
  %v3228 = vunpack.c.h.bf16 %v3226
  %s3229 = scalar_lea.vmem %s1, 700
  %v3230 = vld [vmem:[%s3229] sm:$0xf]
  %v3231 = vunpack.c.l.bf16 %v3230
  %v3232 = vunpack.c.h.bf16 %v3230
  %3233 = xla_tuple %v3227, %v3231
  %3234 = xla_tuple %3233
  %v3235 = vsub.f32 %v3227, %v3231
  %3236 = xla_tuple %v3235
  %s3237 = scalar_lea.vmem %s2, 700
  %v3238 = vpack.c.bf16 0.0, %v3235
  %3239 = vst [vmem:[%s3237] sm:$0xf] %v3238
  %s3240 = scalar_lea.vmem %s0, 204
  %v3241 = vld [vmem:[%s3240] sm:$0xf]
  %v3242 = vunpack.c.l.bf16 %v3241
  %v3243 = vunpack.c.h.bf16 %v3241
  %s3244 = scalar_lea.vmem %s1, 204
  %v3245 = vld [vmem:[%s3244] sm:$0xf]
  %v3246 = vunpack.c.l.bf16 %v3245
  %v3247 = vunpack.c.h.bf16 %v3245
  %3248 = xla_tuple %v3242, %v3246
  %3249 = xla_tuple %3248
  %v3250 = vsub.f32 %v3242, %v3246
  %3251 = xla_tuple %v3250
  %s3252 = scalar_lea.vmem %s2, 204
  %v3253 = vpack.c.bf16 0.0, %v3250
  %3254 = vst [vmem:[%s3252] sm:$0xf] %v3253
  %s3255 = scalar_lea.vmem %s0, 716
  %v3256 = vld [vmem:[%s3255] sm:$0xf]
  %v3257 = vunpack.c.l.bf16 %v3256
  %v3258 = vunpack.c.h.bf16 %v3256
  %s3259 = scalar_lea.vmem %s1, 716
  %v3260 = vld [vmem:[%s3259] sm:$0xf]
  %v3261 = vunpack.c.l.bf16 %v3260
  %v3262 = vunpack.c.h.bf16 %v3260
  %3263 = xla_tuple %v3257, %v3261
  %3264 = xla_tuple %3263
  %v3265 = vsub.f32 %v3257, %v3261
  %3266 = xla_tuple %v3265
  %s3267 = scalar_lea.vmem %s2, 716
  %v3268 = vpack.c.bf16 0.0, %v3265
  %3269 = vst [vmem:[%s3267] sm:$0xf] %v3268
  %s3270 = scalar_lea.vmem %s0, 220
  %v3271 = vld [vmem:[%s3270] sm:$0xf]
  %v3272 = vunpack.c.l.bf16 %v3271
  %v3273 = vunpack.c.h.bf16 %v3271
  %s3274 = scalar_lea.vmem %s1, 220
  %v3275 = vld [vmem:[%s3274] sm:$0xf]
  %v3276 = vunpack.c.l.bf16 %v3275
  %v3277 = vunpack.c.h.bf16 %v3275
  %3278 = xla_tuple %v3272, %v3276
  %3279 = xla_tuple %3278
  %v3280 = vsub.f32 %v3272, %v3276
  %3281 = xla_tuple %v3280
  %s3282 = scalar_lea.vmem %s2, 220
  %v3283 = vpack.c.bf16 0.0, %v3280
  %3284 = vst [vmem:[%s3282] sm:$0xf] %v3283
  %s3285 = scalar_lea.vmem %s0, 732
  %v3286 = vld [vmem:[%s3285] sm:$0xf]
  %v3287 = vunpack.c.l.bf16 %v3286
  %v3288 = vunpack.c.h.bf16 %v3286
  %s3289 = scalar_lea.vmem %s1, 732
  %v3290 = vld [vmem:[%s3289] sm:$0xf]
  %v3291 = vunpack.c.l.bf16 %v3290
  %v3292 = vunpack.c.h.bf16 %v3290
  %3293 = xla_tuple %v3287, %v3291
  %3294 = xla_tuple %3293
  %v3295 = vsub.f32 %v3287, %v3291
  %3296 = xla_tuple %v3295
  %s3297 = scalar_lea.vmem %s2, 732
  %v3298 = vpack.c.bf16 0.0, %v3295
  %3299 = vst [vmem:[%s3297] sm:$0xf] %v3298
  %s3300 = scalar_lea.vmem %s0, 236
  %v3301 = vld [vmem:[%s3300] sm:$0xf]
  %v3302 = vunpack.c.l.bf16 %v3301
  %v3303 = vunpack.c.h.bf16 %v3301
  %s3304 = scalar_lea.vmem %s1, 236
  %v3305 = vld [vmem:[%s3304] sm:$0xf]
  %v3306 = vunpack.c.l.bf16 %v3305
  %v3307 = vunpack.c.h.bf16 %v3305
  %3308 = xla_tuple %v3302, %v3306
  %3309 = xla_tuple %3308
  %v3310 = vsub.f32 %v3302, %v3306
  %3311 = xla_tuple %v3310
  %s3312 = scalar_lea.vmem %s2, 236
  %v3313 = vpack.c.bf16 0.0, %v3310
  %3314 = vst [vmem:[%s3312] sm:$0xf] %v3313
  %s3315 = scalar_lea.vmem %s0, 748
  %v3316 = vld [vmem:[%s3315] sm:$0xf]
  %v3317 = vunpack.c.l.bf16 %v3316
  %v3318 = vunpack.c.h.bf16 %v3316
  %s3319 = scalar_lea.vmem %s1, 748
  %v3320 = vld [vmem:[%s3319] sm:$0xf]
  %v3321 = vunpack.c.l.bf16 %v3320
  %v3322 = vunpack.c.h.bf16 %v3320
  %3323 = xla_tuple %v3317, %v3321
  %3324 = xla_tuple %3323
  %v3325 = vsub.f32 %v3317, %v3321
  %3326 = xla_tuple %v3325
  %s3327 = scalar_lea.vmem %s2, 748
  %v3328 = vpack.c.bf16 0.0, %v3325
  %3329 = vst [vmem:[%s3327] sm:$0xf] %v3328
  %s3330 = scalar_lea.vmem %s0, 252
  %v3331 = vld [vmem:[%s3330] sm:$0xf]
  %v3332 = vunpack.c.l.bf16 %v3331
  %v3333 = vunpack.c.h.bf16 %v3331
  %s3334 = scalar_lea.vmem %s1, 252
  %v3335 = vld [vmem:[%s3334] sm:$0xf]
  %v3336 = vunpack.c.l.bf16 %v3335
  %v3337 = vunpack.c.h.bf16 %v3335
  %3338 = xla_tuple %v3332, %v3336
  %3339 = xla_tuple %3338
  %v3340 = vsub.f32 %v3332, %v3336
  %3341 = xla_tuple %v3340
  %s3342 = scalar_lea.vmem %s2, 252
  %v3343 = vpack.c.bf16 0.0, %v3340
  %3344 = vst [vmem:[%s3342] sm:$0xf] %v3343
  %s3345 = scalar_lea.vmem %s0, 764
  %v3346 = vld [vmem:[%s3345] sm:$0xf]
  %v3347 = vunpack.c.l.bf16 %v3346
  %v3348 = vunpack.c.h.bf16 %v3346
  %s3349 = scalar_lea.vmem %s1, 764
  %v3350 = vld [vmem:[%s3349] sm:$0xf]
  %v3351 = vunpack.c.l.bf16 %v3350
  %v3352 = vunpack.c.h.bf16 %v3350
  %3353 = xla_tuple %v3347, %v3351
  %3354 = xla_tuple %3353
  %v3355 = vsub.f32 %v3347, %v3351
  %3356 = xla_tuple %v3355
  %s3357 = scalar_lea.vmem %s2, 764
  %v3358 = vpack.c.bf16 0.0, %v3355
  %3359 = vst [vmem:[%s3357] sm:$0xf] %v3358
  %s3360 = scalar_lea.vmem %s0, 268
  %v3361 = vld [vmem:[%s3360] sm:$0xf]
  %v3362 = vunpack.c.l.bf16 %v3361
  %v3363 = vunpack.c.h.bf16 %v3361
  %s3364 = scalar_lea.vmem %s1, 268
  %v3365 = vld [vmem:[%s3364] sm:$0xf]
  %v3366 = vunpack.c.l.bf16 %v3365
  %v3367 = vunpack.c.h.bf16 %v3365
  %3368 = xla_tuple %v3362, %v3366
  %3369 = xla_tuple %3368
  %v3370 = vsub.f32 %v3362, %v3366
  %3371 = xla_tuple %v3370
  %s3372 = scalar_lea.vmem %s2, 268
  %v3373 = vpack.c.bf16 0.0, %v3370
  %3374 = vst [vmem:[%s3372] sm:$0xf] %v3373
  %s3375 = scalar_lea.vmem %s0, 780
  %v3376 = vld [vmem:[%s3375] sm:$0xf]
  %v3377 = vunpack.c.l.bf16 %v3376
  %v3378 = vunpack.c.h.bf16 %v3376
  %s3379 = scalar_lea.vmem %s1, 780
  %v3380 = vld [vmem:[%s3379] sm:$0xf]
  %v3381 = vunpack.c.l.bf16 %v3380
  %v3382 = vunpack.c.h.bf16 %v3380
  %3383 = xla_tuple %v3377, %v3381
  %3384 = xla_tuple %3383
  %v3385 = vsub.f32 %v3377, %v3381
  %3386 = xla_tuple %v3385
  %s3387 = scalar_lea.vmem %s2, 780
  %v3388 = vpack.c.bf16 0.0, %v3385
  %3389 = vst [vmem:[%s3387] sm:$0xf] %v3388
  %s3390 = scalar_lea.vmem %s0, 284
  %v3391 = vld [vmem:[%s3390] sm:$0xf]
  %v3392 = vunpack.c.l.bf16 %v3391
  %v3393 = vunpack.c.h.bf16 %v3391
  %s3394 = scalar_lea.vmem %s1, 284
  %v3395 = vld [vmem:[%s3394] sm:$0xf]
  %v3396 = vunpack.c.l.bf16 %v3395
  %v3397 = vunpack.c.h.bf16 %v3395
  %3398 = xla_tuple %v3392, %v3396
  %3399 = xla_tuple %3398
  %v3400 = vsub.f32 %v3392, %v3396
  %3401 = xla_tuple %v3400
  %s3402 = scalar_lea.vmem %s2, 284
  %v3403 = vpack.c.bf16 0.0, %v3400
  %3404 = vst [vmem:[%s3402] sm:$0xf] %v3403
  %s3405 = scalar_lea.vmem %s0, 796
  %v3406 = vld [vmem:[%s3405] sm:$0xf]
  %v3407 = vunpack.c.l.bf16 %v3406
  %v3408 = vunpack.c.h.bf16 %v3406
  %s3409 = scalar_lea.vmem %s1, 796
  %v3410 = vld [vmem:[%s3409] sm:$0xf]
  %v3411 = vunpack.c.l.bf16 %v3410
  %v3412 = vunpack.c.h.bf16 %v3410
  %3413 = xla_tuple %v3407, %v3411
  %3414 = xla_tuple %3413
  %v3415 = vsub.f32 %v3407, %v3411
  %3416 = xla_tuple %v3415
  %s3417 = scalar_lea.vmem %s2, 796
  %v3418 = vpack.c.bf16 0.0, %v3415
  %3419 = vst [vmem:[%s3417] sm:$0xf] %v3418
  %s3420 = scalar_lea.vmem %s0, 300
  %v3421 = vld [vmem:[%s3420] sm:$0xf]
  %v3422 = vunpack.c.l.bf16 %v3421
  %v3423 = vunpack.c.h.bf16 %v3421
  %s3424 = scalar_lea.vmem %s1, 300
  %v3425 = vld [vmem:[%s3424] sm:$0xf]
  %v3426 = vunpack.c.l.bf16 %v3425
  %v3427 = vunpack.c.h.bf16 %v3425
  %3428 = xla_tuple %v3422, %v3426
  %3429 = xla_tuple %3428
  %v3430 = vsub.f32 %v3422, %v3426
  %3431 = xla_tuple %v3430
  %s3432 = scalar_lea.vmem %s2, 300
  %v3433 = vpack.c.bf16 0.0, %v3430
  %3434 = vst [vmem:[%s3432] sm:$0xf] %v3433
  %s3435 = scalar_lea.vmem %s0, 812
  %v3436 = vld [vmem:[%s3435] sm:$0xf]
  %v3437 = vunpack.c.l.bf16 %v3436
  %v3438 = vunpack.c.h.bf16 %v3436
  %s3439 = scalar_lea.vmem %s1, 812
  %v3440 = vld [vmem:[%s3439] sm:$0xf]
  %v3441 = vunpack.c.l.bf16 %v3440
  %v3442 = vunpack.c.h.bf16 %v3440
  %3443 = xla_tuple %v3437, %v3441
  %3444 = xla_tuple %3443
  %v3445 = vsub.f32 %v3437, %v3441
  %3446 = xla_tuple %v3445
  %s3447 = scalar_lea.vmem %s2, 812
  %v3448 = vpack.c.bf16 0.0, %v3445
  %3449 = vst [vmem:[%s3447] sm:$0xf] %v3448
  %s3450 = scalar_lea.vmem %s0, 316
  %v3451 = vld [vmem:[%s3450] sm:$0xf]
  %v3452 = vunpack.c.l.bf16 %v3451
  %v3453 = vunpack.c.h.bf16 %v3451
  %s3454 = scalar_lea.vmem %s1, 316
  %v3455 = vld [vmem:[%s3454] sm:$0xf]
  %v3456 = vunpack.c.l.bf16 %v3455
  %v3457 = vunpack.c.h.bf16 %v3455
  %3458 = xla_tuple %v3452, %v3456
  %3459 = xla_tuple %3458
  %v3460 = vsub.f32 %v3452, %v3456
  %3461 = xla_tuple %v3460
  %s3462 = scalar_lea.vmem %s2, 316
  %v3463 = vpack.c.bf16 0.0, %v3460
  %3464 = vst [vmem:[%s3462] sm:$0xf] %v3463
  %s3465 = scalar_lea.vmem %s0, 828
  %v3466 = vld [vmem:[%s3465] sm:$0xf]
  %v3467 = vunpack.c.l.bf16 %v3466
  %v3468 = vunpack.c.h.bf16 %v3466
  %s3469 = scalar_lea.vmem %s1, 828
  %v3470 = vld [vmem:[%s3469] sm:$0xf]
  %v3471 = vunpack.c.l.bf16 %v3470
  %v3472 = vunpack.c.h.bf16 %v3470
  %3473 = xla_tuple %v3467, %v3471
  %3474 = xla_tuple %3473
  %v3475 = vsub.f32 %v3467, %v3471
  %3476 = xla_tuple %v3475
  %s3477 = scalar_lea.vmem %s2, 828
  %v3478 = vpack.c.bf16 0.0, %v3475
  %3479 = vst [vmem:[%s3477] sm:$0xf] %v3478
  %s3480 = scalar_lea.vmem %s0, 332
  %v3481 = vld [vmem:[%s3480] sm:$0xf]
  %v3482 = vunpack.c.l.bf16 %v3481
  %v3483 = vunpack.c.h.bf16 %v3481
  %s3484 = scalar_lea.vmem %s1, 332
  %v3485 = vld [vmem:[%s3484] sm:$0xf]
  %v3486 = vunpack.c.l.bf16 %v3485
  %v3487 = vunpack.c.h.bf16 %v3485
  %3488 = xla_tuple %v3482, %v3486
  %3489 = xla_tuple %3488
  %v3490 = vsub.f32 %v3482, %v3486
  %3491 = xla_tuple %v3490
  %s3492 = scalar_lea.vmem %s2, 332
  %v3493 = vpack.c.bf16 0.0, %v3490
  %3494 = vst [vmem:[%s3492] sm:$0xf] %v3493
  %s3495 = scalar_lea.vmem %s0, 844
  %v3496 = vld [vmem:[%s3495] sm:$0xf]
  %v3497 = vunpack.c.l.bf16 %v3496
  %v3498 = vunpack.c.h.bf16 %v3496
  %s3499 = scalar_lea.vmem %s1, 844
  %v3500 = vld [vmem:[%s3499] sm:$0xf]
  %v3501 = vunpack.c.l.bf16 %v3500
  %v3502 = vunpack.c.h.bf16 %v3500
  %3503 = xla_tuple %v3497, %v3501
  %3504 = xla_tuple %3503
  %v3505 = vsub.f32 %v3497, %v3501
  %3506 = xla_tuple %v3505
  %s3507 = scalar_lea.vmem %s2, 844
  %v3508 = vpack.c.bf16 0.0, %v3505
  %3509 = vst [vmem:[%s3507] sm:$0xf] %v3508
  %s3510 = scalar_lea.vmem %s0, 348
  %v3511 = vld [vmem:[%s3510] sm:$0xf]
  %v3512 = vunpack.c.l.bf16 %v3511
  %v3513 = vunpack.c.h.bf16 %v3511
  %s3514 = scalar_lea.vmem %s1, 348
  %v3515 = vld [vmem:[%s3514] sm:$0xf]
  %v3516 = vunpack.c.l.bf16 %v3515
  %v3517 = vunpack.c.h.bf16 %v3515
  %3518 = xla_tuple %v3512, %v3516
  %3519 = xla_tuple %3518
  %v3520 = vsub.f32 %v3512, %v3516
  %3521 = xla_tuple %v3520
  %s3522 = scalar_lea.vmem %s2, 348
  %v3523 = vpack.c.bf16 0.0, %v3520
  %3524 = vst [vmem:[%s3522] sm:$0xf] %v3523
  %s3525 = scalar_lea.vmem %s0, 860
  %v3526 = vld [vmem:[%s3525] sm:$0xf]
  %v3527 = vunpack.c.l.bf16 %v3526
  %v3528 = vunpack.c.h.bf16 %v3526
  %s3529 = scalar_lea.vmem %s1, 860
  %v3530 = vld [vmem:[%s3529] sm:$0xf]
  %v3531 = vunpack.c.l.bf16 %v3530
  %v3532 = vunpack.c.h.bf16 %v3530
  %3533 = xla_tuple %v3527, %v3531
  %3534 = xla_tuple %3533
  %v3535 = vsub.f32 %v3527, %v3531
  %3536 = xla_tuple %v3535
  %s3537 = scalar_lea.vmem %s2, 860
  %v3538 = vpack.c.bf16 0.0, %v3535
  %3539 = vst [vmem:[%s3537] sm:$0xf] %v3538
  %s3540 = scalar_lea.vmem %s0, 364
  %v3541 = vld [vmem:[%s3540] sm:$0xf]
  %v3542 = vunpack.c.l.bf16 %v3541
  %v3543 = vunpack.c.h.bf16 %v3541
  %s3544 = scalar_lea.vmem %s1, 364
  %v3545 = vld [vmem:[%s3544] sm:$0xf]
  %v3546 = vunpack.c.l.bf16 %v3545
  %v3547 = vunpack.c.h.bf16 %v3545
  %3548 = xla_tuple %v3542, %v3546
  %3549 = xla_tuple %3548
  %v3550 = vsub.f32 %v3542, %v3546
  %3551 = xla_tuple %v3550
  %s3552 = scalar_lea.vmem %s2, 364
  %v3553 = vpack.c.bf16 0.0, %v3550
  %3554 = vst [vmem:[%s3552] sm:$0xf] %v3553
  %s3555 = scalar_lea.vmem %s0, 876
  %v3556 = vld [vmem:[%s3555] sm:$0xf]
  %v3557 = vunpack.c.l.bf16 %v3556
  %v3558 = vunpack.c.h.bf16 %v3556
  %s3559 = scalar_lea.vmem %s1, 876
  %v3560 = vld [vmem:[%s3559] sm:$0xf]
  %v3561 = vunpack.c.l.bf16 %v3560
  %v3562 = vunpack.c.h.bf16 %v3560
  %3563 = xla_tuple %v3557, %v3561
  %3564 = xla_tuple %3563
  %v3565 = vsub.f32 %v3557, %v3561
  %3566 = xla_tuple %v3565
  %s3567 = scalar_lea.vmem %s2, 876
  %v3568 = vpack.c.bf16 0.0, %v3565
  %3569 = vst [vmem:[%s3567] sm:$0xf] %v3568
  %s3570 = scalar_lea.vmem %s0, 380
  %v3571 = vld [vmem:[%s3570] sm:$0xf]
  %v3572 = vunpack.c.l.bf16 %v3571
  %v3573 = vunpack.c.h.bf16 %v3571
  %s3574 = scalar_lea.vmem %s1, 380
  %v3575 = vld [vmem:[%s3574] sm:$0xf]
  %v3576 = vunpack.c.l.bf16 %v3575
  %v3577 = vunpack.c.h.bf16 %v3575
  %3578 = xla_tuple %v3572, %v3576
  %3579 = xla_tuple %3578
  %v3580 = vsub.f32 %v3572, %v3576
  %3581 = xla_tuple %v3580
  %s3582 = scalar_lea.vmem %s2, 380
  %v3583 = vpack.c.bf16 0.0, %v3580
  %3584 = vst [vmem:[%s3582] sm:$0xf] %v3583
  %s3585 = scalar_lea.vmem %s0, 892
  %v3586 = vld [vmem:[%s3585] sm:$0xf]
  %v3587 = vunpack.c.l.bf16 %v3586
  %v3588 = vunpack.c.h.bf16 %v3586
  %s3589 = scalar_lea.vmem %s1, 892
  %v3590 = vld [vmem:[%s3589] sm:$0xf]
  %v3591 = vunpack.c.l.bf16 %v3590
  %v3592 = vunpack.c.h.bf16 %v3590
  %3593 = xla_tuple %v3587, %v3591
  %3594 = xla_tuple %3593
  %v3595 = vsub.f32 %v3587, %v3591
  %3596 = xla_tuple %v3595
  %s3597 = scalar_lea.vmem %s2, 892
  %v3598 = vpack.c.bf16 0.0, %v3595
  %3599 = vst [vmem:[%s3597] sm:$0xf] %v3598
  %s3600 = scalar_lea.vmem %s0, 396
  %v3601 = vld [vmem:[%s3600] sm:$0xf]
  %v3602 = vunpack.c.l.bf16 %v3601
  %v3603 = vunpack.c.h.bf16 %v3601
  %s3604 = scalar_lea.vmem %s1, 396
  %v3605 = vld [vmem:[%s3604] sm:$0xf]
  %v3606 = vunpack.c.l.bf16 %v3605
  %v3607 = vunpack.c.h.bf16 %v3605
  %3608 = xla_tuple %v3602, %v3606
  %3609 = xla_tuple %3608
  %v3610 = vsub.f32 %v3602, %v3606
  %3611 = xla_tuple %v3610
  %s3612 = scalar_lea.vmem %s2, 396
  %v3613 = vpack.c.bf16 0.0, %v3610
  %3614 = vst [vmem:[%s3612] sm:$0xf] %v3613
  %s3615 = scalar_lea.vmem %s0, 908
  %v3616 = vld [vmem:[%s3615] sm:$0xf]
  %v3617 = vunpack.c.l.bf16 %v3616
  %v3618 = vunpack.c.h.bf16 %v3616
  %s3619 = scalar_lea.vmem %s1, 908
  %v3620 = vld [vmem:[%s3619] sm:$0xf]
  %v3621 = vunpack.c.l.bf16 %v3620
  %v3622 = vunpack.c.h.bf16 %v3620
  %3623 = xla_tuple %v3617, %v3621
  %3624 = xla_tuple %3623
  %v3625 = vsub.f32 %v3617, %v3621
  %3626 = xla_tuple %v3625
  %s3627 = scalar_lea.vmem %s2, 908
  %v3628 = vpack.c.bf16 0.0, %v3625
  %3629 = vst [vmem:[%s3627] sm:$0xf] %v3628
  %s3630 = scalar_lea.vmem %s0, 412
  %v3631 = vld [vmem:[%s3630] sm:$0xf]
  %v3632 = vunpack.c.l.bf16 %v3631
  %v3633 = vunpack.c.h.bf16 %v3631
  %s3634 = scalar_lea.vmem %s1, 412
  %v3635 = vld [vmem:[%s3634] sm:$0xf]
  %v3636 = vunpack.c.l.bf16 %v3635
  %v3637 = vunpack.c.h.bf16 %v3635
  %3638 = xla_tuple %v3632, %v3636
  %3639 = xla_tuple %3638
  %v3640 = vsub.f32 %v3632, %v3636
  %3641 = xla_tuple %v3640
  %s3642 = scalar_lea.vmem %s2, 412
  %v3643 = vpack.c.bf16 0.0, %v3640
  %3644 = vst [vmem:[%s3642] sm:$0xf] %v3643
  %s3645 = scalar_lea.vmem %s0, 924
  %v3646 = vld [vmem:[%s3645] sm:$0xf]
  %v3647 = vunpack.c.l.bf16 %v3646
  %v3648 = vunpack.c.h.bf16 %v3646
  %s3649 = scalar_lea.vmem %s1, 924
  %v3650 = vld [vmem:[%s3649] sm:$0xf]
  %v3651 = vunpack.c.l.bf16 %v3650
  %v3652 = vunpack.c.h.bf16 %v3650
  %3653 = xla_tuple %v3647, %v3651
  %3654 = xla_tuple %3653
  %v3655 = vsub.f32 %v3647, %v3651
  %3656 = xla_tuple %v3655
  %s3657 = scalar_lea.vmem %s2, 924
  %v3658 = vpack.c.bf16 0.0, %v3655
  %3659 = vst [vmem:[%s3657] sm:$0xf] %v3658
  %s3660 = scalar_lea.vmem %s0, 428
  %v3661 = vld [vmem:[%s3660] sm:$0xf]
  %v3662 = vunpack.c.l.bf16 %v3661
  %v3663 = vunpack.c.h.bf16 %v3661
  %s3664 = scalar_lea.vmem %s1, 428
  %v3665 = vld [vmem:[%s3664] sm:$0xf]
  %v3666 = vunpack.c.l.bf16 %v3665
  %v3667 = vunpack.c.h.bf16 %v3665
  %3668 = xla_tuple %v3662, %v3666
  %3669 = xla_tuple %3668
  %v3670 = vsub.f32 %v3662, %v3666
  %3671 = xla_tuple %v3670
  %s3672 = scalar_lea.vmem %s2, 428
  %v3673 = vpack.c.bf16 0.0, %v3670
  %3674 = vst [vmem:[%s3672] sm:$0xf] %v3673
  %s3675 = scalar_lea.vmem %s0, 940
  %v3676 = vld [vmem:[%s3675] sm:$0xf]
  %v3677 = vunpack.c.l.bf16 %v3676
  %v3678 = vunpack.c.h.bf16 %v3676
  %s3679 = scalar_lea.vmem %s1, 940
  %v3680 = vld [vmem:[%s3679] sm:$0xf]
  %v3681 = vunpack.c.l.bf16 %v3680
  %v3682 = vunpack.c.h.bf16 %v3680
  %3683 = xla_tuple %v3677, %v3681
  %3684 = xla_tuple %3683
  %v3685 = vsub.f32 %v3677, %v3681
  %3686 = xla_tuple %v3685
  %s3687 = scalar_lea.vmem %s2, 940
  %v3688 = vpack.c.bf16 0.0, %v3685
  %3689 = vst [vmem:[%s3687] sm:$0xf] %v3688
  %s3690 = scalar_lea.vmem %s0, 444
  %v3691 = vld [vmem:[%s3690] sm:$0xf]
  %v3692 = vunpack.c.l.bf16 %v3691
  %v3693 = vunpack.c.h.bf16 %v3691
  %s3694 = scalar_lea.vmem %s1, 444
  %v3695 = vld [vmem:[%s3694] sm:$0xf]
  %v3696 = vunpack.c.l.bf16 %v3695
  %v3697 = vunpack.c.h.bf16 %v3695
  %3698 = xla_tuple %v3692, %v3696
  %3699 = xla_tuple %3698
  %v3700 = vsub.f32 %v3692, %v3696
  %3701 = xla_tuple %v3700
  %s3702 = scalar_lea.vmem %s2, 444
  %v3703 = vpack.c.bf16 0.0, %v3700
  %3704 = vst [vmem:[%s3702] sm:$0xf] %v3703
  %s3705 = scalar_lea.vmem %s0, 956
  %v3706 = vld [vmem:[%s3705] sm:$0xf]
  %v3707 = vunpack.c.l.bf16 %v3706
  %v3708 = vunpack.c.h.bf16 %v3706
  %s3709 = scalar_lea.vmem %s1, 956
  %v3710 = vld [vmem:[%s3709] sm:$0xf]
  %v3711 = vunpack.c.l.bf16 %v3710
  %v3712 = vunpack.c.h.bf16 %v3710
  %3713 = xla_tuple %v3707, %v3711
  %3714 = xla_tuple %3713
  %v3715 = vsub.f32 %v3707, %v3711
  %3716 = xla_tuple %v3715
  %s3717 = scalar_lea.vmem %s2, 956
  %v3718 = vpack.c.bf16 0.0, %v3715
  %3719 = vst [vmem:[%s3717] sm:$0xf] %v3718
  %s3720 = scalar_lea.vmem %s0, 460
  %v3721 = vld [vmem:[%s3720] sm:$0xf]
  %v3722 = vunpack.c.l.bf16 %v3721
  %v3723 = vunpack.c.h.bf16 %v3721
  %s3724 = scalar_lea.vmem %s1, 460
  %v3725 = vld [vmem:[%s3724] sm:$0xf]
  %v3726 = vunpack.c.l.bf16 %v3725
  %v3727 = vunpack.c.h.bf16 %v3725
  %3728 = xla_tuple %v3722, %v3726
  %3729 = xla_tuple %3728
  %v3730 = vsub.f32 %v3722, %v3726
  %3731 = xla_tuple %v3730
  %s3732 = scalar_lea.vmem %s2, 460
  %v3733 = vpack.c.bf16 0.0, %v3730
  %3734 = vst [vmem:[%s3732] sm:$0xf] %v3733
  %s3735 = scalar_lea.vmem %s0, 972
  %v3736 = vld [vmem:[%s3735] sm:$0xf]
  %v3737 = vunpack.c.l.bf16 %v3736
  %v3738 = vunpack.c.h.bf16 %v3736
  %s3739 = scalar_lea.vmem %s1, 972
  %v3740 = vld [vmem:[%s3739] sm:$0xf]
  %v3741 = vunpack.c.l.bf16 %v3740
  %v3742 = vunpack.c.h.bf16 %v3740
  %3743 = xla_tuple %v3737, %v3741
  %3744 = xla_tuple %3743
  %v3745 = vsub.f32 %v3737, %v3741
  %3746 = xla_tuple %v3745
  %s3747 = scalar_lea.vmem %s2, 972
  %v3748 = vpack.c.bf16 0.0, %v3745
  %3749 = vst [vmem:[%s3747] sm:$0xf] %v3748
  %s3750 = scalar_lea.vmem %s0, 476
  %v3751 = vld [vmem:[%s3750] sm:$0xf]
  %v3752 = vunpack.c.l.bf16 %v3751
  %v3753 = vunpack.c.h.bf16 %v3751
  %s3754 = scalar_lea.vmem %s1, 476
  %v3755 = vld [vmem:[%s3754] sm:$0xf]
  %v3756 = vunpack.c.l.bf16 %v3755
  %v3757 = vunpack.c.h.bf16 %v3755
  %3758 = xla_tuple %v3752, %v3756
  %3759 = xla_tuple %3758
  %v3760 = vsub.f32 %v3752, %v3756
  %3761 = xla_tuple %v3760
  %s3762 = scalar_lea.vmem %s2, 476
  %v3763 = vpack.c.bf16 0.0, %v3760
  %3764 = vst [vmem:[%s3762] sm:$0xf] %v3763
  %s3765 = scalar_lea.vmem %s0, 988
  %v3766 = vld [vmem:[%s3765] sm:$0xf]
  %v3767 = vunpack.c.l.bf16 %v3766
  %v3768 = vunpack.c.h.bf16 %v3766
  %s3769 = scalar_lea.vmem %s1, 988
  %v3770 = vld [vmem:[%s3769] sm:$0xf]
  %v3771 = vunpack.c.l.bf16 %v3770
  %v3772 = vunpack.c.h.bf16 %v3770
  %3773 = xla_tuple %v3767, %v3771
  %3774 = xla_tuple %3773
  %v3775 = vsub.f32 %v3767, %v3771
  %3776 = xla_tuple %v3775
  %s3777 = scalar_lea.vmem %s2, 988
  %v3778 = vpack.c.bf16 0.0, %v3775
  %3779 = vst [vmem:[%s3777] sm:$0xf] %v3778
  %s3780 = scalar_lea.vmem %s0, 492
  %v3781 = vld [vmem:[%s3780] sm:$0xf]
  %v3782 = vunpack.c.l.bf16 %v3781
  %v3783 = vunpack.c.h.bf16 %v3781
  %s3784 = scalar_lea.vmem %s1, 492
  %v3785 = vld [vmem:[%s3784] sm:$0xf]
  %v3786 = vunpack.c.l.bf16 %v3785
  %v3787 = vunpack.c.h.bf16 %v3785
  %3788 = xla_tuple %v3782, %v3786
  %3789 = xla_tuple %3788
  %v3790 = vsub.f32 %v3782, %v3786
  %3791 = xla_tuple %v3790
  %s3792 = scalar_lea.vmem %s2, 492
  %v3793 = vpack.c.bf16 0.0, %v3790
  %3794 = vst [vmem:[%s3792] sm:$0xf] %v3793
  %s3795 = scalar_lea.vmem %s0, 1004
  %v3796 = vld [vmem:[%s3795] sm:$0xf]
  %v3797 = vunpack.c.l.bf16 %v3796
  %v3798 = vunpack.c.h.bf16 %v3796
  %s3799 = scalar_lea.vmem %s1, 1004
  %v3800 = vld [vmem:[%s3799] sm:$0xf]
  %v3801 = vunpack.c.l.bf16 %v3800
  %v3802 = vunpack.c.h.bf16 %v3800
  %3803 = xla_tuple %v3797, %v3801
  %3804 = xla_tuple %3803
  %v3805 = vsub.f32 %v3797, %v3801
  %3806 = xla_tuple %v3805
  %s3807 = scalar_lea.vmem %s2, 1004
  %v3808 = vpack.c.bf16 0.0, %v3805
  %3809 = vst [vmem:[%s3807] sm:$0xf] %v3808
  %s3810 = scalar_lea.vmem %s0, 508
  %v3811 = vld [vmem:[%s3810] sm:$0xf]
  %v3812 = vunpack.c.l.bf16 %v3811
  %v3813 = vunpack.c.h.bf16 %v3811
  %s3814 = scalar_lea.vmem %s1, 508
  %v3815 = vld [vmem:[%s3814] sm:$0xf]
  %v3816 = vunpack.c.l.bf16 %v3815
  %v3817 = vunpack.c.h.bf16 %v3815
  %3818 = xla_tuple %v3812, %v3816
  %3819 = xla_tuple %3818
  %v3820 = vsub.f32 %v3812, %v3816
  %3821 = xla_tuple %v3820
  %s3822 = scalar_lea.vmem %s2, 508
  %v3823 = vpack.c.bf16 0.0, %v3820
  %3824 = vst [vmem:[%s3822] sm:$0xf] %v3823
  %s3825 = scalar_lea.vmem %s0, 1020
  %v3826 = vld [vmem:[%s3825] sm:$0xf]
  %v3827 = vunpack.c.l.bf16 %v3826
  %v3828 = vunpack.c.h.bf16 %v3826
  %s3829 = scalar_lea.vmem %s1, 1020
  %v3830 = vld [vmem:[%s3829] sm:$0xf]
  %v3831 = vunpack.c.l.bf16 %v3830
  %v3832 = vunpack.c.h.bf16 %v3830
  %3833 = xla_tuple %v3827, %v3831
  %3834 = xla_tuple %3833
  %v3835 = vsub.f32 %v3827, %v3831
  %3836 = xla_tuple %v3835
  %s3837 = scalar_lea.vmem %s2, 1020
  %v3838 = vpack.c.bf16 0.0, %v3835
  %3839 = vst [vmem:[%s3837] sm:$0xf] %v3838

// kernel: _lambda_.15
$region0: #{_lambda_.15}
  #allocation0 [shape = 'u32[]', space=smem, size = 0x4, offset = 0x4, fixed_abs, tag = 'smem constant byte address 0x4 - core index']
  #allocation1 [shape = 'u32[72,128]{1,0:T(1,128)}', space=vmem, size = 0x9000, scoped, tag = 'internal scratch']
  %s0 = inlined_call_operand.vmem [shape: bf16[4,2048], index: 0, kind: input, shape index: {}]
  %s1 = inlined_call_operand.vmem [shape: f32[2,4], index: 1, kind: input, shape index: {}]
  %s2 = inlined_call_operand.vmem [shape: f32[2,1], index: 2, kind: input, shape index: {}]
  %s3 = inlined_call_operand.vmem [shape: f32[4,2], index: 3, kind: input, shape index: {}]
  %s4 = inlined_call_operand.vmem [shape: f32[4,1], index: 4, kind: input, shape index: {}]
  %s5 = inlined_call_operand.vmem [shape: bf16[4,2048], index: 5, kind: output, shape index: {}]
  %s6 = sld [smem:[#allocation0]]
  $region53: #{_lambda_.15} parent=0
    _
  %s8 = ssub.s32 1, %s6
  %s9 = scalar_select 0, %s8, %s6
  loop: start=0, step=1, limit=4
  $region2: #{_lambda_.15} parent=0 // loop_pre_header
    _
  $region3: #{_lambda_.15} parent=0 // loop_header
    %s11 = sphi 0, %s15
    %p12 = scmp.ge.s32.totalorder %s11, 4
    %s21 = sphi 0, %s23
    %s24 = sphi 0, %s21
    %s25 = sphi 0, %s24
    %s41 = sphi 0, %s25
    %s45 = sphi 0, %s45
    %s47 = sphi 0, %s45
    %s48 = sphi 0, %s47
    %s62 = sphi 0, %s48
    %s66 = sphi 0, %s66
    %s68 = sphi 0, %s66
    %s69 = sphi 0, %s68
    %s83 = sphi 0, %s69
    %s87 = sphi 0, %s87
    %s89 = sphi 0, %s87
    %s90 = sphi 0, %s89
    %s104 = sphi 0, %s90
    %s108 = sphi 0, %s108
    %s110 = sphi 0, %s108
    %s111 = sphi 0, %s110
    %s125 = sphi 0, %s111
    %s131 = sphi 0, %s133
    %s134 = sphi 0, %s131
    %s135 = sphi 0, %s134
    %s151 = sphi 0, %s135
  $region4: #{_lambda_.15} parent=0 // loop_header_branch
    %14 = sbr.rel (%p12) target = $region8
  $region5: #{_lambda_.15} parent=0 // loop_body
    %s16 = ssub.s32 %s11, 1
    %s17 = ssub.s32 %s11, 2
    %s18 = sadd.s32 %s11, 1
    %s19 = ssub.s32 %s11, %s18
    %p20 = scmp.eq.s32.totalorder %s19, 0
    %s22 = sadd.s32 %s21, 1
    %s23 = scalar_select %p20, %s21, %s22
    %p26 = pneg %p20
    %p27 = scmp.eq.s32.totalorder %s11, 1
    %p28 = por %p26, %p27
    %p29 = scmp.ne.s32.totalorder %s21, %s24
    %p30 = scmp.eq.s32.totalorder %s11, 0
    %p31 = por %p29, %p30
    %p32 = scmp.ne.s32.totalorder %s21, %s24
    %p33 = scmp.eq.s32.totalorder %s16, 1
    %p34 = por %p32, %p33
    %p35 = scmp.ne.s32.totalorder %s24, %s25
    %p36 = scmp.eq.s32.totalorder %s16, 0
    %p37 = por %p35, %p36
    %p38 = scmp.ne.s32.totalorder %s24, %s25
    %p39 = scmp.eq.s32.totalorder %s17, 1
    %p40 = por %p38, %p39
    %p42 = scmp.ne.s32.totalorder %s25, %s41
    %p43 = scmp.eq.s32.totalorder %s17, 0
    %p44 = por %p42, %p43
    %s46 = sadd.s32 %s45, 1
    %p49 = scmp.eq.s32.totalorder %s11, 1
    %p50 = scmp.ne.s32.totalorder %s45, %s47
    %p51 = scmp.eq.s32.totalorder %s11, 0
    %p52 = por %p50, %p51
    %p53 = scmp.ne.s32.totalorder %s45, %s47
    %p54 = scmp.eq.s32.totalorder %s16, 1
    %p55 = por %p53, %p54
    %p56 = scmp.ne.s32.totalorder %s47, %s48
    %p57 = scmp.eq.s32.totalorder %s16, 0
    %p58 = por %p56, %p57
    %p59 = scmp.ne.s32.totalorder %s47, %s48
    %p60 = scmp.eq.s32.totalorder %s17, 1
    %p61 = por %p59, %p60
    %p63 = scmp.ne.s32.totalorder %s48, %s62
    %p64 = scmp.eq.s32.totalorder %s17, 0
    %p65 = por %p63, %p64
    %s67 = sadd.s32 %s66, 1
    %p70 = scmp.eq.s32.totalorder %s11, 1
    %p71 = scmp.ne.s32.totalorder %s66, %s68
    %p72 = scmp.eq.s32.totalorder %s11, 0
    %p73 = por %p71, %p72
    %p74 = scmp.ne.s32.totalorder %s66, %s68
    %p75 = scmp.eq.s32.totalorder %s16, 1
    %p76 = por %p74, %p75
    %p77 = scmp.ne.s32.totalorder %s68, %s69
    %p78 = scmp.eq.s32.totalorder %s16, 0
    %p79 = por %p77, %p78
    %p80 = scmp.ne.s32.totalorder %s68, %s69
    %p81 = scmp.eq.s32.totalorder %s17, 1
    %p82 = por %p80, %p81
    %p84 = scmp.ne.s32.totalorder %s69, %s83
    %p85 = scmp.eq.s32.totalorder %s17, 0
    %p86 = por %p84, %p85
    %s88 = sadd.s32 %s87, 1
    %p91 = scmp.eq.s32.totalorder %s11, 1
    %p92 = scmp.ne.s32.totalorder %s87, %s89
    %p93 = scmp.eq.s32.totalorder %s11, 0
    %p94 = por %p92, %p93
    %p95 = scmp.ne.s32.totalorder %s87, %s89
    %p96 = scmp.eq.s32.totalorder %s16, 1
    %p97 = por %p95, %p96
    %p98 = scmp.ne.s32.totalorder %s89, %s90
    %p99 = scmp.eq.s32.totalorder %s16, 0
    %p100 = por %p98, %p99
    %p101 = scmp.ne.s32.totalorder %s89, %s90
    %p102 = scmp.eq.s32.totalorder %s17, 1
    %p103 = por %p101, %p102
    %p105 = scmp.ne.s32.totalorder %s90, %s104
    %p106 = scmp.eq.s32.totalorder %s17, 0
    %p107 = por %p105, %p106
    %s109 = sadd.s32 %s108, 1
    %p112 = scmp.eq.s32.totalorder %s11, 1
    %p113 = scmp.ne.s32.totalorder %s108, %s110
    %p114 = scmp.eq.s32.totalorder %s11, 0
    %p115 = por %p113, %p114
    %p116 = scmp.ne.s32.totalorder %s108, %s110
    %p117 = scmp.eq.s32.totalorder %s16, 1
    %p118 = por %p116, %p117
    %p119 = scmp.ne.s32.totalorder %s110, %s111
    %p120 = scmp.eq.s32.totalorder %s16, 0
    %p121 = por %p119, %p120
    %p122 = scmp.ne.s32.totalorder %s110, %s111
    %p123 = scmp.eq.s32.totalorder %s17, 1
    %p124 = por %p122, %p123
    %p126 = scmp.ne.s32.totalorder %s111, %s125
    %p127 = scmp.eq.s32.totalorder %s17, 0
    %p128 = por %p126, %p127
    %s129 = ssub.s32 %s11, %s18
    %p130 = scmp.eq.s32.totalorder %s129, 0
    %s132 = sadd.s32 %s131, 1
    %s133 = scalar_select %p130, %s131, %s132
    %p136 = pneg %p130
    %p137 = scmp.eq.s32.totalorder %s11, 1
    %p138 = por %p136, %p137
    %p139 = scmp.ne.s32.totalorder %s131, %s134
    %p140 = scmp.eq.s32.totalorder %s11, 0
    %p141 = por %p139, %p140
    %p142 = scmp.ne.s32.totalorder %s131, %s134
    %p143 = scmp.eq.s32.totalorder %s16, 1
    %p144 = por %p142, %p143
    %p145 = scmp.ne.s32.totalorder %s134, %s135
    %p146 = scmp.eq.s32.totalorder %s16, 0
    %p147 = por %p145, %p146
    %p148 = scmp.ne.s32.totalorder %s134, %s135
    %p149 = scmp.eq.s32.totalorder %s17, 1
    %p150 = por %p148, %p149
    %p152 = scmp.ne.s32.totalorder %s135, %s151
    %p153 = scmp.eq.s32.totalorder %s17, 0
    %p154 = por %p152, %p153
    %p155 = scmp.le.s32.totalorder 1, %s11
    %p156 = scmp.lt.s32.totalorder %s11, 3
    %p157 = pnand %p155, %p156
    %p158 = pneg %p157
    // Predicated region
    $region9: #{_lambda_.15} parent=5 // pred_check
      _
    $region10: #{_lambda_.15} parent=5 // pred_check_branch
      %160 = sbr.rel (%p157) target = $region12
    $region11: #{_lambda_.15} parent=5 // pred_region
      %s161 = ssub.s32 %s11, 1
      // Predicated region
      $region13: #{_lambda_.15} parent=11 // pred_check
        %p162 = pneg %p58
      $region14: #{_lambda_.15} parent=11 // pred_check_branch
        %164 = sbr.rel (%p162) target = $region16
      $region15: #{_lambda_.15} parent=11 // pred_region
        _
      $region16: #{_lambda_.15} parent=11 // pred_fallthru
        _
      // Predicated region
      $region17: #{_lambda_.15} parent=11 // pred_check
        %p165 = pneg %p79
      $region18: #{_lambda_.15} parent=11 // pred_check_branch
        %167 = sbr.rel (%p165) target = $region20
      $region19: #{_lambda_.15} parent=11 // pred_region
        _
      $region20: #{_lambda_.15} parent=11 // pred_fallthru
        _
      // Predicated region
      $region21: #{_lambda_.15} parent=11 // pred_check
        %p168 = pneg %p100
      $region22: #{_lambda_.15} parent=11 // pred_check_branch
        %170 = sbr.rel (%p168) target = $region24
      $region23: #{_lambda_.15} parent=11 // pred_region
        _
      $region24: #{_lambda_.15} parent=11 // pred_fallthru
        _
      // Predicated region
      $region25: #{_lambda_.15} parent=11 // pred_check
        %p171 = pneg %p121
      $region26: #{_lambda_.15} parent=11 // pred_check_branch
        %173 = sbr.rel (%p171) target = $region28
      $region27: #{_lambda_.15} parent=11 // pred_region
        _
      $region28: #{_lambda_.15} parent=11 // pred_fallthru
        _
    $region12: #{_lambda_.15} parent=5 // pred_fallthru
      _
    %p174 = scmp.lt.s32.totalorder %s11, 2
    // Predicated region
    $region29: #{_lambda_.15} parent=5 // pred_check
      %p175 = pneg %p174
    $region30: #{_lambda_.15} parent=5 // pred_check_branch
      %177 = sbr.rel (%p175) target = $region32
    $region31: #{_lambda_.15} parent=5 // pred_region
      // Predicated region
      $region33: #{_lambda_.15} parent=31 // pred_check
        %p178 = pneg %p31
      $region34: #{_lambda_.15} parent=31 // pred_check_branch
        %180 = sbr.rel (%p178) target = $region36
      $region35: #{_lambda_.15} parent=31 // pred_region
        %s181 = smul.u32 8, %s11
        %p182 = scmp.lt.s32.totalorder %s181, 15
        %s183 = scalar_select %p182, %s181, 15
        %s184 = smul.addr %s183, 2
        %s185 = scalar_lea.vmem %s0, %s184
        %s186 = smul.u32 8, %s11
      $region36: #{_lambda_.15} parent=31 // pred_fallthru
        _
    $region32: #{_lambda_.15} parent=5 // pred_fallthru
      _
    %p187 = scmp.le.s32.totalorder 1, %s11
    %p188 = scmp.lt.s32.totalorder %s11, 3
    %p189 = pnand %p187, %p188
    %p190 = pneg %p189
    // Predicated region
    $region37: #{_lambda_.15} parent=5 // pred_check
      _
    $region38: #{_lambda_.15} parent=5 // pred_check_branch
      %192 = sbr.rel (%p189) target = $region40
    $region39: #{_lambda_.15} parent=5 // pred_region
      %s193 = ssub.s32 %s11, 1
      %s194 = smul.u32 8, %s16
      %p195 = scmp.lt.s32.totalorder %s194, 15
      %s196 = scalar_select %p195, %s194, 15
      %s197 = smul.addr %s196, 2
      %s198 = scalar_lea.vmem %s0, %s197
      %p199 = pneg %p37
      %p200 = pneg %p34
      %p201 = pneg %p58
      %p202 = pneg %p55
      %p203 = pneg %p79
      %p204 = pneg %p76
      %p205 = pneg %p100
      %p206 = pneg %p97
      %p207 = pneg %p121
      %p208 = pneg %p118
      %p209 = pneg %p147
      %p210 = pneg %p144
      %s211 = smul.u32 8, %s16
      %p212 = scmp.lt.s32.totalorder %s211, 15
      %s213 = scalar_select %p212, %s211, 15
      %s214 = smul.addr %s213, 2
      %s215 = scalar_lea.vmem %s5, %s214
      %s216 = smul.u32 8, %s16
      %p217 = scmp.lt.s32.totalorder %s216, 15
      %s218 = scalar_select %p217, %s216, 15
      %s219 = smul.addr %s218, 2
      %s220 = scalar_lea.vmem %s0, %s219
      %s221 = smul.u32 8, %s16
      %s222 = smul.u32 8, %s16
      %p223 = scmp.lt.s32.totalorder %s222, 15
      %s224 = scalar_select %p223, %s222, 15
      %s225 = smul.addr %s224, 2
      %s226 = scalar_lea.vmem %s5, %s225
      %s227 = smul.u32 8, %s16
      %v228 = vld [vmem:[%s220] sm:$0xff]
      %v229 = vld [vmem:[%s220 + $0x8] sm:$0xff]
      %v230 = vunpack.c.l.bf16 %v228
      %v231 = vunpack.c.h.bf16 %v228
      %v232 = vunpack.c.l.bf16 %v229
      %v233 = vunpack.c.h.bf16 %v229
      %238 = vst [vmem:[#allocation1] ss:$2 sm:$0xff] %v230
      %s239 = scalar_lea.vmem [#allocation1], 16
      %240 = vst [vmem:[%s239] ss:$2 sm:$0xff] %v231
      %s241 = scalar_lea.vmem [#allocation1], 32
      %242 = vst [vmem:[%s241] ss:$2 sm:$0xff] %v232
      %s243 = scalar_lea.vmem [#allocation1], 48
      %244 = vst [vmem:[%s243] ss:$2 sm:$0xff] %v233
      %v245 = vld.sshfl [vmem:[#allocation1] sm:$0xff pattern:$0x75316420]
      %v246 = vld.sshfl [vmem:[#allocation1 + $0x8] sm:$0xff pattern:$0x75316420]
      %v247 = vld.sshfl [vmem:[#allocation1 + $0x10] sm:$0xff pattern:$0x75316420]
      %v248 = vld.sshfl [vmem:[#allocation1 + $0x18] sm:$0xff pattern:$0x75316420]
      %v249 = vld.sshfl [vmem:[#allocation1 + $0x20] sm:$0xff pattern:$0x75316420]
      %v250 = vld.sshfl [vmem:[#allocation1 + $0x28] sm:$0xff pattern:$0x75316420]
      %v251 = vld.sshfl [vmem:[#allocation1 + $0x30] sm:$0xff pattern:$0x75316420]
      %v252 = vld.sshfl [vmem:[#allocation1 + $0x38] sm:$0xff pattern:$0x75316420]
      %vm261 = vcmask 1043456
      %v262 = vsel %vm261, %v245, 0.0
      %v263 = vsel %vm261, %v246, 0.0
      %v264 = vadd.f32 %v262, %v263
      %v265 = vsel %vm261, %v247, 0.0
      %v266 = vadd.f32 %v264, %v265
      %v267 = vsel %vm261, %v248, 0.0
      %v268 = vadd.f32 %v266, %v267
      %v269 = vsel %vm261, %v249, 0.0
      %v270 = vadd.f32 %v268, %v269
      %v271 = vsel %vm261, %v250, 0.0
      %v272 = vadd.f32 %v270, %v271
      %v273 = vsel %vm261, %v251, 0.0
      %v274 = vadd.f32 %v272, %v273
      %v275 = vsel %vm261, %v252, 0.0
      %v276 = vadd.f32 %v274, %v275
      %277 = vadd.xlane.f32.xlu0 %v276
      %v278 = vpop.xlane.xlu0 %277
      %v279 = vmul.f32 %v278, 0.0009765625
      %v280 = vld [vmem:[%s1] sm:$0x3]
      %v281 = vld [vmem:[%s2] sm:$0x3]
      %vm282 = vcmask 31744
      %v284 = vsel %vm282, %v280, 0
      %v287 = vsel %vm261, %v279, 0
      %289 = vmatpush.msra.mxu0 0.0
      %290 = vmatpush.msra.mxu0 0.0
      %291 = vmatpush.msra.mxu0 0.0
      %292 = vmatpush.msra.mxu0 0.0
      %293 = vmatpush.msra.mxu0 0.0
      %294 = vmatpush.msra.mxu0 0.0
      %295 = vmatpush.msra.mxu0 0.0
      %296 = vmatpush.msra.mxu0 0.0
      %297 = vmatpush.msra.mxu0 0.0
      %298 = vmatpush.msra.mxu0 0.0
      %299 = vmatpush.msra.mxu0 0.0
      %300 = vmatpush.msra.mxu0 0.0
      %301 = vmatpush.msra.mxu0 0.0
      %302 = vmatpush.msra.mxu0 0.0
      %303 = vmatpush.msra.mxu0 0.0
      %304 = vmatpush.msra.mxu0 %v287
      %305 = vmatmul.f32.gmra.mxu0 %v284
      %v306 = vpop.f32.mrf.mxu0
      %v307 = vadd.f32 %v281, %v306
      %308 = vdwg.mxu0
      %v309 = vmax.f32 %v307, 0.0
      %v310 = vld [vmem:[%s3] sm:$0xf]
      %v311 = vld [vmem:[%s4] sm:$0xf]
      %vm312 = vcmask 15360
      %v314 = vsel %vm312, %v310, 0
      %vm316 = vcmask 1041408
      %v318 = vsel %vm316, %v309, 0
      %320 = vmatpush.msra.mxu0 0.0
      %321 = vmatpush.msra.mxu0 0.0
      %322 = vmatpush.msra.mxu0 0.0
      %323 = vmatpush.msra.mxu0 0.0
      %324 = vmatpush.msra.mxu0 0.0
      %325 = vmatpush.msra.mxu0 0.0
      %326 = vmatpush.msra.mxu0 0.0
      %327 = vmatpush.msra.mxu0 0.0
      %328 = vmatpush.msra.mxu0 0.0
      %329 = vmatpush.msra.mxu0 0.0
      %330 = vmatpush.msra.mxu0 0.0
      %331 = vmatpush.msra.mxu0 0.0
      %332 = vmatpush.msra.mxu0 0.0
      %333 = vmatpush.msra.mxu0 0.0
      %334 = vmatpush.msra.mxu0 0.0
      %335 = vmatpush.msra.mxu0 %v318
      %336 = vmatmul.f32.gmra.mxu0 %v314
      %v337 = vpop.f32.mrf.mxu0
      %v338 = vadd.f32 %v311, %v337
      %339 = vdwg.mxu0
      %v340 = vxor.u32 %v338, 2147483648
      %v341 = vmul.f32 %v340, 1.442695
      %v342 = vpow.pop %v341
      %v343 = vadd.f32 %v342, 1.0
      %v344 = vrcp.pop %v343
      %v345 = vmul.f32 %v343, %v344
      %v346 = vsub.f32 1.0, %v345
      %v347 = vmul.f32 %v344, %v346
      %v348 = vadd.f32 %v344, %v347
      %vm349 = vweird.f32 %v343
      %vm350 = vweird.f32 %v344
      %vm351 = vmor %vm349, %vm350
      %v352 = vsel %vm351, %v344, %v348
      %v353 = vand.u32 2147483647, %v343
      %vm354 = vcmp.eq.f32.partialorder %v353, 8.507059e+37
      %v355 = vand.u32 %v343, 2147483648
      %v356 = vor.u32 1.1754944e-38, %v355
      %v357 = vsel %vm354, %v356, %v352
      %v358 = vmul.f32 1.0, %v357
      %360 = vset.pattern.permute.xlu0 0
      %361 = vperm.xlu0 %360, %v358
      %v362 = vpop.permute.xlu0 %361
      %v364 = vunpack.c.l.s4 839922192
      %v365 = vunpack.c.0.s8 %v364
      %v366 = vperm.slane %v362, %v365
      %v368 = vmul.f32 %v230, %v366
      %v369 = vmul.f32 %v231, %v366
      %v370 = vmul.f32 %v232, %v366
      %v371 = vmul.f32 %v233, %v366
      %376 = vst [vmem:[#allocation1] ss:$2 sm:$0xff] %v368
      %s377 = scalar_lea.vmem [#allocation1], 16
      %378 = vst [vmem:[%s377] ss:$2 sm:$0xff] %v369
      %s379 = scalar_lea.vmem [#allocation1], 32
      %380 = vst [vmem:[%s379] ss:$2 sm:$0xff] %v370
      %s381 = scalar_lea.vmem [#allocation1], 48
      %382 = vst [vmem:[%s381] ss:$2 sm:$0xff] %v371
      %v383 = vld.sshfl [vmem:[#allocation1] sm:$0xff pattern:$0x75316420]
      %v384 = vld.sshfl [vmem:[#allocation1 + $0x8] sm:$0xff pattern:$0x75316420]
      %v385 = vld.sshfl [vmem:[#allocation1 + $0x10] sm:$0xff pattern:$0x75316420]
      %v386 = vld.sshfl [vmem:[#allocation1 + $0x18] sm:$0xff pattern:$0x75316420]
      %v387 = vld.sshfl [vmem:[#allocation1 + $0x20] sm:$0xff pattern:$0x75316420]
      %v388 = vld.sshfl [vmem:[#allocation1 + $0x28] sm:$0xff pattern:$0x75316420]
      %v389 = vld.sshfl [vmem:[#allocation1 + $0x30] sm:$0xff pattern:$0x75316420]
      %v390 = vld.sshfl [vmem:[#allocation1 + $0x38] sm:$0xff pattern:$0x75316420]
      %v399 = vpack.c.bf16 %v384, %v383
      %v400 = vpack.c.bf16 %v386, %v385
      %v401 = vpack.c.bf16 %v388, %v387
      %v402 = vpack.c.bf16 %v390, %v389
      %v407 = vrot.slane %v399, 2
      %v408 = vrot.slane %v400, 4
      %v409 = vrot.slane %v400, 6
      %v410 = vrot.slane %v401, 2
      %v411 = vrot.slane %v402, 4
      %v412 = vrot.slane %v402, 6
      %v415 = vsel %vm316, %v399, %v407
      %vm416 = vcmask 1045508
      %v419 = vsel %vm416, %v408, %v409
      %v420 = vsel %vm261, %v415, %v419
      %v423 = vsel %vm316, %v401, %v410
      %v426 = vsel %vm416, %v411, %v412
      %v427 = vsel %vm261, %v423, %v426
      %430 = vst [vmem:[%s226] sm:$0xff] %v420
      %431 = vst [vmem:[%s226 + $0x8] sm:$0xff] %v427
      %s432 = smul.u32 8, %s16
      %p433 = scmp.lt.s32.totalorder %s432, 15
      %s434 = scalar_select %p433, %s432, 15
      %s435 = smul.addr %s434, 2
      %s436 = scalar_lea.vmem %s5, %s435
      // Predicated region
      $region41: #{_lambda_.15} parent=39 // pred_check
        %p437 = pneg %p144
      $region42: #{_lambda_.15} parent=39 // pred_check_branch
        %439 = sbr.rel (%p437) target = $region44
      $region43: #{_lambda_.15} parent=39 // pred_region
        %s440 = smul.u32 8, %s16
      $region44: #{_lambda_.15} parent=39 // pred_fallthru
        _
    $region40: #{_lambda_.15} parent=5 // pred_fallthru
      _
    %p441 = scmp.le.s32.totalorder 2, %s11
    // Predicated region
    $region45: #{_lambda_.15} parent=5 // pred_check
      %p442 = pneg %p441
    $region46: #{_lambda_.15} parent=5 // pred_check_branch
      %444 = sbr.rel (%p442) target = $region48
    $region47: #{_lambda_.15} parent=5 // pred_region
      %s445 = ssub.s32 %s11, 2
      // Predicated region
      $region49: #{_lambda_.15} parent=47 // pred_check
        %p446 = pneg %p150
      $region50: #{_lambda_.15} parent=47 // pred_check_branch
        %448 = sbr.rel (%p446) target = $region52
      $region51: #{_lambda_.15} parent=47 // pred_region
        %s449 = smul.u32 8, %s17
        %p450 = scmp.lt.s32.totalorder %s449, 15
        %s451 = scalar_select %p450, %s449, 15
        %s452 = smul.addr %s451, 2
        %s453 = scalar_lea.vmem %s5, %s452
      $region52: #{_lambda_.15} parent=47 // pred_fallthru
        _
    $region48: #{_lambda_.15} parent=5 // pred_fallthru
      _
  $region6: #{_lambda_.15} parent=0 // loop_footer
    %s15 = sadd.s32 1, %s11
  $region7: #{_lambda_.15} parent=0 // loop_footer_branch
    %10 = sbr.rel target = $region3
  $region8: #{_lambda_.15} parent=0 // loop_exit
    _

// kernel: _lambda_.20
$region0: #{_lambda_.20}
  #allocation0 [shape = 'u32[]', space=smem, size = 0x4, offset = 0x4, fixed_abs, tag = 'smem constant byte address 0x4 - core index']
  #allocation1 [shape = 'u32[72,128]{1,0:T(1,128)}', space=vmem, size = 0x9000, scoped, tag = 'internal scratch']
  #allocation2 [shape = 'f32[1]{0:T(128)S(6)}', space=smem, size = 0x200, scoped, tag = 'scoped memory for _lambda_.20']
  %s0 = inlined_call_operand.vmem [shape: bf16[4,36], index: 0, kind: input, shape index: {}]
  %s1 = inlined_call_operand.vmem [shape: bf16[36,2048], index: 1, kind: input, shape index: {}]
  %s2 = inlined_call_operand.vmem [shape: f32[4,1], index: 2, kind: input, shape index: {}]
  %s3 = inlined_call_operand.<no memory space> [shape: f32[1], index: 3, kind: input, shape index: {}]
  %s4 = inlined_call_operand.vmem [shape: bf16[4,2048], index: 4, kind: output, shape index: {}]
  %s5 = sld [smem:[#allocation0]]
  $region72: #{_lambda_.20} parent=0
    _
  %s7 = ssub.s32 1, %s5
  %s8 = scalar_select 0, %s7, %s5
  %9 = sst [smem:[#allocation2]] %s3
  $region1: #{_lambda_.20} parent=0
    #allocation3 [shape = 'u8[163840]{0}', space=vmem, size = 0x28000, scoped, tag = 'input window, operand 1']
    loop: start=0, step=1, limit=4
    $region2: #{_lambda_.20} parent=1 // loop_pre_header
      _
    $region3: #{_lambda_.20} parent=1 // loop_header
      %s11 = sphi 0, %s15
      %p12 = scmp.ge.s32.totalorder %s11, 4
      %s19 = sphi 0, %s19
      %s21 = sphi 0, %s19
      %s22 = sphi 0, %s21
      %s36 = sphi 0, %s22
      %s42 = sphi 0, %s44
      %s45 = sphi 0, %s42
      %s46 = sphi 0, %s45
      %s62 = sphi 0, %s46
      %s66 = sphi 0, %s66
      %s68 = sphi 0, %s66
      %s69 = sphi 0, %s68
      %s83 = sphi 0, %s69
      %s87 = sphi 0, %s87
      %s89 = sphi 0, %s87
      %s90 = sphi 0, %s89
      %s104 = sphi 0, %s90
      %s110 = sphi 0, %s112
      %s113 = sphi 0, %s110
      %s114 = sphi 0, %s113
      %s130 = sphi 0, %s114
    $region4: #{_lambda_.20} parent=1 // loop_header_branch
      %14 = sbr.rel (%p12) target = $region8
    $region5: #{_lambda_.20} parent=1 // loop_body
      %s16 = ssub.s32 %s11, 1
      %s17 = ssub.s32 %s11, 2
      %s18 = sadd.s32 %s11, 1
      %s20 = sadd.s32 %s19, 1
      %p23 = scmp.eq.s32.totalorder %s11, 1
      %p24 = scmp.ne.s32.totalorder %s19, %s21
      %p25 = scmp.eq.s32.totalorder %s11, 0
      %p26 = por %p24, %p25
      %p27 = scmp.ne.s32.totalorder %s19, %s21
      %p28 = scmp.eq.s32.totalorder %s16, 1
      %p29 = por %p27, %p28
      %p30 = scmp.ne.s32.totalorder %s21, %s22
      %p31 = scmp.eq.s32.totalorder %s16, 0
      %p32 = por %p30, %p31
      %p33 = scmp.ne.s32.totalorder %s21, %s22
      %p34 = scmp.eq.s32.totalorder %s17, 1
      %p35 = por %p33, %p34
      %p37 = scmp.ne.s32.totalorder %s22, %s36
      %p38 = scmp.eq.s32.totalorder %s17, 0
      %p39 = por %p37, %p38
      %s40 = ssub.s32 %s11, %s18
      %p41 = scmp.eq.s32.totalorder %s40, 0
      %s43 = sadd.s32 %s42, 1
      %s44 = scalar_select %p41, %s42, %s43
      %p47 = pneg %p41
      %p48 = scmp.eq.s32.totalorder %s11, 1
      %p49 = por %p47, %p48
      %p50 = scmp.ne.s32.totalorder %s42, %s45
      %p51 = scmp.eq.s32.totalorder %s11, 0
      %p52 = por %p50, %p51
      %p53 = scmp.ne.s32.totalorder %s42, %s45
      %p54 = scmp.eq.s32.totalorder %s16, 1
      %p55 = por %p53, %p54
      %p56 = scmp.ne.s32.totalorder %s45, %s46
      %p57 = scmp.eq.s32.totalorder %s16, 0
      %p58 = por %p56, %p57
      %p59 = scmp.ne.s32.totalorder %s45, %s46
      %p60 = scmp.eq.s32.totalorder %s17, 1
      %p61 = por %p59, %p60
      %p63 = scmp.ne.s32.totalorder %s46, %s62
      %p64 = scmp.eq.s32.totalorder %s17, 0
      %p65 = por %p63, %p64
      %s67 = sadd.s32 %s66, 1
      %p70 = scmp.eq.s32.totalorder %s11, 1
      %p71 = scmp.ne.s32.totalorder %s66, %s68
      %p72 = scmp.eq.s32.totalorder %s11, 0
      %p73 = por %p71, %p72
      %p74 = scmp.ne.s32.totalorder %s66, %s68
      %p75 = scmp.eq.s32.totalorder %s16, 1
      %p76 = por %p74, %p75
      %p77 = scmp.ne.s32.totalorder %s68, %s69
      %p78 = scmp.eq.s32.totalorder %s16, 0
      %p79 = por %p77, %p78
      %p80 = scmp.ne.s32.totalorder %s68, %s69
      %p81 = scmp.eq.s32.totalorder %s17, 1
      %p82 = por %p80, %p81
      %p84 = scmp.ne.s32.totalorder %s69, %s83
      %p85 = scmp.eq.s32.totalorder %s17, 0
      %p86 = por %p84, %p85
      %s88 = sadd.s32 %s87, 1
      %p91 = scmp.eq.s32.totalorder %s11, 1
      %p92 = scmp.ne.s32.totalorder %s87, %s89
      %p93 = scmp.eq.s32.totalorder %s11, 0
      %p94 = por %p92, %p93
      %p95 = scmp.ne.s32.totalorder %s87, %s89
      %p96 = scmp.eq.s32.totalorder %s16, 1
      %p97 = por %p95, %p96
      %p98 = scmp.ne.s32.totalorder %s89, %s90
      %p99 = scmp.eq.s32.totalorder %s16, 0
      %p100 = por %p98, %p99
      %p101 = scmp.ne.s32.totalorder %s89, %s90
      %p102 = scmp.eq.s32.totalorder %s17, 1
      %p103 = por %p101, %p102
      %p105 = scmp.ne.s32.totalorder %s90, %s104
      %p106 = scmp.eq.s32.totalorder %s17, 0
      %p107 = por %p105, %p106
      %s108 = ssub.s32 %s11, %s18
      %p109 = scmp.eq.s32.totalorder %s108, 0
      %s111 = sadd.s32 %s110, 1
      %s112 = scalar_select %p109, %s110, %s111
      %p115 = pneg %p109
      %p116 = scmp.eq.s32.totalorder %s11, 1
      %p117 = por %p115, %p116
      %p118 = scmp.ne.s32.totalorder %s110, %s113
      %p119 = scmp.eq.s32.totalorder %s11, 0
      %p120 = por %p118, %p119
      %p121 = scmp.ne.s32.totalorder %s110, %s113
      %p122 = scmp.eq.s32.totalorder %s16, 1
      %p123 = por %p121, %p122
      %p124 = scmp.ne.s32.totalorder %s113, %s114
      %p125 = scmp.eq.s32.totalorder %s16, 0
      %p126 = por %p124, %p125
      %p127 = scmp.ne.s32.totalorder %s113, %s114
      %p128 = scmp.eq.s32.totalorder %s17, 1
      %p129 = por %p127, %p128
      %p131 = scmp.ne.s32.totalorder %s114, %s130
      %p132 = scmp.eq.s32.totalorder %s17, 0
      %p133 = por %p131, %p132
      %p134 = scmp.le.s32.totalorder 1, %s11
      %p135 = scmp.lt.s32.totalorder %s11, 3
      %p136 = pnand %p134, %p135
      %p137 = pneg %p136
      // Predicated region
      $region9: #{_lambda_.20} parent=5 // pred_check
        _
      $region10: #{_lambda_.20} parent=5 // pred_check_branch
        %139 = sbr.rel (%p136) target = $region12
      $region11: #{_lambda_.20} parent=5 // pred_region
        %s140 = ssub.s32 %s11, 1
        // Predicated region
        $region13: #{_lambda_.20} parent=11 // pred_check
          %p141 = pneg %p32
        $region14: #{_lambda_.20} parent=11 // pred_check_branch
          %143 = sbr.rel (%p141) target = $region16
        $region15: #{_lambda_.20} parent=11 // pred_region
          _
        $region16: #{_lambda_.20} parent=11 // pred_fallthru
          _
        // Predicated region
        $region17: #{_lambda_.20} parent=11 // pred_check
          %p144 = pneg %p79
        $region18: #{_lambda_.20} parent=11 // pred_check_branch
          %146 = sbr.rel (%p144) target = $region20
        $region19: #{_lambda_.20} parent=11 // pred_region
          _
        $region20: #{_lambda_.20} parent=11 // pred_fallthru
          _
        // Predicated region
        $region21: #{_lambda_.20} parent=11 // pred_check
          %p147 = pneg %p100
        $region22: #{_lambda_.20} parent=11 // pred_check_branch
          %149 = sbr.rel (%p147) target = $region24
        $region23: #{_lambda_.20} parent=11 // pred_region
          _
        $region24: #{_lambda_.20} parent=11 // pred_fallthru
          _
      $region12: #{_lambda_.20} parent=5 // pred_fallthru
        _
      %p150 = scmp.lt.s32.totalorder %s11, 2
      // Predicated region
      $region25: #{_lambda_.20} parent=5 // pred_check
        %p151 = pneg %p150
      $region26: #{_lambda_.20} parent=5 // pred_check_branch
        %153 = sbr.rel (%p151) target = $region28
      $region27: #{_lambda_.20} parent=5 // pred_region
        // Predicated region
        $region29: #{_lambda_.20} parent=27 // pred_check
          %p154 = pneg %p52
        $region30: #{_lambda_.20} parent=27 // pred_check_branch
          %156 = sbr.rel (%p154) target = $region32
        $region31: #{_lambda_.20} parent=27 // pred_region
          %s157 = sand.u32 %s42, 1
          %s158 = sand.u32 %s42, 1
          %s159 = smul.addr %s158, 160
          %s160 = scalar_lea.vmem [#allocation3], %s159
          %s161 = smul.u32 8, %s11
          %s162 = smul.addr %s161, 4
          %s163 = scalar_lea.vmem %s1, %s162
          // Predicated region
          $region33: #{_lambda_.20} parent=31 // pred_check
            _
          $region34: #{_lambda_.20} parent=31 // pred_check_branch
            %165 = sbr.rel (0) target = $region36
          $region35: #{_lambda_.20} parent=31 // pred_region
            // Predicated region
            $region37: #{_lambda_.20} parent=35 // pred_check
              _
            $region38: #{_lambda_.20} parent=35 // pred_check_branch
              %167 = sbr.rel (0) target = $region40
            $region39: #{_lambda_.20} parent=35 // pred_region
              loop: start=0, step=1, limit=1
              $region41: #{_lambda_.20} parent=39 // loop_pre_header
                _
              $region42: #{_lambda_.20} parent=39 // loop_header
                %s169 = sphi 0, %s173
                %p170 = scmp.ge.s32.totalorder %s169, 1
                %s174 = sphi %s163, %s163
                %s175 = sphi %s160, %s160
              $region43: #{_lambda_.20} parent=39 // loop_header_branch
                %172 = sbr.rel (%p170) target = $region47
              $region44: #{_lambda_.20} parent=39 // loop_body
                %v176 = vld [vmem:[%s174] sm:$0xff]
                %177 = vst [vmem:[%s175] sm:$0xff] %v176
                %v178 = vld [vmem:[%s174 + $0x8] sm:$0xff]
                %179 = vst [vmem:[%s175 + $0x8] sm:$0xff] %v178
                %v180 = vld [vmem:[%s174 + $0x10] sm:$0xff]
                %181 = vst [vmem:[%s175 + $0x10] sm:$0xff] %v180
                %v182 = vld [vmem:[%s174 + $0x18] sm:$0xff]
                %183 = vst [vmem:[%s175 + $0x18] sm:$0xff] %v182
                %v184 = vld [vmem:[%s174 + $0x40] sm:$0xff]
                %185 = vst [vmem:[%s175 + $0x20] sm:$0xff] %v184
                %v186 = vld [vmem:[%s174 + $0x48] sm:$0xff]
                %187 = vst [vmem:[%s175 + $0x28] sm:$0xff] %v186
                %v188 = vld [vmem:[%s174 + $0x50] sm:$0xff]
                %189 = vst [vmem:[%s175 + $0x30] sm:$0xff] %v188
                %v190 = vld [vmem:[%s174 + $0x58] sm:$0xff]
                %191 = vst [vmem:[%s175 + $0x38] sm:$0xff] %v190
                %v192 = vld [vmem:[%s174 + $0x80] sm:$0xff]
                %193 = vst [vmem:[%s175 + $0x40] sm:$0xff] %v192
                %v194 = vld [vmem:[%s174 + $0x88] sm:$0xff]
                %195 = vst [vmem:[%s175 + $0x48] sm:$0xff] %v194
                %v196 = vld [vmem:[%s174 + $0x90] sm:$0xff]
                %197 = vst [vmem:[%s175 + $0x50] sm:$0xff] %v196
                %v198 = vld [vmem:[%s174 + $0x98] sm:$0xff]
                %199 = vst [vmem:[%s175 + $0x58] sm:$0xff] %v198
                %v200 = vld [vmem:[%s174 + $0xc0] sm:$0xff]
                %201 = vst [vmem:[%s175 + $0x60] sm:$0xff] %v200
                %v202 = vld [vmem:[%s174 + $0xc8] sm:$0xff]
                %203 = vst [vmem:[%s175 + $0x68] sm:$0xff] %v202
                %v204 = vld [vmem:[%s174 + $0xd0] sm:$0xff]
                %205 = vst [vmem:[%s175 + $0x70] sm:$0xff] %v204
                %v206 = vld [vmem:[%s174 + $0xd8] sm:$0xff]
                %207 = vst [vmem:[%s175 + $0x78] sm:$0xff] %v206
                %v208 = vld [vmem:[%s174 + $0x100] sm:$0xff]
                %209 = vst [vmem:[%s175 + $0x80] sm:$0xff] %v208
                %v210 = vld [vmem:[%s174 + $0x108] sm:$0xff]
                %211 = vst [vmem:[%s175 + $0x88] sm:$0xff] %v210
                %v212 = vld [vmem:[%s174 + $0x110] sm:$0xff]
                %213 = vst [vmem:[%s175 + $0x90] sm:$0xff] %v212
                %v214 = vld [vmem:[%s174 + $0x118] sm:$0xff]
                %215 = vst [vmem:[%s175 + $0x98] sm:$0xff] %v214
              $region45: #{_lambda_.20} parent=39 // loop_footer
                %s173 = sadd.s32 1, %s169
              $region46: #{_lambda_.20} parent=39 // loop_footer_branch
                %168 = sbr.rel target = $region42
              $region47: #{_lambda_.20} parent=39 // loop_exit
                _
            $region40: #{_lambda_.20} parent=35 // pred_fallthru
              _
            // Predicated region
            $region48: #{_lambda_.20} parent=35 // pred_check
              _
            $region49: #{_lambda_.20} parent=35 // pred_check_branch
              %217 = sbr.rel target = $region51
            $region50: #{_lambda_.20} parent=35 // pred_region
              _
            $region51: #{_lambda_.20} parent=35 // pred_fallthru
              _
          $region36: #{_lambda_.20} parent=31 // pred_fallthru
            _
          %218 = vnop
        $region32: #{_lambda_.20} parent=27 // pred_fallthru
          _
      $region28: #{_lambda_.20} parent=5 // pred_fallthru
        _
      %p219 = scmp.le.s32.totalorder 1, %s11
      %p220 = scmp.lt.s32.totalorder %s11, 3
      %p221 = pnand %p219, %p220
      %p222 = pneg %p221
      // Predicated region
      $region52: #{_lambda_.20} parent=5 // pred_check
        _
      $region53: #{_lambda_.20} parent=5 // pred_check_branch
        %224 = sbr.rel (%p221) target = $region55
      $region54: #{_lambda_.20} parent=5 // pred_region
        %s225 = ssub.s32 %s11, 1
        %s226 = sand.u32 %s45, 1
        %s227 = sand.u32 %s45, 1
        %s228 = smul.addr %s227, 160
        %s229 = scalar_lea.vmem [#allocation3], %s228
        // Predicated region
        $region56: #{_lambda_.20} parent=54 // pred_check
          %p230 = pneg %p58
        $region57: #{_lambda_.20} parent=54 // pred_check_branch
          %232 = sbr.rel (%p230) target = $region59
        $region58: #{_lambda_.20} parent=54 // pred_region
          _
        $region59: #{_lambda_.20} parent=54 // pred_fallthru
          _
        %p233 = pneg %p32
        %p234 = pneg %p29
        %s235 = sand.u32 %s45, 1
        %s236 = sand.u32 %s45, 1
        %s237 = smul.addr %s236, 160
        %s238 = scalar_lea.vmem [#allocation3], %s237
        %p239 = pneg %p58
        %p240 = pneg %p55
        %p241 = pneg %p79
        %p242 = pneg %p76
        %p243 = pneg %p100
        %p244 = pneg %p97
        %p245 = pneg %p126
        %p246 = pneg %p123
        %s247 = smul.u32 8, %s16
        %p248 = scmp.lt.s32.totalorder %s247, 15
        %s249 = scalar_select %p248, %s247, 15
        %s250 = smul.addr %s249, 2
        %s251 = scalar_lea.vmem %s4, %s250
        %s252 = smul.u32 8, %s16
        %s253 = smul.u32 8, %s16
        %p254 = scmp.lt.s32.totalorder %s253, 15
        %s255 = scalar_select %p254, %s253, 15
        %s256 = smul.addr %s255, 2
        %s257 = scalar_lea.vmem %s4, %s256
        %s258 = smul.u32 8, %s16
        %v260 = vld [vmem:[%s0] sm:$0x3]
        %v261 = vld [vmem:[%s229] sm:$0xff]
        %v262 = vld [vmem:[%s229 + $0x8] sm:$0xff]
        %v263 = vld [vmem:[%s229 + $0x10] sm:$0xff]
        %v264 = vld [vmem:[%s229 + $0x18] sm:$0xff]
        %v265 = vld [vmem:[%s229 + $0x20] sm:$0xff]
        %v266 = vld [vmem:[%s229 + $0x28] sm:$0xff]
        %v267 = vld [vmem:[%s229 + $0x30] sm:$0xff]
        %v268 = vld [vmem:[%s229 + $0x38] sm:$0xff]
        %v269 = vld [vmem:[%s229 + $0x40] sm:$0xff]
        %v270 = vld [vmem:[%s229 + $0x48] sm:$0xff]
        %v271 = vld [vmem:[%s229 + $0x50] sm:$0xff]
        %v272 = vld [vmem:[%s229 + $0x58] sm:$0xff]
        %v273 = vld [vmem:[%s229 + $0x60] sm:$0xff]
        %v274 = vld [vmem:[%s229 + $0x68] sm:$0xff]
        %v275 = vld [vmem:[%s229 + $0x70] sm:$0xff]
        %v276 = vld [vmem:[%s229 + $0x78] sm:$0xff]
        %v277 = vld [vmem:[%s229 + $0x80] sm:$0x33]
        %v278 = vld [vmem:[%s229 + $0x88] sm:$0x33]
        %v279 = vld [vmem:[%s229 + $0x90] sm:$0x33]
        %v280 = vld [vmem:[%s229 + $0x98] sm:$0x33]
        %v281 = vld [vmem:[%s2] sm:$0xf]
        %283 = vset.pattern.permute.xlu0 0
        %284 = vperm.xlu0 %283, %v281
        %v285 = vpop.permute.xlu0 %284
        %v307 = vunpack.c.l.b16 %v261
        %v308 = vunpack.c.h.b16 %v261
        %v309 = vunpack.c.l.b16 %v262
        %v310 = vunpack.c.h.b16 %v262
        %v311 = vunpack.c.l.b16 %v263
        %v312 = vunpack.c.h.b16 %v263
        %v313 = vunpack.c.l.b16 %v264
        %v314 = vunpack.c.h.b16 %v264
        %v315 = vunpack.c.l.b16 %v265
        %v316 = vunpack.c.h.b16 %v265
        %v317 = vunpack.c.l.b16 %v266
        %v318 = vunpack.c.h.b16 %v266
        %v319 = vunpack.c.l.b16 %v267
        %v320 = vunpack.c.h.b16 %v267
        %v321 = vunpack.c.l.b16 %v268
        %v322 = vunpack.c.h.b16 %v268
        %v323 = vunpack.c.l.b16 %v269
        %v324 = vunpack.c.h.b16 %v269
        %v325 = vunpack.c.l.b16 %v270
        %v326 = vunpack.c.h.b16 %v270
        %v327 = vunpack.c.l.b16 %v271
        %v328 = vunpack.c.h.b16 %v271
        %v329 = vunpack.c.l.b16 %v272
        %v330 = vunpack.c.h.b16 %v272
        %v331 = vunpack.c.l.b16 %v273
        %v332 = vunpack.c.h.b16 %v273
        %v333 = vunpack.c.l.b16 %v274
        %v334 = vunpack.c.h.b16 %v274
        %v335 = vunpack.c.l.b16 %v275
        %v336 = vunpack.c.h.b16 %v275
        %v337 = vunpack.c.l.b16 %v276
        %v338 = vunpack.c.h.b16 %v276
        %v339 = vunpack.c.l.b16 %v277
        %v340 = vunpack.c.h.b16 %v277
        %v341 = vunpack.c.l.b16 %v278
        %v342 = vunpack.c.h.b16 %v278
        %v343 = vunpack.c.l.b16 %v279
        %v344 = vunpack.c.h.b16 %v279
        %v345 = vunpack.c.l.b16 %v280
        %v346 = vunpack.c.h.b16 %v280
        %v347 = vpack.c.b16 %v315, %v307
        %v348 = vpack.c.b16 %v316, %v308
        %v349 = vpack.c.b16 %v317, %v309
        %v350 = vpack.c.b16 %v318, %v310
        %v351 = vpack.c.b16 %v319, %v311
        %v352 = vpack.c.b16 %v320, %v312
        %v353 = vpack.c.b16 %v321, %v313
        %v354 = vpack.c.b16 %v322, %v314
        %v355 = vpack.c.b16 %v331, %v323
        %v356 = vpack.c.b16 %v332, %v324
        %v357 = vpack.c.b16 %v333, %v325
        %v358 = vpack.c.b16 %v334, %v326
        %v359 = vpack.c.b16 %v335, %v327
        %v360 = vpack.c.b16 %v336, %v328
        %v361 = vpack.c.b16 %v337, %v329
        %v362 = vpack.c.b16 %v338, %v330
        %v363 = vpack.c.b16 %v339, %v339
        %v364 = vpack.c.b16 %v340, %v340
        %v365 = vpack.c.b16 %v341, %v341
        %v366 = vpack.c.b16 %v342, %v342
        %v367 = vpack.c.b16 %v343, %v343
        %v368 = vpack.c.b16 %v344, %v344
        %v369 = vpack.c.b16 %v345, %v345
        %v370 = vpack.c.b16 %v346, %v346
        %vm387 = vcmask 293888
        %v389 = vsel %vm387, %v260, 0
        %vm391 = vcmask 1041408
        %v393 = vsel %vm391, %v363, 0
        %v396 = vsel %vm391, %v364, 0
        %v399 = vsel %vm391, %v365, 0
        %v402 = vsel %vm391, %v366, 0
        %v405 = vsel %vm391, %v367, 0
        %v408 = vsel %vm391, %v368, 0
        %v411 = vsel %vm391, %v369, 0
        %v414 = vsel %vm391, %v370, 0
        %416 = vmatpush.bf16.msra.mxu0 0
        %417 = vmatpush.bf16.msra.mxu0 0
        %418 = vmatpush.bf16.msra.mxu0 0
        %419 = vmatpush.bf16.msra.mxu0 0
        %420 = vmatpush.bf16.msra.mxu0 0
        %421 = vmatpush.bf16.msra.mxu0 %v393
        %422 = vmatpush.bf16.msra.mxu0 %v355
        %423 = vmatpush.bf16.msra.mxu0 %v347
        %424 = vmatmul.bf16.gmra.mxu0 %v389
        %v425 = vpop.f32.mrf.mxu0
        %v426 = vadd.f32 %v285, %v425
        %v427 = vpop.f32.mrf.mxu0
        %428 = vdwg.mxu0
        %429 = vmatpush.bf16.msra.mxu0 0
        %430 = vmatpush.bf16.msra.mxu0 0
        %431 = vmatpush.bf16.msra.mxu0 0
        %432 = vmatpush.bf16.msra.mxu0 0
        %433 = vmatpush.bf16.msra.mxu0 0
        %434 = vmatpush.bf16.msra.mxu0 %v396
        %435 = vmatpush.bf16.msra.mxu0 %v356
        %436 = vmatpush.bf16.msra.mxu0 %v348
        %437 = vmatmul.bf16.gmra.mxu0 %v389
        %v438 = vpop.f32.mrf.mxu0
        %v439 = vadd.f32 %v285, %v438
        %v440 = vpop.f32.mrf.mxu0
        %441 = vdwg.mxu0
        %442 = vmatpush.bf16.msra.mxu0 0
        %443 = vmatpush.bf16.msra.mxu0 0
        %444 = vmatpush.bf16.msra.mxu0 0
        %445 = vmatpush.bf16.msra.mxu0 0
        %446 = vmatpush.bf16.msra.mxu0 0
        %447 = vmatpush.bf16.msra.mxu0 %v399
        %448 = vmatpush.bf16.msra.mxu0 %v357
        %449 = vmatpush.bf16.msra.mxu0 %v349
        %450 = vmatmul.bf16.gmra.mxu0 %v389
        %v451 = vpop.f32.mrf.mxu0
        %v452 = vadd.f32 %v285, %v451
        %v453 = vpop.f32.mrf.mxu0
        %454 = vdwg.mxu0
        %455 = vmatpush.bf16.msra.mxu0 0
        %456 = vmatpush.bf16.msra.mxu0 0
        %457 = vmatpush.bf16.msra.mxu0 0
        %458 = vmatpush.bf16.msra.mxu0 0
        %459 = vmatpush.bf16.msra.mxu0 0
        %460 = vmatpush.bf16.msra.mxu0 %v402
        %461 = vmatpush.bf16.msra.mxu0 %v358
        %462 = vmatpush.bf16.msra.mxu0 %v350
        %463 = vmatmul.bf16.gmra.mxu0 %v389
        %v464 = vpop.f32.mrf.mxu0
        %v465 = vadd.f32 %v285, %v464
        %v466 = vpop.f32.mrf.mxu0
        %467 = vdwg.mxu0
        %468 = vmatpush.bf16.msra.mxu0 0
        %469 = vmatpush.bf16.msra.mxu0 0
        %470 = vmatpush.bf16.msra.mxu0 0
        %471 = vmatpush.bf16.msra.mxu0 0
        %472 = vmatpush.bf16.msra.mxu0 0
        %473 = vmatpush.bf16.msra.mxu0 %v405
        %474 = vmatpush.bf16.msra.mxu0 %v359
        %475 = vmatpush.bf16.msra.mxu0 %v351
        %476 = vmatmul.bf16.gmra.mxu0 %v389
        %v477 = vpop.f32.mrf.mxu0
        %v478 = vadd.f32 %v285, %v477
        %v479 = vpop.f32.mrf.mxu0
        %480 = vdwg.mxu0
        %481 = vmatpush.bf16.msra.mxu0 0
        %482 = vmatpush.bf16.msra.mxu0 0
        %483 = vmatpush.bf16.msra.mxu0 0
        %484 = vmatpush.bf16.msra.mxu0 0
        %485 = vmatpush.bf16.msra.mxu0 0
        %486 = vmatpush.bf16.msra.mxu0 %v408
        %487 = vmatpush.bf16.msra.mxu0 %v360
        %488 = vmatpush.bf16.msra.mxu0 %v352
        %489 = vmatmul.bf16.gmra.mxu0 %v389
        %v490 = vpop.f32.mrf.mxu0
        %v491 = vadd.f32 %v285, %v490
        %v492 = vpop.f32.mrf.mxu0
        %493 = vdwg.mxu0
        %494 = vmatpush.bf16.msra.mxu0 0
        %495 = vmatpush.bf16.msra.mxu0 0
        %496 = vmatpush.bf16.msra.mxu0 0
        %497 = vmatpush.bf16.msra.mxu0 0
        %498 = vmatpush.bf16.msra.mxu0 0
        %499 = vmatpush.bf16.msra.mxu0 %v411
        %500 = vmatpush.bf16.msra.mxu0 %v361
        %501 = vmatpush.bf16.msra.mxu0 %v353
        %502 = vmatmul.bf16.gmra.mxu0 %v389
        %v503 = vpop.f32.mrf.mxu0
        %v504 = vadd.f32 %v285, %v503
        %v505 = vpop.f32.mrf.mxu0
        %506 = vdwg.mxu0
        %507 = vmatpush.bf16.msra.mxu0 0
        %508 = vmatpush.bf16.msra.mxu0 0
        %509 = vmatpush.bf16.msra.mxu0 0
        %510 = vmatpush.bf16.msra.mxu0 0
        %511 = vmatpush.bf16.msra.mxu0 0
        %512 = vmatpush.bf16.msra.mxu0 %v414
        %513 = vmatpush.bf16.msra.mxu0 %v362
        %514 = vmatpush.bf16.msra.mxu0 %v354
        %515 = vmatmul.bf16.gmra.mxu0 %v389
        %v516 = vpop.f32.mrf.mxu0
        %v517 = vadd.f32 %v285, %v516
        %v518 = vpop.f32.mrf.mxu0
        %519 = vdwg.mxu0
        %s520 = sld [smem:[#allocation2]]
        %vm521 = vcmp.ge.f32.partialorder %v426, 0.0
        %vm522 = vcmp.ge.f32.partialorder %v439, 0.0
        %vm523 = vcmp.ge.f32.partialorder %v452, 0.0
        %vm524 = vcmp.ge.f32.partialorder %v465, 0.0
        %vm525 = vcmp.ge.f32.partialorder %v478, 0.0
        %vm526 = vcmp.ge.f32.partialorder %v491, 0.0
        %vm527 = vcmp.ge.f32.partialorder %v504, 0.0
        %vm528 = vcmp.ge.f32.partialorder %v517, 0.0
        %v529 = vstv %s520
        %v530 = vmul.f32 %v529, %v426
        %v531 = vmul.f32 %v529, %v439
        %v532 = vmul.f32 %v529, %v452
        %v533 = vmul.f32 %v529, %v465
        %v534 = vmul.f32 %v529, %v478
        %v535 = vmul.f32 %v529, %v491
        %v536 = vmul.f32 %v529, %v504
        %v537 = vmul.f32 %v529, %v517
        %v538 = vsel %vm521, %v426, %v530
        %v539 = vsel %vm522, %v439, %v531
        %v540 = vsel %vm523, %v452, %v532
        %v541 = vsel %vm524, %v465, %v533
        %v542 = vsel %vm525, %v478, %v534
        %v543 = vsel %vm526, %v491, %v535
        %v544 = vsel %vm527, %v504, %v536
        %v545 = vsel %vm528, %v517, %v537
        %v546 = vpack.c.bf16 %v539, %v538
        %v547 = vpack.c.bf16 %v541, %v540
        %v548 = vpack.c.bf16 %v543, %v542
        %v549 = vpack.c.bf16 %v545, %v544
        %v554 = vrot.slane %v546, 2
        %v555 = vrot.slane %v547, 4
        %v556 = vrot.slane %v547, 6
        %v557 = vrot.slane %v548, 2
        %v558 = vrot.slane %v549, 4
        %v559 = vrot.slane %v549, 6
        %v562 = vsel %vm391, %v546, %v554
        %vm563 = vcmask 1045508
        %v566 = vsel %vm563, %v555, %v556
        %vm567 = vcmask 1043456
        %v568 = vsel %vm567, %v562, %v566
        %v571 = vsel %vm391, %v548, %v557
        %v574 = vsel %vm563, %v558, %v559
        %v575 = vsel %vm567, %v571, %v574
        %578 = vst [vmem:[%s257] sm:$0xff] %v568
        %579 = vst [vmem:[%s257 + $0x8] sm:$0xff] %v575
        %s580 = smul.u32 8, %s16
        %p581 = scmp.lt.s32.totalorder %s580, 15
        %s582 = scalar_select %p581, %s580, 15
        %s583 = smul.addr %s582, 2
        %s584 = scalar_lea.vmem %s4, %s583
        // Predicated region
        $region60: #{_lambda_.20} parent=54 // pred_check
          %p585 = pneg %p123
        $region61: #{_lambda_.20} parent=54 // pred_check_branch
          %587 = sbr.rel (%p585) target = $region63
        $region62: #{_lambda_.20} parent=54 // pred_region
          %s588 = smul.u32 8, %s16
        $region63: #{_lambda_.20} parent=54 // pred_fallthru
          _
      $region55: #{_lambda_.20} parent=5 // pred_fallthru
        _
      %p589 = scmp.le.s32.totalorder 2, %s11
      // Predicated region
      $region64: #{_lambda_.20} parent=5 // pred_check
        %p590 = pneg %p589
      $region65: #{_lambda_.20} parent=5 // pred_check_branch
        %592 = sbr.rel (%p590) target = $region67
      $region66: #{_lambda_.20} parent=5 // pred_region
        %s593 = ssub.s32 %s11, 2
        // Predicated region
        $region68: #{_lambda_.20} parent=66 // pred_check
          %p594 = pneg %p129
        $region69: #{_lambda_.20} parent=66 // pred_check_branch
          %596 = sbr.rel (%p594) target = $region71
        $region70: #{_lambda_.20} parent=66 // pred_region
          %s597 = smul.u32 8, %s17
          %p598 = scmp.lt.s32.totalorder %s597, 15
          %s599 = scalar_select %p598, %s597, 15
          %s600 = smul.addr %s599, 2
          %s601 = scalar_lea.vmem %s4, %s600
        $region71: #{_lambda_.20} parent=66 // pred_fallthru
          _
      $region67: #{_lambda_.20} parent=5 // pred_fallthru
        _
    $region6: #{_lambda_.20} parent=1 // loop_footer
      %s15 = sadd.s32 1, %s11
    $region7: #{_lambda_.20} parent=1 // loop_footer_branch
      %10 = sbr.rel target = $region3
    $region8: #{_lambda_.20} parent=1 // loop_exit
      _

// kernel: _lambda_.21
$region0: #{_lambda_.21}
  #allocation0 [shape = 'u32[]', space=smem, size = 0x4, offset = 0x4, fixed_abs, tag = 'smem constant byte address 0x4 - core index']
  #allocation1 [shape = 'u32[72,128]{1,0:T(1,128)}', space=vmem, size = 0x9000, scoped, tag = 'internal scratch']
  #allocation2 [shape = 'f32[1]{0:T(128)S(6)}', space=smem, size = 0x200, scoped, tag = 'scoped memory for _lambda_.21']
  %s0 = inlined_call_operand.vmem [shape: bf16[4,36], index: 0, kind: input, shape index: {}]
  %s1 = inlined_call_operand.vmem [shape: bf16[36,2048], index: 1, kind: input, shape index: {}]
  %s2 = inlined_call_operand.vmem [shape: f32[4,1], index: 2, kind: input, shape index: {}]
  %s3 = inlined_call_operand.<no memory space> [shape: f32[1], index: 3, kind: input, shape index: {}]
  %s4 = inlined_call_operand.vmem [shape: bf16[4,2048], index: 4, kind: input, shape index: {}]
  %s5 = inlined_call_operand.vmem [shape: bf16[4,2048], index: 5, kind: output, shape index: {}]
  %s6 = sld [smem:[#allocation0]]
  $region76: #{_lambda_.21} parent=0
    _
  %s8 = ssub.s32 1, %s6
  %s9 = scalar_select 0, %s8, %s6
  %10 = sst [smem:[#allocation2]] %s3
  $region1: #{_lambda_.21} parent=0
    #allocation3 [shape = 'u8[163840]{0}', space=vmem, size = 0x28000, scoped, tag = 'input window, operand 1']
    loop: start=0, step=1, limit=4
    $region2: #{_lambda_.21} parent=1 // loop_pre_header
      _
    $region3: #{_lambda_.21} parent=1 // loop_header
      %s12 = sphi 0, %s16
      %p13 = scmp.ge.s32.totalorder %s12, 4
      %s20 = sphi 0, %s20
      %s22 = sphi 0, %s20
      %s23 = sphi 0, %s22
      %s37 = sphi 0, %s23
      %s43 = sphi 0, %s45
      %s46 = sphi 0, %s43
      %s47 = sphi 0, %s46
      %s63 = sphi 0, %s47
      %s67 = sphi 0, %s67
      %s69 = sphi 0, %s67
      %s70 = sphi 0, %s69
      %s84 = sphi 0, %s70
      %s88 = sphi 0, %s88
      %s90 = sphi 0, %s88
      %s91 = sphi 0, %s90
      %s105 = sphi 0, %s91
      %s111 = sphi 0, %s113
      %s114 = sphi 0, %s111
      %s115 = sphi 0, %s114
      %s131 = sphi 0, %s115
      %s137 = sphi 0, %s139
      %s140 = sphi 0, %s137
      %s141 = sphi 0, %s140
      %s157 = sphi 0, %s141
    $region4: #{_lambda_.21} parent=1 // loop_header_branch
      %15 = sbr.rel (%p13) target = $region8
    $region5: #{_lambda_.21} parent=1 // loop_body
      %s17 = ssub.s32 %s12, 1
      %s18 = ssub.s32 %s12, 2
      %s19 = sadd.s32 %s12, 1
      %s21 = sadd.s32 %s20, 1
      %p24 = scmp.eq.s32.totalorder %s12, 1
      %p25 = scmp.ne.s32.totalorder %s20, %s22
      %p26 = scmp.eq.s32.totalorder %s12, 0
      %p27 = por %p25, %p26
      %p28 = scmp.ne.s32.totalorder %s20, %s22
      %p29 = scmp.eq.s32.totalorder %s17, 1
      %p30 = por %p28, %p29
      %p31 = scmp.ne.s32.totalorder %s22, %s23
      %p32 = scmp.eq.s32.totalorder %s17, 0
      %p33 = por %p31, %p32
      %p34 = scmp.ne.s32.totalorder %s22, %s23
      %p35 = scmp.eq.s32.totalorder %s18, 1
      %p36 = por %p34, %p35
      %p38 = scmp.ne.s32.totalorder %s23, %s37
      %p39 = scmp.eq.s32.totalorder %s18, 0
      %p40 = por %p38, %p39
      %s41 = ssub.s32 %s12, %s19
      %p42 = scmp.eq.s32.totalorder %s41, 0
      %s44 = sadd.s32 %s43, 1
      %s45 = scalar_select %p42, %s43, %s44
      %p48 = pneg %p42
      %p49 = scmp.eq.s32.totalorder %s12, 1
      %p50 = por %p48, %p49
      %p51 = scmp.ne.s32.totalorder %s43, %s46
      %p52 = scmp.eq.s32.totalorder %s12, 0
      %p53 = por %p51, %p52
      %p54 = scmp.ne.s32.totalorder %s43, %s46
      %p55 = scmp.eq.s32.totalorder %s17, 1
      %p56 = por %p54, %p55
      %p57 = scmp.ne.s32.totalorder %s46, %s47
      %p58 = scmp.eq.s32.totalorder %s17, 0
      %p59 = por %p57, %p58
      %p60 = scmp.ne.s32.totalorder %s46, %s47
      %p61 = scmp.eq.s32.totalorder %s18, 1
      %p62 = por %p60, %p61
      %p64 = scmp.ne.s32.totalorder %s47, %s63
      %p65 = scmp.eq.s32.totalorder %s18, 0
      %p66 = por %p64, %p65
      %s68 = sadd.s32 %s67, 1
      %p71 = scmp.eq.s32.totalorder %s12, 1
      %p72 = scmp.ne.s32.totalorder %s67, %s69
      %p73 = scmp.eq.s32.totalorder %s12, 0
      %p74 = por %p72, %p73
      %p75 = scmp.ne.s32.totalorder %s67, %s69
      %p76 = scmp.eq.s32.totalorder %s17, 1
      %p77 = por %p75, %p76
      %p78 = scmp.ne.s32.totalorder %s69, %s70
      %p79 = scmp.eq.s32.totalorder %s17, 0
      %p80 = por %p78, %p79
      %p81 = scmp.ne.s32.totalorder %s69, %s70
      %p82 = scmp.eq.s32.totalorder %s18, 1
      %p83 = por %p81, %p82
      %p85 = scmp.ne.s32.totalorder %s70, %s84
      %p86 = scmp.eq.s32.totalorder %s18, 0
      %p87 = por %p85, %p86
      %s89 = sadd.s32 %s88, 1
      %p92 = scmp.eq.s32.totalorder %s12, 1
      %p93 = scmp.ne.s32.totalorder %s88, %s90
      %p94 = scmp.eq.s32.totalorder %s12, 0
      %p95 = por %p93, %p94
      %p96 = scmp.ne.s32.totalorder %s88, %s90
      %p97 = scmp.eq.s32.totalorder %s17, 1
      %p98 = por %p96, %p97
      %p99 = scmp.ne.s32.totalorder %s90, %s91
      %p100 = scmp.eq.s32.totalorder %s17, 0
      %p101 = por %p99, %p100
      %p102 = scmp.ne.s32.totalorder %s90, %s91
      %p103 = scmp.eq.s32.totalorder %s18, 1
      %p104 = por %p102, %p103
      %p106 = scmp.ne.s32.totalorder %s91, %s105
      %p107 = scmp.eq.s32.totalorder %s18, 0
      %p108 = por %p106, %p107
      %s109 = ssub.s32 %s12, %s19
      %p110 = scmp.eq.s32.totalorder %s109, 0
      %s112 = sadd.s32 %s111, 1
      %s113 = scalar_select %p110, %s111, %s112
      %p116 = pneg %p110
      %p117 = scmp.eq.s32.totalorder %s12, 1
      %p118 = por %p116, %p117
      %p119 = scmp.ne.s32.totalorder %s111, %s114
      %p120 = scmp.eq.s32.totalorder %s12, 0
      %p121 = por %p119, %p120
      %p122 = scmp.ne.s32.totalorder %s111, %s114
      %p123 = scmp.eq.s32.totalorder %s17, 1
      %p124 = por %p122, %p123
      %p125 = scmp.ne.s32.totalorder %s114, %s115
      %p126 = scmp.eq.s32.totalorder %s17, 0
      %p127 = por %p125, %p126
      %p128 = scmp.ne.s32.totalorder %s114, %s115
      %p129 = scmp.eq.s32.totalorder %s18, 1
      %p130 = por %p128, %p129
      %p132 = scmp.ne.s32.totalorder %s115, %s131
      %p133 = scmp.eq.s32.totalorder %s18, 0
      %p134 = por %p132, %p133
      %s135 = ssub.s32 %s12, %s19
      %p136 = scmp.eq.s32.totalorder %s135, 0
      %s138 = sadd.s32 %s137, 1
      %s139 = scalar_select %p136, %s137, %s138
      %p142 = pneg %p136
      %p143 = scmp.eq.s32.totalorder %s12, 1
      %p144 = por %p142, %p143
      %p145 = scmp.ne.s32.totalorder %s137, %s140
      %p146 = scmp.eq.s32.totalorder %s12, 0
      %p147 = por %p145, %p146
      %p148 = scmp.ne.s32.totalorder %s137, %s140
      %p149 = scmp.eq.s32.totalorder %s17, 1
      %p150 = por %p148, %p149
      %p151 = scmp.ne.s32.totalorder %s140, %s141
      %p152 = scmp.eq.s32.totalorder %s17, 0
      %p153 = por %p151, %p152
      %p154 = scmp.ne.s32.totalorder %s140, %s141
      %p155 = scmp.eq.s32.totalorder %s18, 1
      %p156 = por %p154, %p155
      %p158 = scmp.ne.s32.totalorder %s141, %s157
      %p159 = scmp.eq.s32.totalorder %s18, 0
      %p160 = por %p158, %p159
      %p161 = scmp.le.s32.totalorder 1, %s12
      %p162 = scmp.lt.s32.totalorder %s12, 3
      %p163 = pnand %p161, %p162
      %p164 = pneg %p163
      // Predicated region
      $region9: #{_lambda_.21} parent=5 // pred_check
        _
      $region10: #{_lambda_.21} parent=5 // pred_check_branch
        %166 = sbr.rel (%p163) target = $region12
      $region11: #{_lambda_.21} parent=5 // pred_region
        %s167 = ssub.s32 %s12, 1
        // Predicated region
        $region13: #{_lambda_.21} parent=11 // pred_check
          %p168 = pneg %p33
        $region14: #{_lambda_.21} parent=11 // pred_check_branch
          %170 = sbr.rel (%p168) target = $region16
        $region15: #{_lambda_.21} parent=11 // pred_region
          _
        $region16: #{_lambda_.21} parent=11 // pred_fallthru
          _
        // Predicated region
        $region17: #{_lambda_.21} parent=11 // pred_check
          %p171 = pneg %p80
        $region18: #{_lambda_.21} parent=11 // pred_check_branch
          %173 = sbr.rel (%p171) target = $region20
        $region19: #{_lambda_.21} parent=11 // pred_region
          _
        $region20: #{_lambda_.21} parent=11 // pred_fallthru
          _
        // Predicated region
        $region21: #{_lambda_.21} parent=11 // pred_check
          %p174 = pneg %p101
        $region22: #{_lambda_.21} parent=11 // pred_check_branch
          %176 = sbr.rel (%p174) target = $region24
        $region23: #{_lambda_.21} parent=11 // pred_region
          _
        $region24: #{_lambda_.21} parent=11 // pred_fallthru
          _
      $region12: #{_lambda_.21} parent=5 // pred_fallthru
        _
      %p177 = scmp.lt.s32.totalorder %s12, 2
      // Predicated region
      $region25: #{_lambda_.21} parent=5 // pred_check
        %p178 = pneg %p177
      $region26: #{_lambda_.21} parent=5 // pred_check_branch
        %180 = sbr.rel (%p178) target = $region28
      $region27: #{_lambda_.21} parent=5 // pred_region
        // Predicated region
        $region29: #{_lambda_.21} parent=27 // pred_check
          %p181 = pneg %p53
        $region30: #{_lambda_.21} parent=27 // pred_check_branch
          %183 = sbr.rel (%p181) target = $region32
        $region31: #{_lambda_.21} parent=27 // pred_region
          %s184 = sand.u32 %s43, 1
          %s185 = sand.u32 %s43, 1
          %s186 = smul.addr %s185, 160
          %s187 = scalar_lea.vmem [#allocation3], %s186
          %s188 = smul.u32 8, %s12
          %s189 = smul.addr %s188, 4
          %s190 = scalar_lea.vmem %s1, %s189
          // Predicated region
          $region33: #{_lambda_.21} parent=31 // pred_check
            _
          $region34: #{_lambda_.21} parent=31 // pred_check_branch
            %192 = sbr.rel (0) target = $region36
          $region35: #{_lambda_.21} parent=31 // pred_region
            // Predicated region
            $region37: #{_lambda_.21} parent=35 // pred_check
              _
            $region38: #{_lambda_.21} parent=35 // pred_check_branch
              %194 = sbr.rel (0) target = $region40
            $region39: #{_lambda_.21} parent=35 // pred_region
              loop: start=0, step=1, limit=1
              $region41: #{_lambda_.21} parent=39 // loop_pre_header
                _
              $region42: #{_lambda_.21} parent=39 // loop_header
                %s196 = sphi 0, %s200
                %p197 = scmp.ge.s32.totalorder %s196, 1
                %s201 = sphi %s190, %s190
                %s202 = sphi %s187, %s187
              $region43: #{_lambda_.21} parent=39 // loop_header_branch
                %199 = sbr.rel (%p197) target = $region47
              $region44: #{_lambda_.21} parent=39 // loop_body
                %v203 = vld [vmem:[%s201] sm:$0xff]
                %204 = vst [vmem:[%s202] sm:$0xff] %v203
                %v205 = vld [vmem:[%s201 + $0x8] sm:$0xff]
                %206 = vst [vmem:[%s202 + $0x8] sm:$0xff] %v205
                %v207 = vld [vmem:[%s201 + $0x10] sm:$0xff]
                %208 = vst [vmem:[%s202 + $0x10] sm:$0xff] %v207
                %v209 = vld [vmem:[%s201 + $0x18] sm:$0xff]
                %210 = vst [vmem:[%s202 + $0x18] sm:$0xff] %v209
                %v211 = vld [vmem:[%s201 + $0x40] sm:$0xff]
                %212 = vst [vmem:[%s202 + $0x20] sm:$0xff] %v211
                %v213 = vld [vmem:[%s201 + $0x48] sm:$0xff]
                %214 = vst [vmem:[%s202 + $0x28] sm:$0xff] %v213
                %v215 = vld [vmem:[%s201 + $0x50] sm:$0xff]
                %216 = vst [vmem:[%s202 + $0x30] sm:$0xff] %v215
                %v217 = vld [vmem:[%s201 + $0x58] sm:$0xff]
                %218 = vst [vmem:[%s202 + $0x38] sm:$0xff] %v217
                %v219 = vld [vmem:[%s201 + $0x80] sm:$0xff]
                %220 = vst [vmem:[%s202 + $0x40] sm:$0xff] %v219
                %v221 = vld [vmem:[%s201 + $0x88] sm:$0xff]
                %222 = vst [vmem:[%s202 + $0x48] sm:$0xff] %v221
                %v223 = vld [vmem:[%s201 + $0x90] sm:$0xff]
                %224 = vst [vmem:[%s202 + $0x50] sm:$0xff] %v223
                %v225 = vld [vmem:[%s201 + $0x98] sm:$0xff]
                %226 = vst [vmem:[%s202 + $0x58] sm:$0xff] %v225
                %v227 = vld [vmem:[%s201 + $0xc0] sm:$0xff]
                %228 = vst [vmem:[%s202 + $0x60] sm:$0xff] %v227
                %v229 = vld [vmem:[%s201 + $0xc8] sm:$0xff]
                %230 = vst [vmem:[%s202 + $0x68] sm:$0xff] %v229
                %v231 = vld [vmem:[%s201 + $0xd0] sm:$0xff]
                %232 = vst [vmem:[%s202 + $0x70] sm:$0xff] %v231
                %v233 = vld [vmem:[%s201 + $0xd8] sm:$0xff]
                %234 = vst [vmem:[%s202 + $0x78] sm:$0xff] %v233
                %v235 = vld [vmem:[%s201 + $0x100] sm:$0xff]
                %236 = vst [vmem:[%s202 + $0x80] sm:$0xff] %v235
                %v237 = vld [vmem:[%s201 + $0x108] sm:$0xff]
                %238 = vst [vmem:[%s202 + $0x88] sm:$0xff] %v237
                %v239 = vld [vmem:[%s201 + $0x110] sm:$0xff]
                %240 = vst [vmem:[%s202 + $0x90] sm:$0xff] %v239
                %v241 = vld [vmem:[%s201 + $0x118] sm:$0xff]
                %242 = vst [vmem:[%s202 + $0x98] sm:$0xff] %v241
              $region45: #{_lambda_.21} parent=39 // loop_footer
                %s200 = sadd.s32 1, %s196
              $region46: #{_lambda_.21} parent=39 // loop_footer_branch
                %195 = sbr.rel target = $region42
              $region47: #{_lambda_.21} parent=39 // loop_exit
                _
            $region40: #{_lambda_.21} parent=35 // pred_fallthru
              _
            // Predicated region
            $region48: #{_lambda_.21} parent=35 // pred_check
              _
            $region49: #{_lambda_.21} parent=35 // pred_check_branch
              %244 = sbr.rel target = $region51
            $region50: #{_lambda_.21} parent=35 // pred_region
              _
            $region51: #{_lambda_.21} parent=35 // pred_fallthru
              _
          $region36: #{_lambda_.21} parent=31 // pred_fallthru
            _
          %245 = vnop
        $region32: #{_lambda_.21} parent=27 // pred_fallthru
          _
        // Predicated region
        $region52: #{_lambda_.21} parent=27 // pred_check
          %p246 = pneg %p121
        $region53: #{_lambda_.21} parent=27 // pred_check_branch
          %248 = sbr.rel (%p246) target = $region55
        $region54: #{_lambda_.21} parent=27 // pred_region
          %s249 = smul.u32 8, %s12
          %p250 = scmp.lt.s32.totalorder %s249, 15
          %s251 = scalar_select %p250, %s249, 15
          %s252 = smul.addr %s251, 2
          %s253 = scalar_lea.vmem %s4, %s252
          %s254 = smul.u32 8, %s12
        $region55: #{_lambda_.21} parent=27 // pred_fallthru
          _
      $region28: #{_lambda_.21} parent=5 // pred_fallthru
        _
      %p255 = scmp.le.s32.totalorder 1, %s12
      %p256 = scmp.lt.s32.totalorder %s12, 3
      %p257 = pnand %p255, %p256
      %p258 = pneg %p257
      // Predicated region
      $region56: #{_lambda_.21} parent=5 // pred_check
        _
      $region57: #{_lambda_.21} parent=5 // pred_check_branch
        %260 = sbr.rel (%p257) target = $region59
      $region58: #{_lambda_.21} parent=5 // pred_region
        %s261 = ssub.s32 %s12, 1
        %s262 = sand.u32 %s46, 1
        %s263 = sand.u32 %s46, 1
        %s264 = smul.addr %s263, 160
        %s265 = scalar_lea.vmem [#allocation3], %s264
        // Predicated region
        $region60: #{_lambda_.21} parent=58 // pred_check
          %p266 = pneg %p59
        $region61: #{_lambda_.21} parent=58 // pred_check_branch
          %268 = sbr.rel (%p266) target = $region63
        $region62: #{_lambda_.21} parent=58 // pred_region
          _
        $region63: #{_lambda_.21} parent=58 // pred_fallthru
          _
        %p269 = pneg %p33
        %p270 = pneg %p30
        %s271 = sand.u32 %s46, 1
        %s272 = sand.u32 %s46, 1
        %s273 = smul.addr %s272, 160
        %s274 = scalar_lea.vmem [#allocation3], %s273
        %p275 = pneg %p59
        %p276 = pneg %p56
        %p277 = pneg %p80
        %p278 = pneg %p77
        %p279 = pneg %p101
        %p280 = pneg %p98
        %s281 = smul.u32 8, %s17
        %p282 = scmp.lt.s32.totalorder %s281, 15
        %s283 = scalar_select %p282, %s281, 15
        %s284 = smul.addr %s283, 2
        %s285 = scalar_lea.vmem %s4, %s284
        %p286 = pneg %p127
        %p287 = pneg %p124
        %p288 = pneg %p153
        %p289 = pneg %p150
        %s290 = smul.u32 8, %s17
        %p291 = scmp.lt.s32.totalorder %s290, 15
        %s292 = scalar_select %p291, %s290, 15
        %s293 = smul.addr %s292, 2
        %s294 = scalar_lea.vmem %s5, %s293
        %s295 = smul.u32 8, %s17
        %s296 = smul.u32 8, %s17
        %p297 = scmp.lt.s32.totalorder %s296, 15
        %s298 = scalar_select %p297, %s296, 15
        %s299 = smul.addr %s298, 2
        %s300 = scalar_lea.vmem %s4, %s299
        %s301 = smul.u32 8, %s17
        %s302 = smul.u32 8, %s17
        %p303 = scmp.lt.s32.totalorder %s302, 15
        %s304 = scalar_select %p303, %s302, 15
        %s305 = smul.addr %s304, 2
        %s306 = scalar_lea.vmem %s5, %s305
        %s307 = smul.u32 8, %s17
        %v309 = vld [vmem:[%s300] sm:$0xff]
        %v310 = vld [vmem:[%s300 + $0x8] sm:$0xff]
        %v311 = vunpack.c.l.bf16 %v309
        %v312 = vunpack.c.h.bf16 %v309
        %v313 = vunpack.c.l.bf16 %v310
        %v314 = vunpack.c.h.bf16 %v310
        %v315 = vld [vmem:[%s0] sm:$0x3]
        %v316 = vld [vmem:[%s265] sm:$0xff]
        %v317 = vld [vmem:[%s265 + $0x8] sm:$0xff]
        %v318 = vld [vmem:[%s265 + $0x10] sm:$0xff]
        %v319 = vld [vmem:[%s265 + $0x18] sm:$0xff]
        %v320 = vld [vmem:[%s265 + $0x20] sm:$0xff]
        %v321 = vld [vmem:[%s265 + $0x28] sm:$0xff]
        %v322 = vld [vmem:[%s265 + $0x30] sm:$0xff]
        %v323 = vld [vmem:[%s265 + $0x38] sm:$0xff]
        %v324 = vld [vmem:[%s265 + $0x40] sm:$0xff]
        %v325 = vld [vmem:[%s265 + $0x48] sm:$0xff]
        %v326 = vld [vmem:[%s265 + $0x50] sm:$0xff]
        %v327 = vld [vmem:[%s265 + $0x58] sm:$0xff]
        %v328 = vld [vmem:[%s265 + $0x60] sm:$0xff]
        %v329 = vld [vmem:[%s265 + $0x68] sm:$0xff]
        %v330 = vld [vmem:[%s265 + $0x70] sm:$0xff]
        %v331 = vld [vmem:[%s265 + $0x78] sm:$0xff]
        %v332 = vld [vmem:[%s265 + $0x80] sm:$0x33]
        %v333 = vld [vmem:[%s265 + $0x88] sm:$0x33]
        %v334 = vld [vmem:[%s265 + $0x90] sm:$0x33]
        %v335 = vld [vmem:[%s265 + $0x98] sm:$0x33]
        %v336 = vld [vmem:[%s2] sm:$0xf]
        %338 = vset.pattern.permute.xlu0 0
        %339 = vperm.xlu0 %338, %v336
        %v340 = vpop.permute.xlu0 %339
        %v362 = vunpack.c.l.b16 %v316
        %v363 = vunpack.c.h.b16 %v316
        %v364 = vunpack.c.l.b16 %v317
        %v365 = vunpack.c.h.b16 %v317
        %v366 = vunpack.c.l.b16 %v318
        %v367 = vunpack.c.h.b16 %v318
        %v368 = vunpack.c.l.b16 %v319
        %v369 = vunpack.c.h.b16 %v319
        %v370 = vunpack.c.l.b16 %v320
        %v371 = vunpack.c.h.b16 %v320
        %v372 = vunpack.c.l.b16 %v321
        %v373 = vunpack.c.h.b16 %v321
        %v374 = vunpack.c.l.b16 %v322
        %v375 = vunpack.c.h.b16 %v322
        %v376 = vunpack.c.l.b16 %v323
        %v377 = vunpack.c.h.b16 %v323
        %v378 = vunpack.c.l.b16 %v324
        %v379 = vunpack.c.h.b16 %v324
        %v380 = vunpack.c.l.b16 %v325
        %v381 = vunpack.c.h.b16 %v325
        %v382 = vunpack.c.l.b16 %v326
        %v383 = vunpack.c.h.b16 %v326
        %v384 = vunpack.c.l.b16 %v327
        %v385 = vunpack.c.h.b16 %v327
        %v386 = vunpack.c.l.b16 %v328
        %v387 = vunpack.c.h.b16 %v328
        %v388 = vunpack.c.l.b16 %v329
        %v389 = vunpack.c.h.b16 %v329
        %v390 = vunpack.c.l.b16 %v330
        %v391 = vunpack.c.h.b16 %v330
        %v392 = vunpack.c.l.b16 %v331
        %v393 = vunpack.c.h.b16 %v331
        %v394 = vunpack.c.l.b16 %v332
        %v395 = vunpack.c.h.b16 %v332
        %v396 = vunpack.c.l.b16 %v333
        %v397 = vunpack.c.h.b16 %v333
        %v398 = vunpack.c.l.b16 %v334
        %v399 = vunpack.c.h.b16 %v334
        %v400 = vunpack.c.l.b16 %v335
        %v401 = vunpack.c.h.b16 %v335
        %v402 = vpack.c.b16 %v370, %v362
        %v403 = vpack.c.b16 %v371, %v363
        %v404 = vpack.c.b16 %v372, %v364
        %v405 = vpack.c.b16 %v373, %v365
        %v406 = vpack.c.b16 %v374, %v366
        %v407 = vpack.c.b16 %v375, %v367
        %v408 = vpack.c.b16 %v376, %v368
        %v409 = vpack.c.b16 %v377, %v369
        %v410 = vpack.c.b16 %v386, %v378
        %v411 = vpack.c.b16 %v387, %v379
        %v412 = vpack.c.b16 %v388, %v380
        %v413 = vpack.c.b16 %v389, %v381
        %v414 = vpack.c.b16 %v390, %v382
        %v415 = vpack.c.b16 %v391, %v383
        %v416 = vpack.c.b16 %v392, %v384
        %v417 = vpack.c.b16 %v393, %v385
        %v418 = vpack.c.b16 %v394, %v394
        %v419 = vpack.c.b16 %v395, %v395
        %v420 = vpack.c.b16 %v396, %v396
        %v421 = vpack.c.b16 %v397, %v397
        %v422 = vpack.c.b16 %v398, %v398
        %v423 = vpack.c.b16 %v399, %v399
        %v424 = vpack.c.b16 %v400, %v400
        %v425 = vpack.c.b16 %v401, %v401
        %vm442 = vcmask 293888
        %v444 = vsel %vm442, %v315, 0
        %vm446 = vcmask 1041408
        %v448 = vsel %vm446, %v418, 0
        %v451 = vsel %vm446, %v419, 0
        %v454 = vsel %vm446, %v420, 0
        %v457 = vsel %vm446, %v421, 0
        %v460 = vsel %vm446, %v422, 0
        %v463 = vsel %vm446, %v423, 0
        %v466 = vsel %vm446, %v424, 0
        %v469 = vsel %vm446, %v425, 0
        %471 = vmatpush.bf16.msra.mxu0 0
        %472 = vmatpush.bf16.msra.mxu0 0
        %473 = vmatpush.bf16.msra.mxu0 0
        %474 = vmatpush.bf16.msra.mxu0 0
        %475 = vmatpush.bf16.msra.mxu0 0
        %476 = vmatpush.bf16.msra.mxu0 %v448
        %477 = vmatpush.bf16.msra.mxu0 %v410
        %478 = vmatpush.bf16.msra.mxu0 %v402
        %479 = vmatmul.bf16.gmra.mxu0 %v444
        %v480 = vpop.f32.mrf.mxu0
        %v481 = vadd.f32 %v340, %v480
        %v482 = vpop.f32.mrf.mxu0
        %483 = vdwg.mxu0
        %484 = vmatpush.bf16.msra.mxu0 0
        %485 = vmatpush.bf16.msra.mxu0 0
        %486 = vmatpush.bf16.msra.mxu0 0
        %487 = vmatpush.bf16.msra.mxu0 0
        %488 = vmatpush.bf16.msra.mxu0 0
        %489 = vmatpush.bf16.msra.mxu0 %v451
        %490 = vmatpush.bf16.msra.mxu0 %v411
        %491 = vmatpush.bf16.msra.mxu0 %v403
        %492 = vmatmul.bf16.gmra.mxu0 %v444
        %v493 = vpop.f32.mrf.mxu0
        %v494 = vadd.f32 %v340, %v493
        %v495 = vpop.f32.mrf.mxu0
        %496 = vdwg.mxu0
        %497 = vmatpush.bf16.msra.mxu0 0
        %498 = vmatpush.bf16.msra.mxu0 0
        %499 = vmatpush.bf16.msra.mxu0 0
        %500 = vmatpush.bf16.msra.mxu0 0
        %501 = vmatpush.bf16.msra.mxu0 0
        %502 = vmatpush.bf16.msra.mxu0 %v454
        %503 = vmatpush.bf16.msra.mxu0 %v412
        %504 = vmatpush.bf16.msra.mxu0 %v404
        %505 = vmatmul.bf16.gmra.mxu0 %v444
        %v506 = vpop.f32.mrf.mxu0
        %v507 = vadd.f32 %v340, %v506
        %v508 = vpop.f32.mrf.mxu0
        %509 = vdwg.mxu0
        %510 = vmatpush.bf16.msra.mxu0 0
        %511 = vmatpush.bf16.msra.mxu0 0
        %512 = vmatpush.bf16.msra.mxu0 0
        %513 = vmatpush.bf16.msra.mxu0 0
        %514 = vmatpush.bf16.msra.mxu0 0
        %515 = vmatpush.bf16.msra.mxu0 %v457
        %516 = vmatpush.bf16.msra.mxu0 %v413
        %517 = vmatpush.bf16.msra.mxu0 %v405
        %518 = vmatmul.bf16.gmra.mxu0 %v444
        %v519 = vpop.f32.mrf.mxu0
        %v520 = vadd.f32 %v340, %v519
        %v521 = vpop.f32.mrf.mxu0
        %522 = vdwg.mxu0
        %523 = vmatpush.bf16.msra.mxu0 0
        %524 = vmatpush.bf16.msra.mxu0 0
        %525 = vmatpush.bf16.msra.mxu0 0
        %526 = vmatpush.bf16.msra.mxu0 0
        %527 = vmatpush.bf16.msra.mxu0 0
        %528 = vmatpush.bf16.msra.mxu0 %v460
        %529 = vmatpush.bf16.msra.mxu0 %v414
        %530 = vmatpush.bf16.msra.mxu0 %v406
        %531 = vmatmul.bf16.gmra.mxu0 %v444
        %v532 = vpop.f32.mrf.mxu0
        %v533 = vadd.f32 %v340, %v532
        %v534 = vpop.f32.mrf.mxu0
        %535 = vdwg.mxu0
        %536 = vmatpush.bf16.msra.mxu0 0
        %537 = vmatpush.bf16.msra.mxu0 0
        %538 = vmatpush.bf16.msra.mxu0 0
        %539 = vmatpush.bf16.msra.mxu0 0
        %540 = vmatpush.bf16.msra.mxu0 0
        %541 = vmatpush.bf16.msra.mxu0 %v463
        %542 = vmatpush.bf16.msra.mxu0 %v415
        %543 = vmatpush.bf16.msra.mxu0 %v407
        %544 = vmatmul.bf16.gmra.mxu0 %v444
        %v545 = vpop.f32.mrf.mxu0
        %v546 = vadd.f32 %v340, %v545
        %v547 = vpop.f32.mrf.mxu0
        %548 = vdwg.mxu0
        %549 = vmatpush.bf16.msra.mxu0 0
        %550 = vmatpush.bf16.msra.mxu0 0
        %551 = vmatpush.bf16.msra.mxu0 0
        %552 = vmatpush.bf16.msra.mxu0 0
        %553 = vmatpush.bf16.msra.mxu0 0
        %554 = vmatpush.bf16.msra.mxu0 %v466
        %555 = vmatpush.bf16.msra.mxu0 %v416
        %556 = vmatpush.bf16.msra.mxu0 %v408
        %557 = vmatmul.bf16.gmra.mxu0 %v444
        %v558 = vpop.f32.mrf.mxu0
        %v559 = vadd.f32 %v340, %v558
        %v560 = vpop.f32.mrf.mxu0
        %561 = vdwg.mxu0
        %562 = vmatpush.bf16.msra.mxu0 0
        %563 = vmatpush.bf16.msra.mxu0 0
        %564 = vmatpush.bf16.msra.mxu0 0
        %565 = vmatpush.bf16.msra.mxu0 0
        %566 = vmatpush.bf16.msra.mxu0 0
        %567 = vmatpush.bf16.msra.mxu0 %v469
        %568 = vmatpush.bf16.msra.mxu0 %v417
        %569 = vmatpush.bf16.msra.mxu0 %v409
        %570 = vmatmul.bf16.gmra.mxu0 %v444
        %v571 = vpop.f32.mrf.mxu0
        %v572 = vadd.f32 %v340, %v571
        %v573 = vpop.f32.mrf.mxu0
        %574 = vdwg.mxu0
        %579 = vst [vmem:[#allocation1] ss:$2 sm:$0xff] %v311
        %s580 = scalar_lea.vmem [#allocation1], 16
        %581 = vst [vmem:[%s580] ss:$2 sm:$0xff] %v312
        %s582 = scalar_lea.vmem [#allocation1], 32
        %583 = vst [vmem:[%s582] ss:$2 sm:$0xff] %v313
        %s584 = scalar_lea.vmem [#allocation1], 48
        %585 = vst [vmem:[%s584] ss:$2 sm:$0xff] %v314
        %v586 = vld.sshfl [vmem:[#allocation1] sm:$0xff pattern:$0x75316420]
        %v587 = vld.sshfl [vmem:[#allocation1 + $0x8] sm:$0xff pattern:$0x75316420]
        %v588 = vld.sshfl [vmem:[#allocation1 + $0x10] sm:$0xff pattern:$0x75316420]
        %v589 = vld.sshfl [vmem:[#allocation1 + $0x18] sm:$0xff pattern:$0x75316420]
        %v590 = vld.sshfl [vmem:[#allocation1 + $0x20] sm:$0xff pattern:$0x75316420]
        %v591 = vld.sshfl [vmem:[#allocation1 + $0x28] sm:$0xff pattern:$0x75316420]
        %v592 = vld.sshfl [vmem:[#allocation1 + $0x30] sm:$0xff pattern:$0x75316420]
        %v593 = vld.sshfl [vmem:[#allocation1 + $0x38] sm:$0xff pattern:$0x75316420]
        %v602 = vadd.f32 %v481, %v586
        %v603 = vadd.f32 %v494, %v587
        %v604 = vadd.f32 %v507, %v588
        %v605 = vadd.f32 %v520, %v589
        %v606 = vadd.f32 %v533, %v590
        %v607 = vadd.f32 %v546, %v591
        %v608 = vadd.f32 %v559, %v592
        %v609 = vadd.f32 %v572, %v593
        %v610 = vpack.c.bf16 %v603, %v602
        %v611 = vpack.c.bf16 %v605, %v604
        %v612 = vpack.c.bf16 %v607, %v606
        %v613 = vpack.c.bf16 %v609, %v608
        %v618 = vrot.slane %v610, 2
        %v619 = vrot.slane %v611, 4
        %v620 = vrot.slane %v611, 6
        %v621 = vrot.slane %v612, 2
        %v622 = vrot.slane %v613, 4
        %v623 = vrot.slane %v613, 6
        %v626 = vsel %vm446, %v610, %v618
        %vm627 = vcmask 1045508
        %v630 = vsel %vm627, %v619, %v620
        %vm631 = vcmask 1043456
        %v632 = vsel %vm631, %v626, %v630
        %v635 = vsel %vm446, %v612, %v621
        %v638 = vsel %vm627, %v622, %v623
        %v639 = vsel %vm631, %v635, %v638
        %642 = vst [vmem:[%s306] sm:$0xff] %v632
        %643 = vst [vmem:[%s306 + $0x8] sm:$0xff] %v639
        %s644 = smul.u32 8, %s17
        %p645 = scmp.lt.s32.totalorder %s644, 15
        %s646 = scalar_select %p645, %s644, 15
        %s647 = smul.addr %s646, 2
        %s648 = scalar_lea.vmem %s5, %s647
        // Predicated region
        $region64: #{_lambda_.21} parent=58 // pred_check
          %p649 = pneg %p150
        $region65: #{_lambda_.21} parent=58 // pred_check_branch
          %651 = sbr.rel (%p649) target = $region67
        $region66: #{_lambda_.21} parent=58 // pred_region
          %s652 = smul.u32 8, %s17
        $region67: #{_lambda_.21} parent=58 // pred_fallthru
          _
      $region59: #{_lambda_.21} parent=5 // pred_fallthru
        _
      %p653 = scmp.le.s32.totalorder 2, %s12
      // Predicated region
      $region68: #{_lambda_.21} parent=5 // pred_check
        %p654 = pneg %p653
      $region69: #{_lambda_.21} parent=5 // pred_check_branch
        %656 = sbr.rel (%p654) target = $region71
      $region70: #{_lambda_.21} parent=5 // pred_region
        %s657 = ssub.s32 %s12, 2
        // Predicated region
        $region72: #{_lambda_.21} parent=70 // pred_check
          %p658 = pneg %p156
        $region73: #{_lambda_.21} parent=70 // pred_check_branch
          %660 = sbr.rel (%p658) target = $region75
        $region74: #{_lambda_.21} parent=70 // pred_region
          %s661 = smul.u32 8, %s18
          %p662 = scmp.lt.s32.totalorder %s661, 15
          %s663 = scalar_select %p662, %s661, 15
          %s664 = smul.addr %s663, 2
          %s665 = scalar_lea.vmem %s5, %s664
        $region75: #{_lambda_.21} parent=70 // pred_fallthru
          _
      $region71: #{_lambda_.21} parent=5 // pred_fallthru
        _
    $region6: #{_lambda_.21} parent=1 // loop_footer
      %s16 = sadd.s32 1, %s12
    $region7: #{_lambda_.21} parent=1 // loop_footer_branch
      %11 = sbr.rel target = $region3
    $region8: #{_lambda_.21} parent=1 // loop_exit
      _

// kernel: _lambda_.22
$region0: #{_lambda_.22}
  #allocation0 [shape = 'u32[]', space=smem, size = 0x4, offset = 0x4, fixed_abs, tag = 'smem constant byte address 0x4 - core index']
  #allocation1 [shape = 'u32[72,128]{1,0:T(1,128)}', space=vmem, size = 0x9000, scoped, tag = 'internal scratch']
  #allocation2 [shape = 'f32[1]{0:T(128)S(6)}', space=smem, size = 0x200, scoped, tag = 'scoped memory for _lambda_.22']
  %s0 = inlined_call_operand.vmem [shape: bf16[4,144], index: 0, kind: input, shape index: {}]
  %s1 = inlined_call_operand.vmem [shape: bf16[144,512], index: 1, kind: input, shape index: {}]
  %s2 = inlined_call_operand.vmem [shape: f32[4,1], index: 2, kind: input, shape index: {}]
  %s3 = inlined_call_operand.<no memory space> [shape: f32[1], index: 3, kind: input, shape index: {}]
  %s4 = inlined_call_operand.vmem [shape: bf16[4,512], index: 4, kind: input, shape index: {}]
  %s5 = inlined_call_operand.vmem [shape: bf16[4,512], index: 5, kind: output, shape index: {}]
  %s6 = sld [smem:[#allocation0]]
  $region91: #{_lambda_.22} parent=0
    _
  %s8 = ssub.s32 1, %s6
  %s9 = scalar_select 0, %s8, %s6
  %10 = sst [smem:[#allocation2]] %s3
  $region1: #{_lambda_.22} parent=0
    #allocation3 [shape = 'u8[147456]{0}', space=vmem, size = 0x24000, scoped, tag = 'input window, operand 1']
    loop: start=0, step=1, limit=4
    $region2: #{_lambda_.22} parent=1 // loop_pre_header
      _
    $region3: #{_lambda_.22} parent=1 // loop_header
      %s12 = sphi 0, %s16
      %p13 = scmp.ge.s32.totalorder %s12, 4
      %s20 = sphi 0, %s20
      %s22 = sphi 0, %s20
      %s23 = sphi 0, %s22
      %s37 = sphi 0, %s23
      %s43 = sphi 0, %s45
      %s46 = sphi 0, %s43
      %s47 = sphi 0, %s46
      %s63 = sphi 0, %s47
      %s67 = sphi 0, %s67
      %s69 = sphi 0, %s67
      %s70 = sphi 0, %s69
      %s84 = sphi 0, %s70
      %s88 = sphi 0, %s88
      %s90 = sphi 0, %s88
      %s91 = sphi 0, %s90
      %s105 = sphi 0, %s91
      %s111 = sphi 0, %s113
      %s114 = sphi 0, %s111
      %s115 = sphi 0, %s114
      %s131 = sphi 0, %s115
      %s137 = sphi 0, %s139
      %s140 = sphi 0, %s137
      %s141 = sphi 0, %s140
      %s157 = sphi 0, %s141
    $region4: #{_lambda_.22} parent=1 // loop_header_branch
      %15 = sbr.rel (%p13) target = $region8
    $region5: #{_lambda_.22} parent=1 // loop_body
      %s17 = ssub.s32 %s12, 1
      %s18 = ssub.s32 %s12, 2
      %s19 = sadd.s32 %s12, 1
      %s21 = sadd.s32 %s20, 1
      %p24 = scmp.eq.s32.totalorder %s12, 1
      %p25 = scmp.ne.s32.totalorder %s20, %s22
      %p26 = scmp.eq.s32.totalorder %s12, 0
      %p27 = por %p25, %p26
      %p28 = scmp.ne.s32.totalorder %s20, %s22
      %p29 = scmp.eq.s32.totalorder %s17, 1
      %p30 = por %p28, %p29
      %p31 = scmp.ne.s32.totalorder %s22, %s23
      %p32 = scmp.eq.s32.totalorder %s17, 0
      %p33 = por %p31, %p32
      %p34 = scmp.ne.s32.totalorder %s22, %s23
      %p35 = scmp.eq.s32.totalorder %s18, 1
      %p36 = por %p34, %p35
      %p38 = scmp.ne.s32.totalorder %s23, %s37
      %p39 = scmp.eq.s32.totalorder %s18, 0
      %p40 = por %p38, %p39
      %s41 = ssub.s32 %s12, %s19
      %p42 = scmp.eq.s32.totalorder %s41, 0
      %s44 = sadd.s32 %s43, 1
      %s45 = scalar_select %p42, %s43, %s44
      %p48 = pneg %p42
      %p49 = scmp.eq.s32.totalorder %s12, 1
      %p50 = por %p48, %p49
      %p51 = scmp.ne.s32.totalorder %s43, %s46
      %p52 = scmp.eq.s32.totalorder %s12, 0
      %p53 = por %p51, %p52
      %p54 = scmp.ne.s32.totalorder %s43, %s46
      %p55 = scmp.eq.s32.totalorder %s17, 1
      %p56 = por %p54, %p55
      %p57 = scmp.ne.s32.totalorder %s46, %s47
      %p58 = scmp.eq.s32.totalorder %s17, 0
      %p59 = por %p57, %p58
      %p60 = scmp.ne.s32.totalorder %s46, %s47
      %p61 = scmp.eq.s32.totalorder %s18, 1
      %p62 = por %p60, %p61
      %p64 = scmp.ne.s32.totalorder %s47, %s63
      %p65 = scmp.eq.s32.totalorder %s18, 0
      %p66 = por %p64, %p65
      %s68 = sadd.s32 %s67, 1
      %p71 = scmp.eq.s32.totalorder %s12, 1
      %p72 = scmp.ne.s32.totalorder %s67, %s69
      %p73 = scmp.eq.s32.totalorder %s12, 0
      %p74 = por %p72, %p73
      %p75 = scmp.ne.s32.totalorder %s67, %s69
      %p76 = scmp.eq.s32.totalorder %s17, 1
      %p77 = por %p75, %p76
      %p78 = scmp.ne.s32.totalorder %s69, %s70
      %p79 = scmp.eq.s32.totalorder %s17, 0
      %p80 = por %p78, %p79
      %p81 = scmp.ne.s32.totalorder %s69, %s70
      %p82 = scmp.eq.s32.totalorder %s18, 1
      %p83 = por %p81, %p82
      %p85 = scmp.ne.s32.totalorder %s70, %s84
      %p86 = scmp.eq.s32.totalorder %s18, 0
      %p87 = por %p85, %p86
      %s89 = sadd.s32 %s88, 1
      %p92 = scmp.eq.s32.totalorder %s12, 1
      %p93 = scmp.ne.s32.totalorder %s88, %s90
      %p94 = scmp.eq.s32.totalorder %s12, 0
      %p95 = por %p93, %p94
      %p96 = scmp.ne.s32.totalorder %s88, %s90
      %p97 = scmp.eq.s32.totalorder %s17, 1
      %p98 = por %p96, %p97
      %p99 = scmp.ne.s32.totalorder %s90, %s91
      %p100 = scmp.eq.s32.totalorder %s17, 0
      %p101 = por %p99, %p100
      %p102 = scmp.ne.s32.totalorder %s90, %s91
      %p103 = scmp.eq.s32.totalorder %s18, 1
      %p104 = por %p102, %p103
      %p106 = scmp.ne.s32.totalorder %s91, %s105
      %p107 = scmp.eq.s32.totalorder %s18, 0
      %p108 = por %p106, %p107
      %s109 = ssub.s32 %s12, %s19
      %p110 = scmp.eq.s32.totalorder %s109, 0
      %s112 = sadd.s32 %s111, 1
      %s113 = scalar_select %p110, %s111, %s112
      %p116 = pneg %p110
      %p117 = scmp.eq.s32.totalorder %s12, 1
      %p118 = por %p116, %p117
      %p119 = scmp.ne.s32.totalorder %s111, %s114
      %p120 = scmp.eq.s32.totalorder %s12, 0
      %p121 = por %p119, %p120
      %p122 = scmp.ne.s32.totalorder %s111, %s114
      %p123 = scmp.eq.s32.totalorder %s17, 1
      %p124 = por %p122, %p123
      %p125 = scmp.ne.s32.totalorder %s114, %s115
      %p126 = scmp.eq.s32.totalorder %s17, 0
      %p127 = por %p125, %p126
      %p128 = scmp.ne.s32.totalorder %s114, %s115
      %p129 = scmp.eq.s32.totalorder %s18, 1
      %p130 = por %p128, %p129
      %p132 = scmp.ne.s32.totalorder %s115, %s131
      %p133 = scmp.eq.s32.totalorder %s18, 0
      %p134 = por %p132, %p133
      %s135 = ssub.s32 %s12, %s19
      %p136 = scmp.eq.s32.totalorder %s135, 0
      %s138 = sadd.s32 %s137, 1
      %s139 = scalar_select %p136, %s137, %s138
      %p142 = pneg %p136
      %p143 = scmp.eq.s32.totalorder %s12, 1
      %p144 = por %p142, %p143
      %p145 = scmp.ne.s32.totalorder %s137, %s140
      %p146 = scmp.eq.s32.totalorder %s12, 0
      %p147 = por %p145, %p146
      %p148 = scmp.ne.s32.totalorder %s137, %s140
      %p149 = scmp.eq.s32.totalorder %s17, 1
      %p150 = por %p148, %p149
      %p151 = scmp.ne.s32.totalorder %s140, %s141
      %p152 = scmp.eq.s32.totalorder %s17, 0
      %p153 = por %p151, %p152
      %p154 = scmp.ne.s32.totalorder %s140, %s141
      %p155 = scmp.eq.s32.totalorder %s18, 1
      %p156 = por %p154, %p155
      %p158 = scmp.ne.s32.totalorder %s141, %s157
      %p159 = scmp.eq.s32.totalorder %s18, 0
      %p160 = por %p158, %p159
      %p161 = scmp.le.s32.totalorder 1, %s12
      %p162 = scmp.lt.s32.totalorder %s12, 3
      %p163 = pnand %p161, %p162
      %p164 = pneg %p163
      // Predicated region
      $region9: #{_lambda_.22} parent=5 // pred_check
        _
      $region10: #{_lambda_.22} parent=5 // pred_check_branch
        %166 = sbr.rel (%p163) target = $region12
      $region11: #{_lambda_.22} parent=5 // pred_region
        %s167 = ssub.s32 %s12, 1
        // Predicated region
        $region13: #{_lambda_.22} parent=11 // pred_check
          %p168 = pneg %p33
        $region14: #{_lambda_.22} parent=11 // pred_check_branch
          %170 = sbr.rel (%p168) target = $region16
        $region15: #{_lambda_.22} parent=11 // pred_region
          _
        $region16: #{_lambda_.22} parent=11 // pred_fallthru
          _
        // Predicated region
        $region17: #{_lambda_.22} parent=11 // pred_check
          %p171 = pneg %p80
        $region18: #{_lambda_.22} parent=11 // pred_check_branch
          %173 = sbr.rel (%p171) target = $region20
        $region19: #{_lambda_.22} parent=11 // pred_region
          _
        $region20: #{_lambda_.22} parent=11 // pred_fallthru
          _
        // Predicated region
        $region21: #{_lambda_.22} parent=11 // pred_check
          %p174 = pneg %p101
        $region22: #{_lambda_.22} parent=11 // pred_check_branch
          %176 = sbr.rel (%p174) target = $region24
        $region23: #{_lambda_.22} parent=11 // pred_region
          _
        $region24: #{_lambda_.22} parent=11 // pred_fallthru
          _
      $region12: #{_lambda_.22} parent=5 // pred_fallthru
        _
      %p177 = scmp.lt.s32.totalorder %s12, 2
      // Predicated region
      $region25: #{_lambda_.22} parent=5 // pred_check
        %p178 = pneg %p177
      $region26: #{_lambda_.22} parent=5 // pred_check_branch
        %180 = sbr.rel (%p178) target = $region28
      $region27: #{_lambda_.22} parent=5 // pred_region
        // Predicated region
        $region29: #{_lambda_.22} parent=27 // pred_check
          %p181 = pneg %p53
        $region30: #{_lambda_.22} parent=27 // pred_check_branch
          %183 = sbr.rel (%p181) target = $region32
        $region31: #{_lambda_.22} parent=27 // pred_region
          %s184 = sand.u32 %s43, 1
          %s185 = sand.u32 %s43, 1
          %s186 = smul.addr %s185, 144
          %s187 = scalar_lea.vmem [#allocation3], %s186
          %s188 = smul.u32 2, %s12
          %s189 = smul.addr %s188, 4
          %s190 = scalar_lea.vmem %s1, %s189
          // Predicated region
          $region33: #{_lambda_.22} parent=31 // pred_check
            _
          $region34: #{_lambda_.22} parent=31 // pred_check_branch
            %192 = sbr.rel (0) target = $region36
          $region35: #{_lambda_.22} parent=31 // pred_region
            // Predicated region
            $region37: #{_lambda_.22} parent=35 // pred_check
              _
            $region38: #{_lambda_.22} parent=35 // pred_check_branch
              %194 = sbr.rel (0) target = $region40
            $region39: #{_lambda_.22} parent=35 // pred_region
              // Predicated region
              $region52: #{_lambda_.22} parent=39 // pred_check
                _
              $region53: #{_lambda_.22} parent=39 // pred_check_branch
                %244 = sbr.rel (0) target = $region55
              $region54: #{_lambda_.22} parent=39 // pred_region
                loop: start=0, step=1, limit=1
                $region56: #{_lambda_.22} parent=54 // loop_pre_header
                  _
                $region57: #{_lambda_.22} parent=54 // loop_header
                  %s246 = sphi 0, %s250
                  %p247 = scmp.ge.s32.totalorder %s246, 1
                  %s251 = sphi %s190, %s190
                  %s252 = sphi %s187, %s187
                $region58: #{_lambda_.22} parent=54 // loop_header_branch
                  %249 = sbr.rel (%p247) target = $region62
                $region59: #{_lambda_.22} parent=54 // loop_body
                  %v253 = vld [vmem:[%s251] sm:$0xff]
                  %254 = vst [vmem:[%s252] sm:$0xff] %v253
                  %v255 = vld [vmem:[%s251 + $0x10] sm:$0xff]
                  %256 = vst [vmem:[%s252 + $0x8] sm:$0xff] %v255
                  %v257 = vld [vmem:[%s251 + $0x20] sm:$0xff]
                  %258 = vst [vmem:[%s252 + $0x10] sm:$0xff] %v257
                  %v259 = vld [vmem:[%s251 + $0x30] sm:$0xff]
                  %260 = vst [vmem:[%s252 + $0x18] sm:$0xff] %v259
                  %v261 = vld [vmem:[%s251 + $0x40] sm:$0xff]
                  %262 = vst [vmem:[%s252 + $0x20] sm:$0xff] %v261
                  %v263 = vld [vmem:[%s251 + $0x50] sm:$0xff]
                  %264 = vst [vmem:[%s252 + $0x28] sm:$0xff] %v263
                  %v265 = vld [vmem:[%s251 + $0x60] sm:$0xff]
                  %266 = vst [vmem:[%s252 + $0x30] sm:$0xff] %v265
                  %v267 = vld [vmem:[%s251 + $0x70] sm:$0xff]
                  %268 = vst [vmem:[%s252 + $0x38] sm:$0xff] %v267
                  %v269 = vld [vmem:[%s251 + $0x80] sm:$0xff]
                  %270 = vst [vmem:[%s252 + $0x40] sm:$0xff] %v269
                  %v271 = vld [vmem:[%s251 + $0x90] sm:$0xff]
                  %272 = vst [vmem:[%s252 + $0x48] sm:$0xff] %v271
                  %v273 = vld [vmem:[%s251 + $0xa0] sm:$0xff]
                  %274 = vst [vmem:[%s252 + $0x50] sm:$0xff] %v273
                  %v275 = vld [vmem:[%s251 + $0xb0] sm:$0xff]
                  %276 = vst [vmem:[%s252 + $0x58] sm:$0xff] %v275
                  %v277 = vld [vmem:[%s251 + $0xc0] sm:$0xff]
                  %278 = vst [vmem:[%s252 + $0x60] sm:$0xff] %v277
                  %v279 = vld [vmem:[%s251 + $0xd0] sm:$0xff]
                  %280 = vst [vmem:[%s252 + $0x68] sm:$0xff] %v279
                  %v281 = vld [vmem:[%s251 + $0xe0] sm:$0xff]
                  %282 = vst [vmem:[%s252 + $0x70] sm:$0xff] %v281
                  %v283 = vld [vmem:[%s251 + $0xf0] sm:$0xff]
                  %284 = vst [vmem:[%s252 + $0x78] sm:$0xff] %v283
                  %v285 = vld [vmem:[%s251 + $0x100] sm:$0xff]
                  %286 = vst [vmem:[%s252 + $0x80] sm:$0xff] %v285
                  %v287 = vld [vmem:[%s251 + $0x110] sm:$0xff]
                  %288 = vst [vmem:[%s252 + $0x88] sm:$0xff] %v287
                $region60: #{_lambda_.22} parent=54 // loop_footer
                  %s250 = sadd.s32 1, %s246
                $region61: #{_lambda_.22} parent=54 // loop_footer_branch
                  %245 = sbr.rel target = $region57
                $region62: #{_lambda_.22} parent=54 // loop_exit
                  _
              $region55: #{_lambda_.22} parent=39 // pred_fallthru
                _
              // Predicated region
              $region63: #{_lambda_.22} parent=39 // pred_check
                _
              $region64: #{_lambda_.22} parent=39 // pred_check_branch
                %290 = sbr.rel target = $region66
              $region65: #{_lambda_.22} parent=39 // pred_region
                _
              $region66: #{_lambda_.22} parent=39 // pred_fallthru
                _
            $region40: #{_lambda_.22} parent=35 // pred_fallthru
              _
            // Predicated region
            $region41: #{_lambda_.22} parent=35 // pred_check
              _
            $region42: #{_lambda_.22} parent=35 // pred_check_branch
              %196 = sbr.rel target = $region44
            $region43: #{_lambda_.22} parent=35 // pred_region
              %s198 = ssub.s32 256, 1
              loop: start=0, step=1, limit=1
              $region45: #{_lambda_.22} parent=43 // loop_pre_header
                _
              $region46: #{_lambda_.22} parent=43 // loop_header
                %s200 = sphi 0, %s204
                %p201 = scmp.ge.s32.totalorder %s200, 1
                %s205 = sphi %s190, %s190
                %s206 = sphi %s187, %s187
              $region47: #{_lambda_.22} parent=43 // loop_header_branch
                %203 = sbr.rel (%p201) target = $region51
              $region48: #{_lambda_.22} parent=43 // loop_body
                %v207 = vld [vmem:[%s205] sm:%s198]
                %208 = vst [vmem:[%s206] sm:%s198] %v207
                %v209 = vld [vmem:[%s205 + $0x10] sm:%s198]
                %210 = vst [vmem:[%s206 + $0x8] sm:%s198] %v209
                %v211 = vld [vmem:[%s205 + $0x20] sm:%s198]
                %212 = vst [vmem:[%s206 + $0x10] sm:%s198] %v211
                %v213 = vld [vmem:[%s205 + $0x30] sm:%s198]
                %214 = vst [vmem:[%s206 + $0x18] sm:%s198] %v213
                %v215 = vld [vmem:[%s205 + $0x40] sm:%s198]
                %216 = vst [vmem:[%s206 + $0x20] sm:%s198] %v215
                %v217 = vld [vmem:[%s205 + $0x50] sm:%s198]
                %218 = vst [vmem:[%s206 + $0x28] sm:%s198] %v217
                %v219 = vld [vmem:[%s205 + $0x60] sm:%s198]
                %220 = vst [vmem:[%s206 + $0x30] sm:%s198] %v219
                %v221 = vld [vmem:[%s205 + $0x70] sm:%s198]
                %222 = vst [vmem:[%s206 + $0x38] sm:%s198] %v221
                %v223 = vld [vmem:[%s205 + $0x80] sm:%s198]
                %224 = vst [vmem:[%s206 + $0x40] sm:%s198] %v223
                %v225 = vld [vmem:[%s205 + $0x90] sm:%s198]
                %226 = vst [vmem:[%s206 + $0x48] sm:%s198] %v225
                %v227 = vld [vmem:[%s205 + $0xa0] sm:%s198]
                %228 = vst [vmem:[%s206 + $0x50] sm:%s198] %v227
                %v229 = vld [vmem:[%s205 + $0xb0] sm:%s198]
                %230 = vst [vmem:[%s206 + $0x58] sm:%s198] %v229
                %v231 = vld [vmem:[%s205 + $0xc0] sm:%s198]
                %232 = vst [vmem:[%s206 + $0x60] sm:%s198] %v231
                %v233 = vld [vmem:[%s205 + $0xd0] sm:%s198]
                %234 = vst [vmem:[%s206 + $0x68] sm:%s198] %v233
                %v235 = vld [vmem:[%s205 + $0xe0] sm:%s198]
                %236 = vst [vmem:[%s206 + $0x70] sm:%s198] %v235
                %v237 = vld [vmem:[%s205 + $0xf0] sm:%s198]
                %238 = vst [vmem:[%s206 + $0x78] sm:%s198] %v237
                %v239 = vld [vmem:[%s205 + $0x100] sm:%s198]
                %240 = vst [vmem:[%s206 + $0x80] sm:%s198] %v239
                %v241 = vld [vmem:[%s205 + $0x110] sm:%s198]
                %242 = vst [vmem:[%s206 + $0x88] sm:%s198] %v241
              $region49: #{_lambda_.22} parent=43 // loop_footer
                %s204 = sadd.s32 1, %s200
              $region50: #{_lambda_.22} parent=43 // loop_footer_branch
                %199 = sbr.rel target = $region46
              $region51: #{_lambda_.22} parent=43 // loop_exit
                _
            $region44: #{_lambda_.22} parent=35 // pred_fallthru
              _
          $region36: #{_lambda_.22} parent=31 // pred_fallthru
            _
          %291 = vnop
        $region32: #{_lambda_.22} parent=27 // pred_fallthru
          _
        // Predicated region
        $region67: #{_lambda_.22} parent=27 // pred_check
          %p292 = pneg %p121
        $region68: #{_lambda_.22} parent=27 // pred_check_branch
          %294 = sbr.rel (%p292) target = $region70
        $region69: #{_lambda_.22} parent=27 // pred_region
          %s295 = smul.u32 2, %s12
          %p296 = scmp.lt.s32.totalorder %s295, 3
          %s297 = scalar_select %p296, %s295, 3
          %s298 = smul.addr %s297, 2
          %s299 = scalar_lea.vmem %s4, %s298
          %s300 = smul.u32 2, %s12
        $region70: #{_lambda_.22} parent=27 // pred_fallthru
          _
      $region28: #{_lambda_.22} parent=5 // pred_fallthru
        _
      %p301 = scmp.le.s32.totalorder 1, %s12
      %p302 = scmp.lt.s32.totalorder %s12, 3
      %p303 = pnand %p301, %p302
      %p304 = pneg %p303
      // Predicated region
      $region71: #{_lambda_.22} parent=5 // pred_check
        _
      $region72: #{_lambda_.22} parent=5 // pred_check_branch
        %306 = sbr.rel (%p303) target = $region74
      $region73: #{_lambda_.22} parent=5 // pred_region
        %s307 = ssub.s32 %s12, 1
        %s308 = sand.u32 %s46, 1
        %s309 = sand.u32 %s46, 1
        %s310 = smul.addr %s309, 144
        %s311 = scalar_lea.vmem [#allocation3], %s310
        // Predicated region
        $region75: #{_lambda_.22} parent=73 // pred_check
          %p312 = pneg %p59
        $region76: #{_lambda_.22} parent=73 // pred_check_branch
          %314 = sbr.rel (%p312) target = $region78
        $region77: #{_lambda_.22} parent=73 // pred_region
          _
        $region78: #{_lambda_.22} parent=73 // pred_fallthru
          _
        %p315 = pneg %p33
        %p316 = pneg %p30
        %s317 = sand.u32 %s46, 1
        %s318 = sand.u32 %s46, 1
        %s319 = smul.addr %s318, 144
        %s320 = scalar_lea.vmem [#allocation3], %s319
        %p321 = pneg %p59
        %p322 = pneg %p56
        %p323 = pneg %p80
        %p324 = pneg %p77
        %p325 = pneg %p101
        %p326 = pneg %p98
        %s327 = smul.u32 2, %s17
        %p328 = scmp.lt.s32.totalorder %s327, 3
        %s329 = scalar_select %p328, %s327, 3
        %s330 = smul.addr %s329, 2
        %s331 = scalar_lea.vmem %s4, %s330
        %p332 = pneg %p127
        %p333 = pneg %p124
        %p334 = pneg %p153
        %p335 = pneg %p150
        %s336 = smul.u32 2, %s17
        %p337 = scmp.lt.s32.totalorder %s336, 3
        %s338 = scalar_select %p337, %s336, 3
        %s339 = smul.addr %s338, 2
        %s340 = scalar_lea.vmem %s5, %s339
        %s341 = smul.u32 2, %s17
        %s342 = smul.u32 2, %s17
        %p343 = scmp.lt.s32.totalorder %s342, 3
        %s344 = scalar_select %p343, %s342, 3
        %s345 = smul.addr %s344, 2
        %s346 = scalar_lea.vmem %s4, %s345
        %s347 = smul.u32 2, %s17
        %s348 = smul.u32 2, %s17
        %p349 = scmp.lt.s32.totalorder %s348, 3
        %s350 = scalar_select %p349, %s348, 3
        %s351 = smul.addr %s350, 2
        %s352 = scalar_lea.vmem %s5, %s351
        %s353 = smul.u32 2, %s17
        %v355 = vld [vmem:[%s346] sm:$0xf]
        %v356 = vunpack.c.l.bf16 %v355
        %v357 = vld [vmem:[%s0] sm:$0xf]
        %v358 = vld [vmem:[%s311] sm:$0xff]
        %v359 = vld [vmem:[%s311 + $0x8] sm:$0xff]
        %v360 = vld [vmem:[%s311 + $0x10] sm:$0xff]
        %v361 = vld [vmem:[%s311 + $0x18] sm:$0xff]
        %v362 = vld [vmem:[%s311 + $0x20] sm:$0xff]
        %v363 = vld [vmem:[%s311 + $0x28] sm:$0xff]
        %v364 = vld [vmem:[%s311 + $0x30] sm:$0xff]
        %v365 = vld [vmem:[%s311 + $0x38] sm:$0xff]
        %v366 = vld [vmem:[%s311 + $0x40] sm:$0xff]
        %v367 = vld [vmem:[%s311 + $0x48] sm:$0xff]
        %v368 = vld [vmem:[%s311 + $0x50] sm:$0xff]
        %v369 = vld [vmem:[%s311 + $0x58] sm:$0xff]
        %v370 = vld [vmem:[%s311 + $0x60] sm:$0xff]
        %v371 = vld [vmem:[%s311 + $0x68] sm:$0xff]
        %v372 = vld [vmem:[%s311 + $0x70] sm:$0xff]
        %v373 = vld [vmem:[%s311 + $0x78] sm:$0xff]
        %v374 = vld [vmem:[%s311 + $0x80] sm:$0xff]
        %v375 = vld [vmem:[%s311 + $0x88] sm:$0xff]
        %v376 = vld [vmem:[%s2] sm:$0xf]
        %378 = vset.pattern.permute.xlu0 0
        %379 = vperm.xlu0 %378, %v376
        %v380 = vpop.permute.xlu0 %379
        %383 = vst [vmem:[#allocation1] ss:$4 sm:$0xff] %v357
        %v384 = vld.sshfl [vmem:[#allocation1] sm:$0xff pattern:$0x73625140]
        %v385 = vld.sshfl [vmem:[#allocation1 + $0x8] sm:$0xff pattern:$0x73625140]
        %v405 = vunpack.c.l.b16 %v358
        %v406 = vunpack.c.h.b16 %v358
        %v407 = vunpack.c.l.b16 %v359
        %v408 = vunpack.c.h.b16 %v359
        %v409 = vunpack.c.l.b16 %v360
        %v410 = vunpack.c.h.b16 %v360
        %v411 = vunpack.c.l.b16 %v361
        %v412 = vunpack.c.h.b16 %v361
        %v413 = vunpack.c.l.b16 %v362
        %v414 = vunpack.c.h.b16 %v362
        %v415 = vunpack.c.l.b16 %v363
        %v416 = vunpack.c.h.b16 %v363
        %v417 = vunpack.c.l.b16 %v364
        %v418 = vunpack.c.h.b16 %v364
        %v419 = vunpack.c.l.b16 %v365
        %v420 = vunpack.c.h.b16 %v365
        %v421 = vunpack.c.l.b16 %v366
        %v422 = vunpack.c.h.b16 %v366
        %v423 = vunpack.c.l.b16 %v367
        %v424 = vunpack.c.h.b16 %v367
        %v425 = vunpack.c.l.b16 %v368
        %v426 = vunpack.c.h.b16 %v368
        %v427 = vunpack.c.l.b16 %v369
        %v428 = vunpack.c.h.b16 %v369
        %v429 = vunpack.c.l.b16 %v370
        %v430 = vunpack.c.h.b16 %v370
        %v431 = vunpack.c.l.b16 %v371
        %v432 = vunpack.c.h.b16 %v371
        %v433 = vunpack.c.l.b16 %v372
        %v434 = vunpack.c.h.b16 %v372
        %v435 = vunpack.c.l.b16 %v373
        %v436 = vunpack.c.h.b16 %v373
        %v437 = vunpack.c.l.b16 %v374
        %v438 = vunpack.c.h.b16 %v374
        %v439 = vunpack.c.l.b16 %v375
        %v440 = vunpack.c.h.b16 %v375
        %v441 = vpack.c.b16 %v407, %v405
        %v442 = vpack.c.b16 %v408, %v406
        %v443 = vpack.c.b16 %v411, %v409
        %v444 = vpack.c.b16 %v412, %v410
        %v445 = vpack.c.b16 %v415, %v413
        %v446 = vpack.c.b16 %v416, %v414
        %v447 = vpack.c.b16 %v419, %v417
        %v448 = vpack.c.b16 %v420, %v418
        %v449 = vpack.c.b16 %v423, %v421
        %v450 = vpack.c.b16 %v424, %v422
        %v451 = vpack.c.b16 %v427, %v425
        %v452 = vpack.c.b16 %v428, %v426
        %v453 = vpack.c.b16 %v431, %v429
        %v454 = vpack.c.b16 %v432, %v430
        %v455 = vpack.c.b16 %v435, %v433
        %v456 = vpack.c.b16 %v436, %v434
        %v457 = vpack.c.b16 %v439, %v437
        %v458 = vpack.c.b16 %v440, %v438
        %vm477 = vcmask 130048
        %v478 = vsel %vm477, %v385, 0
        %480 = vmatpush.bf16.msra.mxu0 %v455
        %481 = vmatpush.bf16.msra.mxu0 %v453
        %482 = vmatpush.bf16.msra.mxu0 %v451
        %483 = vmatpush.bf16.msra.mxu0 %v449
        %484 = vmatpush.bf16.msra.mxu0 %v447
        %485 = vmatpush.bf16.msra.mxu0 %v445
        %486 = vmatpush.bf16.msra.mxu0 %v443
        %487 = vmatpush.bf16.msra.mxu0 %v441
        %488 = vmatmul.bf16.gmra.mxu0 %v384
        %v489 = vpop.f32.mrf.mxu0
        %v490 = vadd.f32 %v380, %v489
        %v491 = vpop.f32.mrf.mxu0
        %492 = vdwg.mxu0
        %493 = vmatpush.bf16.msra.mxu0 0
        %494 = vmatpush.bf16.msra.mxu0 0
        %495 = vmatpush.bf16.msra.mxu0 0
        %496 = vmatpush.bf16.msra.mxu0 0
        %497 = vmatpush.bf16.msra.mxu0 0
        %498 = vmatpush.bf16.msra.mxu0 0
        %499 = vmatpush.bf16.msra.mxu0 0
        %500 = vmatpush.bf16.msra.mxu0 %v457
        %501 = vmatmul.bf16.gmra.mxu0 %v478
        %v502 = vpop.f32.mrf.mxu0
        %v503 = vadd.f32 %v490, %v502
        %v504 = vpop.f32.mrf.mxu0
        %505 = vdwg.mxu0
        %506 = vmatpush.bf16.msra.mxu0 %v456
        %507 = vmatpush.bf16.msra.mxu0 %v454
        %508 = vmatpush.bf16.msra.mxu0 %v452
        %509 = vmatpush.bf16.msra.mxu0 %v450
        %510 = vmatpush.bf16.msra.mxu0 %v448
        %511 = vmatpush.bf16.msra.mxu0 %v446
        %512 = vmatpush.bf16.msra.mxu0 %v444
        %513 = vmatpush.bf16.msra.mxu0 %v442
        %514 = vmatmul.bf16.gmra.mxu0 %v384
        %v515 = vpop.f32.mrf.mxu0
        %v516 = vadd.f32 %v380, %v515
        %v517 = vpop.f32.mrf.mxu0
        %518 = vdwg.mxu0
        %519 = vmatpush.bf16.msra.mxu0 0
        %520 = vmatpush.bf16.msra.mxu0 0
        %521 = vmatpush.bf16.msra.mxu0 0
        %522 = vmatpush.bf16.msra.mxu0 0
        %523 = vmatpush.bf16.msra.mxu0 0
        %524 = vmatpush.bf16.msra.mxu0 0
        %525 = vmatpush.bf16.msra.mxu0 0
        %526 = vmatpush.bf16.msra.mxu0 %v458
        %527 = vmatmul.bf16.gmra.mxu0 %v478
        %v528 = vpop.f32.mrf.mxu0
        %v529 = vadd.f32 %v516, %v528
        %v530 = vpop.f32.mrf.mxu0
        %531 = vdwg.mxu0
        %s532 = sld [smem:[#allocation2]]
        %vm533 = vcmp.ge.f32.partialorder %v503, 0.0
        %vm534 = vcmp.ge.f32.partialorder %v529, 0.0
        %v535 = vstv %s532
        %v536 = vmul.f32 %v535, %v503
        %v537 = vmul.f32 %v535, %v529
        %v538 = vsel %vm533, %v503, %v536
        %v539 = vsel %vm534, %v529, %v537
        %v542 = vrot.slane %v539, 4
        %vm543 = vcmask 1043456
        %v544 = vsel %vm543, %v538, %v542
        %v546 = vsub.f32 %v356, %v544
        %548 = vst [vmem:[#allocation1] ss:$2 sm:$0xff] %v546
        %v549 = vld.sshfl [vmem:[#allocation1] sm:$0xff pattern:$0x75316420]
        %v550 = vld.sshfl [vmem:[#allocation1 + $0x8] sm:$0xff pattern:$0x75316420]
        %v553 = vpack.c.bf16 %v550, %v549
        %v555 = vrot.slane %v553, 2
        %vm556 = vcmask 1041408
        %v559 = vsel %vm556, %v553, %v555
        %561 = vst [vmem:[%s352] sm:$0xf] %v559
        %s562 = smul.u32 2, %s17
        %p563 = scmp.lt.s32.totalorder %s562, 3
        %s564 = scalar_select %p563, %s562, 3
        %s565 = smul.addr %s564, 2
        %s566 = scalar_lea.vmem %s5, %s565
        // Predicated region
        $region79: #{_lambda_.22} parent=73 // pred_check
          %p567 = pneg %p150
        $region80: #{_lambda_.22} parent=73 // pred_check_branch
          %569 = sbr.rel (%p567) target = $region82
        $region81: #{_lambda_.22} parent=73 // pred_region
          %s570 = smul.u32 2, %s17
        $region82: #{_lambda_.22} parent=73 // pred_fallthru
          _
      $region74: #{_lambda_.22} parent=5 // pred_fallthru
        _
      %p571 = scmp.le.s32.totalorder 2, %s12
      // Predicated region
      $region83: #{_lambda_.22} parent=5 // pred_check
        %p572 = pneg %p571
      $region84: #{_lambda_.22} parent=5 // pred_check_branch
        %574 = sbr.rel (%p572) target = $region86
      $region85: #{_lambda_.22} parent=5 // pred_region
        %s575 = ssub.s32 %s12, 2
        // Predicated region
        $region87: #{_lambda_.22} parent=85 // pred_check
          %p576 = pneg %p156
        $region88: #{_lambda_.22} parent=85 // pred_check_branch
          %578 = sbr.rel (%p576) target = $region90
        $region89: #{_lambda_.22} parent=85 // pred_region
          %s579 = smul.u32 2, %s18
          %p580 = scmp.lt.s32.totalorder %s579, 3
          %s581 = scalar_select %p580, %s579, 3
          %s582 = smul.addr %s581, 2
          %s583 = scalar_lea.vmem %s5, %s582
        $region90: #{_lambda_.22} parent=85 // pred_fallthru
          _
      $region86: #{_lambda_.22} parent=5 // pred_fallthru
        _
    $region6: #{_lambda_.22} parent=1 // loop_footer
      %s16 = sadd.s32 1, %s12
    $region7: #{_lambda_.22} parent=1 // loop_footer_branch
      %11 = sbr.rel target = $region3
    $region8: #{_lambda_.22} parent=1 // loop_exit
      _

// kernel: _lambda_.24
$region0: #{_lambda_.24}
  #allocation0 [shape = 'u32[]', space=smem, size = 0x4, offset = 0x4, fixed_abs, tag = 'smem constant byte address 0x4 - core index']
  #allocation1 [shape = 'u32[72,128]{1,0:T(1,128)}', space=vmem, size = 0x9000, scoped, tag = 'internal scratch']
  #allocation2 [shape = 'f32[1]{0:T(128)S(6)}', space=smem, size = 0x200, scoped, tag = 'scoped memory for _lambda_.24']
  %s0 = inlined_call_operand.vmem [shape: bf16[4,144], index: 0, kind: input, shape index: {}]
  %s1 = inlined_call_operand.vmem [shape: bf16[144,512], index: 1, kind: input, shape index: {}]
  %s2 = inlined_call_operand.vmem [shape: f32[4,1], index: 2, kind: input, shape index: {}]
  %s3 = inlined_call_operand.<no memory space> [shape: f32[1], index: 3, kind: input, shape index: {}]
  %s4 = inlined_call_operand.vmem [shape: bf16[4,512], index: 4, kind: output, shape index: {}]
  %s5 = sld [smem:[#allocation0]]
  $region87: #{_lambda_.24} parent=0
    _
  %s7 = ssub.s32 1, %s5
  %s8 = scalar_select 0, %s7, %s5
  %9 = sst [smem:[#allocation2]] %s3
  $region1: #{_lambda_.24} parent=0
    #allocation3 [shape = 'u8[147456]{0}', space=vmem, size = 0x24000, scoped, tag = 'input window, operand 1']
    loop: start=0, step=1, limit=4
    $region2: #{_lambda_.24} parent=1 // loop_pre_header
      _
    $region3: #{_lambda_.24} parent=1 // loop_header
      %s11 = sphi 0, %s15
      %p12 = scmp.ge.s32.totalorder %s11, 4
      %s19 = sphi 0, %s19
      %s21 = sphi 0, %s19
      %s22 = sphi 0, %s21
      %s36 = sphi 0, %s22
      %s42 = sphi 0, %s44
      %s45 = sphi 0, %s42
      %s46 = sphi 0, %s45
      %s62 = sphi 0, %s46
      %s66 = sphi 0, %s66
      %s68 = sphi 0, %s66
      %s69 = sphi 0, %s68
      %s83 = sphi 0, %s69
      %s87 = sphi 0, %s87
      %s89 = sphi 0, %s87
      %s90 = sphi 0, %s89
      %s104 = sphi 0, %s90
      %s110 = sphi 0, %s112
      %s113 = sphi 0, %s110
      %s114 = sphi 0, %s113
      %s130 = sphi 0, %s114
    $region4: #{_lambda_.24} parent=1 // loop_header_branch
      %14 = sbr.rel (%p12) target = $region8
    $region5: #{_lambda_.24} parent=1 // loop_body
      %s16 = ssub.s32 %s11, 1
      %s17 = ssub.s32 %s11, 2
      %s18 = sadd.s32 %s11, 1
      %s20 = sadd.s32 %s19, 1
      %p23 = scmp.eq.s32.totalorder %s11, 1
      %p24 = scmp.ne.s32.totalorder %s19, %s21
      %p25 = scmp.eq.s32.totalorder %s11, 0
      %p26 = por %p24, %p25
      %p27 = scmp.ne.s32.totalorder %s19, %s21
      %p28 = scmp.eq.s32.totalorder %s16, 1
      %p29 = por %p27, %p28
      %p30 = scmp.ne.s32.totalorder %s21, %s22
      %p31 = scmp.eq.s32.totalorder %s16, 0
      %p32 = por %p30, %p31
      %p33 = scmp.ne.s32.totalorder %s21, %s22
      %p34 = scmp.eq.s32.totalorder %s17, 1
      %p35 = por %p33, %p34
      %p37 = scmp.ne.s32.totalorder %s22, %s36
      %p38 = scmp.eq.s32.totalorder %s17, 0
      %p39 = por %p37, %p38
      %s40 = ssub.s32 %s11, %s18
      %p41 = scmp.eq.s32.totalorder %s40, 0
      %s43 = sadd.s32 %s42, 1
      %s44 = scalar_select %p41, %s42, %s43
      %p47 = pneg %p41
      %p48 = scmp.eq.s32.totalorder %s11, 1
      %p49 = por %p47, %p48
      %p50 = scmp.ne.s32.totalorder %s42, %s45
      %p51 = scmp.eq.s32.totalorder %s11, 0
      %p52 = por %p50, %p51
      %p53 = scmp.ne.s32.totalorder %s42, %s45
      %p54 = scmp.eq.s32.totalorder %s16, 1
      %p55 = por %p53, %p54
      %p56 = scmp.ne.s32.totalorder %s45, %s46
      %p57 = scmp.eq.s32.totalorder %s16, 0
      %p58 = por %p56, %p57
      %p59 = scmp.ne.s32.totalorder %s45, %s46
      %p60 = scmp.eq.s32.totalorder %s17, 1
      %p61 = por %p59, %p60
      %p63 = scmp.ne.s32.totalorder %s46, %s62
      %p64 = scmp.eq.s32.totalorder %s17, 0
      %p65 = por %p63, %p64
      %s67 = sadd.s32 %s66, 1
      %p70 = scmp.eq.s32.totalorder %s11, 1
      %p71 = scmp.ne.s32.totalorder %s66, %s68
      %p72 = scmp.eq.s32.totalorder %s11, 0
      %p73 = por %p71, %p72
      %p74 = scmp.ne.s32.totalorder %s66, %s68
      %p75 = scmp.eq.s32.totalorder %s16, 1
      %p76 = por %p74, %p75
      %p77 = scmp.ne.s32.totalorder %s68, %s69
      %p78 = scmp.eq.s32.totalorder %s16, 0
      %p79 = por %p77, %p78
      %p80 = scmp.ne.s32.totalorder %s68, %s69
      %p81 = scmp.eq.s32.totalorder %s17, 1
      %p82 = por %p80, %p81
      %p84 = scmp.ne.s32.totalorder %s69, %s83
      %p85 = scmp.eq.s32.totalorder %s17, 0
      %p86 = por %p84, %p85
      %s88 = sadd.s32 %s87, 1
      %p91 = scmp.eq.s32.totalorder %s11, 1
      %p92 = scmp.ne.s32.totalorder %s87, %s89
      %p93 = scmp.eq.s32.totalorder %s11, 0
      %p94 = por %p92, %p93
      %p95 = scmp.ne.s32.totalorder %s87, %s89
      %p96 = scmp.eq.s32.totalorder %s16, 1
      %p97 = por %p95, %p96
      %p98 = scmp.ne.s32.totalorder %s89, %s90
      %p99 = scmp.eq.s32.totalorder %s16, 0
      %p100 = por %p98, %p99
      %p101 = scmp.ne.s32.totalorder %s89, %s90
      %p102 = scmp.eq.s32.totalorder %s17, 1
      %p103 = por %p101, %p102
      %p105 = scmp.ne.s32.totalorder %s90, %s104
      %p106 = scmp.eq.s32.totalorder %s17, 0
      %p107 = por %p105, %p106
      %s108 = ssub.s32 %s11, %s18
      %p109 = scmp.eq.s32.totalorder %s108, 0
      %s111 = sadd.s32 %s110, 1
      %s112 = scalar_select %p109, %s110, %s111
      %p115 = pneg %p109
      %p116 = scmp.eq.s32.totalorder %s11, 1
      %p117 = por %p115, %p116
      %p118 = scmp.ne.s32.totalorder %s110, %s113
      %p119 = scmp.eq.s32.totalorder %s11, 0
      %p120 = por %p118, %p119
      %p121 = scmp.ne.s32.totalorder %s110, %s113
      %p122 = scmp.eq.s32.totalorder %s16, 1
      %p123 = por %p121, %p122
      %p124 = scmp.ne.s32.totalorder %s113, %s114
      %p125 = scmp.eq.s32.totalorder %s16, 0
      %p126 = por %p124, %p125
      %p127 = scmp.ne.s32.totalorder %s113, %s114
      %p128 = scmp.eq.s32.totalorder %s17, 1
      %p129 = por %p127, %p128
      %p131 = scmp.ne.s32.totalorder %s114, %s130
      %p132 = scmp.eq.s32.totalorder %s17, 0
      %p133 = por %p131, %p132
      %p134 = scmp.le.s32.totalorder 1, %s11
      %p135 = scmp.lt.s32.totalorder %s11, 3
      %p136 = pnand %p134, %p135
      %p137 = pneg %p136
      // Predicated region
      $region9: #{_lambda_.24} parent=5 // pred_check
        _
      $region10: #{_lambda_.24} parent=5 // pred_check_branch
        %139 = sbr.rel (%p136) target = $region12
      $region11: #{_lambda_.24} parent=5 // pred_region
        %s140 = ssub.s32 %s11, 1
        // Predicated region
        $region13: #{_lambda_.24} parent=11 // pred_check
          %p141 = pneg %p32
        $region14: #{_lambda_.24} parent=11 // pred_check_branch
          %143 = sbr.rel (%p141) target = $region16
        $region15: #{_lambda_.24} parent=11 // pred_region
          _
        $region16: #{_lambda_.24} parent=11 // pred_fallthru
          _
        // Predicated region
        $region17: #{_lambda_.24} parent=11 // pred_check
          %p144 = pneg %p79
        $region18: #{_lambda_.24} parent=11 // pred_check_branch
          %146 = sbr.rel (%p144) target = $region20
        $region19: #{_lambda_.24} parent=11 // pred_region
          _
        $region20: #{_lambda_.24} parent=11 // pred_fallthru
          _
        // Predicated region
        $region21: #{_lambda_.24} parent=11 // pred_check
          %p147 = pneg %p100
        $region22: #{_lambda_.24} parent=11 // pred_check_branch
          %149 = sbr.rel (%p147) target = $region24
        $region23: #{_lambda_.24} parent=11 // pred_region
          _
        $region24: #{_lambda_.24} parent=11 // pred_fallthru
          _
      $region12: #{_lambda_.24} parent=5 // pred_fallthru
        _
      %p150 = scmp.lt.s32.totalorder %s11, 2
      // Predicated region
      $region25: #{_lambda_.24} parent=5 // pred_check
        %p151 = pneg %p150
      $region26: #{_lambda_.24} parent=5 // pred_check_branch
        %153 = sbr.rel (%p151) target = $region28
      $region27: #{_lambda_.24} parent=5 // pred_region
        // Predicated region
        $region29: #{_lambda_.24} parent=27 // pred_check
          %p154 = pneg %p52
        $region30: #{_lambda_.24} parent=27 // pred_check_branch
          %156 = sbr.rel (%p154) target = $region32
        $region31: #{_lambda_.24} parent=27 // pred_region
          %s157 = sand.u32 %s42, 1
          %s158 = sand.u32 %s42, 1
          %s159 = smul.addr %s158, 144
          %s160 = scalar_lea.vmem [#allocation3], %s159
          %s161 = smul.u32 2, %s11
          %s162 = smul.addr %s161, 4
          %s163 = scalar_lea.vmem %s1, %s162
          // Predicated region
          $region33: #{_lambda_.24} parent=31 // pred_check
            _
          $region34: #{_lambda_.24} parent=31 // pred_check_branch
            %165 = sbr.rel (0) target = $region36
          $region35: #{_lambda_.24} parent=31 // pred_region
            // Predicated region
            $region37: #{_lambda_.24} parent=35 // pred_check
              _
            $region38: #{_lambda_.24} parent=35 // pred_check_branch
              %167 = sbr.rel (0) target = $region40
            $region39: #{_lambda_.24} parent=35 // pred_region
              // Predicated region
              $region52: #{_lambda_.24} parent=39 // pred_check
                _
              $region53: #{_lambda_.24} parent=39 // pred_check_branch
                %217 = sbr.rel (0) target = $region55
              $region54: #{_lambda_.24} parent=39 // pred_region
                loop: start=0, step=1, limit=1
                $region56: #{_lambda_.24} parent=54 // loop_pre_header
                  _
                $region57: #{_lambda_.24} parent=54 // loop_header
                  %s219 = sphi 0, %s223
                  %p220 = scmp.ge.s32.totalorder %s219, 1
                  %s224 = sphi %s163, %s163
                  %s225 = sphi %s160, %s160
                $region58: #{_lambda_.24} parent=54 // loop_header_branch
                  %222 = sbr.rel (%p220) target = $region62
                $region59: #{_lambda_.24} parent=54 // loop_body
                  %v226 = vld [vmem:[%s224] sm:$0xff]
                  %227 = vst [vmem:[%s225] sm:$0xff] %v226
                  %v228 = vld [vmem:[%s224 + $0x10] sm:$0xff]
                  %229 = vst [vmem:[%s225 + $0x8] sm:$0xff] %v228
                  %v230 = vld [vmem:[%s224 + $0x20] sm:$0xff]
                  %231 = vst [vmem:[%s225 + $0x10] sm:$0xff] %v230
                  %v232 = vld [vmem:[%s224 + $0x30] sm:$0xff]
                  %233 = vst [vmem:[%s225 + $0x18] sm:$0xff] %v232
                  %v234 = vld [vmem:[%s224 + $0x40] sm:$0xff]
                  %235 = vst [vmem:[%s225 + $0x20] sm:$0xff] %v234
                  %v236 = vld [vmem:[%s224 + $0x50] sm:$0xff]
                  %237 = vst [vmem:[%s225 + $0x28] sm:$0xff] %v236
                  %v238 = vld [vmem:[%s224 + $0x60] sm:$0xff]
                  %239 = vst [vmem:[%s225 + $0x30] sm:$0xff] %v238
                  %v240 = vld [vmem:[%s224 + $0x70] sm:$0xff]
                  %241 = vst [vmem:[%s225 + $0x38] sm:$0xff] %v240
                  %v242 = vld [vmem:[%s224 + $0x80] sm:$0xff]
                  %243 = vst [vmem:[%s225 + $0x40] sm:$0xff] %v242
                  %v244 = vld [vmem:[%s224 + $0x90] sm:$0xff]
                  %245 = vst [vmem:[%s225 + $0x48] sm:$0xff] %v244
                  %v246 = vld [vmem:[%s224 + $0xa0] sm:$0xff]
                  %247 = vst [vmem:[%s225 + $0x50] sm:$0xff] %v246
                  %v248 = vld [vmem:[%s224 + $0xb0] sm:$0xff]
                  %249 = vst [vmem:[%s225 + $0x58] sm:$0xff] %v248
                  %v250 = vld [vmem:[%s224 + $0xc0] sm:$0xff]
                  %251 = vst [vmem:[%s225 + $0x60] sm:$0xff] %v250
                  %v252 = vld [vmem:[%s224 + $0xd0] sm:$0xff]
                  %253 = vst [vmem:[%s225 + $0x68] sm:$0xff] %v252
                  %v254 = vld [vmem:[%s224 + $0xe0] sm:$0xff]
                  %255 = vst [vmem:[%s225 + $0x70] sm:$0xff] %v254
                  %v256 = vld [vmem:[%s224 + $0xf0] sm:$0xff]
                  %257 = vst [vmem:[%s225 + $0x78] sm:$0xff] %v256
                  %v258 = vld [vmem:[%s224 + $0x100] sm:$0xff]
                  %259 = vst [vmem:[%s225 + $0x80] sm:$0xff] %v258
                  %v260 = vld [vmem:[%s224 + $0x110] sm:$0xff]
                  %261 = vst [vmem:[%s225 + $0x88] sm:$0xff] %v260
                $region60: #{_lambda_.24} parent=54 // loop_footer
                  %s223 = sadd.s32 1, %s219
                $region61: #{_lambda_.24} parent=54 // loop_footer_branch
                  %218 = sbr.rel target = $region57
                $region62: #{_lambda_.24} parent=54 // loop_exit
                  _
              $region55: #{_lambda_.24} parent=39 // pred_fallthru
                _
              // Predicated region
              $region63: #{_lambda_.24} parent=39 // pred_check
                _
              $region64: #{_lambda_.24} parent=39 // pred_check_branch
                %263 = sbr.rel target = $region66
              $region65: #{_lambda_.24} parent=39 // pred_region
                _
              $region66: #{_lambda_.24} parent=39 // pred_fallthru
                _
            $region40: #{_lambda_.24} parent=35 // pred_fallthru
              _
            // Predicated region
            $region41: #{_lambda_.24} parent=35 // pred_check
              _
            $region42: #{_lambda_.24} parent=35 // pred_check_branch
              %169 = sbr.rel target = $region44
            $region43: #{_lambda_.24} parent=35 // pred_region
              %s171 = ssub.s32 256, 1
              loop: start=0, step=1, limit=1
              $region45: #{_lambda_.24} parent=43 // loop_pre_header
                _
              $region46: #{_lambda_.24} parent=43 // loop_header
                %s173 = sphi 0, %s177
                %p174 = scmp.ge.s32.totalorder %s173, 1
                %s178 = sphi %s163, %s163
                %s179 = sphi %s160, %s160
              $region47: #{_lambda_.24} parent=43 // loop_header_branch
                %176 = sbr.rel (%p174) target = $region51
              $region48: #{_lambda_.24} parent=43 // loop_body
                %v180 = vld [vmem:[%s178] sm:%s171]
                %181 = vst [vmem:[%s179] sm:%s171] %v180
                %v182 = vld [vmem:[%s178 + $0x10] sm:%s171]
                %183 = vst [vmem:[%s179 + $0x8] sm:%s171] %v182
                %v184 = vld [vmem:[%s178 + $0x20] sm:%s171]
                %185 = vst [vmem:[%s179 + $0x10] sm:%s171] %v184
                %v186 = vld [vmem:[%s178 + $0x30] sm:%s171]
                %187 = vst [vmem:[%s179 + $0x18] sm:%s171] %v186
                %v188 = vld [vmem:[%s178 + $0x40] sm:%s171]
                %189 = vst [vmem:[%s179 + $0x20] sm:%s171] %v188
                %v190 = vld [vmem:[%s178 + $0x50] sm:%s171]
                %191 = vst [vmem:[%s179 + $0x28] sm:%s171] %v190
                %v192 = vld [vmem:[%s178 + $0x60] sm:%s171]
                %193 = vst [vmem:[%s179 + $0x30] sm:%s171] %v192
                %v194 = vld [vmem:[%s178 + $0x70] sm:%s171]
                %195 = vst [vmem:[%s179 + $0x38] sm:%s171] %v194
                %v196 = vld [vmem:[%s178 + $0x80] sm:%s171]
                %197 = vst [vmem:[%s179 + $0x40] sm:%s171] %v196
                %v198 = vld [vmem:[%s178 + $0x90] sm:%s171]
                %199 = vst [vmem:[%s179 + $0x48] sm:%s171] %v198
                %v200 = vld [vmem:[%s178 + $0xa0] sm:%s171]
                %201 = vst [vmem:[%s179 + $0x50] sm:%s171] %v200
                %v202 = vld [vmem:[%s178 + $0xb0] sm:%s171]
                %203 = vst [vmem:[%s179 + $0x58] sm:%s171] %v202
                %v204 = vld [vmem:[%s178 + $0xc0] sm:%s171]
                %205 = vst [vmem:[%s179 + $0x60] sm:%s171] %v204
                %v206 = vld [vmem:[%s178 + $0xd0] sm:%s171]
                %207 = vst [vmem:[%s179 + $0x68] sm:%s171] %v206
                %v208 = vld [vmem:[%s178 + $0xe0] sm:%s171]
                %209 = vst [vmem:[%s179 + $0x70] sm:%s171] %v208
                %v210 = vld [vmem:[%s178 + $0xf0] sm:%s171]
                %211 = vst [vmem:[%s179 + $0x78] sm:%s171] %v210
                %v212 = vld [vmem:[%s178 + $0x100] sm:%s171]
                %213 = vst [vmem:[%s179 + $0x80] sm:%s171] %v212
                %v214 = vld [vmem:[%s178 + $0x110] sm:%s171]
                %215 = vst [vmem:[%s179 + $0x88] sm:%s171] %v214
              $region49: #{_lambda_.24} parent=43 // loop_footer
                %s177 = sadd.s32 1, %s173
              $region50: #{_lambda_.24} parent=43 // loop_footer_branch
                %172 = sbr.rel target = $region46
              $region51: #{_lambda_.24} parent=43 // loop_exit
                _
            $region44: #{_lambda_.24} parent=35 // pred_fallthru
              _
          $region36: #{_lambda_.24} parent=31 // pred_fallthru
            _
          %264 = vnop
        $region32: #{_lambda_.24} parent=27 // pred_fallthru
          _
      $region28: #{_lambda_.24} parent=5 // pred_fallthru
        _
      %p265 = scmp.le.s32.totalorder 1, %s11
      %p266 = scmp.lt.s32.totalorder %s11, 3
      %p267 = pnand %p265, %p266
      %p268 = pneg %p267
      // Predicated region
      $region67: #{_lambda_.24} parent=5 // pred_check
        _
      $region68: #{_lambda_.24} parent=5 // pred_check_branch
        %270 = sbr.rel (%p267) target = $region70
      $region69: #{_lambda_.24} parent=5 // pred_region
        %s271 = ssub.s32 %s11, 1
        %s272 = sand.u32 %s45, 1
        %s273 = sand.u32 %s45, 1
        %s274 = smul.addr %s273, 144
        %s275 = scalar_lea.vmem [#allocation3], %s274
        // Predicated region
        $region71: #{_lambda_.24} parent=69 // pred_check
          %p276 = pneg %p58
        $region72: #{_lambda_.24} parent=69 // pred_check_branch
          %278 = sbr.rel (%p276) target = $region74
        $region73: #{_lambda_.24} parent=69 // pred_region
          _
        $region74: #{_lambda_.24} parent=69 // pred_fallthru
          _
        %p279 = pneg %p32
        %p280 = pneg %p29
        %s281 = sand.u32 %s45, 1
        %s282 = sand.u32 %s45, 1
        %s283 = smul.addr %s282, 144
        %s284 = scalar_lea.vmem [#allocation3], %s283
        %p285 = pneg %p58
        %p286 = pneg %p55
        %p287 = pneg %p79
        %p288 = pneg %p76
        %p289 = pneg %p100
        %p290 = pneg %p97
        %p291 = pneg %p126
        %p292 = pneg %p123
        %s293 = smul.u32 2, %s16
        %p294 = scmp.lt.s32.totalorder %s293, 3
        %s295 = scalar_select %p294, %s293, 3
        %s296 = smul.addr %s295, 2
        %s297 = scalar_lea.vmem %s4, %s296
        %s298 = smul.u32 2, %s16
        %s299 = smul.u32 2, %s16
        %p300 = scmp.lt.s32.totalorder %s299, 3
        %s301 = scalar_select %p300, %s299, 3
        %s302 = smul.addr %s301, 2
        %s303 = scalar_lea.vmem %s4, %s302
        %s304 = smul.u32 2, %s16
        %v306 = vld [vmem:[%s0] sm:$0xf]
        %v307 = vld [vmem:[%s275] sm:$0xff]
        %v308 = vld [vmem:[%s275 + $0x8] sm:$0xff]
        %v309 = vld [vmem:[%s275 + $0x10] sm:$0xff]
        %v310 = vld [vmem:[%s275 + $0x18] sm:$0xff]
        %v311 = vld [vmem:[%s275 + $0x20] sm:$0xff]
        %v312 = vld [vmem:[%s275 + $0x28] sm:$0xff]
        %v313 = vld [vmem:[%s275 + $0x30] sm:$0xff]
        %v314 = vld [vmem:[%s275 + $0x38] sm:$0xff]
        %v315 = vld [vmem:[%s275 + $0x40] sm:$0xff]
        %v316 = vld [vmem:[%s275 + $0x48] sm:$0xff]
        %v317 = vld [vmem:[%s275 + $0x50] sm:$0xff]
        %v318 = vld [vmem:[%s275 + $0x58] sm:$0xff]
        %v319 = vld [vmem:[%s275 + $0x60] sm:$0xff]
        %v320 = vld [vmem:[%s275 + $0x68] sm:$0xff]
        %v321 = vld [vmem:[%s275 + $0x70] sm:$0xff]
        %v322 = vld [vmem:[%s275 + $0x78] sm:$0xff]
        %v323 = vld [vmem:[%s275 + $0x80] sm:$0xff]
        %v324 = vld [vmem:[%s275 + $0x88] sm:$0xff]
        %v325 = vld [vmem:[%s2] sm:$0xf]
        %327 = vset.pattern.permute.xlu0 0
        %328 = vperm.xlu0 %327, %v325
        %v329 = vpop.permute.xlu0 %328
        %332 = vst [vmem:[#allocation1] ss:$4 sm:$0xff] %v306
        %v333 = vld.sshfl [vmem:[#allocation1] sm:$0xff pattern:$0x73625140]
        %v334 = vld.sshfl [vmem:[#allocation1 + $0x8] sm:$0xff pattern:$0x73625140]
        %v354 = vunpack.c.l.b16 %v307
        %v355 = vunpack.c.h.b16 %v307
        %v356 = vunpack.c.l.b16 %v308
        %v357 = vunpack.c.h.b16 %v308
        %v358 = vunpack.c.l.b16 %v309
        %v359 = vunpack.c.h.b16 %v309
        %v360 = vunpack.c.l.b16 %v310
        %v361 = vunpack.c.h.b16 %v310
        %v362 = vunpack.c.l.b16 %v311
        %v363 = vunpack.c.h.b16 %v311
        %v364 = vunpack.c.l.b16 %v312
        %v365 = vunpack.c.h.b16 %v312
        %v366 = vunpack.c.l.b16 %v313
        %v367 = vunpack.c.h.b16 %v313
        %v368 = vunpack.c.l.b16 %v314
        %v369 = vunpack.c.h.b16 %v314
        %v370 = vunpack.c.l.b16 %v315
        %v371 = vunpack.c.h.b16 %v315
        %v372 = vunpack.c.l.b16 %v316
        %v373 = vunpack.c.h.b16 %v316
        %v374 = vunpack.c.l.b16 %v317
        %v375 = vunpack.c.h.b16 %v317
        %v376 = vunpack.c.l.b16 %v318
        %v377 = vunpack.c.h.b16 %v318
        %v378 = vunpack.c.l.b16 %v319
        %v379 = vunpack.c.h.b16 %v319
        %v380 = vunpack.c.l.b16 %v320
        %v381 = vunpack.c.h.b16 %v320
        %v382 = vunpack.c.l.b16 %v321
        %v383 = vunpack.c.h.b16 %v321
        %v384 = vunpack.c.l.b16 %v322
        %v385 = vunpack.c.h.b16 %v322
        %v386 = vunpack.c.l.b16 %v323
        %v387 = vunpack.c.h.b16 %v323
        %v388 = vunpack.c.l.b16 %v324
        %v389 = vunpack.c.h.b16 %v324
        %v390 = vpack.c.b16 %v356, %v354
        %v391 = vpack.c.b16 %v357, %v355
        %v392 = vpack.c.b16 %v360, %v358
        %v393 = vpack.c.b16 %v361, %v359
        %v394 = vpack.c.b16 %v364, %v362
        %v395 = vpack.c.b16 %v365, %v363
        %v396 = vpack.c.b16 %v368, %v366
        %v397 = vpack.c.b16 %v369, %v367
        %v398 = vpack.c.b16 %v372, %v370
        %v399 = vpack.c.b16 %v373, %v371
        %v400 = vpack.c.b16 %v376, %v374
        %v401 = vpack.c.b16 %v377, %v375
        %v402 = vpack.c.b16 %v380, %v378
        %v403 = vpack.c.b16 %v381, %v379
        %v404 = vpack.c.b16 %v384, %v382
        %v405 = vpack.c.b16 %v385, %v383
        %v406 = vpack.c.b16 %v388, %v386
        %v407 = vpack.c.b16 %v389, %v387
        %vm426 = vcmask 130048
        %v427 = vsel %vm426, %v334, 0
        %429 = vmatpush.bf16.msra.mxu0 %v404
        %430 = vmatpush.bf16.msra.mxu0 %v402
        %431 = vmatpush.bf16.msra.mxu0 %v400
        %432 = vmatpush.bf16.msra.mxu0 %v398
        %433 = vmatpush.bf16.msra.mxu0 %v396
        %434 = vmatpush.bf16.msra.mxu0 %v394
        %435 = vmatpush.bf16.msra.mxu0 %v392
        %436 = vmatpush.bf16.msra.mxu0 %v390
        %437 = vmatmul.bf16.gmra.mxu0 %v333
        %v438 = vpop.f32.mrf.mxu0
        %v439 = vadd.f32 %v329, %v438
        %v440 = vpop.f32.mrf.mxu0
        %441 = vdwg.mxu0
        %442 = vmatpush.bf16.msra.mxu0 0
        %443 = vmatpush.bf16.msra.mxu0 0
        %444 = vmatpush.bf16.msra.mxu0 0
        %445 = vmatpush.bf16.msra.mxu0 0
        %446 = vmatpush.bf16.msra.mxu0 0
        %447 = vmatpush.bf16.msra.mxu0 0
        %448 = vmatpush.bf16.msra.mxu0 0
        %449 = vmatpush.bf16.msra.mxu0 %v406
        %450 = vmatmul.bf16.gmra.mxu0 %v427
        %v451 = vpop.f32.mrf.mxu0
        %v452 = vadd.f32 %v439, %v451
        %v453 = vpop.f32.mrf.mxu0
        %454 = vdwg.mxu0
        %455 = vmatpush.bf16.msra.mxu0 %v405
        %456 = vmatpush.bf16.msra.mxu0 %v403
        %457 = vmatpush.bf16.msra.mxu0 %v401
        %458 = vmatpush.bf16.msra.mxu0 %v399
        %459 = vmatpush.bf16.msra.mxu0 %v397
        %460 = vmatpush.bf16.msra.mxu0 %v395
        %461 = vmatpush.bf16.msra.mxu0 %v393
        %462 = vmatpush.bf16.msra.mxu0 %v391
        %463 = vmatmul.bf16.gmra.mxu0 %v333
        %v464 = vpop.f32.mrf.mxu0
        %v465 = vadd.f32 %v329, %v464
        %v466 = vpop.f32.mrf.mxu0
        %467 = vdwg.mxu0
        %468 = vmatpush.bf16.msra.mxu0 0
        %469 = vmatpush.bf16.msra.mxu0 0
        %470 = vmatpush.bf16.msra.mxu0 0
        %471 = vmatpush.bf16.msra.mxu0 0
        %472 = vmatpush.bf16.msra.mxu0 0
        %473 = vmatpush.bf16.msra.mxu0 0
        %474 = vmatpush.bf16.msra.mxu0 0
        %475 = vmatpush.bf16.msra.mxu0 %v407
        %476 = vmatmul.bf16.gmra.mxu0 %v427
        %v477 = vpop.f32.mrf.mxu0
        %v478 = vadd.f32 %v465, %v477
        %v479 = vpop.f32.mrf.mxu0
        %480 = vdwg.mxu0
        %s481 = sld [smem:[#allocation2]]
        %vm482 = vcmp.ge.f32.partialorder %v452, 0.0
        %vm483 = vcmp.ge.f32.partialorder %v478, 0.0
        %v484 = vstv %s481
        %v485 = vmul.f32 %v484, %v452
        %v486 = vmul.f32 %v484, %v478
        %v487 = vsel %vm482, %v452, %v485
        %v488 = vsel %vm483, %v478, %v486
        %v489 = vpack.c.bf16 %v488, %v487
        %v491 = vrot.slane %v489, 2
        %vm492 = vcmask 1041408
        %v495 = vsel %vm492, %v489, %v491
        %497 = vst [vmem:[%s303] sm:$0xf] %v495
        %s498 = smul.u32 2, %s16
        %p499 = scmp.lt.s32.totalorder %s498, 3
        %s500 = scalar_select %p499, %s498, 3
        %s501 = smul.addr %s500, 2
        %s502 = scalar_lea.vmem %s4, %s501
        // Predicated region
        $region75: #{_lambda_.24} parent=69 // pred_check
          %p503 = pneg %p123
        $region76: #{_lambda_.24} parent=69 // pred_check_branch
          %505 = sbr.rel (%p503) target = $region78
        $region77: #{_lambda_.24} parent=69 // pred_region
          %s506 = smul.u32 2, %s16
        $region78: #{_lambda_.24} parent=69 // pred_fallthru
          _
      $region70: #{_lambda_.24} parent=5 // pred_fallthru
        _
      %p507 = scmp.le.s32.totalorder 2, %s11
      // Predicated region
      $region79: #{_lambda_.24} parent=5 // pred_check
        %p508 = pneg %p507
      $region80: #{_lambda_.24} parent=5 // pred_check_branch
        %510 = sbr.rel (%p508) target = $region82
      $region81: #{_lambda_.24} parent=5 // pred_region
        %s511 = ssub.s32 %s11, 2
        // Predicated region
        $region83: #{_lambda_.24} parent=81 // pred_check
          %p512 = pneg %p129
        $region84: #{_lambda_.24} parent=81 // pred_check_branch
          %514 = sbr.rel (%p512) target = $region86
        $region85: #{_lambda_.24} parent=81 // pred_region
          %s515 = smul.u32 2, %s17
          %p516 = scmp.lt.s32.totalorder %s515, 3
          %s517 = scalar_select %p516, %s515, 3
          %s518 = smul.addr %s517, 2
          %s519 = scalar_lea.vmem %s4, %s518
        $region86: #{_lambda_.24} parent=81 // pred_fallthru
          _
      $region82: #{_lambda_.24} parent=5 // pred_fallthru
        _
    $region6: #{_lambda_.24} parent=1 // loop_footer
      %s15 = sadd.s32 1, %s11
    $region7: #{_lambda_.24} parent=1 // loop_footer_branch
      %10 = sbr.rel target = $region3
    $region8: #{_lambda_.24} parent=1 // loop_exit
      _

// kernel: _lambda_.25
$region0: #{_lambda_.25}
  #allocation0 [shape = 'u32[]', space=smem, size = 0x4, offset = 0x4, fixed_abs, tag = 'smem constant byte address 0x4 - core index']
  #allocation1 [shape = 'u32[72,128]{1,0:T(1,128)}', space=vmem, size = 0x9000, scoped, tag = 'internal scratch']
  #allocation2 [shape = 'f32[1]{0:T(128)S(6)}', space=smem, size = 0x200, scoped, tag = 'scoped memory for _lambda_.25']
  %s0 = inlined_call_operand.vmem [shape: bf16[4,36], index: 0, kind: input, shape index: {}]
  %s1 = inlined_call_operand.vmem [shape: bf16[36,512], index: 1, kind: input, shape index: {}]
  %s2 = inlined_call_operand.vmem [shape: f32[4,1], index: 2, kind: input, shape index: {}]
  %s3 = inlined_call_operand.<no memory space> [shape: f32[1], index: 3, kind: input, shape index: {}]
  %s4 = inlined_call_operand.vmem [shape: bf16[4,512], index: 4, kind: output, shape index: {}]
  %s5 = sld [smem:[#allocation0]]
  $region87: #{_lambda_.25} parent=0
    _
  %s7 = ssub.s32 1, %s5
  %s8 = scalar_select 0, %s7, %s5
  %9 = sst [smem:[#allocation2]] %s3
  $region1: #{_lambda_.25} parent=0
    #allocation3 [shape = 'u8[40960]{0}', space=vmem, size = 0xa000, scoped, tag = 'input window, operand 1']
    loop: start=0, step=1, limit=4
    $region2: #{_lambda_.25} parent=1 // loop_pre_header
      _
    $region3: #{_lambda_.25} parent=1 // loop_header
      %s11 = sphi 0, %s15
      %p12 = scmp.ge.s32.totalorder %s11, 4
      %s19 = sphi 0, %s19
      %s21 = sphi 0, %s19
      %s22 = sphi 0, %s21
      %s36 = sphi 0, %s22
      %s42 = sphi 0, %s44
      %s45 = sphi 0, %s42
      %s46 = sphi 0, %s45
      %s62 = sphi 0, %s46
      %s66 = sphi 0, %s66
      %s68 = sphi 0, %s66
      %s69 = sphi 0, %s68
      %s83 = sphi 0, %s69
      %s87 = sphi 0, %s87
      %s89 = sphi 0, %s87
      %s90 = sphi 0, %s89
      %s104 = sphi 0, %s90
      %s110 = sphi 0, %s112
      %s113 = sphi 0, %s110
      %s114 = sphi 0, %s113
      %s130 = sphi 0, %s114
    $region4: #{_lambda_.25} parent=1 // loop_header_branch
      %14 = sbr.rel (%p12) target = $region8
    $region5: #{_lambda_.25} parent=1 // loop_body
      %s16 = ssub.s32 %s11, 1
      %s17 = ssub.s32 %s11, 2
      %s18 = sadd.s32 %s11, 1
      %s20 = sadd.s32 %s19, 1
      %p23 = scmp.eq.s32.totalorder %s11, 1
      %p24 = scmp.ne.s32.totalorder %s19, %s21
      %p25 = scmp.eq.s32.totalorder %s11, 0
      %p26 = por %p24, %p25
      %p27 = scmp.ne.s32.totalorder %s19, %s21
      %p28 = scmp.eq.s32.totalorder %s16, 1
      %p29 = por %p27, %p28
      %p30 = scmp.ne.s32.totalorder %s21, %s22
      %p31 = scmp.eq.s32.totalorder %s16, 0
      %p32 = por %p30, %p31
      %p33 = scmp.ne.s32.totalorder %s21, %s22
      %p34 = scmp.eq.s32.totalorder %s17, 1
      %p35 = por %p33, %p34
      %p37 = scmp.ne.s32.totalorder %s22, %s36
      %p38 = scmp.eq.s32.totalorder %s17, 0
      %p39 = por %p37, %p38
      %s40 = ssub.s32 %s11, %s18
      %p41 = scmp.eq.s32.totalorder %s40, 0
      %s43 = sadd.s32 %s42, 1
      %s44 = scalar_select %p41, %s42, %s43
      %p47 = pneg %p41
      %p48 = scmp.eq.s32.totalorder %s11, 1
      %p49 = por %p47, %p48
      %p50 = scmp.ne.s32.totalorder %s42, %s45
      %p51 = scmp.eq.s32.totalorder %s11, 0
      %p52 = por %p50, %p51
      %p53 = scmp.ne.s32.totalorder %s42, %s45
      %p54 = scmp.eq.s32.totalorder %s16, 1
      %p55 = por %p53, %p54
      %p56 = scmp.ne.s32.totalorder %s45, %s46
      %p57 = scmp.eq.s32.totalorder %s16, 0
      %p58 = por %p56, %p57
      %p59 = scmp.ne.s32.totalorder %s45, %s46
      %p60 = scmp.eq.s32.totalorder %s17, 1
      %p61 = por %p59, %p60
      %p63 = scmp.ne.s32.totalorder %s46, %s62
      %p64 = scmp.eq.s32.totalorder %s17, 0
      %p65 = por %p63, %p64
      %s67 = sadd.s32 %s66, 1
      %p70 = scmp.eq.s32.totalorder %s11, 1
      %p71 = scmp.ne.s32.totalorder %s66, %s68
      %p72 = scmp.eq.s32.totalorder %s11, 0
      %p73 = por %p71, %p72
      %p74 = scmp.ne.s32.totalorder %s66, %s68
      %p75 = scmp.eq.s32.totalorder %s16, 1
      %p76 = por %p74, %p75
      %p77 = scmp.ne.s32.totalorder %s68, %s69
      %p78 = scmp.eq.s32.totalorder %s16, 0
      %p79 = por %p77, %p78
      %p80 = scmp.ne.s32.totalorder %s68, %s69
      %p81 = scmp.eq.s32.totalorder %s17, 1
      %p82 = por %p80, %p81
      %p84 = scmp.ne.s32.totalorder %s69, %s83
      %p85 = scmp.eq.s32.totalorder %s17, 0
      %p86 = por %p84, %p85
      %s88 = sadd.s32 %s87, 1
      %p91 = scmp.eq.s32.totalorder %s11, 1
      %p92 = scmp.ne.s32.totalorder %s87, %s89
      %p93 = scmp.eq.s32.totalorder %s11, 0
      %p94 = por %p92, %p93
      %p95 = scmp.ne.s32.totalorder %s87, %s89
      %p96 = scmp.eq.s32.totalorder %s16, 1
      %p97 = por %p95, %p96
      %p98 = scmp.ne.s32.totalorder %s89, %s90
      %p99 = scmp.eq.s32.totalorder %s16, 0
      %p100 = por %p98, %p99
      %p101 = scmp.ne.s32.totalorder %s89, %s90
      %p102 = scmp.eq.s32.totalorder %s17, 1
      %p103 = por %p101, %p102
      %p105 = scmp.ne.s32.totalorder %s90, %s104
      %p106 = scmp.eq.s32.totalorder %s17, 0
      %p107 = por %p105, %p106
      %s108 = ssub.s32 %s11, %s18
      %p109 = scmp.eq.s32.totalorder %s108, 0
      %s111 = sadd.s32 %s110, 1
      %s112 = scalar_select %p109, %s110, %s111
      %p115 = pneg %p109
      %p116 = scmp.eq.s32.totalorder %s11, 1
      %p117 = por %p115, %p116
      %p118 = scmp.ne.s32.totalorder %s110, %s113
      %p119 = scmp.eq.s32.totalorder %s11, 0
      %p120 = por %p118, %p119
      %p121 = scmp.ne.s32.totalorder %s110, %s113
      %p122 = scmp.eq.s32.totalorder %s16, 1
      %p123 = por %p121, %p122
      %p124 = scmp.ne.s32.totalorder %s113, %s114
      %p125 = scmp.eq.s32.totalorder %s16, 0
      %p126 = por %p124, %p125
      %p127 = scmp.ne.s32.totalorder %s113, %s114
      %p128 = scmp.eq.s32.totalorder %s17, 1
      %p129 = por %p127, %p128
      %p131 = scmp.ne.s32.totalorder %s114, %s130
      %p132 = scmp.eq.s32.totalorder %s17, 0
      %p133 = por %p131, %p132
      %p134 = scmp.le.s32.totalorder 1, %s11
      %p135 = scmp.lt.s32.totalorder %s11, 3
      %p136 = pnand %p134, %p135
      %p137 = pneg %p136
      // Predicated region
      $region9: #{_lambda_.25} parent=5 // pred_check
        _
      $region10: #{_lambda_.25} parent=5 // pred_check_branch
        %139 = sbr.rel (%p136) target = $region12
      $region11: #{_lambda_.25} parent=5 // pred_region
        %s140 = ssub.s32 %s11, 1
        // Predicated region
        $region13: #{_lambda_.25} parent=11 // pred_check
          %p141 = pneg %p32
        $region14: #{_lambda_.25} parent=11 // pred_check_branch
          %143 = sbr.rel (%p141) target = $region16
        $region15: #{_lambda_.25} parent=11 // pred_region
          _
        $region16: #{_lambda_.25} parent=11 // pred_fallthru
          _
        // Predicated region
        $region17: #{_lambda_.25} parent=11 // pred_check
          %p144 = pneg %p79
        $region18: #{_lambda_.25} parent=11 // pred_check_branch
          %146 = sbr.rel (%p144) target = $region20
        $region19: #{_lambda_.25} parent=11 // pred_region
          _
        $region20: #{_lambda_.25} parent=11 // pred_fallthru
          _
        // Predicated region
        $region21: #{_lambda_.25} parent=11 // pred_check
          %p147 = pneg %p100
        $region22: #{_lambda_.25} parent=11 // pred_check_branch
          %149 = sbr.rel (%p147) target = $region24
        $region23: #{_lambda_.25} parent=11 // pred_region
          _
        $region24: #{_lambda_.25} parent=11 // pred_fallthru
          _
      $region12: #{_lambda_.25} parent=5 // pred_fallthru
        _
      %p150 = scmp.lt.s32.totalorder %s11, 2
      // Predicated region
      $region25: #{_lambda_.25} parent=5 // pred_check
        %p151 = pneg %p150
      $region26: #{_lambda_.25} parent=5 // pred_check_branch
        %153 = sbr.rel (%p151) target = $region28
      $region27: #{_lambda_.25} parent=5 // pred_region
        // Predicated region
        $region29: #{_lambda_.25} parent=27 // pred_check
          %p154 = pneg %p52
        $region30: #{_lambda_.25} parent=27 // pred_check_branch
          %156 = sbr.rel (%p154) target = $region32
        $region31: #{_lambda_.25} parent=27 // pred_region
          %s157 = sand.u32 %s42, 1
          %s158 = sand.u32 %s42, 1
          %s159 = smul.addr %s158, 40
          %s160 = scalar_lea.vmem [#allocation3], %s159
          %s161 = smul.u32 2, %s11
          %s162 = smul.addr %s161, 4
          %s163 = scalar_lea.vmem %s1, %s162
          // Predicated region
          $region33: #{_lambda_.25} parent=31 // pred_check
            _
          $region34: #{_lambda_.25} parent=31 // pred_check_branch
            %165 = sbr.rel (0) target = $region36
          $region35: #{_lambda_.25} parent=31 // pred_region
            // Predicated region
            $region37: #{_lambda_.25} parent=35 // pred_check
              _
            $region38: #{_lambda_.25} parent=35 // pred_check_branch
              %167 = sbr.rel (0) target = $region40
            $region39: #{_lambda_.25} parent=35 // pred_region
              // Predicated region
              $region52: #{_lambda_.25} parent=39 // pred_check
                _
              $region53: #{_lambda_.25} parent=39 // pred_check_branch
                %191 = sbr.rel (0) target = $region55
              $region54: #{_lambda_.25} parent=39 // pred_region
                loop: start=0, step=1, limit=1
                $region56: #{_lambda_.25} parent=54 // loop_pre_header
                  _
                $region57: #{_lambda_.25} parent=54 // loop_header
                  %s193 = sphi 0, %s197
                  %p194 = scmp.ge.s32.totalorder %s193, 1
                  %s198 = sphi %s163, %s163
                  %s199 = sphi %s160, %s160
                $region58: #{_lambda_.25} parent=54 // loop_header_branch
                  %196 = sbr.rel (%p194) target = $region62
                $region59: #{_lambda_.25} parent=54 // loop_body
                  %v200 = vld [vmem:[%s198] sm:$0xff]
                  %201 = vst [vmem:[%s199] sm:$0xff] %v200
                  %v202 = vld [vmem:[%s198 + $0x10] sm:$0xff]
                  %203 = vst [vmem:[%s199 + $0x8] sm:$0xff] %v202
                  %v204 = vld [vmem:[%s198 + $0x20] sm:$0xff]
                  %205 = vst [vmem:[%s199 + $0x10] sm:$0xff] %v204
                  %v206 = vld [vmem:[%s198 + $0x30] sm:$0xff]
                  %207 = vst [vmem:[%s199 + $0x18] sm:$0xff] %v206
                  %v208 = vld [vmem:[%s198 + $0x40] sm:$0xff]
                  %209 = vst [vmem:[%s199 + $0x20] sm:$0xff] %v208
                $region60: #{_lambda_.25} parent=54 // loop_footer
                  %s197 = sadd.s32 1, %s193
                $region61: #{_lambda_.25} parent=54 // loop_footer_branch
                  %192 = sbr.rel target = $region57
                $region62: #{_lambda_.25} parent=54 // loop_exit
                  _
              $region55: #{_lambda_.25} parent=39 // pred_fallthru
                _
              // Predicated region
              $region63: #{_lambda_.25} parent=39 // pred_check
                _
              $region64: #{_lambda_.25} parent=39 // pred_check_branch
                %211 = sbr.rel target = $region66
              $region65: #{_lambda_.25} parent=39 // pred_region
                _
              $region66: #{_lambda_.25} parent=39 // pred_fallthru
                _
            $region40: #{_lambda_.25} parent=35 // pred_fallthru
              _
            // Predicated region
            $region41: #{_lambda_.25} parent=35 // pred_check
              _
            $region42: #{_lambda_.25} parent=35 // pred_check_branch
              %169 = sbr.rel target = $region44
            $region43: #{_lambda_.25} parent=35 // pred_region
              %s171 = ssub.s32 256, 1
              loop: start=0, step=1, limit=1
              $region45: #{_lambda_.25} parent=43 // loop_pre_header
                _
              $region46: #{_lambda_.25} parent=43 // loop_header
                %s173 = sphi 0, %s177
                %p174 = scmp.ge.s32.totalorder %s173, 1
                %s178 = sphi %s163, %s163
                %s179 = sphi %s160, %s160
              $region47: #{_lambda_.25} parent=43 // loop_header_branch
                %176 = sbr.rel (%p174) target = $region51
              $region48: #{_lambda_.25} parent=43 // loop_body
                %v180 = vld [vmem:[%s178] sm:%s171]
                %181 = vst [vmem:[%s179] sm:%s171] %v180
                %v182 = vld [vmem:[%s178 + $0x10] sm:%s171]
                %183 = vst [vmem:[%s179 + $0x8] sm:%s171] %v182
                %v184 = vld [vmem:[%s178 + $0x20] sm:%s171]
                %185 = vst [vmem:[%s179 + $0x10] sm:%s171] %v184
                %v186 = vld [vmem:[%s178 + $0x30] sm:%s171]
                %187 = vst [vmem:[%s179 + $0x18] sm:%s171] %v186
                %v188 = vld [vmem:[%s178 + $0x40] sm:%s171]
                %189 = vst [vmem:[%s179 + $0x20] sm:%s171] %v188
              $region49: #{_lambda_.25} parent=43 // loop_footer
                %s177 = sadd.s32 1, %s173
              $region50: #{_lambda_.25} parent=43 // loop_footer_branch
                %172 = sbr.rel target = $region46
              $region51: #{_lambda_.25} parent=43 // loop_exit
                _
            $region44: #{_lambda_.25} parent=35 // pred_fallthru
              _
          $region36: #{_lambda_.25} parent=31 // pred_fallthru
            _
          %212 = vnop
        $region32: #{_lambda_.25} parent=27 // pred_fallthru
          _
      $region28: #{_lambda_.25} parent=5 // pred_fallthru
        _
      %p213 = scmp.le.s32.totalorder 1, %s11
      %p214 = scmp.lt.s32.totalorder %s11, 3
      %p215 = pnand %p213, %p214
      %p216 = pneg %p215
      // Predicated region
      $region67: #{_lambda_.25} parent=5 // pred_check
        _
      $region68: #{_lambda_.25} parent=5 // pred_check_branch
        %218 = sbr.rel (%p215) target = $region70
      $region69: #{_lambda_.25} parent=5 // pred_region
        %s219 = ssub.s32 %s11, 1
        %s220 = sand.u32 %s45, 1
        %s221 = sand.u32 %s45, 1
        %s222 = smul.addr %s221, 40
        %s223 = scalar_lea.vmem [#allocation3], %s222
        // Predicated region
        $region71: #{_lambda_.25} parent=69 // pred_check
          %p224 = pneg %p58
        $region72: #{_lambda_.25} parent=69 // pred_check_branch
          %226 = sbr.rel (%p224) target = $region74
        $region73: #{_lambda_.25} parent=69 // pred_region
          _
        $region74: #{_lambda_.25} parent=69 // pred_fallthru
          _
        %p227 = pneg %p32
        %p228 = pneg %p29
        %s229 = sand.u32 %s45, 1
        %s230 = sand.u32 %s45, 1
        %s231 = smul.addr %s230, 40
        %s232 = scalar_lea.vmem [#allocation3], %s231
        %p233 = pneg %p58
        %p234 = pneg %p55
        %p235 = pneg %p79
        %p236 = pneg %p76
        %p237 = pneg %p100
        %p238 = pneg %p97
        %p239 = pneg %p126
        %p240 = pneg %p123
        %s241 = smul.u32 2, %s16
        %p242 = scmp.lt.s32.totalorder %s241, 3
        %s243 = scalar_select %p242, %s241, 3
        %s244 = smul.addr %s243, 2
        %s245 = scalar_lea.vmem %s4, %s244
        %s246 = smul.u32 2, %s16
        %s247 = smul.u32 2, %s16
        %p248 = scmp.lt.s32.totalorder %s247, 3
        %s249 = scalar_select %p248, %s247, 3
        %s250 = smul.addr %s249, 2
        %s251 = scalar_lea.vmem %s4, %s250
        %s252 = smul.u32 2, %s16
        %v254 = vld [vmem:[%s0] sm:$0x3]
        %v255 = vld [vmem:[%s223] sm:$0xff]
        %v256 = vld [vmem:[%s223 + $0x8] sm:$0xff]
        %v257 = vld [vmem:[%s223 + $0x10] sm:$0xff]
        %v258 = vld [vmem:[%s223 + $0x18] sm:$0xff]
        %v259 = vld [vmem:[%s223 + $0x20] sm:$0x33]
        %v260 = vld [vmem:[%s2] sm:$0xf]
        %262 = vset.pattern.permute.xlu0 0
        %263 = vperm.xlu0 %262, %v260
        %v264 = vpop.permute.xlu0 %263
        %v271 = vunpack.c.l.b16 %v255
        %v272 = vunpack.c.h.b16 %v255
        %v273 = vunpack.c.l.b16 %v256
        %v274 = vunpack.c.h.b16 %v256
        %v275 = vunpack.c.l.b16 %v257
        %v276 = vunpack.c.h.b16 %v257
        %v277 = vunpack.c.l.b16 %v258
        %v278 = vunpack.c.h.b16 %v258
        %v279 = vunpack.c.l.b16 %v259
        %v280 = vunpack.c.h.b16 %v259
        %v281 = vpack.c.b16 %v273, %v271
        %v282 = vpack.c.b16 %v274, %v272
        %v283 = vpack.c.b16 %v277, %v275
        %v284 = vpack.c.b16 %v278, %v276
        %v285 = vpack.c.b16 %v279, %v279
        %v286 = vpack.c.b16 %v280, %v280
        %vm291 = vcmask 293888
        %v293 = vsel %vm291, %v254, 0
        %vm295 = vcmask 1041408
        %v297 = vsel %vm295, %v285, 0
        %v300 = vsel %vm295, %v286, 0
        %302 = vmatpush.bf16.msra.mxu0 0
        %303 = vmatpush.bf16.msra.mxu0 0
        %304 = vmatpush.bf16.msra.mxu0 0
        %305 = vmatpush.bf16.msra.mxu0 0
        %306 = vmatpush.bf16.msra.mxu0 0
        %307 = vmatpush.bf16.msra.mxu0 %v297
        %308 = vmatpush.bf16.msra.mxu0 %v283
        %309 = vmatpush.bf16.msra.mxu0 %v281
        %310 = vmatmul.bf16.gmra.mxu0 %v293
        %v311 = vpop.f32.mrf.mxu0
        %v312 = vadd.f32 %v264, %v311
        %v313 = vpop.f32.mrf.mxu0
        %314 = vdwg.mxu0
        %315 = vmatpush.bf16.msra.mxu0 0
        %316 = vmatpush.bf16.msra.mxu0 0
        %317 = vmatpush.bf16.msra.mxu0 0
        %318 = vmatpush.bf16.msra.mxu0 0
        %319 = vmatpush.bf16.msra.mxu0 0
        %320 = vmatpush.bf16.msra.mxu0 %v300
        %321 = vmatpush.bf16.msra.mxu0 %v284
        %322 = vmatpush.bf16.msra.mxu0 %v282
        %323 = vmatmul.bf16.gmra.mxu0 %v293
        %v324 = vpop.f32.mrf.mxu0
        %v325 = vadd.f32 %v264, %v324
        %v326 = vpop.f32.mrf.mxu0
        %327 = vdwg.mxu0
        %s328 = sld [smem:[#allocation2]]
        %vm329 = vcmp.ge.f32.partialorder %v312, 0.0
        %vm330 = vcmp.ge.f32.partialorder %v325, 0.0
        %v331 = vstv %s328
        %v332 = vmul.f32 %v331, %v312
        %v333 = vmul.f32 %v331, %v325
        %v334 = vsel %vm329, %v312, %v332
        %v335 = vsel %vm330, %v325, %v333
        %v336 = vpack.c.bf16 %v335, %v334
        %v338 = vrot.slane %v336, 2
        %v341 = vsel %vm295, %v336, %v338
        %343 = vst [vmem:[%s251] sm:$0xf] %v341
        %s344 = smul.u32 2, %s16
        %p345 = scmp.lt.s32.totalorder %s344, 3
        %s346 = scalar_select %p345, %s344, 3
        %s347 = smul.addr %s346, 2
        %s348 = scalar_lea.vmem %s4, %s347
        // Predicated region
        $region75: #{_lambda_.25} parent=69 // pred_check
          %p349 = pneg %p123
        $region76: #{_lambda_.25} parent=69 // pred_check_branch
          %351 = sbr.rel (%p349) target = $region78
        $region77: #{_lambda_.25} parent=69 // pred_region
          %s352 = smul.u32 2, %s16
        $region78: #{_lambda_.25} parent=69 // pred_fallthru
          _
      $region70: #{_lambda_.25} parent=5 // pred_fallthru
        _
      %p353 = scmp.le.s32.totalorder 2, %s11
      // Predicated region
      $region79: #{_lambda_.25} parent=5 // pred_check
        %p354 = pneg %p353
      $region80: #{_lambda_.25} parent=5 // pred_check_branch
        %356 = sbr.rel (%p354) target = $region82
      $region81: #{_lambda_.25} parent=5 // pred_region
        %s357 = ssub.s32 %s11, 2
        // Predicated region
        $region83: #{_lambda_.25} parent=81 // pred_check
          %p358 = pneg %p129
        $region84: #{_lambda_.25} parent=81 // pred_check_branch
          %360 = sbr.rel (%p358) target = $region86
        $region85: #{_lambda_.25} parent=81 // pred_region
          %s361 = smul.u32 2, %s17
          %p362 = scmp.lt.s32.totalorder %s361, 3
          %s363 = scalar_select %p362, %s361, 3
          %s364 = smul.addr %s363, 2
          %s365 = scalar_lea.vmem %s4, %s364
        $region86: #{_lambda_.25} parent=81 // pred_fallthru
          _
      $region82: #{_lambda_.25} parent=5 // pred_fallthru
        _
    $region6: #{_lambda_.25} parent=1 // loop_footer
      %s15 = sadd.s32 1, %s11
    $region7: #{_lambda_.25} parent=1 // loop_footer_branch
      %10 = sbr.rel target = $region3
    $region8: #{_lambda_.25} parent=1 // loop_exit
      _

</llo_original>
